<compile_context>
chip_gen: v7x
topology: tpu7x:2x2x1
jax: 0.10.0
libtpu: 0.0.40
codegen_flags: <defaults>
</compile_context>

<pallas_src>
import jax
import jax.numpy as jnp
from jax.experimental import pallas as pl
from jax.experimental.pallas import tpu as pltpu

EPS = 1e-5
LANES = 128


def _choose_bh(n, h, w, cp, budget_bytes=1 << 20):
    """Largest divisor of h whose (n, bh, w, cp) f32 output block fits budget."""
    best = 1
    for bh in range(1, h + 1):
        if h % bh == 0 and n * bh * w * cp * 4 <= budget_bytes:
            best = bh
    return best


def _make_kernel(N, H, W, CP, BH):
    inv_cnt = 1.0 / float(N * H * W)

    def kernel(xp_ref, w_ref, g_ref, b_ref, o_ref,
               sum_ref, sq_ref, scale_ref, bias_ref):
        # xp_ref : (N, H+2, W+2, CP) zero-padded input, VMEM-resident
        # w_ref  : (9, CP)  depthwise taps, row = kh*3 + kw
        # g_ref  : (1, CP)  gamma ; b_ref : (1, CP) beta
        # o_ref  : (N, BH, W, CP) output block
        # scratch: per-channel sum / sumsq / fused scale / fused bias
        p = pl.program_id(0)      # 0: conv + stats, 1: conv + normalize/write
        i = pl.program_id(1)      # H-block index
        row0 = i * BH

        @pl.when(jnp.logical_and(p == 0, i == 0))
        def _init_stats():
            sum_ref[...] = jnp.zeros_like(sum_ref)
            sq_ref[...] = jnp.zeros_like(sq_ref)

        wv = w_ref[...]                                     # (9, CP), load once

        # Padded row window for this block; the sliced axis is above the
        # sublane axis, so any dynamic offset is tile-aligned.
        xwin = xp_ref[:, pl.ds(row0, BH + 2), :, :]         # (N, BH+2, W+2, CP)

        # Hoist the three horizontal (kw) shifts; only kw = 1, 2 touch the
        # sublane axis with a misaligned offset, and only once per block each.
        xs = [xwin[:, :, kw:kw + W, :] for kw in range(3)]  # (N, BH+2, W, CP)

        # 3x3 depthwise conv as 9 shifted FMAs (pure VPU work; kh slices are
        # on a third-from-minor axis -> free).
        acc = jnp.zeros((N, BH, W, CP), jnp.float32)
        for kh in range(3):
            for kw in range(3):
                k = kh * 3 + kw
                tap = wv[k:k + 1, :].reshape(1, 1, 1, CP)
                acc = acc + xs[kw][:, kh:kh + BH, :, :] * tap

        @pl.when(p == 0)
        def _accumulate_stats():
            sum_ref[...] += jnp.sum(acc, axis=(0, 1, 2),
                                    keepdims=True).reshape(1, CP)
            sq_ref[...] += jnp.sum(acc * acc, axis=(0, 1, 2),
                                   keepdims=True).reshape(1, CP)

        @pl.when(jnp.logical_and(p == 1, i == 0))
        def _finalize_stats():
            mean = sum_ref[...] * inv_cnt
            var = jnp.maximum(sq_ref[...] * inv_cnt - mean * mean, 0.0)
            a = g_ref[...] * jax.lax.rsqrt(var + EPS)
            scale_ref[...] = a
            bias_ref[...] = b_ref[...] - mean * a

        @pl.when(p == 1)
        def _normalize_write():
            a = scale_ref[...].reshape(1, 1, 1, CP)
            b = bias_ref[...].reshape(1, 1, 1, CP)
            o_ref[...] = (acc * a + b).astype(o_ref.dtype)

    return kernel


@jax.jit
def dwconv_bn(x_nchw, weight, gamma, beta):
    """x_nchw: (N, C, H, W); weight: (C, 1, 3, 3); gamma/beta: (C,)."""
    N, C, H, W = x_nchw.shape
    CP = ((C + LANES - 1) // LANES) * LANES          # 72 -> 128, lane-dense

    # Layout glue kept in the wrapper (XLA fuses transpose + pad into one op):
    # NCHW -> NHWC, zero-pad spatial by 1 and channels up to CP.
    x_nhwc = jnp.transpose(x_nchw, (0, 2, 3, 1)).astype(jnp.float32)
    x_pad = jnp.pad(x_nhwc, ((0, 0), (1, 1), (1, 1), (0, CP - C)))

    # (C, 1, 3, 3) -> (9, CP); row kh*3+kw holds the per-channel tap.
    w = jnp.transpose(weight[:, 0, :, :], (1, 2, 0)).astype(jnp.float32)
    w = jnp.pad(w, ((0, 0), (0, 0), (0, CP - C))).reshape(9, CP)
    g = jnp.pad(gamma.astype(jnp.float32), (0, CP - C)).reshape(1, CP)
    b = jnp.pad(beta.astype(jnp.float32), (0, CP - C)).reshape(1, CP)

    BH = _choose_bh(N, H, W, CP)
    n_hb = H // BH
    kernel = _make_kernel(N, H, W, CP, BH)

    grid_spec = pltpu.PrefetchScalarGridSpec(
        num_scalar_prefetch=0,
        grid=(2, n_hb),                      # (pass, H-block), pass outermost
        in_specs=[
            # Full padded input, constant block index -> DMA'd once, resident.
            pl.BlockSpec((N, H + 2, W + 2, CP), lambda p, i: (0, 0, 0, 0)),
            pl.BlockSpec((9, CP), lambda p, i: (0, 0)),
            pl.BlockSpec((1, CP), lambda p, i: (0, 0)),
            pl.BlockSpec((1, CP), lambda p, i: (0, 0)),
        ],
        # p*i keeps the output block index frozen at 0 during the stats pass,
        # so nothing is flushed until pass 1 writes real data; every output
        # block hits HBM exactly once.
        out_specs=pl.BlockSpec((N, BH, W, CP), lambda p, i: (0, p * i, 0, 0)),
        scratch_shapes=[
            pltpu.VMEM((1, CP), jnp.float32),   # per-channel sum
            pltpu.VMEM((1, CP), jnp.float32),   # per-channel sum of squares
            pltpu.VMEM((1, CP), jnp.float32),   # fused scale a
            pltpu.VMEM((1, CP), jnp.float32),   # fused bias  b
        ],
    )

    out = pl.pallas_call(
        kernel,
        out_shape=jax.ShapeDtypeStruct((N, H, W, CP), jnp.float32),
        grid_spec=grid_spec,
        compiler_params=pltpu.CompilerParams(
            # Stats scratch carries across both grid axes -> sequential.
            dimension_semantics=("arbitrary", "arbitrary"),
            vmem_limit_bytes=32 * 1024 * 1024,
        ),
    )(x_pad, w, g, b)

    # Drop padded channels, NHWC -> NCHW to match PyTorch output convention.
    # TODO(synk): BatchNorm running_mean/running_var buffer updates (momentum
    # side effect) are not part of the returned tensor and are not emitted.
    return jnp.transpose(out[..., :C], (0, 3, 1, 2))


def _reference(x_nchw, weight, gamma, beta):
    """Plain-JAX reference: depthwise conv + training-mode batchnorm."""
    y = jax.lax.conv_general_dilated(
        x_nchw, weight,
        window_strides=(1, 1), padding=((1, 1), (1, 1)),
        dimension_numbers=("NCHW", "OIHW", "NCHW"),
        feature_group_count=x_nchw.shape[1],
    )
    mean = jnp.mean(y, axis=(0, 2, 3), keepdims=True)
    var = jnp.mean((y - mean) ** 2, axis=(0, 2, 3), keepdims=True)
    yhat = (y - mean) * jax.lax.rsqrt(var + EPS)
    return yhat * gamma.reshape(1, -1, 1, 1) + beta.reshape(1, -1, 1, 1)


if __name__ == "__main__":
    # Shapes from the module spec: x22 = randn(1, 72, 56, 56); C fixed at 72.
    N, C, H, W = 1, 72, 56, 56

    key = jax.random.PRNGKey(0)
    kx, kwt, kg, kb = jax.random.split(key, 4)
    x = jax.random.normal(kx, (N, C, H, W), jnp.float32)
    weight = jax.random.normal(kwt, (C, 1, 3, 3), jnp.float32) * 0.1
    # PyTorch BatchNorm2d init is gamma=1, beta=0; perturb deterministically so
    # the affine path is exercised.
    gamma = 1.0 + 0.05 * jax.random.normal(kg, (C,), jnp.float32)
    beta = 0.05 * jax.random.normal(kb, (C,), jnp.float32)

    out = jax.block_until_ready(dwconv_bn(x, weight, gamma, beta))
    ref = jax.block_until_ready(_reference(x, weight, gamma, beta))

    assert out.shape == (N, C, H, W)
    assert jnp.allclose(out, ref, rtol=2e-3, atol=2e-3), "mismatch vs reference"
    print("KERNEL_OK")
</pallas_src>

<mosaic_0001>
module attributes {stable_mosaic.version = 11 : i64} {
  func.func @kernel(%arg0: i32, %arg1: i32, %arg2: memref<1x58x58x128xf32, #tpu.memory_space<vmem>>, %arg3: memref<9x128xf32, #tpu.memory_space<vmem>>, %arg4: memref<1x128xf32, #tpu.memory_space<vmem>>, %arg5: memref<1x128xf32, #tpu.memory_space<vmem>>, %arg6: memref<1x28x56x128xf32, #tpu.memory_space<vmem>>, %arg7: memref<1x128xf32, #tpu.memory_space<vmem>>, %arg8: memref<1x128xf32, #tpu.memory_space<vmem>>, %arg9: memref<1x128xf32, #tpu.memory_space<vmem>>, %arg10: memref<1x128xf32, #tpu.memory_space<vmem>>) attributes {dimension_semantics = [#tpu.dimension_semantics<arbitrary>, #tpu.dimension_semantics<arbitrary>], iteration_bounds = array<i64: 2, 2>, scalar_prefetch = 0 : i64, scratch_operands = 4 : i64, tpu.core_type = #tpu.core_type<tc>, window_params = [{pipeline_mode = #tpu.pipeline_mode<synchronous>, transform_indices = @transform_0, window_bounds = array<i64: 1, 58, 58, 128>}, {pipeline_mode = #tpu.pipeline_mode<synchronous>, transform_indices = @transform_1, window_bounds = array<i64: 9, 128>}, {pipeline_mode = #tpu.pipeline_mode<synchronous>, transform_indices = @transform_2, window_bounds = array<i64: 1, 128>}, {pipeline_mode = #tpu.pipeline_mode<synchronous>, transform_indices = @transform_3, window_bounds = array<i64: 1, 128>}, {transform_indices = @transform_4, window_bounds = array<i64: 1, 28, 56, 128>}]} {
    %c28_i32 = arith.constant 28 : i32
    %0 = arith.muli %arg1, %c28_i32 : i32
    %c0_i32 = arith.constant 0 : i32
    %1 = arith.cmpi eq, %arg0, %c0_i32 : i32
    %c0_i32_0 = arith.constant 0 : i32
    %2 = arith.cmpi eq, %arg1, %c0_i32_0 : i32
    %3 = arith.andi %1, %2 : i1
    %4 = arith.extui %3 : i1 to i32
    %c0_i32_1 = arith.constant 0 : i32
    %5 = arith.cmpi ne, %4, %c0_i32_1 : i32
    scf.if %5 {
      %cst_12 = arith.constant 0.000000e+00 : f32
      %78 = vector.broadcast %cst_12 : f32 to vector<1x128xf32>
      %c0_13 = arith.constant 0 : index
      %c0_14 = arith.constant 0 : index
      %79 = vector.load %arg7[%c0_13, %c0_14] : memref<1x128xf32, #tpu.memory_space<vmem>>, vector<1x128xf32>
      tpu.vector_store %arg7[%c0_13, %c0_14], %78 {strides = array<i32>} : memref<1x128xf32, #tpu.memory_space<vmem>>, vector<1x128xf32>,
      %cst_15 = arith.constant 0.000000e+00 : f32
      %80 = vector.broadcast %cst_15 : f32 to vector<1x128xf32>
      %c0_16 = arith.constant 0 : index
      %c0_17 = arith.constant 0 : index
      %81 = vector.load %arg8[%c0_16, %c0_17] : memref<1x128xf32, #tpu.memory_space<vmem>>, vector<1x128xf32>
      tpu.vector_store %arg8[%c0_16, %c0_17], %80 {strides = array<i32>} : memref<1x128xf32, #tpu.memory_space<vmem>>, vector<1x128xf32>,
    } else {
    }
    %c0 = arith.constant 0 : index
    %c0_2 = arith.constant 0 : index
    %6 = vector.load %arg3[%c0, %c0_2] : memref<9x128xf32, #tpu.memory_space<vmem>>, vector<9x128xf32>
    %c0_3 = arith.constant 0 : index
    %7 = arith.index_cast %0 : i32 to index
    %c0_4 = arith.constant 0 : index
    %c0_5 = arith.constant 0 : index
    %8 = vector.load %arg2[%c0_3, %7, %c0_4, %c0_5] : memref<1x58x58x128xf32, #tpu.memory_space<vmem>>, vector<1x30x58x128xf32>
    %9 = vector.extract_strided_slice %8 {offsets = [0, 0, 0, 0], sizes = [1, 30, 56, 128], strides = [1, 1, 1, 1]} : vector<1x30x58x128xf32> to vector<1x30x56x128xf32>
    %10 = vector.extract_strided_slice %8 {offsets = [0, 0, 1, 0], sizes = [1, 30, 56, 128], strides = [1, 1, 1, 1]} : vector<1x30x58x128xf32> to vector<1x30x56x128xf32>
    %11 = vector.extract_strided_slice %8 {offsets = [0, 0, 2, 0], sizes = [1, 30, 56, 128], strides = [1, 1, 1, 1]} : vector<1x30x58x128xf32> to vector<1x30x56x128xf32>
    %cst = arith.constant 0.000000e+00 : f32
    %12 = vector.broadcast %cst : f32 to vector<1x28x56x128xf32>
    %13 = vector.extract_strided_slice %6 {offsets = [0, 0], sizes = [1, 128], strides = [1, 1]} : vector<9x128xf32> to vector<1x128xf32>
    %14 = vector.shape_cast %13 : vector<1x128xf32> to vector<1x1x1x128xf32>
    %15 = vector.extract_strided_slice %9 {offsets = [0, 0, 0, 0], sizes = [1, 28, 56, 128], strides = [1, 1, 1, 1]} : vector<1x30x56x128xf32> to vector<1x28x56x128xf32>
    %16 = vector.broadcast %14 : vector<1x1x1x128xf32> to vector<1x28x56x128xf32>
    %17 = arith.mulf %15, %16 : vector<1x28x56x128xf32>
    %18 = arith.addf %12, %17 : vector<1x28x56x128xf32>
    %19 = vector.extract_strided_slice %6 {offsets = [1, 0], sizes = [1, 128], strides = [1, 1]} : vector<9x128xf32> to vector<1x128xf32>
    %20 = vector.shape_cast %19 : vector<1x128xf32> to vector<1x1x1x128xf32>
    %21 = vector.extract_strided_slice %10 {offsets = [0, 0, 0, 0], sizes = [1, 28, 56, 128], strides = [1, 1, 1, 1]} : vector<1x30x56x128xf32> to vector<1x28x56x128xf32>
    %22 = vector.broadcast %20 : vector<1x1x1x128xf32> to vector<1x28x56x128xf32>
    %23 = arith.mulf %21, %22 : vector<1x28x56x128xf32>
    %24 = arith.addf %18, %23 : vector<1x28x56x128xf32>
    %25 = vector.extract_strided_slice %6 {offsets = [2, 0], sizes = [1, 128], strides = [1, 1]} : vector<9x128xf32> to vector<1x128xf32>
    %26 = vector.shape_cast %25 : vector<1x128xf32> to vector<1x1x1x128xf32>
    %27 = vector.extract_strided_slice %11 {offsets = [0, 0, 0, 0], sizes = [1, 28, 56, 128], strides = [1, 1, 1, 1]} : vector<1x30x56x128xf32> to vector<1x28x56x128xf32>
    %28 = vector.broadcast %26 : vector<1x1x1x128xf32> to vector<1x28x56x128xf32>
    %29 = arith.mulf %27, %28 : vector<1x28x56x128xf32>
    %30 = arith.addf %24, %29 : vector<1x28x56x128xf32>
    %31 = vector.extract_strided_slice %6 {offsets = [3, 0], sizes = [1, 128], strides = [1, 1]} : vector<9x128xf32> to vector<1x128xf32>
    %32 = vector.shape_cast %31 : vector<1x128xf32> to vector<1x1x1x128xf32>
    %33 = vector.extract_strided_slice %9 {offsets = [0, 1, 0, 0], sizes = [1, 28, 56, 128], strides = [1, 1, 1, 1]} : vector<1x30x56x128xf32> to vector<1x28x56x128xf32>
    %34 = vector.broadcast %32 : vector<1x1x1x128xf32> to vector<1x28x56x128xf32>
    %35 = arith.mulf %33, %34 : vector<1x28x56x128xf32>
    %36 = arith.addf %30, %35 : vector<1x28x56x128xf32>
    %37 = vector.extract_strided_slice %6 {offsets = [4, 0], sizes = [1, 128], strides = [1, 1]} : vector<9x128xf32> to vector<1x128xf32>
    %38 = vector.shape_cast %37 : vector<1x128xf32> to vector<1x1x1x128xf32>
    %39 = vector.extract_strided_slice %10 {offsets = [0, 1, 0, 0], sizes = [1, 28, 56, 128], strides = [1, 1, 1, 1]} : vector<1x30x56x128xf32> to vector<1x28x56x128xf32>
    %40 = vector.broadcast %38 : vector<1x1x1x128xf32> to vector<1x28x56x128xf32>
    %41 = arith.mulf %39, %40 : vector<1x28x56x128xf32>
    %42 = arith.addf %36, %41 : vector<1x28x56x128xf32>
    %43 = vector.extract_strided_slice %6 {offsets = [5, 0], sizes = [1, 128], strides = [1, 1]} : vector<9x128xf32> to vector<1x128xf32>
    %44 = vector.shape_cast %43 : vector<1x128xf32> to vector<1x1x1x128xf32>
    %45 = vector.extract_strided_slice %11 {offsets = [0, 1, 0, 0], sizes = [1, 28, 56, 128], strides = [1, 1, 1, 1]} : vector<1x30x56x128xf32> to vector<1x28x56x128xf32>
    %46 = vector.broadcast %44 : vector<1x1x1x128xf32> to vector<1x28x56x128xf32>
    %47 = arith.mulf %45, %46 : vector<1x28x56x128xf32>
    %48 = arith.addf %42, %47 : vector<1x28x56x128xf32>
    %49 = vector.extract_strided_slice %6 {offsets = [6, 0], sizes = [1, 128], strides = [1, 1]} : vector<9x128xf32> to vector<1x128xf32>
    %50 = vector.shape_cast %49 : vector<1x128xf32> to vector<1x1x1x128xf32>
    %51 = vector.extract_strided_slice %9 {offsets = [0, 2, 0, 0], sizes = [1, 28, 56, 128], strides = [1, 1, 1, 1]} : vector<1x30x56x128xf32> to vector<1x28x56x128xf32>
    %52 = vector.broadcast %50 : vector<1x1x1x128xf32> to vector<1x28x56x128xf32>
    %53 = arith.mulf %51, %52 : vector<1x28x56x128xf32>
    %54 = arith.addf %48, %53 : vector<1x28x56x128xf32>
    %55 = vector.extract_strided_slice %6 {offsets = [7, 0], sizes = [1, 128], strides = [1, 1]} : vector<9x128xf32> to vector<1x128xf32>
    %56 = vector.shape_cast %55 : vector<1x128xf32> to vector<1x1x1x128xf32>
    %57 = vector.extract_strided_slice %10 {offsets = [0, 2, 0, 0], sizes = [1, 28, 56, 128], strides = [1, 1, 1, 1]} : vector<1x30x56x128xf32> to vector<1x28x56x128xf32>
    %58 = vector.broadcast %56 : vector<1x1x1x128xf32> to vector<1x28x56x128xf32>
    %59 = arith.mulf %57, %58 : vector<1x28x56x128xf32>
    %60 = arith.addf %54, %59 : vector<1x28x56x128xf32>
    %61 = vector.extract_strided_slice %6 {offsets = [8, 0], sizes = [1, 128], strides = [1, 1]} : vector<9x128xf32> to vector<1x128xf32>
    %62 = vector.shape_cast %61 : vector<1x128xf32> to vector<1x1x1x128xf32>
    %63 = vector.extract_strided_slice %11 {offsets = [0, 2, 0, 0], sizes = [1, 28, 56, 128], strides = [1, 1, 1, 1]} : vector<1x30x56x128xf32> to vector<1x28x56x128xf32>
    %64 = vector.broadcast %62 : vector<1x1x1x128xf32> to vector<1x28x56x128xf32>
    %65 = arith.mulf %63, %64 : vector<1x28x56x128xf32>
    %66 = arith.addf %60, %65 : vector<1x28x56x128xf32>
    %c0_i32_6 = arith.constant 0 : i32
    %67 = arith.cmpi eq, %arg0, %c0_i32_6 : i32
    %68 = arith.extui %67 : i1 to i32
    %c0_i32_7 = arith.constant 0 : i32
    %69 = arith.cmpi ne, %68, %c0_i32_7 : i32
    scf.if %69 {
      %c0_12 = arith.constant 0 : index
      %c0_13 = arith.constant 0 : index
      %78 = vector.load %arg7[%c0_12, %c0_13] : memref<1x128xf32, #tpu.memory_space<vmem>>, vector<1x128xf32>
      %cst_14 = arith.constant dense<0.000000e+00> : vector<128xf32>
      %79 = vector.multi_reduction <add>, %66, %cst_14 [0, 1, 2] : vector<1x28x56x128xf32> to vector<128xf32>
      %80 = vector.shape_cast %79 : vector<128xf32> to vector<1x1x1x128xf32>
      %81 = vector.shape_cast %80 : vector<1x1x1x128xf32> to vector<1x128xf32>
      %82 = arith.addf %78, %81 : vector<1x128xf32>
      %c0_15 = arith.constant 0 : index
      %c0_16 = arith.constant 0 : index
      %83 = vector.load %arg7[%c0_15, %c0_16] : memref<1x128xf32, #tpu.memory_space<vmem>>, vector<1x128xf32>
      tpu.vector_store %arg7[%c0_15, %c0_16], %82 {strides = array<i32>} : memref<1x128xf32, #tpu.memory_space<vmem>>, vector<1x128xf32>,
      %c0_17 = arith.constant 0 : index
      %c0_18 = arith.constant 0 : index
      %84 = vector.load %arg8[%c0_17, %c0_18] : memref<1x128xf32, #tpu.memory_space<vmem>>, vector<1x128xf32>
      %85 = arith.mulf %66, %66 : vector<1x28x56x128xf32>
      %cst_19 = arith.constant dense<0.000000e+00> : vector<128xf32>
      %86 = vector.multi_reduction <add>, %85, %cst_19 [0, 1, 2] : vector<1x28x56x128xf32> to vector<128xf32>
      %87 = vector.shape_cast %86 : vector<128xf32> to vector<1x1x1x128xf32>
      %88 = vector.shape_cast %87 : vector<1x1x1x128xf32> to vector<1x128xf32>
      %89 = arith.addf %84, %88 : vector<1x128xf32>
      %c0_20 = arith.constant 0 : index
      %c0_21 = arith.constant 0 : index
      %90 = vector.load %arg8[%c0_20, %c0_21] : memref<1x128xf32, #tpu.memory_space<vmem>>, vector<1x128xf32>
      tpu.vector_store %arg8[%c0_20, %c0_21], %89 {strides = array<i32>} : memref<1x128xf32, #tpu.memory_space<vmem>>, vector<1x128xf32>,
    } else {
    }
    %c1_i32 = arith.constant 1 : i32
    %70 = arith.cmpi eq, %arg0, %c1_i32 : i32
    %c0_i32_8 = arith.constant 0 : i32
    %71 = arith.cmpi eq, %arg1, %c0_i32_8 : i32
    %72 = arith.andi %70, %71 : i1
    %73 = arith.extui %72 : i1 to i32
    %c0_i32_9 = arith.constant 0 : i32
    %74 = arith.cmpi ne, %73, %c0_i32_9 : i32
    scf.if %74 {
      %c0_12 = arith.constant 0 : index
      %c0_13 = arith.constant 0 : index
      %78 = vector.load %arg7[%c0_12, %c0_13] : memref<1x128xf32, #tpu.memory_space<vmem>>, vector<1x128xf32>
      %cst_14 = arith.constant 3.18877544E-4 : f32
      %79 = vector.broadcast %cst_14 : f32 to vector<1x128xf32>
      %80 = arith.mulf %78, %79 : vector<1x128xf32>
      %c0_15 = arith.constant 0 : index
      %c0_16 = arith.constant 0 : index
      %81 = vector.load %arg8[%c0_15, %c0_16] : memref<1x128xf32, #tpu.memory_space<vmem>>, vector<1x128xf32>
      %cst_17 = arith.constant 3.18877544E-4 : f32
      %82 = vector.broadcast %cst_17 : f32 to vector<1x128xf32>
      %83 = arith.mulf %81, %82 : vector<1x128xf32>
      %84 = arith.mulf %80, %80 : vector<1x128xf32>
      %85 = arith.subf %83, %84 : vector<1x128xf32>
      %cst_18 = arith.constant 0.000000e+00 : f32
      %86 = vector.broadcast %cst_18 : f32 to vector<1x128xf32>
      %87 = arith.maximumf %85, %86 : vector<1x128xf32>
      %c0_19 = arith.constant 0 : index
      %c0_20 = arith.constant 0 : index
      %88 = vector.load %arg4[%c0_19, %c0_20] : memref<1x128xf32, #tpu.memory_space<vmem>>, vector<1x128xf32>
      %cst_21 = arith.constant 9.99999974E-6 : f32
      %89 = vector.broadcast %cst_21 : f32 to vector<1x128xf32>
      %90 = arith.addf %87, %89 : vector<1x128xf32>
      %91 = math.rsqrt %90 : vector<1x128xf32>
      %92 = arith.mulf %88, %91 : vector<1x128xf32>
      %c0_22 = arith.constant 0 : index
      %c0_23 = arith.constant 0 : index
      %93 = vector.load %arg9[%c0_22, %c0_23] : memref<1x128xf32, #tpu.memory_space<vmem>>, vector<1x128xf32>
      tpu.vector_store %arg9[%c0_22, %c0_23], %92 {strides = array<i32>} : memref<1x128xf32, #tpu.memory_space<vmem>>, vector<1x128xf32>,
      %c0_24 = arith.constant 0 : index
      %c0_25 = arith.constant 0 : index
      %94 = vector.load %arg5[%c0_24, %c0_25] : memref<1x128xf32, #tpu.memory_space<vmem>>, vector<1x128xf32>
      %95 = arith.mulf %80, %92 : vector<1x128xf32>
      %96 = arith.subf %94, %95 : vector<1x128xf32>
      %c0_26 = arith.constant 0 : index
      %c0_27 = arith.constant 0 : index
      %97 = vector.load %arg10[%c0_26, %c0_27] : memref<1x128xf32, #tpu.memory_space<vmem>>, vector<1x128xf32>
      tpu.vector_store %arg10[%c0_26, %c0_27], %96 {strides = array<i32>} : memref<1x128xf32, #tpu.memory_space<vmem>>, vector<1x128xf32>,
    } else {
    }
    %c1_i32_10 = arith.constant 1 : i32
    %75 = arith.cmpi eq, %arg0, %c1_i32_10 : i32
    %76 = arith.extui %75 : i1 to i32
    %c0_i32_11 = arith.constant 0 : i32
    %77 = arith.cmpi ne, %76, %c0_i32_11 : i32
    scf.if %77 {
      %c0_12 = arith.constant 0 : index
      %c0_13 = arith.constant 0 : index
      %78 = vector.load %arg9[%c0_12, %c0_13] : memref<1x128xf32, #tpu.memory_space<vmem>>, vector<1x128xf32>
      %79 = vector.shape_cast %78 : vector<1x128xf32> to vector<1x1x1x128xf32>
      %c0_14 = arith.constant 0 : index
      %c0_15 = arith.constant 0 : index
      %80 = vector.load %arg10[%c0_14, %c0_15] : memref<1x128xf32, #tpu.memory_space<vmem>>, vector<1x128xf32>
      %81 = vector.shape_cast %80 : vector<1x128xf32> to vector<1x1x1x128xf32>
      %82 = vector.broadcast %79 : vector<1x1x1x128xf32> to vector<1x28x56x128xf32>
      %83 = arith.mulf %66, %82 : vector<1x28x56x128xf32>
      %84 = vector.broadcast %81 : vector<1x1x1x128xf32> to vector<1x28x56x128xf32>
      %85 = arith.addf %83, %84 : vector<1x28x56x128xf32>
      %c0_16 = arith.constant 0 : index
      %c0_17 = arith.constant 0 : index
      %c0_18 = arith.constant 0 : index
      %c0_19 = arith.constant 0 : index
      %86 = vector.load %arg6[%c0_16, %c0_17, %c0_18, %c0_19] : memref<1x28x56x128xf32, #tpu.memory_space<vmem>>, vector<1x28x56x128xf32>
      tpu.vector_store %arg6[%c0_16, %c0_17, %c0_18, %c0_19], %85 {strides = array<i32>} : memref<1x28x56x128xf32, #tpu.memory_space<vmem>>, vector<1x28x56x128xf32>,
    } else {
    }
    return
  }
  func.func @transform_0(%arg0: i32, %arg1: i32) -> (i32, i32, i32, i32) {
    %c0_i32 = arith.constant 0 : i32
    %c0_i32_0 = arith.constant 0 : i32
    %c0_i32_1 = arith.constant 0 : i32
    %c0_i32_2 = arith.constant 0 : i32
    %c0_i32_3 = arith.constant 0 : i32
    return %c0_i32, %c0_i32_0, %c0_i32_1, %c0_i32_2 : i32, i32, i32, i32
  }
  func.func @transform_1(%arg0: i32, %arg1: i32) -> (i32, i32) {
    %c0_i32 = arith.constant 0 : i32
    %c0_i32_0 = arith.constant 0 : i32
    %c0_i32_1 = arith.constant 0 : i32
    return %c0_i32, %c0_i32_0 : i32, i32
  }
  func.func @transform_2(%arg0: i32, %arg1: i32) -> (i32, i32) {
    %c0_i32 = arith.constant 0 : i32
    %c0_i32_0 = arith.constant 0 : i32
    %c0_i32_1 = arith.constant 0 : i32
    return %c0_i32, %c0_i32_0 : i32, i32
  }
  func.func @transform_3(%arg0: i32, %arg1: i32) -> (i32, i32) {
    %c0_i32 = arith.constant 0 : i32
    %c0_i32_0 = arith.constant 0 : i32
    %c0_i32_1 = arith.constant 0 : i32
    return %c0_i32, %c0_i32_0 : i32, i32
  }
  func.func @transform_4(%arg0: i32, %arg1: i32) -> (i32, i32, i32, i32) {
    %0 = arith.muli %arg0, %arg1 : i32
    %c0_i32 = arith.constant 0 : i32
    %c0_i32_0 = arith.constant 0 : i32
    %c0_i32_1 = arith.constant 0 : i32
    %c0_i32_2 = arith.constant 0 : i32
    return %c0_i32, %0, %c0_i32_0, %c0_i32_1 : i32, i32, i32, i32
  }
}

</mosaic_0001>

<llo_original>
// kernel: dwconv_bn.1
$region0: #{dwconv_bn.1}
  #allocation0 [shape = 'u32[]', space=smem, size = 0x4, offset = 0x4, fixed_abs, tag = 'smem constant byte address 0x4 - core index']
  #allocation1 [shape = 'u32[144,128]{1,0:T(1,128)}', space=vmem, size = 0x12000, scoped, tag = 'internal scratch']
  #allocation2 [shape = 'f32[1,128]{1,0:T(1,128)}', space=vmem, size = 0x200, scoped, tag = 'scratch operand']
  #allocation3 [shape = 'f32[1,128]{1,0:T(1,128)}', space=vmem, size = 0x200, scoped, tag = 'scratch operand']
  #allocation4 [shape = 'f32[1,128]{1,0:T(1,128)}', space=vmem, size = 0x200, scoped, tag = 'scratch operand']
  #allocation5 [shape = 'f32[1,128]{1,0:T(1,128)}', space=vmem, size = 0x200, scoped, tag = 'scratch operand']
  %s0 = inlined_call_operand.vmem [shape: f32[1,58,58,128], index: 0, kind: input, shape index: {}]
  %s1 = inlined_call_operand.vmem [shape: f32[9,128], index: 1, kind: input, shape index: {}]
  %s2 = inlined_call_operand.vmem [shape: f32[1,128], index: 2, kind: input, shape index: {}]
  %s3 = inlined_call_operand.vmem [shape: f32[1,128], index: 3, kind: input, shape index: {}]
  %s4 = inlined_call_operand.vmem [shape: f32[1,56,56,128], index: 4, kind: output, shape index: {}]
  %s5 = sld [smem:[#allocation0]]
  $region65: #{dwconv_bn.1} parent=0
    _
  %s7 = ssub.s32 1, %s5
  %s8 = scalar_select 0, %s7, %s5
  loop: start=0, step=1, limit=6
  $region2: #{dwconv_bn.1} parent=0 // loop_pre_header
    _
  $region3: #{dwconv_bn.1} parent=0 // loop_header
    %s10 = sphi 0, %s14
    %p11 = scmp.ge.s32.totalorder %s10, 6
    %s17 = sphi 0, %s29
    %s18 = sphi 0, %s25
    %s19 = sphi 0, %s17
    %s20 = sphi 0, %s18
    %s21 = sphi 0, %s19
    %s22 = sphi 0, %s20
    %s30 = sphi 0, %s30
    %s32 = sphi 0, %s30
    %s33 = sphi 0, %s32
    %s47 = sphi 0, %s33
    %s51 = sphi 0, %s51
    %s53 = sphi 0, %s51
    %s54 = sphi 0, %s53
    %s68 = sphi 0, %s54
    %s72 = sphi 0, %s72
    %s74 = sphi 0, %s72
    %s75 = sphi 0, %s74
    %s89 = sphi 0, %s75
    %s93 = sphi 0, %s93
    %s95 = sphi 0, %s93
    %s96 = sphi 0, %s95
    %s110 = sphi 0, %s96
    %s118 = sphi 0, %s120
    %s121 = sphi 0, %s118
    %s122 = sphi 0, %s121
    %s138 = sphi 0, %s122
  $region4: #{dwconv_bn.1} parent=0 // loop_header_branch
    %13 = sbr.rel (%p11) target = $region8
  $region5: #{dwconv_bn.1} parent=0 // loop_body
    %s15 = ssub.s32 %s10, 1
    %s16 = ssub.s32 %s10, 2
    %s23 = sadd.s32 1, %s18
    %p24 = scmp.ge.s32.totalorder %s23, 2
    %s25 = scalar_select %p24, 0, %s23
    %s26 = sadd.s32 1, %s17
    %s27 = scalar_select %p24, %s26, %s17
    %p28 = scmp.ge.s32.totalorder %s27, 2
    %s29 = scalar_select %p28, 0, %s27
    %s31 = sadd.s32 %s30, 1
    %p34 = scmp.eq.s32.totalorder %s10, 3
    %p35 = scmp.ne.s32.totalorder %s30, %s32
    %p36 = scmp.eq.s32.totalorder %s10, 0
    %p37 = por %p35, %p36
    %p38 = scmp.ne.s32.totalorder %s30, %s32
    %p39 = scmp.eq.s32.totalorder %s15, 3
    %p40 = por %p38, %p39
    %p41 = scmp.ne.s32.totalorder %s32, %s33
    %p42 = scmp.eq.s32.totalorder %s15, 0
    %p43 = por %p41, %p42
    %p44 = scmp.ne.s32.totalorder %s32, %s33
    %p45 = scmp.eq.s32.totalorder %s16, 3
    %p46 = por %p44, %p45
    %p48 = scmp.ne.s32.totalorder %s33, %s47
    %p49 = scmp.eq.s32.totalorder %s16, 0
    %p50 = por %p48, %p49
    %s52 = sadd.s32 %s51, 1
    %p55 = scmp.eq.s32.totalorder %s10, 3
    %p56 = scmp.ne.s32.totalorder %s51, %s53
    %p57 = scmp.eq.s32.totalorder %s10, 0
    %p58 = por %p56, %p57
    %p59 = scmp.ne.s32.totalorder %s51, %s53
    %p60 = scmp.eq.s32.totalorder %s15, 3
    %p61 = por %p59, %p60
    %p62 = scmp.ne.s32.totalorder %s53, %s54
    %p63 = scmp.eq.s32.totalorder %s15, 0
    %p64 = por %p62, %p63
    %p65 = scmp.ne.s32.totalorder %s53, %s54
    %p66 = scmp.eq.s32.totalorder %s16, 3
    %p67 = por %p65, %p66
    %p69 = scmp.ne.s32.totalorder %s54, %s68
    %p70 = scmp.eq.s32.totalorder %s16, 0
    %p71 = por %p69, %p70
    %s73 = sadd.s32 %s72, 1
    %p76 = scmp.eq.s32.totalorder %s10, 3
    %p77 = scmp.ne.s32.totalorder %s72, %s74
    %p78 = scmp.eq.s32.totalorder %s10, 0
    %p79 = por %p77, %p78
    %p80 = scmp.ne.s32.totalorder %s72, %s74
    %p81 = scmp.eq.s32.totalorder %s15, 3
    %p82 = por %p80, %p81
    %p83 = scmp.ne.s32.totalorder %s74, %s75
    %p84 = scmp.eq.s32.totalorder %s15, 0
    %p85 = por %p83, %p84
    %p86 = scmp.ne.s32.totalorder %s74, %s75
    %p87 = scmp.eq.s32.totalorder %s16, 3
    %p88 = por %p86, %p87
    %p90 = scmp.ne.s32.totalorder %s75, %s89
    %p91 = scmp.eq.s32.totalorder %s16, 0
    %p92 = por %p90, %p91
    %s94 = sadd.s32 %s93, 1
    %p97 = scmp.eq.s32.totalorder %s10, 3
    %p98 = scmp.ne.s32.totalorder %s93, %s95
    %p99 = scmp.eq.s32.totalorder %s10, 0
    %p100 = por %p98, %p99
    %p101 = scmp.ne.s32.totalorder %s93, %s95
    %p102 = scmp.eq.s32.totalorder %s15, 3
    %p103 = por %p101, %p102
    %p104 = scmp.ne.s32.totalorder %s95, %s96
    %p105 = scmp.eq.s32.totalorder %s15, 0
    %p106 = por %p104, %p105
    %p107 = scmp.ne.s32.totalorder %s95, %s96
    %p108 = scmp.eq.s32.totalorder %s16, 3
    %p109 = por %p107, %p108
    %p111 = scmp.ne.s32.totalorder %s96, %s110
    %p112 = scmp.eq.s32.totalorder %s16, 0
    %p113 = por %p111, %p112
    %s114 = smul.u32 %s17, %s18
    %s115 = smul.u32 %s29, %s25
    %s116 = ssub.s32 %s114, %s115
    %p117 = scmp.eq.s32.totalorder %s116, 0
    %s119 = sadd.s32 %s118, 1
    %s120 = scalar_select %p117, %s118, %s119
    %p123 = pneg %p117
    %p124 = scmp.eq.s32.totalorder %s10, 3
    %p125 = por %p123, %p124
    %p126 = scmp.ne.s32.totalorder %s118, %s121
    %p127 = scmp.eq.s32.totalorder %s10, 0
    %p128 = por %p126, %p127
    %p129 = scmp.ne.s32.totalorder %s118, %s121
    %p130 = scmp.eq.s32.totalorder %s15, 3
    %p131 = por %p129, %p130
    %p132 = scmp.ne.s32.totalorder %s121, %s122
    %p133 = scmp.eq.s32.totalorder %s15, 0
    %p134 = por %p132, %p133
    %p135 = scmp.ne.s32.totalorder %s121, %s122
    %p136 = scmp.eq.s32.totalorder %s16, 3
    %p137 = por %p135, %p136
    %p139 = scmp.ne.s32.totalorder %s122, %s138
    %p140 = scmp.eq.s32.totalorder %s16, 0
    %p141 = por %p139, %p140
    %p142 = scmp.le.s32.totalorder 1, %s10
    %p143 = scmp.lt.s32.totalorder %s10, 5
    %p144 = pnand %p142, %p143
    %p145 = pneg %p144
    // Predicated region
    $region9: #{dwconv_bn.1} parent=5 // pred_check
      _
    $region10: #{dwconv_bn.1} parent=5 // pred_check_branch
      %147 = sbr.rel (%p144) target = $region12
    $region11: #{dwconv_bn.1} parent=5 // pred_region
      %s148 = ssub.s32 %s10, 1
      // Predicated region
      $region13: #{dwconv_bn.1} parent=11 // pred_check
        %p149 = pneg %p43
      $region14: #{dwconv_bn.1} parent=11 // pred_check_branch
        %151 = sbr.rel (%p149) target = $region16
      $region15: #{dwconv_bn.1} parent=11 // pred_region
        _
      $region16: #{dwconv_bn.1} parent=11 // pred_fallthru
        _
      // Predicated region
      $region17: #{dwconv_bn.1} parent=11 // pred_check
        %p152 = pneg %p64
      $region18: #{dwconv_bn.1} parent=11 // pred_check_branch
        %154 = sbr.rel (%p152) target = $region20
      $region19: #{dwconv_bn.1} parent=11 // pred_region
        _
      $region20: #{dwconv_bn.1} parent=11 // pred_fallthru
        _
      // Predicated region
      $region21: #{dwconv_bn.1} parent=11 // pred_check
        %p155 = pneg %p85
      $region22: #{dwconv_bn.1} parent=11 // pred_check_branch
        %157 = sbr.rel (%p155) target = $region24
      $region23: #{dwconv_bn.1} parent=11 // pred_region
        _
      $region24: #{dwconv_bn.1} parent=11 // pred_fallthru
        _
      // Predicated region
      $region25: #{dwconv_bn.1} parent=11 // pred_check
        %p158 = pneg %p106
      $region26: #{dwconv_bn.1} parent=11 // pred_check_branch
        %160 = sbr.rel (%p158) target = $region28
      $region27: #{dwconv_bn.1} parent=11 // pred_region
        _
      $region28: #{dwconv_bn.1} parent=11 // pred_fallthru
        _
    $region12: #{dwconv_bn.1} parent=5 // pred_fallthru
      _
    %p161 = scmp.lt.s32.totalorder %s10, 4
    // Predicated region
    $region29: #{dwconv_bn.1} parent=5 // pred_check
      %p162 = pneg %p161
    $region30: #{dwconv_bn.1} parent=5 // pred_check_branch
      %164 = sbr.rel (%p162) target = $region32
    $region31: #{dwconv_bn.1} parent=5 // pred_region
      _
    $region32: #{dwconv_bn.1} parent=5 // pred_fallthru
      _
    %p165 = scmp.le.s32.totalorder 1, %s10
    %p166 = scmp.lt.s32.totalorder %s10, 5
    %p167 = pnand %p165, %p166
    %p168 = pneg %p167
    // Predicated region
    $region33: #{dwconv_bn.1} parent=5 // pred_check
      _
    $region34: #{dwconv_bn.1} parent=5 // pred_check_branch
      %170 = sbr.rel (%p167) target = $region36
    $region35: #{dwconv_bn.1} parent=5 // pred_region
      %s171 = ssub.s32 %s10, 1
      %p172 = pneg %p43
      %p173 = pneg %p40
      %p174 = pneg %p64
      %p175 = pneg %p61
      %p176 = pneg %p85
      %p177 = pneg %p82
      %p178 = pneg %p106
      %p179 = pneg %p103
      %p180 = pneg %p134
      %p181 = pneg %p131
      %s182 = smul.u32 %s19, %s20
      %s183 = smul.u32 28, %s182
      %p184 = scmp.lt.s32.totalorder %s183, 55
      %s185 = scalar_select %p184, %s183, 55
      %s186 = smul.addr %s185, 7
      %s187 = smul.addr %s186, 8
      %s188 = scalar_lea.vmem %s4, %s187
      %s189 = smul.u32 %s19, %s20
      %s190 = smul.u32 28, %s189
      %p191 = scmp.lt.s32.totalorder %s190, 55
      %s192 = scalar_select %p191, %s190, 55
      %s193 = smul.addr %s192, 7
      %s194 = smul.addr %s193, 8
      %s195 = scalar_lea.vmem %s4, %s194
      %s196 = smul.u32 %s19, %s20
      %s197 = smul.u32 28, %s196
      %s198 = smul.u32 %s20, 28
      %p199 = scmp.eq.s32.totalorder %s19, 0
      %p200 = scmp.eq.s32.totalorder %s20, 0
      %p201 = pnand %p199, %p200
      %p202 = pneg %p201
      // Predicated region
      $region37: #{dwconv_bn.1} parent=35 // pred_check
        _
      $region38: #{dwconv_bn.1} parent=35 // pred_check_branch
        %204 = sbr.rel (%p201) target = $region40
      $region39: #{dwconv_bn.1} parent=35 // pred_region
        %205 = vst [vmem:[#allocation2] sm:$0x1] 0.0
        %206 = vst [vmem:[#allocation3] sm:$0x1] 0.0
      $region40: #{dwconv_bn.1} parent=35 // pred_fallthru
        _
      %v207 = vld [vmem:[%s1] sm:$0xff]
      %v208 = vld [vmem:[%s1 + $0x8] sm:$0x1]
      %s209 = smul.u32 %s198, 64
      %s210 = scalar_lea.vmem %s0, %s209
      %v211 = vld [vmem:[%s210] sm:$0xff]
      %v212 = vld [vmem:[%s210 + $0x8] sm:$0xff]
      %v213 = vld [vmem:[%s210 + $0x10] sm:$0xff]
      %v214 = vld [vmem:[%s210 + $0x18] sm:$0xff]
      %v215 = vld [vmem:[%s210 + $0x20] sm:$0xff]
      %v216 = vld [vmem:[%s210 + $0x28] sm:$0xff]
      %v217 = vld [vmem:[%s210 + $0x30] sm:$0xff]
      %v218 = vld [vmem:[%s210 + $0x38] sm:$0x3]
      %v219 = vld [vmem:[%s210 + $0x40] sm:$0xff]
      %v220 = vld [vmem:[%s210 + $0x48] sm:$0xff]
      %v221 = vld [vmem:[%s210 + $0x50] sm:$0xff]
      %v222 = vld [vmem:[%s210 + $0x58] sm:$0xff]
      %v223 = vld [vmem:[%s210 + $0x60] sm:$0xff]
      %v224 = vld [vmem:[%s210 + $0x68] sm:$0xff]
      %v225 = vld [vmem:[%s210 + $0x70] sm:$0xff]
      %v226 = vld [vmem:[%s210 + $0x78] sm:$0x3]
      %v227 = vld [vmem:[%s210 + $0x80] sm:$0xff]
      %v228 = vld [vmem:[%s210 + $0x88] sm:$0xff]
      %v229 = vld [vmem:[%s210 + $0x90] sm:$0xff]
      %v230 = vld [vmem:[%s210 + $0x98] sm:$0xff]
      %v231 = vld [vmem:[%s210 + $0xa0] sm:$0xff]
      %v232 = vld [vmem:[%s210 + $0xa8] sm:$0xff]
      %v233 = vld [vmem:[%s210 + $0xb0] sm:$0xff]
      %v234 = vld [vmem:[%s210 + $0xb8] sm:$0x3]
      %v235 = vld [vmem:[%s210 + $0xc0] sm:$0xff]
      %v236 = vld [vmem:[%s210 + $0xc8] sm:$0xff]
      %v237 = vld [vmem:[%s210 + $0xd0] sm:$0xff]
      %v238 = vld [vmem:[%s210 + $0xd8] sm:$0xff]
      %v239 = vld [vmem:[%s210 + $0xe0] sm:$0xff]
      %v240 = vld [vmem:[%s210 + $0xe8] sm:$0xff]
      %v241 = vld [vmem:[%s210 + $0xf0] sm:$0xff]
      %v242 = vld [vmem:[%s210 + $0xf8] sm:$0x3]
      %v243 = vld [vmem:[%s210 + $0x100] sm:$0xff]
      %v244 = vld [vmem:[%s210 + $0x108] sm:$0xff]
      %v245 = vld [vmem:[%s210 + $0x110] sm:$0xff]
      %v246 = vld [vmem:[%s210 + $0x118] sm:$0xff]
      %v247 = vld [vmem:[%s210 + $0x120] sm:$0xff]
      %v248 = vld [vmem:[%s210 + $0x128] sm:$0xff]
      %v249 = vld [vmem:[%s210 + $0x130] sm:$0xff]
      %v250 = vld [vmem:[%s210 + $0x138] sm:$0x3]
      %v251 = vld [vmem:[%s210 + $0x140] sm:$0xff]
      %v252 = vld [vmem:[%s210 + $0x148] sm:$0xff]
      %v253 = vld [vmem:[%s210 + $0x150] sm:$0xff]
      %v254 = vld [vmem:[%s210 + $0x158] sm:$0xff]
      %v255 = vld [vmem:[%s210 + $0x160] sm:$0xff]
      %v256 = vld [vmem:[%s210 + $0x168] sm:$0xff]
      %v257 = vld [vmem:[%s210 + $0x170] sm:$0xff]
      %v258 = vld [vmem:[%s210 + $0x178] sm:$0x3]
      %v259 = vld [vmem:[%s210 + $0x180] sm:$0xff]
      %v260 = vld [vmem:[%s210 + $0x188] sm:$0xff]
      %v261 = vld [vmem:[%s210 + $0x190] sm:$0xff]
      %v262 = vld [vmem:[%s210 + $0x198] sm:$0xff]
      %v263 = vld [vmem:[%s210 + $0x1a0] sm:$0xff]
      %v264 = vld [vmem:[%s210 + $0x1a8] sm:$0xff]
      %v265 = vld [vmem:[%s210 + $0x1b0] sm:$0xff]
      %v266 = vld [vmem:[%s210 + $0x1b8] sm:$0x3]
      %v267 = vld [vmem:[%s210 + $0x1c0] sm:$0xff]
      %v268 = vld [vmem:[%s210 + $0x1c8] sm:$0xff]
      %v269 = vld [vmem:[%s210 + $0x1d0] sm:$0xff]
      %v270 = vld [vmem:[%s210 + $0x1d8] sm:$0xff]
      %v271 = vld [vmem:[%s210 + $0x1e0] sm:$0xff]
      %v272 = vld [vmem:[%s210 + $0x1e8] sm:$0xff]
      %v273 = vld [vmem:[%s210 + $0x1f0] sm:$0xff]
      %v274 = vld [vmem:[%s210 + $0x1f8] sm:$0x3]
      %v275 = vld [vmem:[%s210 + $0x200] sm:$0xff]
      %v276 = vld [vmem:[%s210 + $0x208] sm:$0xff]
      %v277 = vld [vmem:[%s210 + $0x210] sm:$0xff]
      %v278 = vld [vmem:[%s210 + $0x218] sm:$0xff]
      %v279 = vld [vmem:[%s210 + $0x220] sm:$0xff]
      %v280 = vld [vmem:[%s210 + $0x228] sm:$0xff]
      %v281 = vld [vmem:[%s210 + $0x230] sm:$0xff]
      %v282 = vld [vmem:[%s210 + $0x238] sm:$0x3]
      %v283 = vld [vmem:[%s210 + $0x240] sm:$0xff]
      %v284 = vld [vmem:[%s210 + $0x248] sm:$0xff]
      %v285 = vld [vmem:[%s210 + $0x250] sm:$0xff]
      %v286 = vld [vmem:[%s210 + $0x258] sm:$0xff]
      %v287 = vld [vmem:[%s210 + $0x260] sm:$0xff]
      %v288 = vld [vmem:[%s210 + $0x268] sm:$0xff]
      %v289 = vld [vmem:[%s210 + $0x270] sm:$0xff]
      %v290 = vld [vmem:[%s210 + $0x278] sm:$0x3]
      %v291 = vld [vmem:[%s210 + $0x280] sm:$0xff]
      %v292 = vld [vmem:[%s210 + $0x288] sm:$0xff]
      %v293 = vld [vmem:[%s210 + $0x290] sm:$0xff]
      %v294 = vld [vmem:[%s210 + $0x298] sm:$0xff]
      %v295 = vld [vmem:[%s210 + $0x2a0] sm:$0xff]
      %v296 = vld [vmem:[%s210 + $0x2a8] sm:$0xff]
      %v297 = vld [vmem:[%s210 + $0x2b0] sm:$0xff]
      %v298 = vld [vmem:[%s210 + $0x2b8] sm:$0x3]
      %v299 = vld [vmem:[%s210 + $0x2c0] sm:$0xff]
      %v300 = vld [vmem:[%s210 + $0x2c8] sm:$0xff]
      %v301 = vld [vmem:[%s210 + $0x2d0] sm:$0xff]
      %v302 = vld [vmem:[%s210 + $0x2d8] sm:$0xff]
      %v303 = vld [vmem:[%s210 + $0x2e0] sm:$0xff]
      %v304 = vld [vmem:[%s210 + $0x2e8] sm:$0xff]
      %v305 = vld [vmem:[%s210 + $0x2f0] sm:$0xff]
      %v306 = vld [vmem:[%s210 + $0x2f8] sm:$0x3]
      %v307 = vld [vmem:[%s210 + $0x300] sm:$0xff]
      %v308 = vld [vmem:[%s210 + $0x308] sm:$0xff]
      %v309 = vld [vmem:[%s210 + $0x310] sm:$0xff]
      %v310 = vld [vmem:[%s210 + $0x318] sm:$0xff]
      %v311 = vld [vmem:[%s210 + $0x320] sm:$0xff]
      %v312 = vld [vmem:[%s210 + $0x328] sm:$0xff]
      %v313 = vld [vmem:[%s210 + $0x330] sm:$0xff]
      %v314 = vld [vmem:[%s210 + $0x338] sm:$0x3]
      %v315 = vld [vmem:[%s210 + $0x340] sm:$0xff]
      %v316 = vld [vmem:[%s210 + $0x348] sm:$0xff]
      %v317 = vld [vmem:[%s210 + $0x350] sm:$0xff]
      %v318 = vld [vmem:[%s210 + $0x358] sm:$0xff]
      %v319 = vld [vmem:[%s210 + $0x360] sm:$0xff]
      %v320 = vld [vmem:[%s210 + $0x368] sm:$0xff]
      %v321 = vld [vmem:[%s210 + $0x370] sm:$0xff]
      %v322 = vld [vmem:[%s210 + $0x378] sm:$0x3]
      %v323 = vld [vmem:[%s210 + $0x380] sm:$0xff]
      %v324 = vld [vmem:[%s210 + $0x388] sm:$0xff]
      %v325 = vld [vmem:[%s210 + $0x390] sm:$0xff]
      %v326 = vld [vmem:[%s210 + $0x398] sm:$0xff]
      %v327 = vld [vmem:[%s210 + $0x3a0] sm:$0xff]
      %v328 = vld [vmem:[%s210 + $0x3a8] sm:$0xff]
      %v329 = vld [vmem:[%s210 + $0x3b0] sm:$0xff]
      %v330 = vld [vmem:[%s210 + $0x3b8] sm:$0x3]
      %v331 = vld [vmem:[%s210 + $0x3c0] sm:$0xff]
      %v332 = vld [vmem:[%s210 + $0x3c8] sm:$0xff]
      %v333 = vld [vmem:[%s210 + $0x3d0] sm:$0xff]
      %v334 = vld [vmem:[%s210 + $0x3d8] sm:$0xff]
      %v335 = vld [vmem:[%s210 + $0x3e0] sm:$0xff]
      %v336 = vld [vmem:[%s210 + $0x3e8] sm:$0xff]
      %v337 = vld [vmem:[%s210 + $0x3f0] sm:$0xff]
      %v338 = vld [vmem:[%s210 + $0x3f8] sm:$0x3]
      %v339 = vld [vmem:[%s210 + $0x400] sm:$0xff]
      %v340 = vld [vmem:[%s210 + $0x408] sm:$0xff]
      %v341 = vld [vmem:[%s210 + $0x410] sm:$0xff]
      %v342 = vld [vmem:[%s210 + $0x418] sm:$0xff]
      %v343 = vld [vmem:[%s210 + $0x420] sm:$0xff]
      %v344 = vld [vmem:[%s210 + $0x428] sm:$0xff]
      %v345 = vld [vmem:[%s210 + $0x430] sm:$0xff]
      %v346 = vld [vmem:[%s210 + $0x438] sm:$0x3]
      %v347 = vld [vmem:[%s210 + $0x440] sm:$0xff]
      %v348 = vld [vmem:[%s210 + $0x448] sm:$0xff]
      %v349 = vld [vmem:[%s210 + $0x450] sm:$0xff]
      %v350 = vld [vmem:[%s210 + $0x458] sm:$0xff]
      %v351 = vld [vmem:[%s210 + $0x460] sm:$0xff]
      %v352 = vld [vmem:[%s210 + $0x468] sm:$0xff]
      %v353 = vld [vmem:[%s210 + $0x470] sm:$0xff]
      %v354 = vld [vmem:[%s210 + $0x478] sm:$0x3]
      %v355 = vld [vmem:[%s210 + $0x480] sm:$0xff]
      %v356 = vld [vmem:[%s210 + $0x488] sm:$0xff]
      %v357 = vld [vmem:[%s210 + $0x490] sm:$0xff]
      %v358 = vld [vmem:[%s210 + $0x498] sm:$0xff]
      %v359 = vld [vmem:[%s210 + $0x4a0] sm:$0xff]
      %v360 = vld [vmem:[%s210 + $0x4a8] sm:$0xff]
      %v361 = vld [vmem:[%s210 + $0x4b0] sm:$0xff]
      %v362 = vld [vmem:[%s210 + $0x4b8] sm:$0x3]
      %v363 = vld [vmem:[%s210 + $0x4c0] sm:$0xff]
      %v364 = vld [vmem:[%s210 + $0x4c8] sm:$0xff]
      %v365 = vld [vmem:[%s210 + $0x4d0] sm:$0xff]
      %v366 = vld [vmem:[%s210 + $0x4d8] sm:$0xff]
      %v367 = vld [vmem:[%s210 + $0x4e0] sm:$0xff]
      %v368 = vld [vmem:[%s210 + $0x4e8] sm:$0xff]
      %v369 = vld [vmem:[%s210 + $0x4f0] sm:$0xff]
      %v370 = vld [vmem:[%s210 + $0x4f8] sm:$0x3]
      %v371 = vld [vmem:[%s210 + $0x500] sm:$0xff]
      %v372 = vld [vmem:[%s210 + $0x508] sm:$0xff]
      %v373 = vld [vmem:[%s210 + $0x510] sm:$0xff]
      %v374 = vld [vmem:[%s210 + $0x518] sm:$0xff]
      %v375 = vld [vmem:[%s210 + $0x520] sm:$0xff]
      %v376 = vld [vmem:[%s210 + $0x528] sm:$0xff]
      %v377 = vld [vmem:[%s210 + $0x530] sm:$0xff]
      %v378 = vld [vmem:[%s210 + $0x538] sm:$0x3]
      %v379 = vld [vmem:[%s210 + $0x540] sm:$0xff]
      %v380 = vld [vmem:[%s210 + $0x548] sm:$0xff]
      %v381 = vld [vmem:[%s210 + $0x550] sm:$0xff]
      %v382 = vld [vmem:[%s210 + $0x558] sm:$0xff]
      %v383 = vld [vmem:[%s210 + $0x560] sm:$0xff]
      %v384 = vld [vmem:[%s210 + $0x568] sm:$0xff]
      %v385 = vld [vmem:[%s210 + $0x570] sm:$0xff]
      %v386 = vld [vmem:[%s210 + $0x578] sm:$0x3]
      %v387 = vld [vmem:[%s210 + $0x580] sm:$0xff]
      %v388 = vld [vmem:[%s210 + $0x588] sm:$0xff]
      %v389 = vld [vmem:[%s210 + $0x590] sm:$0xff]
      %v390 = vld [vmem:[%s210 + $0x598] sm:$0xff]
      %v391 = vld [vmem:[%s210 + $0x5a0] sm:$0xff]
      %v392 = vld [vmem:[%s210 + $0x5a8] sm:$0xff]
      %v393 = vld [vmem:[%s210 + $0x5b0] sm:$0xff]
      %v394 = vld [vmem:[%s210 + $0x5b8] sm:$0x3]
      %v395 = vld [vmem:[%s210 + $0x5c0] sm:$0xff]
      %v396 = vld [vmem:[%s210 + $0x5c8] sm:$0xff]
      %v397 = vld [vmem:[%s210 + $0x5d0] sm:$0xff]
      %v398 = vld [vmem:[%s210 + $0x5d8] sm:$0xff]
      %v399 = vld [vmem:[%s210 + $0x5e0] sm:$0xff]
      %v400 = vld [vmem:[%s210 + $0x5e8] sm:$0xff]
      %v401 = vld [vmem:[%s210 + $0x5f0] sm:$0xff]
      %v402 = vld [vmem:[%s210 + $0x5f8] sm:$0x3]
      %v403 = vld [vmem:[%s210 + $0x600] sm:$0xff]
      %v404 = vld [vmem:[%s210 + $0x608] sm:$0xff]
      %v405 = vld [vmem:[%s210 + $0x610] sm:$0xff]
      %v406 = vld [vmem:[%s210 + $0x618] sm:$0xff]
      %v407 = vld [vmem:[%s210 + $0x620] sm:$0xff]
      %v408 = vld [vmem:[%s210 + $0x628] sm:$0xff]
      %v409 = vld [vmem:[%s210 + $0x630] sm:$0xff]
      %v410 = vld [vmem:[%s210 + $0x638] sm:$0x3]
      %v411 = vld [vmem:[%s210 + $0x640] sm:$0xff]
      %v412 = vld [vmem:[%s210 + $0x648] sm:$0xff]
      %v413 = vld [vmem:[%s210 + $0x650] sm:$0xff]
      %v414 = vld [vmem:[%s210 + $0x658] sm:$0xff]
      %v415 = vld [vmem:[%s210 + $0x660] sm:$0xff]
      %v416 = vld [vmem:[%s210 + $0x668] sm:$0xff]
      %v417 = vld [vmem:[%s210 + $0x670] sm:$0xff]
      %v418 = vld [vmem:[%s210 + $0x678] sm:$0x3]
      %v419 = vld [vmem:[%s210 + $0x680] sm:$0xff]
      %v420 = vld [vmem:[%s210 + $0x688] sm:$0xff]
      %v421 = vld [vmem:[%s210 + $0x690] sm:$0xff]
      %v422 = vld [vmem:[%s210 + $0x698] sm:$0xff]
      %v423 = vld [vmem:[%s210 + $0x6a0] sm:$0xff]
      %v424 = vld [vmem:[%s210 + $0x6a8] sm:$0xff]
      %v425 = vld [vmem:[%s210 + $0x6b0] sm:$0xff]
      %v426 = vld [vmem:[%s210 + $0x6b8] sm:$0x3]
      %v427 = vld [vmem:[%s210 + $0x6c0] sm:$0xff]
      %v428 = vld [vmem:[%s210 + $0x6c8] sm:$0xff]
      %v429 = vld [vmem:[%s210 + $0x6d0] sm:$0xff]
      %v430 = vld [vmem:[%s210 + $0x6d8] sm:$0xff]
      %v431 = vld [vmem:[%s210 + $0x6e0] sm:$0xff]
      %v432 = vld [vmem:[%s210 + $0x6e8] sm:$0xff]
      %v433 = vld [vmem:[%s210 + $0x6f0] sm:$0xff]
      %v434 = vld [vmem:[%s210 + $0x6f8] sm:$0x3]
      %v435 = vld [vmem:[%s210 + $0x700] sm:$0xff]
      %v436 = vld [vmem:[%s210 + $0x708] sm:$0xff]
      %v437 = vld [vmem:[%s210 + $0x710] sm:$0xff]
      %v438 = vld [vmem:[%s210 + $0x718] sm:$0xff]
      %v439 = vld [vmem:[%s210 + $0x720] sm:$0xff]
      %v440 = vld [vmem:[%s210 + $0x728] sm:$0xff]
      %v441 = vld [vmem:[%s210 + $0x730] sm:$0xff]
      %v442 = vld [vmem:[%s210 + $0x738] sm:$0x3]
      %v443 = vld [vmem:[%s210 + $0x740] sm:$0xff]
      %v444 = vld [vmem:[%s210 + $0x748] sm:$0xff]
      %v445 = vld [vmem:[%s210 + $0x750] sm:$0xff]
      %v446 = vld [vmem:[%s210 + $0x758] sm:$0xff]
      %v447 = vld [vmem:[%s210 + $0x760] sm:$0xff]
      %v448 = vld [vmem:[%s210 + $0x768] sm:$0xff]
      %v449 = vld [vmem:[%s210 + $0x770] sm:$0xff]
      %v450 = vld [vmem:[%s210 + $0x778] sm:$0x3]
      %v451 = vlaneseq
      %v452 = vshrl.u32 %v451, 7
      %v453 = vsub.s32 0, %v452
      %v454 = vrot.slane %v207, %v453
      %v455 = vmul.f32 %v211, %v454
      %v456 = vmul.f32 %v212, %v454
      %v457 = vmul.f32 %v213, %v454
      %v458 = vmul.f32 %v214, %v454
      %v459 = vmul.f32 %v215, %v454
      %v460 = vmul.f32 %v216, %v454
      %v461 = vmul.f32 %v217, %v454
      %v462 = vmul.f32 %v219, %v454
      %v463 = vmul.f32 %v220, %v454
      %v464 = vmul.f32 %v221, %v454
      %v465 = vmul.f32 %v222, %v454
      %v466 = vmul.f32 %v223, %v454
      %v467 = vmul.f32 %v224, %v454
      %v468 = vmul.f32 %v225, %v454
      %v469 = vmul.f32 %v227, %v454
      %v470 = vmul.f32 %v228, %v454
      %v471 = vmul.f32 %v229, %v454
      %v472 = vmul.f32 %v230, %v454
      %v473 = vmul.f32 %v231, %v454
      %v474 = vmul.f32 %v232, %v454
      %v475 = vmul.f32 %v233, %v454
      %v476 = vmul.f32 %v235, %v454
      %v477 = vmul.f32 %v236, %v454
      %v478 = vmul.f32 %v237, %v454
      %v479 = vmul.f32 %v238, %v454
      %v480 = vmul.f32 %v239, %v454
      %v481 = vmul.f32 %v240, %v454
      %v482 = vmul.f32 %v241, %v454
      %v483 = vmul.f32 %v243, %v454
      %v484 = vmul.f32 %v244, %v454
      %v485 = vmul.f32 %v245, %v454
      %v486 = vmul.f32 %v246, %v454
      %v487 = vmul.f32 %v247, %v454
      %v488 = vmul.f32 %v248, %v454
      %v489 = vmul.f32 %v249, %v454
      %v490 = vmul.f32 %v251, %v454
      %v491 = vmul.f32 %v252, %v454
      %v492 = vmul.f32 %v253, %v454
      %v493 = vmul.f32 %v254, %v454
      %v494 = vmul.f32 %v255, %v454
      %v495 = vmul.f32 %v256, %v454
      %v496 = vmul.f32 %v257, %v454
      %v497 = vmul.f32 %v259, %v454
      %v498 = vmul.f32 %v260, %v454
      %v499 = vmul.f32 %v261, %v454
      %v500 = vmul.f32 %v262, %v454
      %v501 = vmul.f32 %v263, %v454
      %v502 = vmul.f32 %v264, %v454
      %v503 = vmul.f32 %v265, %v454
      %v504 = vmul.f32 %v267, %v454
      %v505 = vmul.f32 %v268, %v454
      %v506 = vmul.f32 %v269, %v454
      %v507 = vmul.f32 %v270, %v454
      %v508 = vmul.f32 %v271, %v454
      %v509 = vmul.f32 %v272, %v454
      %v510 = vmul.f32 %v273, %v454
      %v511 = vmul.f32 %v275, %v454
      %v512 = vmul.f32 %v276, %v454
      %v513 = vmul.f32 %v277, %v454
      %v514 = vmul.f32 %v278, %v454
      %v515 = vmul.f32 %v279, %v454
      %v516 = vmul.f32 %v280, %v454
      %v517 = vmul.f32 %v281, %v454
      %v518 = vmul.f32 %v283, %v454
      %v519 = vmul.f32 %v284, %v454
      %v520 = vmul.f32 %v285, %v454
      %v521 = vmul.f32 %v286, %v454
      %v522 = vmul.f32 %v287, %v454
      %v523 = vmul.f32 %v288, %v454
      %v524 = vmul.f32 %v289, %v454
      %v525 = vmul.f32 %v291, %v454
      %v526 = vmul.f32 %v292, %v454
      %v527 = vmul.f32 %v293, %v454
      %v528 = vmul.f32 %v294, %v454
      %v529 = vmul.f32 %v295, %v454
      %v530 = vmul.f32 %v296, %v454
      %v531 = vmul.f32 %v297, %v454
      %v532 = vmul.f32 %v299, %v454
      %v533 = vmul.f32 %v300, %v454
      %v534 = vmul.f32 %v301, %v454
      %v535 = vmul.f32 %v302, %v454
      %v536 = vmul.f32 %v303, %v454
      %v537 = vmul.f32 %v304, %v454
      %v538 = vmul.f32 %v305, %v454
      %v539 = vmul.f32 %v307, %v454
      %v540 = vmul.f32 %v308, %v454
      %v541 = vmul.f32 %v309, %v454
      %v542 = vmul.f32 %v310, %v454
      %v543 = vmul.f32 %v311, %v454
      %v544 = vmul.f32 %v312, %v454
      %v545 = vmul.f32 %v313, %v454
      %v546 = vmul.f32 %v315, %v454
      %v547 = vmul.f32 %v316, %v454
      %v548 = vmul.f32 %v317, %v454
      %v549 = vmul.f32 %v318, %v454
      %v550 = vmul.f32 %v319, %v454
      %v551 = vmul.f32 %v320, %v454
      %v552 = vmul.f32 %v321, %v454
      %v553 = vmul.f32 %v323, %v454
      %v554 = vmul.f32 %v324, %v454
      %v555 = vmul.f32 %v325, %v454
      %v556 = vmul.f32 %v326, %v454
      %v557 = vmul.f32 %v327, %v454
      %v558 = vmul.f32 %v328, %v454
      %v559 = vmul.f32 %v329, %v454
      %v560 = vmul.f32 %v331, %v454
      %v561 = vmul.f32 %v332, %v454
      %v562 = vmul.f32 %v333, %v454
      %v563 = vmul.f32 %v334, %v454
      %v564 = vmul.f32 %v335, %v454
      %v565 = vmul.f32 %v336, %v454
      %v566 = vmul.f32 %v337, %v454
      %v567 = vmul.f32 %v339, %v454
      %v568 = vmul.f32 %v340, %v454
      %v569 = vmul.f32 %v341, %v454
      %v570 = vmul.f32 %v342, %v454
      %v571 = vmul.f32 %v343, %v454
      %v572 = vmul.f32 %v344, %v454
      %v573 = vmul.f32 %v345, %v454
      %v574 = vmul.f32 %v347, %v454
      %v575 = vmul.f32 %v348, %v454
      %v576 = vmul.f32 %v349, %v454
      %v577 = vmul.f32 %v350, %v454
      %v578 = vmul.f32 %v351, %v454
      %v579 = vmul.f32 %v352, %v454
      %v580 = vmul.f32 %v353, %v454
      %v581 = vmul.f32 %v355, %v454
      %v582 = vmul.f32 %v356, %v454
      %v583 = vmul.f32 %v357, %v454
      %v584 = vmul.f32 %v358, %v454
      %v585 = vmul.f32 %v359, %v454
      %v586 = vmul.f32 %v360, %v454
      %v587 = vmul.f32 %v361, %v454
      %v588 = vmul.f32 %v363, %v454
      %v589 = vmul.f32 %v364, %v454
      %v590 = vmul.f32 %v365, %v454
      %v591 = vmul.f32 %v366, %v454
      %v592 = vmul.f32 %v367, %v454
      %v593 = vmul.f32 %v368, %v454
      %v594 = vmul.f32 %v369, %v454
      %v595 = vmul.f32 %v371, %v454
      %v596 = vmul.f32 %v372, %v454
      %v597 = vmul.f32 %v373, %v454
      %v598 = vmul.f32 %v374, %v454
      %v599 = vmul.f32 %v375, %v454
      %v600 = vmul.f32 %v376, %v454
      %v601 = vmul.f32 %v377, %v454
      %v602 = vmul.f32 %v379, %v454
      %v603 = vmul.f32 %v380, %v454
      %v604 = vmul.f32 %v381, %v454
      %v605 = vmul.f32 %v382, %v454
      %v606 = vmul.f32 %v383, %v454
      %v607 = vmul.f32 %v384, %v454
      %v608 = vmul.f32 %v385, %v454
      %v609 = vmul.f32 %v387, %v454
      %v610 = vmul.f32 %v388, %v454
      %v611 = vmul.f32 %v389, %v454
      %v612 = vmul.f32 %v390, %v454
      %v613 = vmul.f32 %v391, %v454
      %v614 = vmul.f32 %v392, %v454
      %v615 = vmul.f32 %v393, %v454
      %v616 = vmul.f32 %v395, %v454
      %v617 = vmul.f32 %v396, %v454
      %v618 = vmul.f32 %v397, %v454
      %v619 = vmul.f32 %v398, %v454
      %v620 = vmul.f32 %v399, %v454
      %v621 = vmul.f32 %v400, %v454
      %v622 = vmul.f32 %v401, %v454
      %v623 = vmul.f32 %v403, %v454
      %v624 = vmul.f32 %v404, %v454
      %v625 = vmul.f32 %v405, %v454
      %v626 = vmul.f32 %v406, %v454
      %v627 = vmul.f32 %v407, %v454
      %v628 = vmul.f32 %v408, %v454
      %v629 = vmul.f32 %v409, %v454
      %v630 = vmul.f32 %v411, %v454
      %v631 = vmul.f32 %v412, %v454
      %v632 = vmul.f32 %v413, %v454
      %v633 = vmul.f32 %v414, %v454
      %v634 = vmul.f32 %v415, %v454
      %v635 = vmul.f32 %v416, %v454
      %v636 = vmul.f32 %v417, %v454
      %v637 = vmul.f32 %v419, %v454
      %v638 = vmul.f32 %v420, %v454
      %v639 = vmul.f32 %v421, %v454
      %v640 = vmul.f32 %v422, %v454
      %v641 = vmul.f32 %v423, %v454
      %v642 = vmul.f32 %v424, %v454
      %v643 = vmul.f32 %v425, %v454
      %v644 = vmul.f32 %v427, %v454
      %v645 = vmul.f32 %v428, %v454
      %v646 = vmul.f32 %v429, %v454
      %v647 = vmul.f32 %v430, %v454
      %v648 = vmul.f32 %v431, %v454
      %v649 = vmul.f32 %v432, %v454
      %v650 = vmul.f32 %v433, %v454
      %v651 = vadd.f32 %v455, 0.0
      %v652 = vadd.f32 %v456, 0.0
      %v653 = vadd.f32 %v457, 0.0
      %v654 = vadd.f32 %v458, 0.0
      %v655 = vadd.f32 %v459, 0.0
      %v656 = vadd.f32 %v460, 0.0
      %v657 = vadd.f32 %v461, 0.0
      %v658 = vadd.f32 %v462, 0.0
      %v659 = vadd.f32 %v463, 0.0
      %v660 = vadd.f32 %v464, 0.0
      %v661 = vadd.f32 %v465, 0.0
      %v662 = vadd.f32 %v466, 0.0
      %v663 = vadd.f32 %v467, 0.0
      %v664 = vadd.f32 %v468, 0.0
      %v665 = vadd.f32 %v469, 0.0
      %v666 = vadd.f32 %v470, 0.0
      %v667 = vadd.f32 %v471, 0.0
      %v668 = vadd.f32 %v472, 0.0
      %v669 = vadd.f32 %v473, 0.0
      %v670 = vadd.f32 %v474, 0.0
      %v671 = vadd.f32 %v475, 0.0
      %v672 = vadd.f32 %v476, 0.0
      %v673 = vadd.f32 %v477, 0.0
      %v674 = vadd.f32 %v478, 0.0
      %v675 = vadd.f32 %v479, 0.0
      %v676 = vadd.f32 %v480, 0.0
      %v677 = vadd.f32 %v481, 0.0
      %v678 = vadd.f32 %v482, 0.0
      %v679 = vadd.f32 %v483, 0.0
      %v680 = vadd.f32 %v484, 0.0
      %v681 = vadd.f32 %v485, 0.0
      %v682 = vadd.f32 %v486, 0.0
      %v683 = vadd.f32 %v487, 0.0
      %v684 = vadd.f32 %v488, 0.0
      %v685 = vadd.f32 %v489, 0.0
      %v686 = vadd.f32 %v490, 0.0
      %v687 = vadd.f32 %v491, 0.0
      %v688 = vadd.f32 %v492, 0.0
      %v689 = vadd.f32 %v493, 0.0
      %v690 = vadd.f32 %v494, 0.0
      %v691 = vadd.f32 %v495, 0.0
      %v692 = vadd.f32 %v496, 0.0
      %v693 = vadd.f32 %v497, 0.0
      %v694 = vadd.f32 %v498, 0.0
      %v695 = vadd.f32 %v499, 0.0
      %v696 = vadd.f32 %v500, 0.0
      %v697 = vadd.f32 %v501, 0.0
      %v698 = vadd.f32 %v502, 0.0
      %v699 = vadd.f32 %v503, 0.0
      %v700 = vadd.f32 %v504, 0.0
      %v701 = vadd.f32 %v505, 0.0
      %v702 = vadd.f32 %v506, 0.0
      %v703 = vadd.f32 %v507, 0.0
      %v704 = vadd.f32 %v508, 0.0
      %v705 = vadd.f32 %v509, 0.0
      %v706 = vadd.f32 %v510, 0.0
      %v707 = vadd.f32 %v511, 0.0
      %v708 = vadd.f32 %v512, 0.0
      %v709 = vadd.f32 %v513, 0.0
      %v710 = vadd.f32 %v514, 0.0
      %v711 = vadd.f32 %v515, 0.0
      %v712 = vadd.f32 %v516, 0.0
      %v713 = vadd.f32 %v517, 0.0
      %v714 = vadd.f32 %v518, 0.0
      %v715 = vadd.f32 %v519, 0.0
      %v716 = vadd.f32 %v520, 0.0
      %v717 = vadd.f32 %v521, 0.0
      %v718 = vadd.f32 %v522, 0.0
      %v719 = vadd.f32 %v523, 0.0
      %v720 = vadd.f32 %v524, 0.0
      %v721 = vadd.f32 %v525, 0.0
      %v722 = vadd.f32 %v526, 0.0
      %v723 = vadd.f32 %v527, 0.0
      %v724 = vadd.f32 %v528, 0.0
      %v725 = vadd.f32 %v529, 0.0
      %v726 = vadd.f32 %v530, 0.0
      %v727 = vadd.f32 %v531, 0.0
      %v728 = vadd.f32 %v532, 0.0
      %v729 = vadd.f32 %v533, 0.0
      %v730 = vadd.f32 %v534, 0.0
      %v731 = vadd.f32 %v535, 0.0
      %v732 = vadd.f32 %v536, 0.0
      %v733 = vadd.f32 %v537, 0.0
      %v734 = vadd.f32 %v538, 0.0
      %v735 = vadd.f32 %v539, 0.0
      %v736 = vadd.f32 %v540, 0.0
      %v737 = vadd.f32 %v541, 0.0
      %v738 = vadd.f32 %v542, 0.0
      %v739 = vadd.f32 %v543, 0.0
      %v740 = vadd.f32 %v544, 0.0
      %v741 = vadd.f32 %v545, 0.0
      %v742 = vadd.f32 %v546, 0.0
      %v743 = vadd.f32 %v547, 0.0
      %v744 = vadd.f32 %v548, 0.0
      %v745 = vadd.f32 %v549, 0.0
      %v746 = vadd.f32 %v550, 0.0
      %v747 = vadd.f32 %v551, 0.0
      %v748 = vadd.f32 %v552, 0.0
      %v749 = vadd.f32 %v553, 0.0
      %v750 = vadd.f32 %v554, 0.0
      %v751 = vadd.f32 %v555, 0.0
      %v752 = vadd.f32 %v556, 0.0
      %v753 = vadd.f32 %v557, 0.0
      %v754 = vadd.f32 %v558, 0.0
      %v755 = vadd.f32 %v559, 0.0
      %v756 = vadd.f32 %v560, 0.0
      %v757 = vadd.f32 %v561, 0.0
      %v758 = vadd.f32 %v562, 0.0
      %v759 = vadd.f32 %v563, 0.0
      %v760 = vadd.f32 %v564, 0.0
      %v761 = vadd.f32 %v565, 0.0
      %v762 = vadd.f32 %v566, 0.0
      %v763 = vadd.f32 %v567, 0.0
      %v764 = vadd.f32 %v568, 0.0
      %v765 = vadd.f32 %v569, 0.0
      %v766 = vadd.f32 %v570, 0.0
      %v767 = vadd.f32 %v571, 0.0
      %v768 = vadd.f32 %v572, 0.0
      %v769 = vadd.f32 %v573, 0.0
      %v770 = vadd.f32 %v574, 0.0
      %v771 = vadd.f32 %v575, 0.0
      %v772 = vadd.f32 %v576, 0.0
      %v773 = vadd.f32 %v577, 0.0
      %v774 = vadd.f32 %v578, 0.0
      %v775 = vadd.f32 %v579, 0.0
      %v776 = vadd.f32 %v580, 0.0
      %v777 = vadd.f32 %v581, 0.0
      %v778 = vadd.f32 %v582, 0.0
      %v779 = vadd.f32 %v583, 0.0
      %v780 = vadd.f32 %v584, 0.0
      %v781 = vadd.f32 %v585, 0.0
      %v782 = vadd.f32 %v586, 0.0
      %v783 = vadd.f32 %v587, 0.0
      %v784 = vadd.f32 %v588, 0.0
      %v785 = vadd.f32 %v589, 0.0
      %v786 = vadd.f32 %v590, 0.0
      %v787 = vadd.f32 %v591, 0.0
      %v788 = vadd.f32 %v592, 0.0
      %v789 = vadd.f32 %v593, 0.0
      %v790 = vadd.f32 %v594, 0.0
      %v791 = vadd.f32 %v595, 0.0
      %v792 = vadd.f32 %v596, 0.0
      %v793 = vadd.f32 %v597, 0.0
      %v794 = vadd.f32 %v598, 0.0
      %v795 = vadd.f32 %v599, 0.0
      %v796 = vadd.f32 %v600, 0.0
      %v797 = vadd.f32 %v601, 0.0
      %v798 = vadd.f32 %v602, 0.0
      %v799 = vadd.f32 %v603, 0.0
      %v800 = vadd.f32 %v604, 0.0
      %v801 = vadd.f32 %v605, 0.0
      %v802 = vadd.f32 %v606, 0.0
      %v803 = vadd.f32 %v607, 0.0
      %v804 = vadd.f32 %v608, 0.0
      %v805 = vadd.f32 %v609, 0.0
      %v806 = vadd.f32 %v610, 0.0
      %v807 = vadd.f32 %v611, 0.0
      %v808 = vadd.f32 %v612, 0.0
      %v809 = vadd.f32 %v613, 0.0
      %v810 = vadd.f32 %v614, 0.0
      %v811 = vadd.f32 %v615, 0.0
      %v812 = vadd.f32 %v616, 0.0
      %v813 = vadd.f32 %v617, 0.0
      %v814 = vadd.f32 %v618, 0.0
      %v815 = vadd.f32 %v619, 0.0
      %v816 = vadd.f32 %v620, 0.0
      %v817 = vadd.f32 %v621, 0.0
      %v818 = vadd.f32 %v622, 0.0
      %v819 = vadd.f32 %v623, 0.0
      %v820 = vadd.f32 %v624, 0.0
      %v821 = vadd.f32 %v625, 0.0
      %v822 = vadd.f32 %v626, 0.0
      %v823 = vadd.f32 %v627, 0.0
      %v824 = vadd.f32 %v628, 0.0
      %v825 = vadd.f32 %v629, 0.0
      %v826 = vadd.f32 %v630, 0.0
      %v827 = vadd.f32 %v631, 0.0
      %v828 = vadd.f32 %v632, 0.0
      %v829 = vadd.f32 %v633, 0.0
      %v830 = vadd.f32 %v634, 0.0
      %v831 = vadd.f32 %v635, 0.0
      %v832 = vadd.f32 %v636, 0.0
      %v833 = vadd.f32 %v637, 0.0
      %v834 = vadd.f32 %v638, 0.0
      %v835 = vadd.f32 %v639, 0.0
      %v836 = vadd.f32 %v640, 0.0
      %v837 = vadd.f32 %v641, 0.0
      %v838 = vadd.f32 %v642, 0.0
      %v839 = vadd.f32 %v643, 0.0
      %v840 = vadd.f32 %v644, 0.0
      %v841 = vadd.f32 %v645, 0.0
      %v842 = vadd.f32 %v646, 0.0
      %v843 = vadd.f32 %v647, 0.0
      %v844 = vadd.f32 %v648, 0.0
      %v845 = vadd.f32 %v649, 0.0
      %v846 = vadd.f32 %v650, 0.0
      %v847 = vlaneseq
      %v848 = vshrl.u32 %v847, 7
      %v849 = vsub.s32 1, %v848
      %v850 = vrot.slane %v207, %v849
      %v851 = vmul.f32 %v211, %v850
      %v852 = vmul.f32 %v212, %v850
      %v853 = vmul.f32 %v213, %v850
      %v854 = vmul.f32 %v214, %v850
      %v855 = vmul.f32 %v215, %v850
      %v856 = vmul.f32 %v216, %v850
      %v857 = vmul.f32 %v217, %v850
      %v858 = vmul.f32 %v218, %v850
      %v859 = vmul.f32 %v219, %v850
      %v860 = vmul.f32 %v220, %v850
      %v861 = vmul.f32 %v221, %v850
      %v862 = vmul.f32 %v222, %v850
      %v863 = vmul.f32 %v223, %v850
      %v864 = vmul.f32 %v224, %v850
      %v865 = vmul.f32 %v225, %v850
      %v866 = vmul.f32 %v226, %v850
      %v867 = vmul.f32 %v227, %v850
      %v868 = vmul.f32 %v228, %v850
      %v869 = vmul.f32 %v229, %v850
      %v870 = vmul.f32 %v230, %v850
      %v871 = vmul.f32 %v231, %v850
      %v872 = vmul.f32 %v232, %v850
      %v873 = vmul.f32 %v233, %v850
      %v874 = vmul.f32 %v234, %v850
      %v875 = vmul.f32 %v235, %v850
      %v876 = vmul.f32 %v236, %v850
      %v877 = vmul.f32 %v237, %v850
      %v878 = vmul.f32 %v238, %v850
      %v879 = vmul.f32 %v239, %v850
      %v880 = vmul.f32 %v240, %v850
      %v881 = vmul.f32 %v241, %v850
      %v882 = vmul.f32 %v242, %v850
      %v883 = vmul.f32 %v243, %v850
      %v884 = vmul.f32 %v244, %v850
      %v885 = vmul.f32 %v245, %v850
      %v886 = vmul.f32 %v246, %v850
      %v887 = vmul.f32 %v247, %v850
      %v888 = vmul.f32 %v248, %v850
      %v889 = vmul.f32 %v249, %v850
      %v890 = vmul.f32 %v250, %v850
      %v891 = vmul.f32 %v251, %v850
      %v892 = vmul.f32 %v252, %v850
      %v893 = vmul.f32 %v253, %v850
      %v894 = vmul.f32 %v254, %v850
      %v895 = vmul.f32 %v255, %v850
      %v896 = vmul.f32 %v256, %v850
      %v897 = vmul.f32 %v257, %v850
      %v898 = vmul.f32 %v258, %v850
      %v899 = vmul.f32 %v259, %v850
      %v900 = vmul.f32 %v260, %v850
      %v901 = vmul.f32 %v261, %v850
      %v902 = vmul.f32 %v262, %v850
      %v903 = vmul.f32 %v263, %v850
      %v904 = vmul.f32 %v264, %v850
      %v905 = vmul.f32 %v265, %v850
      %v906 = vmul.f32 %v266, %v850
      %v907 = vmul.f32 %v267, %v850
      %v908 = vmul.f32 %v268, %v850
      %v909 = vmul.f32 %v269, %v850
      %v910 = vmul.f32 %v270, %v850
      %v911 = vmul.f32 %v271, %v850
      %v912 = vmul.f32 %v272, %v850
      %v913 = vmul.f32 %v273, %v850
      %v914 = vmul.f32 %v274, %v850
      %v915 = vmul.f32 %v275, %v850
      %v916 = vmul.f32 %v276, %v850
      %v917 = vmul.f32 %v277, %v850
      %v918 = vmul.f32 %v278, %v850
      %v919 = vmul.f32 %v279, %v850
      %v920 = vmul.f32 %v280, %v850
      %v921 = vmul.f32 %v281, %v850
      %v922 = vmul.f32 %v282, %v850
      %v923 = vmul.f32 %v283, %v850
      %v924 = vmul.f32 %v284, %v850
      %v925 = vmul.f32 %v285, %v850
      %v926 = vmul.f32 %v286, %v850
      %v927 = vmul.f32 %v287, %v850
      %v928 = vmul.f32 %v288, %v850
      %v929 = vmul.f32 %v289, %v850
      %v930 = vmul.f32 %v290, %v850
      %v931 = vmul.f32 %v291, %v850
      %v932 = vmul.f32 %v292, %v850
      %v933 = vmul.f32 %v293, %v850
      %v934 = vmul.f32 %v294, %v850
      %v935 = vmul.f32 %v295, %v850
      %v936 = vmul.f32 %v296, %v850
      %v937 = vmul.f32 %v297, %v850
      %v938 = vmul.f32 %v298, %v850
      %v939 = vmul.f32 %v299, %v850
      %v940 = vmul.f32 %v300, %v850
      %v941 = vmul.f32 %v301, %v850
      %v942 = vmul.f32 %v302, %v850
      %v943 = vmul.f32 %v303, %v850
      %v944 = vmul.f32 %v304, %v850
      %v945 = vmul.f32 %v305, %v850
      %v946 = vmul.f32 %v306, %v850
      %v947 = vmul.f32 %v307, %v850
      %v948 = vmul.f32 %v308, %v850
      %v949 = vmul.f32 %v309, %v850
      %v950 = vmul.f32 %v310, %v850
      %v951 = vmul.f32 %v311, %v850
      %v952 = vmul.f32 %v312, %v850
      %v953 = vmul.f32 %v313, %v850
      %v954 = vmul.f32 %v314, %v850
      %v955 = vmul.f32 %v315, %v850
      %v956 = vmul.f32 %v316, %v850
      %v957 = vmul.f32 %v317, %v850
      %v958 = vmul.f32 %v318, %v850
      %v959 = vmul.f32 %v319, %v850
      %v960 = vmul.f32 %v320, %v850
      %v961 = vmul.f32 %v321, %v850
      %v962 = vmul.f32 %v322, %v850
      %v963 = vmul.f32 %v323, %v850
      %v964 = vmul.f32 %v324, %v850
      %v965 = vmul.f32 %v325, %v850
      %v966 = vmul.f32 %v326, %v850
      %v967 = vmul.f32 %v327, %v850
      %v968 = vmul.f32 %v328, %v850
      %v969 = vmul.f32 %v329, %v850
      %v970 = vmul.f32 %v330, %v850
      %v971 = vmul.f32 %v331, %v850
      %v972 = vmul.f32 %v332, %v850
      %v973 = vmul.f32 %v333, %v850
      %v974 = vmul.f32 %v334, %v850
      %v975 = vmul.f32 %v335, %v850
      %v976 = vmul.f32 %v336, %v850
      %v977 = vmul.f32 %v337, %v850
      %v978 = vmul.f32 %v338, %v850
      %v979 = vmul.f32 %v339, %v850
      %v980 = vmul.f32 %v340, %v850
      %v981 = vmul.f32 %v341, %v850
      %v982 = vmul.f32 %v342, %v850
      %v983 = vmul.f32 %v343, %v850
      %v984 = vmul.f32 %v344, %v850
      %v985 = vmul.f32 %v345, %v850
      %v986 = vmul.f32 %v346, %v850
      %v987 = vmul.f32 %v347, %v850
      %v988 = vmul.f32 %v348, %v850
      %v989 = vmul.f32 %v349, %v850
      %v990 = vmul.f32 %v350, %v850
      %v991 = vmul.f32 %v351, %v850
      %v992 = vmul.f32 %v352, %v850
      %v993 = vmul.f32 %v353, %v850
      %v994 = vmul.f32 %v354, %v850
      %v995 = vmul.f32 %v355, %v850
      %v996 = vmul.f32 %v356, %v850
      %v997 = vmul.f32 %v357, %v850
      %v998 = vmul.f32 %v358, %v850
      %v999 = vmul.f32 %v359, %v850
      %v1000 = vmul.f32 %v360, %v850
      %v1001 = vmul.f32 %v361, %v850
      %v1002 = vmul.f32 %v362, %v850
      %v1003 = vmul.f32 %v363, %v850
      %v1004 = vmul.f32 %v364, %v850
      %v1005 = vmul.f32 %v365, %v850
      %v1006 = vmul.f32 %v366, %v850
      %v1007 = vmul.f32 %v367, %v850
      %v1008 = vmul.f32 %v368, %v850
      %v1009 = vmul.f32 %v369, %v850
      %v1010 = vmul.f32 %v370, %v850
      %v1011 = vmul.f32 %v371, %v850
      %v1012 = vmul.f32 %v372, %v850
      %v1013 = vmul.f32 %v373, %v850
      %v1014 = vmul.f32 %v374, %v850
      %v1015 = vmul.f32 %v375, %v850
      %v1016 = vmul.f32 %v376, %v850
      %v1017 = vmul.f32 %v377, %v850
      %v1018 = vmul.f32 %v378, %v850
      %v1019 = vmul.f32 %v379, %v850
      %v1020 = vmul.f32 %v380, %v850
      %v1021 = vmul.f32 %v381, %v850
      %v1022 = vmul.f32 %v382, %v850
      %v1023 = vmul.f32 %v383, %v850
      %v1024 = vmul.f32 %v384, %v850
      %v1025 = vmul.f32 %v385, %v850
      %v1026 = vmul.f32 %v386, %v850
      %v1027 = vmul.f32 %v387, %v850
      %v1028 = vmul.f32 %v388, %v850
      %v1029 = vmul.f32 %v389, %v850
      %v1030 = vmul.f32 %v390, %v850
      %v1031 = vmul.f32 %v391, %v850
      %v1032 = vmul.f32 %v392, %v850
      %v1033 = vmul.f32 %v393, %v850
      %v1034 = vmul.f32 %v394, %v850
      %v1035 = vmul.f32 %v395, %v850
      %v1036 = vmul.f32 %v396, %v850
      %v1037 = vmul.f32 %v397, %v850
      %v1038 = vmul.f32 %v398, %v850
      %v1039 = vmul.f32 %v399, %v850
      %v1040 = vmul.f32 %v400, %v850
      %v1041 = vmul.f32 %v401, %v850
      %v1042 = vmul.f32 %v402, %v850
      %v1043 = vmul.f32 %v403, %v850
      %v1044 = vmul.f32 %v404, %v850
      %v1045 = vmul.f32 %v405, %v850
      %v1046 = vmul.f32 %v406, %v850
      %v1047 = vmul.f32 %v407, %v850
      %v1048 = vmul.f32 %v408, %v850
      %v1049 = vmul.f32 %v409, %v850
      %v1050 = vmul.f32 %v410, %v850
      %v1051 = vmul.f32 %v411, %v850
      %v1052 = vmul.f32 %v412, %v850
      %v1053 = vmul.f32 %v413, %v850
      %v1054 = vmul.f32 %v414, %v850
      %v1055 = vmul.f32 %v415, %v850
      %v1056 = vmul.f32 %v416, %v850
      %v1057 = vmul.f32 %v417, %v850
      %v1058 = vmul.f32 %v418, %v850
      %v1059 = vmul.f32 %v419, %v850
      %v1060 = vmul.f32 %v420, %v850
      %v1061 = vmul.f32 %v421, %v850
      %v1062 = vmul.f32 %v422, %v850
      %v1063 = vmul.f32 %v423, %v850
      %v1064 = vmul.f32 %v424, %v850
      %v1065 = vmul.f32 %v425, %v850
      %v1066 = vmul.f32 %v426, %v850
      %v1067 = vmul.f32 %v427, %v850
      %v1068 = vmul.f32 %v428, %v850
      %v1069 = vmul.f32 %v429, %v850
      %v1070 = vmul.f32 %v430, %v850
      %v1071 = vmul.f32 %v431, %v850
      %v1072 = vmul.f32 %v432, %v850
      %v1073 = vmul.f32 %v433, %v850
      %v1074 = vmul.f32 %v434, %v850
      %vm1299 = vcmask 1046528
      %v1300 = vrot.slane %v851, 1
      %v1301 = vrot.slane %v852, 1
      %v1302 = vsel %vm1299, %v1300, %v1301
      %v1303 = vrot.slane %v853, 1
      %v1304 = vsel %vm1299, %v1301, %v1303
      %v1305 = vrot.slane %v854, 1
      %v1306 = vsel %vm1299, %v1303, %v1305
      %v1307 = vrot.slane %v855, 1
      %v1308 = vsel %vm1299, %v1305, %v1307
      %v1309 = vrot.slane %v856, 1
      %v1310 = vsel %vm1299, %v1307, %v1309
      %v1311 = vrot.slane %v857, 1
      %v1312 = vsel %vm1299, %v1309, %v1311
      %v1313 = vrot.slane %v858, 1
      %v1314 = vsel %vm1299, %v1311, %v1313
      %v1315 = vrot.slane %v859, 1
      %v1316 = vrot.slane %v860, 1
      %v1317 = vsel %vm1299, %v1315, %v1316
      %v1318 = vrot.slane %v861, 1
      %v1319 = vsel %vm1299, %v1316, %v1318
      %v1320 = vrot.slane %v862, 1
      %v1321 = vsel %vm1299, %v1318, %v1320
      %v1322 = vrot.slane %v863, 1
      %v1323 = vsel %vm1299, %v1320, %v1322
      %v1324 = vrot.slane %v864, 1
      %v1325 = vsel %vm1299, %v1322, %v1324
      %v1326 = vrot.slane %v865, 1
      %v1327 = vsel %vm1299, %v1324, %v1326
      %v1328 = vrot.slane %v866, 1
      %v1329 = vsel %vm1299, %v1326, %v1328
      %v1330 = vrot.slane %v867, 1
      %v1331 = vrot.slane %v868, 1
      %v1332 = vsel %vm1299, %v1330, %v1331
      %v1333 = vrot.slane %v869, 1
      %v1334 = vsel %vm1299, %v1331, %v1333
      %v1335 = vrot.slane %v870, 1
      %v1336 = vsel %vm1299, %v1333, %v1335
      %v1337 = vrot.slane %v871, 1
      %v1338 = vsel %vm1299, %v1335, %v1337
      %v1339 = vrot.slane %v872, 1
      %v1340 = vsel %vm1299, %v1337, %v1339
      %v1341 = vrot.slane %v873, 1
      %v1342 = vsel %vm1299, %v1339, %v1341
      %v1343 = vrot.slane %v874, 1
      %v1344 = vsel %vm1299, %v1341, %v1343
      %v1345 = vrot.slane %v875, 1
      %v1346 = vrot.slane %v876, 1
      %v1347 = vsel %vm1299, %v1345, %v1346
      %v1348 = vrot.slane %v877, 1
      %v1349 = vsel %vm1299, %v1346, %v1348
      %v1350 = vrot.slane %v878, 1
      %v1351 = vsel %vm1299, %v1348, %v1350
      %v1352 = vrot.slane %v879, 1
      %v1353 = vsel %vm1299, %v1350, %v1352
      %v1354 = vrot.slane %v880, 1
      %v1355 = vsel %vm1299, %v1352, %v1354
      %v1356 = vrot.slane %v881, 1
      %v1357 = vsel %vm1299, %v1354, %v1356
      %v1358 = vrot.slane %v882, 1
      %v1359 = vsel %vm1299, %v1356, %v1358
      %v1360 = vrot.slane %v883, 1
      %v1361 = vrot.slane %v884, 1
      %v1362 = vsel %vm1299, %v1360, %v1361
      %v1363 = vrot.slane %v885, 1
      %v1364 = vsel %vm1299, %v1361, %v1363
      %v1365 = vrot.slane %v886, 1
      %v1366 = vsel %vm1299, %v1363, %v1365
      %v1367 = vrot.slane %v887, 1
      %v1368 = vsel %vm1299, %v1365, %v1367
      %v1369 = vrot.slane %v888, 1
      %v1370 = vsel %vm1299, %v1367, %v1369
      %v1371 = vrot.slane %v889, 1
      %v1372 = vsel %vm1299, %v1369, %v1371
      %v1373 = vrot.slane %v890, 1
      %v1374 = vsel %vm1299, %v1371, %v1373
      %v1375 = vrot.slane %v891, 1
      %v1376 = vrot.slane %v892, 1
      %v1377 = vsel %vm1299, %v1375, %v1376
      %v1378 = vrot.slane %v893, 1
      %v1379 = vsel %vm1299, %v1376, %v1378
      %v1380 = vrot.slane %v894, 1
      %v1381 = vsel %vm1299, %v1378, %v1380
      %v1382 = vrot.slane %v895, 1
      %v1383 = vsel %vm1299, %v1380, %v1382
      %v1384 = vrot.slane %v896, 1
      %v1385 = vsel %vm1299, %v1382, %v1384
      %v1386 = vrot.slane %v897, 1
      %v1387 = vsel %vm1299, %v1384, %v1386
      %v1388 = vrot.slane %v898, 1
      %v1389 = vsel %vm1299, %v1386, %v1388
      %v1390 = vrot.slane %v899, 1
      %v1391 = vrot.slane %v900, 1
      %v1392 = vsel %vm1299, %v1390, %v1391
      %v1393 = vrot.slane %v901, 1
      %v1394 = vsel %vm1299, %v1391, %v1393
      %v1395 = vrot.slane %v902, 1
      %v1396 = vsel %vm1299, %v1393, %v1395
      %v1397 = vrot.slane %v903, 1
      %v1398 = vsel %vm1299, %v1395, %v1397
      %v1399 = vrot.slane %v904, 1
      %v1400 = vsel %vm1299, %v1397, %v1399
      %v1401 = vrot.slane %v905, 1
      %v1402 = vsel %vm1299, %v1399, %v1401
      %v1403 = vrot.slane %v906, 1
      %v1404 = vsel %vm1299, %v1401, %v1403
      %v1405 = vrot.slane %v907, 1
      %v1406 = vrot.slane %v908, 1
      %v1407 = vsel %vm1299, %v1405, %v1406
      %v1408 = vrot.slane %v909, 1
      %v1409 = vsel %vm1299, %v1406, %v1408
      %v1410 = vrot.slane %v910, 1
      %v1411 = vsel %vm1299, %v1408, %v1410
      %v1412 = vrot.slane %v911, 1
      %v1413 = vsel %vm1299, %v1410, %v1412
      %v1414 = vrot.slane %v912, 1
      %v1415 = vsel %vm1299, %v1412, %v1414
      %v1416 = vrot.slane %v913, 1
      %v1417 = vsel %vm1299, %v1414, %v1416
      %v1418 = vrot.slane %v914, 1
      %v1419 = vsel %vm1299, %v1416, %v1418
      %v1420 = vrot.slane %v915, 1
      %v1421 = vrot.slane %v916, 1
      %v1422 = vsel %vm1299, %v1420, %v1421
      %v1423 = vrot.slane %v917, 1
      %v1424 = vsel %vm1299, %v1421, %v1423
      %v1425 = vrot.slane %v918, 1
      %v1426 = vsel %vm1299, %v1423, %v1425
      %v1427 = vrot.slane %v919, 1
      %v1428 = vsel %vm1299, %v1425, %v1427
      %v1429 = vrot.slane %v920, 1
      %v1430 = vsel %vm1299, %v1427, %v1429
      %v1431 = vrot.slane %v921, 1
      %v1432 = vsel %vm1299, %v1429, %v1431
      %v1433 = vrot.slane %v922, 1
      %v1434 = vsel %vm1299, %v1431, %v1433
      %v1435 = vrot.slane %v923, 1
      %v1436 = vrot.slane %v924, 1
      %v1437 = vsel %vm1299, %v1435, %v1436
      %v1438 = vrot.slane %v925, 1
      %v1439 = vsel %vm1299, %v1436, %v1438
      %v1440 = vrot.slane %v926, 1
      %v1441 = vsel %vm1299, %v1438, %v1440
      %v1442 = vrot.slane %v927, 1
      %v1443 = vsel %vm1299, %v1440, %v1442
      %v1444 = vrot.slane %v928, 1
      %v1445 = vsel %vm1299, %v1442, %v1444
      %v1446 = vrot.slane %v929, 1
      %v1447 = vsel %vm1299, %v1444, %v1446
      %v1448 = vrot.slane %v930, 1
      %v1449 = vsel %vm1299, %v1446, %v1448
      %v1450 = vrot.slane %v931, 1
      %v1451 = vrot.slane %v932, 1
      %v1452 = vsel %vm1299, %v1450, %v1451
      %v1453 = vrot.slane %v933, 1
      %v1454 = vsel %vm1299, %v1451, %v1453
      %v1455 = vrot.slane %v934, 1
      %v1456 = vsel %vm1299, %v1453, %v1455
      %v1457 = vrot.slane %v935, 1
      %v1458 = vsel %vm1299, %v1455, %v1457
      %v1459 = vrot.slane %v936, 1
      %v1460 = vsel %vm1299, %v1457, %v1459
      %v1461 = vrot.slane %v937, 1
      %v1462 = vsel %vm1299, %v1459, %v1461
      %v1463 = vrot.slane %v938, 1
      %v1464 = vsel %vm1299, %v1461, %v1463
      %v1465 = vrot.slane %v939, 1
      %v1466 = vrot.slane %v940, 1
      %v1467 = vsel %vm1299, %v1465, %v1466
      %v1468 = vrot.slane %v941, 1
      %v1469 = vsel %vm1299, %v1466, %v1468
      %v1470 = vrot.slane %v942, 1
      %v1471 = vsel %vm1299, %v1468, %v1470
      %v1472 = vrot.slane %v943, 1
      %v1473 = vsel %vm1299, %v1470, %v1472
      %v1474 = vrot.slane %v944, 1
      %v1475 = vsel %vm1299, %v1472, %v1474
      %v1476 = vrot.slane %v945, 1
      %v1477 = vsel %vm1299, %v1474, %v1476
      %v1478 = vrot.slane %v946, 1
      %v1479 = vsel %vm1299, %v1476, %v1478
      %v1480 = vrot.slane %v947, 1
      %v1481 = vrot.slane %v948, 1
      %v1482 = vsel %vm1299, %v1480, %v1481
      %v1483 = vrot.slane %v949, 1
      %v1484 = vsel %vm1299, %v1481, %v1483
      %v1485 = vrot.slane %v950, 1
      %v1486 = vsel %vm1299, %v1483, %v1485
      %v1487 = vrot.slane %v951, 1
      %v1488 = vsel %vm1299, %v1485, %v1487
      %v1489 = vrot.slane %v952, 1
      %v1490 = vsel %vm1299, %v1487, %v1489
      %v1491 = vrot.slane %v953, 1
      %v1492 = vsel %vm1299, %v1489, %v1491
      %v1493 = vrot.slane %v954, 1
      %v1494 = vsel %vm1299, %v1491, %v1493
      %v1495 = vrot.slane %v955, 1
      %v1496 = vrot.slane %v956, 1
      %v1497 = vsel %vm1299, %v1495, %v1496
      %v1498 = vrot.slane %v957, 1
      %v1499 = vsel %vm1299, %v1496, %v1498
      %v1500 = vrot.slane %v958, 1
      %v1501 = vsel %vm1299, %v1498, %v1500
      %v1502 = vrot.slane %v959, 1
      %v1503 = vsel %vm1299, %v1500, %v1502
      %v1504 = vrot.slane %v960, 1
      %v1505 = vsel %vm1299, %v1502, %v1504
      %v1506 = vrot.slane %v961, 1
      %v1507 = vsel %vm1299, %v1504, %v1506
      %v1508 = vrot.slane %v962, 1
      %v1509 = vsel %vm1299, %v1506, %v1508
      %v1510 = vrot.slane %v963, 1
      %v1511 = vrot.slane %v964, 1
      %v1512 = vsel %vm1299, %v1510, %v1511
      %v1513 = vrot.slane %v965, 1
      %v1514 = vsel %vm1299, %v1511, %v1513
      %v1515 = vrot.slane %v966, 1
      %v1516 = vsel %vm1299, %v1513, %v1515
      %v1517 = vrot.slane %v967, 1
      %v1518 = vsel %vm1299, %v1515, %v1517
      %v1519 = vrot.slane %v968, 1
      %v1520 = vsel %vm1299, %v1517, %v1519
      %v1521 = vrot.slane %v969, 1
      %v1522 = vsel %vm1299, %v1519, %v1521
      %v1523 = vrot.slane %v970, 1
      %v1524 = vsel %vm1299, %v1521, %v1523
      %v1525 = vrot.slane %v971, 1
      %v1526 = vrot.slane %v972, 1
      %v1527 = vsel %vm1299, %v1525, %v1526
      %v1528 = vrot.slane %v973, 1
      %v1529 = vsel %vm1299, %v1526, %v1528
      %v1530 = vrot.slane %v974, 1
      %v1531 = vsel %vm1299, %v1528, %v1530
      %v1532 = vrot.slane %v975, 1
      %v1533 = vsel %vm1299, %v1530, %v1532
      %v1534 = vrot.slane %v976, 1
      %v1535 = vsel %vm1299, %v1532, %v1534
      %v1536 = vrot.slane %v977, 1
      %v1537 = vsel %vm1299, %v1534, %v1536
      %v1538 = vrot.slane %v978, 1
      %v1539 = vsel %vm1299, %v1536, %v1538
      %v1540 = vrot.slane %v979, 1
      %v1541 = vrot.slane %v980, 1
      %v1542 = vsel %vm1299, %v1540, %v1541
      %v1543 = vrot.slane %v981, 1
      %v1544 = vsel %vm1299, %v1541, %v1543
      %v1545 = vrot.slane %v982, 1
      %v1546 = vsel %vm1299, %v1543, %v1545
      %v1547 = vrot.slane %v983, 1
      %v1548 = vsel %vm1299, %v1545, %v1547
      %v1549 = vrot.slane %v984, 1
      %v1550 = vsel %vm1299, %v1547, %v1549
      %v1551 = vrot.slane %v985, 1
      %v1552 = vsel %vm1299, %v1549, %v1551
      %v1553 = vrot.slane %v986, 1
      %v1554 = vsel %vm1299, %v1551, %v1553
      %v1555 = vrot.slane %v987, 1
      %v1556 = vrot.slane %v988, 1
      %v1557 = vsel %vm1299, %v1555, %v1556
      %v1558 = vrot.slane %v989, 1
      %v1559 = vsel %vm1299, %v1556, %v1558
      %v1560 = vrot.slane %v990, 1
      %v1561 = vsel %vm1299, %v1558, %v1560
      %v1562 = vrot.slane %v991, 1
      %v1563 = vsel %vm1299, %v1560, %v1562
      %v1564 = vrot.slane %v992, 1
      %v1565 = vsel %vm1299, %v1562, %v1564
      %v1566 = vrot.slane %v993, 1
      %v1567 = vsel %vm1299, %v1564, %v1566
      %v1568 = vrot.slane %v994, 1
      %v1569 = vsel %vm1299, %v1566, %v1568
      %v1570 = vrot.slane %v995, 1
      %v1571 = vrot.slane %v996, 1
      %v1572 = vsel %vm1299, %v1570, %v1571
      %v1573 = vrot.slane %v997, 1
      %v1574 = vsel %vm1299, %v1571, %v1573
      %v1575 = vrot.slane %v998, 1
      %v1576 = vsel %vm1299, %v1573, %v1575
      %v1577 = vrot.slane %v999, 1
      %v1578 = vsel %vm1299, %v1575, %v1577
      %v1579 = vrot.slane %v1000, 1
      %v1580 = vsel %vm1299, %v1577, %v1579
      %v1581 = vrot.slane %v1001, 1
      %v1582 = vsel %vm1299, %v1579, %v1581
      %v1583 = vrot.slane %v1002, 1
      %v1584 = vsel %vm1299, %v1581, %v1583
      %v1585 = vrot.slane %v1003, 1
      %v1586 = vrot.slane %v1004, 1
      %v1587 = vsel %vm1299, %v1585, %v1586
      %v1588 = vrot.slane %v1005, 1
      %v1589 = vsel %vm1299, %v1586, %v1588
      %v1590 = vrot.slane %v1006, 1
      %v1591 = vsel %vm1299, %v1588, %v1590
      %v1592 = vrot.slane %v1007, 1
      %v1593 = vsel %vm1299, %v1590, %v1592
      %v1594 = vrot.slane %v1008, 1
      %v1595 = vsel %vm1299, %v1592, %v1594
      %v1596 = vrot.slane %v1009, 1
      %v1597 = vsel %vm1299, %v1594, %v1596
      %v1598 = vrot.slane %v1010, 1
      %v1599 = vsel %vm1299, %v1596, %v1598
      %v1600 = vrot.slane %v1011, 1
      %v1601 = vrot.slane %v1012, 1
      %v1602 = vsel %vm1299, %v1600, %v1601
      %v1603 = vrot.slane %v1013, 1
      %v1604 = vsel %vm1299, %v1601, %v1603
      %v1605 = vrot.slane %v1014, 1
      %v1606 = vsel %vm1299, %v1603, %v1605
      %v1607 = vrot.slane %v1015, 1
      %v1608 = vsel %vm1299, %v1605, %v1607
      %v1609 = vrot.slane %v1016, 1
      %v1610 = vsel %vm1299, %v1607, %v1609
      %v1611 = vrot.slane %v1017, 1
      %v1612 = vsel %vm1299, %v1609, %v1611
      %v1613 = vrot.slane %v1018, 1
      %v1614 = vsel %vm1299, %v1611, %v1613
      %v1615 = vrot.slane %v1019, 1
      %v1616 = vrot.slane %v1020, 1
      %v1617 = vsel %vm1299, %v1615, %v1616
      %v1618 = vrot.slane %v1021, 1
      %v1619 = vsel %vm1299, %v1616, %v1618
      %v1620 = vrot.slane %v1022, 1
      %v1621 = vsel %vm1299, %v1618, %v1620
      %v1622 = vrot.slane %v1023, 1
      %v1623 = vsel %vm1299, %v1620, %v1622
      %v1624 = vrot.slane %v1024, 1
      %v1625 = vsel %vm1299, %v1622, %v1624
      %v1626 = vrot.slane %v1025, 1
      %v1627 = vsel %vm1299, %v1624, %v1626
      %v1628 = vrot.slane %v1026, 1
      %v1629 = vsel %vm1299, %v1626, %v1628
      %v1630 = vrot.slane %v1027, 1
      %v1631 = vrot.slane %v1028, 1
      %v1632 = vsel %vm1299, %v1630, %v1631
      %v1633 = vrot.slane %v1029, 1
      %v1634 = vsel %vm1299, %v1631, %v1633
      %v1635 = vrot.slane %v1030, 1
      %v1636 = vsel %vm1299, %v1633, %v1635
      %v1637 = vrot.slane %v1031, 1
      %v1638 = vsel %vm1299, %v1635, %v1637
      %v1639 = vrot.slane %v1032, 1
      %v1640 = vsel %vm1299, %v1637, %v1639
      %v1641 = vrot.slane %v1033, 1
      %v1642 = vsel %vm1299, %v1639, %v1641
      %v1643 = vrot.slane %v1034, 1
      %v1644 = vsel %vm1299, %v1641, %v1643
      %v1645 = vrot.slane %v1035, 1
      %v1646 = vrot.slane %v1036, 1
      %v1647 = vsel %vm1299, %v1645, %v1646
      %v1648 = vrot.slane %v1037, 1
      %v1649 = vsel %vm1299, %v1646, %v1648
      %v1650 = vrot.slane %v1038, 1
      %v1651 = vsel %vm1299, %v1648, %v1650
      %v1652 = vrot.slane %v1039, 1
      %v1653 = vsel %vm1299, %v1650, %v1652
      %v1654 = vrot.slane %v1040, 1
      %v1655 = vsel %vm1299, %v1652, %v1654
      %v1656 = vrot.slane %v1041, 1
      %v1657 = vsel %vm1299, %v1654, %v1656
      %v1658 = vrot.slane %v1042, 1
      %v1659 = vsel %vm1299, %v1656, %v1658
      %v1660 = vrot.slane %v1043, 1
      %v1661 = vrot.slane %v1044, 1
      %v1662 = vsel %vm1299, %v1660, %v1661
      %v1663 = vrot.slane %v1045, 1
      %v1664 = vsel %vm1299, %v1661, %v1663
      %v1665 = vrot.slane %v1046, 1
      %v1666 = vsel %vm1299, %v1663, %v1665
      %v1667 = vrot.slane %v1047, 1
      %v1668 = vsel %vm1299, %v1665, %v1667
      %v1669 = vrot.slane %v1048, 1
      %v1670 = vsel %vm1299, %v1667, %v1669
      %v1671 = vrot.slane %v1049, 1
      %v1672 = vsel %vm1299, %v1669, %v1671
      %v1673 = vrot.slane %v1050, 1
      %v1674 = vsel %vm1299, %v1671, %v1673
      %v1675 = vrot.slane %v1051, 1
      %v1676 = vrot.slane %v1052, 1
      %v1677 = vsel %vm1299, %v1675, %v1676
      %v1678 = vrot.slane %v1053, 1
      %v1679 = vsel %vm1299, %v1676, %v1678
      %v1680 = vrot.slane %v1054, 1
      %v1681 = vsel %vm1299, %v1678, %v1680
      %v1682 = vrot.slane %v1055, 1
      %v1683 = vsel %vm1299, %v1680, %v1682
      %v1684 = vrot.slane %v1056, 1
      %v1685 = vsel %vm1299, %v1682, %v1684
      %v1686 = vrot.slane %v1057, 1
      %v1687 = vsel %vm1299, %v1684, %v1686
      %v1688 = vrot.slane %v1058, 1
      %v1689 = vsel %vm1299, %v1686, %v1688
      %v1690 = vrot.slane %v1059, 1
      %v1691 = vrot.slane %v1060, 1
      %v1692 = vsel %vm1299, %v1690, %v1691
      %v1693 = vrot.slane %v1061, 1
      %v1694 = vsel %vm1299, %v1691, %v1693
      %v1695 = vrot.slane %v1062, 1
      %v1696 = vsel %vm1299, %v1693, %v1695
      %v1697 = vrot.slane %v1063, 1
      %v1698 = vsel %vm1299, %v1695, %v1697
      %v1699 = vrot.slane %v1064, 1
      %v1700 = vsel %vm1299, %v1697, %v1699
      %v1701 = vrot.slane %v1065, 1
      %v1702 = vsel %vm1299, %v1699, %v1701
      %v1703 = vrot.slane %v1066, 1
      %v1704 = vsel %vm1299, %v1701, %v1703
      %v1705 = vrot.slane %v1067, 1
      %v1706 = vrot.slane %v1068, 1
      %v1707 = vsel %vm1299, %v1705, %v1706
      %v1708 = vrot.slane %v1069, 1
      %v1709 = vsel %vm1299, %v1706, %v1708
      %v1710 = vrot.slane %v1070, 1
      %v1711 = vsel %vm1299, %v1708, %v1710
      %v1712 = vrot.slane %v1071, 1
      %v1713 = vsel %vm1299, %v1710, %v1712
      %v1714 = vrot.slane %v1072, 1
      %v1715 = vsel %vm1299, %v1712, %v1714
      %v1716 = vrot.slane %v1073, 1
      %v1717 = vsel %vm1299, %v1714, %v1716
      %v1718 = vrot.slane %v1074, 1
      %v1719 = vsel %vm1299, %v1716, %v1718
      %v1916 = vadd.f32 %v651, %v1302
      %v1917 = vadd.f32 %v652, %v1304
      %v1918 = vadd.f32 %v653, %v1306
      %v1919 = vadd.f32 %v654, %v1308
      %v1920 = vadd.f32 %v655, %v1310
      %v1921 = vadd.f32 %v656, %v1312
      %v1922 = vadd.f32 %v657, %v1314
      %v1923 = vadd.f32 %v658, %v1317
      %v1924 = vadd.f32 %v659, %v1319
      %v1925 = vadd.f32 %v660, %v1321
      %v1926 = vadd.f32 %v661, %v1323
      %v1927 = vadd.f32 %v662, %v1325
      %v1928 = vadd.f32 %v663, %v1327
      %v1929 = vadd.f32 %v664, %v1329
      %v1930 = vadd.f32 %v665, %v1332
      %v1931 = vadd.f32 %v666, %v1334
      %v1932 = vadd.f32 %v667, %v1336
      %v1933 = vadd.f32 %v668, %v1338
      %v1934 = vadd.f32 %v669, %v1340
      %v1935 = vadd.f32 %v670, %v1342
      %v1936 = vadd.f32 %v671, %v1344
      %v1937 = vadd.f32 %v672, %v1347
      %v1938 = vadd.f32 %v673, %v1349
      %v1939 = vadd.f32 %v674, %v1351
      %v1940 = vadd.f32 %v675, %v1353
      %v1941 = vadd.f32 %v676, %v1355
      %v1942 = vadd.f32 %v677, %v1357
      %v1943 = vadd.f32 %v678, %v1359
      %v1944 = vadd.f32 %v679, %v1362
      %v1945 = vadd.f32 %v680, %v1364
      %v1946 = vadd.f32 %v681, %v1366
      %v1947 = vadd.f32 %v682, %v1368
      %v1948 = vadd.f32 %v683, %v1370
      %v1949 = vadd.f32 %v684, %v1372
      %v1950 = vadd.f32 %v685, %v1374
      %v1951 = vadd.f32 %v686, %v1377
      %v1952 = vadd.f32 %v687, %v1379
      %v1953 = vadd.f32 %v688, %v1381
      %v1954 = vadd.f32 %v689, %v1383
      %v1955 = vadd.f32 %v690, %v1385
      %v1956 = vadd.f32 %v691, %v1387
      %v1957 = vadd.f32 %v692, %v1389
      %v1958 = vadd.f32 %v693, %v1392
      %v1959 = vadd.f32 %v694, %v1394
      %v1960 = vadd.f32 %v695, %v1396
      %v1961 = vadd.f32 %v696, %v1398
      %v1962 = vadd.f32 %v697, %v1400
      %v1963 = vadd.f32 %v698, %v1402
      %v1964 = vadd.f32 %v699, %v1404
      %v1965 = vadd.f32 %v700, %v1407
      %v1966 = vadd.f32 %v701, %v1409
      %v1967 = vadd.f32 %v702, %v1411
      %v1968 = vadd.f32 %v703, %v1413
      %v1969 = vadd.f32 %v704, %v1415
      %v1970 = vadd.f32 %v705, %v1417
      %v1971 = vadd.f32 %v706, %v1419
      %v1972 = vadd.f32 %v707, %v1422
      %v1973 = vadd.f32 %v708, %v1424
      %v1974 = vadd.f32 %v709, %v1426
      %v1975 = vadd.f32 %v710, %v1428
      %v1976 = vadd.f32 %v711, %v1430
      %v1977 = vadd.f32 %v712, %v1432
      %v1978 = vadd.f32 %v713, %v1434
      %v1979 = vadd.f32 %v714, %v1437
      %v1980 = vadd.f32 %v715, %v1439
      %v1981 = vadd.f32 %v716, %v1441
      %v1982 = vadd.f32 %v717, %v1443
      %v1983 = vadd.f32 %v718, %v1445
      %v1984 = vadd.f32 %v719, %v1447
      %v1985 = vadd.f32 %v720, %v1449
      %v1986 = vadd.f32 %v721, %v1452
      %v1987 = vadd.f32 %v722, %v1454
      %v1988 = vadd.f32 %v723, %v1456
      %v1989 = vadd.f32 %v724, %v1458
      %v1990 = vadd.f32 %v725, %v1460
      %v1991 = vadd.f32 %v726, %v1462
      %v1992 = vadd.f32 %v727, %v1464
      %v1993 = vadd.f32 %v728, %v1467
      %v1994 = vadd.f32 %v729, %v1469
      %v1995 = vadd.f32 %v730, %v1471
      %v1996 = vadd.f32 %v731, %v1473
      %v1997 = vadd.f32 %v732, %v1475
      %v1998 = vadd.f32 %v733, %v1477
      %v1999 = vadd.f32 %v734, %v1479
      %v2000 = vadd.f32 %v735, %v1482
      %v2001 = vadd.f32 %v736, %v1484
      %v2002 = vadd.f32 %v737, %v1486
      %v2003 = vadd.f32 %v738, %v1488
      %v2004 = vadd.f32 %v739, %v1490
      %v2005 = vadd.f32 %v740, %v1492
      %v2006 = vadd.f32 %v741, %v1494
      %v2007 = vadd.f32 %v742, %v1497
      %v2008 = vadd.f32 %v743, %v1499
      %v2009 = vadd.f32 %v744, %v1501
      %v2010 = vadd.f32 %v745, %v1503
      %v2011 = vadd.f32 %v746, %v1505
      %v2012 = vadd.f32 %v747, %v1507
      %v2013 = vadd.f32 %v748, %v1509
      %v2014 = vadd.f32 %v749, %v1512
      %v2015 = vadd.f32 %v750, %v1514
      %v2016 = vadd.f32 %v751, %v1516
      %v2017 = vadd.f32 %v752, %v1518
      %v2018 = vadd.f32 %v753, %v1520
      %v2019 = vadd.f32 %v754, %v1522
      %v2020 = vadd.f32 %v755, %v1524
      %v2021 = vadd.f32 %v756, %v1527
      %v2022 = vadd.f32 %v757, %v1529
      %v2023 = vadd.f32 %v758, %v1531
      %v2024 = vadd.f32 %v759, %v1533
      %v2025 = vadd.f32 %v760, %v1535
      %v2026 = vadd.f32 %v761, %v1537
      %v2027 = vadd.f32 %v762, %v1539
      %v2028 = vadd.f32 %v763, %v1542
      %v2029 = vadd.f32 %v764, %v1544
      %v2030 = vadd.f32 %v765, %v1546
      %v2031 = vadd.f32 %v766, %v1548
      %v2032 = vadd.f32 %v767, %v1550
      %v2033 = vadd.f32 %v768, %v1552
      %v2034 = vadd.f32 %v769, %v1554
      %v2035 = vadd.f32 %v770, %v1557
      %v2036 = vadd.f32 %v771, %v1559
      %v2037 = vadd.f32 %v772, %v1561
      %v2038 = vadd.f32 %v773, %v1563
      %v2039 = vadd.f32 %v774, %v1565
      %v2040 = vadd.f32 %v775, %v1567
      %v2041 = vadd.f32 %v776, %v1569
      %v2042 = vadd.f32 %v777, %v1572
      %v2043 = vadd.f32 %v778, %v1574
      %v2044 = vadd.f32 %v779, %v1576
      %v2045 = vadd.f32 %v780, %v1578
      %v2046 = vadd.f32 %v781, %v1580
      %v2047 = vadd.f32 %v782, %v1582
      %v2048 = vadd.f32 %v783, %v1584
      %v2049 = vadd.f32 %v784, %v1587
      %v2050 = vadd.f32 %v785, %v1589
      %v2051 = vadd.f32 %v786, %v1591
      %v2052 = vadd.f32 %v787, %v1593
      %v2053 = vadd.f32 %v788, %v1595
      %v2054 = vadd.f32 %v789, %v1597
      %v2055 = vadd.f32 %v790, %v1599
      %v2056 = vadd.f32 %v791, %v1602
      %v2057 = vadd.f32 %v792, %v1604
      %v2058 = vadd.f32 %v793, %v1606
      %v2059 = vadd.f32 %v794, %v1608
      %v2060 = vadd.f32 %v795, %v1610
      %v2061 = vadd.f32 %v796, %v1612
      %v2062 = vadd.f32 %v797, %v1614
      %v2063 = vadd.f32 %v798, %v1617
      %v2064 = vadd.f32 %v799, %v1619
      %v2065 = vadd.f32 %v800, %v1621
      %v2066 = vadd.f32 %v801, %v1623
      %v2067 = vadd.f32 %v802, %v1625
      %v2068 = vadd.f32 %v803, %v1627
      %v2069 = vadd.f32 %v804, %v1629
      %v2070 = vadd.f32 %v805, %v1632
      %v2071 = vadd.f32 %v806, %v1634
      %v2072 = vadd.f32 %v807, %v1636
      %v2073 = vadd.f32 %v808, %v1638
      %v2074 = vadd.f32 %v809, %v1640
      %v2075 = vadd.f32 %v810, %v1642
      %v2076 = vadd.f32 %v811, %v1644
      %v2077 = vadd.f32 %v812, %v1647
      %v2078 = vadd.f32 %v813, %v1649
      %v2079 = vadd.f32 %v814, %v1651
      %v2080 = vadd.f32 %v815, %v1653
      %v2081 = vadd.f32 %v816, %v1655
      %v2082 = vadd.f32 %v817, %v1657
      %v2083 = vadd.f32 %v818, %v1659
      %v2084 = vadd.f32 %v819, %v1662
      %v2085 = vadd.f32 %v820, %v1664
      %v2086 = vadd.f32 %v821, %v1666
      %v2087 = vadd.f32 %v822, %v1668
      %v2088 = vadd.f32 %v823, %v1670
      %v2089 = vadd.f32 %v824, %v1672
      %v2090 = vadd.f32 %v825, %v1674
      %v2091 = vadd.f32 %v826, %v1677
      %v2092 = vadd.f32 %v827, %v1679
      %v2093 = vadd.f32 %v828, %v1681
      %v2094 = vadd.f32 %v829, %v1683
      %v2095 = vadd.f32 %v830, %v1685
      %v2096 = vadd.f32 %v831, %v1687
      %v2097 = vadd.f32 %v832, %v1689
      %v2098 = vadd.f32 %v833, %v1692
      %v2099 = vadd.f32 %v834, %v1694
      %v2100 = vadd.f32 %v835, %v1696
      %v2101 = vadd.f32 %v836, %v1698
      %v2102 = vadd.f32 %v837, %v1700
      %v2103 = vadd.f32 %v838, %v1702
      %v2104 = vadd.f32 %v839, %v1704
      %v2105 = vadd.f32 %v840, %v1707
      %v2106 = vadd.f32 %v841, %v1709
      %v2107 = vadd.f32 %v842, %v1711
      %v2108 = vadd.f32 %v843, %v1713
      %v2109 = vadd.f32 %v844, %v1715
      %v2110 = vadd.f32 %v845, %v1717
      %v2111 = vadd.f32 %v846, %v1719
      %v2112 = vlaneseq
      %v2113 = vshrl.u32 %v2112, 7
      %v2114 = vsub.s32 2, %v2113
      %v2115 = vrot.slane %v207, %v2114
      %v2116 = vmul.f32 %v211, %v2115
      %v2117 = vmul.f32 %v212, %v2115
      %v2118 = vmul.f32 %v213, %v2115
      %v2119 = vmul.f32 %v214, %v2115
      %v2120 = vmul.f32 %v215, %v2115
      %v2121 = vmul.f32 %v216, %v2115
      %v2122 = vmul.f32 %v217, %v2115
      %v2123 = vmul.f32 %v218, %v2115
      %v2124 = vmul.f32 %v219, %v2115
      %v2125 = vmul.f32 %v220, %v2115
      %v2126 = vmul.f32 %v221, %v2115
      %v2127 = vmul.f32 %v222, %v2115
      %v2128 = vmul.f32 %v223, %v2115
      %v2129 = vmul.f32 %v224, %v2115
      %v2130 = vmul.f32 %v225, %v2115
      %v2131 = vmul.f32 %v226, %v2115
      %v2132 = vmul.f32 %v227, %v2115
      %v2133 = vmul.f32 %v228, %v2115
      %v2134 = vmul.f32 %v229, %v2115
      %v2135 = vmul.f32 %v230, %v2115
      %v2136 = vmul.f32 %v231, %v2115
      %v2137 = vmul.f32 %v232, %v2115
      %v2138 = vmul.f32 %v233, %v2115
      %v2139 = vmul.f32 %v234, %v2115
      %v2140 = vmul.f32 %v235, %v2115
      %v2141 = vmul.f32 %v236, %v2115
      %v2142 = vmul.f32 %v237, %v2115
      %v2143 = vmul.f32 %v238, %v2115
      %v2144 = vmul.f32 %v239, %v2115
      %v2145 = vmul.f32 %v240, %v2115
      %v2146 = vmul.f32 %v241, %v2115
      %v2147 = vmul.f32 %v242, %v2115
      %v2148 = vmul.f32 %v243, %v2115
      %v2149 = vmul.f32 %v244, %v2115
      %v2150 = vmul.f32 %v245, %v2115
      %v2151 = vmul.f32 %v246, %v2115
      %v2152 = vmul.f32 %v247, %v2115
      %v2153 = vmul.f32 %v248, %v2115
      %v2154 = vmul.f32 %v249, %v2115
      %v2155 = vmul.f32 %v250, %v2115
      %v2156 = vmul.f32 %v251, %v2115
      %v2157 = vmul.f32 %v252, %v2115
      %v2158 = vmul.f32 %v253, %v2115
      %v2159 = vmul.f32 %v254, %v2115
      %v2160 = vmul.f32 %v255, %v2115
      %v2161 = vmul.f32 %v256, %v2115
      %v2162 = vmul.f32 %v257, %v2115
      %v2163 = vmul.f32 %v258, %v2115
      %v2164 = vmul.f32 %v259, %v2115
      %v2165 = vmul.f32 %v260, %v2115
      %v2166 = vmul.f32 %v261, %v2115
      %v2167 = vmul.f32 %v262, %v2115
      %v2168 = vmul.f32 %v263, %v2115
      %v2169 = vmul.f32 %v264, %v2115
      %v2170 = vmul.f32 %v265, %v2115
      %v2171 = vmul.f32 %v266, %v2115
      %v2172 = vmul.f32 %v267, %v2115
      %v2173 = vmul.f32 %v268, %v2115
      %v2174 = vmul.f32 %v269, %v2115
      %v2175 = vmul.f32 %v270, %v2115
      %v2176 = vmul.f32 %v271, %v2115
      %v2177 = vmul.f32 %v272, %v2115
      %v2178 = vmul.f32 %v273, %v2115
      %v2179 = vmul.f32 %v274, %v2115
      %v2180 = vmul.f32 %v275, %v2115
      %v2181 = vmul.f32 %v276, %v2115
      %v2182 = vmul.f32 %v277, %v2115
      %v2183 = vmul.f32 %v278, %v2115
      %v2184 = vmul.f32 %v279, %v2115
      %v2185 = vmul.f32 %v280, %v2115
      %v2186 = vmul.f32 %v281, %v2115
      %v2187 = vmul.f32 %v282, %v2115
      %v2188 = vmul.f32 %v283, %v2115
      %v2189 = vmul.f32 %v284, %v2115
      %v2190 = vmul.f32 %v285, %v2115
      %v2191 = vmul.f32 %v286, %v2115
      %v2192 = vmul.f32 %v287, %v2115
      %v2193 = vmul.f32 %v288, %v2115
      %v2194 = vmul.f32 %v289, %v2115
      %v2195 = vmul.f32 %v290, %v2115
      %v2196 = vmul.f32 %v291, %v2115
      %v2197 = vmul.f32 %v292, %v2115
      %v2198 = vmul.f32 %v293, %v2115
      %v2199 = vmul.f32 %v294, %v2115
      %v2200 = vmul.f32 %v295, %v2115
      %v2201 = vmul.f32 %v296, %v2115
      %v2202 = vmul.f32 %v297, %v2115
      %v2203 = vmul.f32 %v298, %v2115
      %v2204 = vmul.f32 %v299, %v2115
      %v2205 = vmul.f32 %v300, %v2115
      %v2206 = vmul.f32 %v301, %v2115
      %v2207 = vmul.f32 %v302, %v2115
      %v2208 = vmul.f32 %v303, %v2115
      %v2209 = vmul.f32 %v304, %v2115
      %v2210 = vmul.f32 %v305, %v2115
      %v2211 = vmul.f32 %v306, %v2115
      %v2212 = vmul.f32 %v307, %v2115
      %v2213 = vmul.f32 %v308, %v2115
      %v2214 = vmul.f32 %v309, %v2115
      %v2215 = vmul.f32 %v310, %v2115
      %v2216 = vmul.f32 %v311, %v2115
      %v2217 = vmul.f32 %v312, %v2115
      %v2218 = vmul.f32 %v313, %v2115
      %v2219 = vmul.f32 %v314, %v2115
      %v2220 = vmul.f32 %v315, %v2115
      %v2221 = vmul.f32 %v316, %v2115
      %v2222 = vmul.f32 %v317, %v2115
      %v2223 = vmul.f32 %v318, %v2115
      %v2224 = vmul.f32 %v319, %v2115
      %v2225 = vmul.f32 %v320, %v2115
      %v2226 = vmul.f32 %v321, %v2115
      %v2227 = vmul.f32 %v322, %v2115
      %v2228 = vmul.f32 %v323, %v2115
      %v2229 = vmul.f32 %v324, %v2115
      %v2230 = vmul.f32 %v325, %v2115
      %v2231 = vmul.f32 %v326, %v2115
      %v2232 = vmul.f32 %v327, %v2115
      %v2233 = vmul.f32 %v328, %v2115
      %v2234 = vmul.f32 %v329, %v2115
      %v2235 = vmul.f32 %v330, %v2115
      %v2236 = vmul.f32 %v331, %v2115
      %v2237 = vmul.f32 %v332, %v2115
      %v2238 = vmul.f32 %v333, %v2115
      %v2239 = vmul.f32 %v334, %v2115
      %v2240 = vmul.f32 %v335, %v2115
      %v2241 = vmul.f32 %v336, %v2115
      %v2242 = vmul.f32 %v337, %v2115
      %v2243 = vmul.f32 %v338, %v2115
      %v2244 = vmul.f32 %v339, %v2115
      %v2245 = vmul.f32 %v340, %v2115
      %v2246 = vmul.f32 %v341, %v2115
      %v2247 = vmul.f32 %v342, %v2115
      %v2248 = vmul.f32 %v343, %v2115
      %v2249 = vmul.f32 %v344, %v2115
      %v2250 = vmul.f32 %v345, %v2115
      %v2251 = vmul.f32 %v346, %v2115
      %v2252 = vmul.f32 %v347, %v2115
      %v2253 = vmul.f32 %v348, %v2115
      %v2254 = vmul.f32 %v349, %v2115
      %v2255 = vmul.f32 %v350, %v2115
      %v2256 = vmul.f32 %v351, %v2115
      %v2257 = vmul.f32 %v352, %v2115
      %v2258 = vmul.f32 %v353, %v2115
      %v2259 = vmul.f32 %v354, %v2115
      %v2260 = vmul.f32 %v355, %v2115
      %v2261 = vmul.f32 %v356, %v2115
      %v2262 = vmul.f32 %v357, %v2115
      %v2263 = vmul.f32 %v358, %v2115
      %v2264 = vmul.f32 %v359, %v2115
      %v2265 = vmul.f32 %v360, %v2115
      %v2266 = vmul.f32 %v361, %v2115
      %v2267 = vmul.f32 %v362, %v2115
      %v2268 = vmul.f32 %v363, %v2115
      %v2269 = vmul.f32 %v364, %v2115
      %v2270 = vmul.f32 %v365, %v2115
      %v2271 = vmul.f32 %v366, %v2115
      %v2272 = vmul.f32 %v367, %v2115
      %v2273 = vmul.f32 %v368, %v2115
      %v2274 = vmul.f32 %v369, %v2115
      %v2275 = vmul.f32 %v370, %v2115
      %v2276 = vmul.f32 %v371, %v2115
      %v2277 = vmul.f32 %v372, %v2115
      %v2278 = vmul.f32 %v373, %v2115
      %v2279 = vmul.f32 %v374, %v2115
      %v2280 = vmul.f32 %v375, %v2115
      %v2281 = vmul.f32 %v376, %v2115
      %v2282 = vmul.f32 %v377, %v2115
      %v2283 = vmul.f32 %v378, %v2115
      %v2284 = vmul.f32 %v379, %v2115
      %v2285 = vmul.f32 %v380, %v2115
      %v2286 = vmul.f32 %v381, %v2115
      %v2287 = vmul.f32 %v382, %v2115
      %v2288 = vmul.f32 %v383, %v2115
      %v2289 = vmul.f32 %v384, %v2115
      %v2290 = vmul.f32 %v385, %v2115
      %v2291 = vmul.f32 %v386, %v2115
      %v2292 = vmul.f32 %v387, %v2115
      %v2293 = vmul.f32 %v388, %v2115
      %v2294 = vmul.f32 %v389, %v2115
      %v2295 = vmul.f32 %v390, %v2115
      %v2296 = vmul.f32 %v391, %v2115
      %v2297 = vmul.f32 %v392, %v2115
      %v2298 = vmul.f32 %v393, %v2115
      %v2299 = vmul.f32 %v394, %v2115
      %v2300 = vmul.f32 %v395, %v2115
      %v2301 = vmul.f32 %v396, %v2115
      %v2302 = vmul.f32 %v397, %v2115
      %v2303 = vmul.f32 %v398, %v2115
      %v2304 = vmul.f32 %v399, %v2115
      %v2305 = vmul.f32 %v400, %v2115
      %v2306 = vmul.f32 %v401, %v2115
      %v2307 = vmul.f32 %v402, %v2115
      %v2308 = vmul.f32 %v403, %v2115
      %v2309 = vmul.f32 %v404, %v2115
      %v2310 = vmul.f32 %v405, %v2115
      %v2311 = vmul.f32 %v406, %v2115
      %v2312 = vmul.f32 %v407, %v2115
      %v2313 = vmul.f32 %v408, %v2115
      %v2314 = vmul.f32 %v409, %v2115
      %v2315 = vmul.f32 %v410, %v2115
      %v2316 = vmul.f32 %v411, %v2115
      %v2317 = vmul.f32 %v412, %v2115
      %v2318 = vmul.f32 %v413, %v2115
      %v2319 = vmul.f32 %v414, %v2115
      %v2320 = vmul.f32 %v415, %v2115
      %v2321 = vmul.f32 %v416, %v2115
      %v2322 = vmul.f32 %v417, %v2115
      %v2323 = vmul.f32 %v418, %v2115
      %v2324 = vmul.f32 %v419, %v2115
      %v2325 = vmul.f32 %v420, %v2115
      %v2326 = vmul.f32 %v421, %v2115
      %v2327 = vmul.f32 %v422, %v2115
      %v2328 = vmul.f32 %v423, %v2115
      %v2329 = vmul.f32 %v424, %v2115
      %v2330 = vmul.f32 %v425, %v2115
      %v2331 = vmul.f32 %v426, %v2115
      %v2332 = vmul.f32 %v427, %v2115
      %v2333 = vmul.f32 %v428, %v2115
      %v2334 = vmul.f32 %v429, %v2115
      %v2335 = vmul.f32 %v430, %v2115
      %v2336 = vmul.f32 %v431, %v2115
      %v2337 = vmul.f32 %v432, %v2115
      %v2338 = vmul.f32 %v433, %v2115
      %v2339 = vmul.f32 %v434, %v2115
      %vm2564 = vcmask 1045504
      %v2565 = vrot.slane %v2116, 2
      %v2566 = vrot.slane %v2117, 2
      %v2567 = vsel %vm2564, %v2565, %v2566
      %v2568 = vrot.slane %v2118, 2
      %v2569 = vsel %vm2564, %v2566, %v2568
      %v2570 = vrot.slane %v2119, 2
      %v2571 = vsel %vm2564, %v2568, %v2570
      %v2572 = vrot.slane %v2120, 2
      %v2573 = vsel %vm2564, %v2570, %v2572
      %v2574 = vrot.slane %v2121, 2
      %v2575 = vsel %vm2564, %v2572, %v2574
      %v2576 = vrot.slane %v2122, 2
      %v2577 = vsel %vm2564, %v2574, %v2576
      %v2578 = vrot.slane %v2123, 2
      %v2579 = vsel %vm2564, %v2576, %v2578
      %v2580 = vrot.slane %v2124, 2
      %v2581 = vrot.slane %v2125, 2
      %v2582 = vsel %vm2564, %v2580, %v2581
      %v2583 = vrot.slane %v2126, 2
      %v2584 = vsel %vm2564, %v2581, %v2583
      %v2585 = vrot.slane %v2127, 2
      %v2586 = vsel %vm2564, %v2583, %v2585
      %v2587 = vrot.slane %v2128, 2
      %v2588 = vsel %vm2564, %v2585, %v2587
      %v2589 = vrot.slane %v2129, 2
      %v2590 = vsel %vm2564, %v2587, %v2589
      %v2591 = vrot.slane %v2130, 2
      %v2592 = vsel %vm2564, %v2589, %v2591
      %v2593 = vrot.slane %v2131, 2
      %v2594 = vsel %vm2564, %v2591, %v2593
      %v2595 = vrot.slane %v2132, 2
      %v2596 = vrot.slane %v2133, 2
      %v2597 = vsel %vm2564, %v2595, %v2596
      %v2598 = vrot.slane %v2134, 2
      %v2599 = vsel %vm2564, %v2596, %v2598
      %v2600 = vrot.slane %v2135, 2
      %v2601 = vsel %vm2564, %v2598, %v2600
      %v2602 = vrot.slane %v2136, 2
      %v2603 = vsel %vm2564, %v2600, %v2602
      %v2604 = vrot.slane %v2137, 2
      %v2605 = vsel %vm2564, %v2602, %v2604
      %v2606 = vrot.slane %v2138, 2
      %v2607 = vsel %vm2564, %v2604, %v2606
      %v2608 = vrot.slane %v2139, 2
      %v2609 = vsel %vm2564, %v2606, %v2608
      %v2610 = vrot.slane %v2140, 2
      %v2611 = vrot.slane %v2141, 2
      %v2612 = vsel %vm2564, %v2610, %v2611
      %v2613 = vrot.slane %v2142, 2
      %v2614 = vsel %vm2564, %v2611, %v2613
      %v2615 = vrot.slane %v2143, 2
      %v2616 = vsel %vm2564, %v2613, %v2615
      %v2617 = vrot.slane %v2144, 2
      %v2618 = vsel %vm2564, %v2615, %v2617
      %v2619 = vrot.slane %v2145, 2
      %v2620 = vsel %vm2564, %v2617, %v2619
      %v2621 = vrot.slane %v2146, 2
      %v2622 = vsel %vm2564, %v2619, %v2621
      %v2623 = vrot.slane %v2147, 2
      %v2624 = vsel %vm2564, %v2621, %v2623
      %v2625 = vrot.slane %v2148, 2
      %v2626 = vrot.slane %v2149, 2
      %v2627 = vsel %vm2564, %v2625, %v2626
      %v2628 = vrot.slane %v2150, 2
      %v2629 = vsel %vm2564, %v2626, %v2628
      %v2630 = vrot.slane %v2151, 2
      %v2631 = vsel %vm2564, %v2628, %v2630
      %v2632 = vrot.slane %v2152, 2
      %v2633 = vsel %vm2564, %v2630, %v2632
      %v2634 = vrot.slane %v2153, 2
      %v2635 = vsel %vm2564, %v2632, %v2634
      %v2636 = vrot.slane %v2154, 2
      %v2637 = vsel %vm2564, %v2634, %v2636
      %v2638 = vrot.slane %v2155, 2
      %v2639 = vsel %vm2564, %v2636, %v2638
      %v2640 = vrot.slane %v2156, 2
      %v2641 = vrot.slane %v2157, 2
      %v2642 = vsel %vm2564, %v2640, %v2641
      %v2643 = vrot.slane %v2158, 2
      %v2644 = vsel %vm2564, %v2641, %v2643
      %v2645 = vrot.slane %v2159, 2
      %v2646 = vsel %vm2564, %v2643, %v2645
      %v2647 = vrot.slane %v2160, 2
      %v2648 = vsel %vm2564, %v2645, %v2647
      %v2649 = vrot.slane %v2161, 2
      %v2650 = vsel %vm2564, %v2647, %v2649
      %v2651 = vrot.slane %v2162, 2
      %v2652 = vsel %vm2564, %v2649, %v2651
      %v2653 = vrot.slane %v2163, 2
      %v2654 = vsel %vm2564, %v2651, %v2653
      %v2655 = vrot.slane %v2164, 2
      %v2656 = vrot.slane %v2165, 2
      %v2657 = vsel %vm2564, %v2655, %v2656
      %v2658 = vrot.slane %v2166, 2
      %v2659 = vsel %vm2564, %v2656, %v2658
      %v2660 = vrot.slane %v2167, 2
      %v2661 = vsel %vm2564, %v2658, %v2660
      %v2662 = vrot.slane %v2168, 2
      %v2663 = vsel %vm2564, %v2660, %v2662
      %v2664 = vrot.slane %v2169, 2
      %v2665 = vsel %vm2564, %v2662, %v2664
      %v2666 = vrot.slane %v2170, 2
      %v2667 = vsel %vm2564, %v2664, %v2666
      %v2668 = vrot.slane %v2171, 2
      %v2669 = vsel %vm2564, %v2666, %v2668
      %v2670 = vrot.slane %v2172, 2
      %v2671 = vrot.slane %v2173, 2
      %v2672 = vsel %vm2564, %v2670, %v2671
      %v2673 = vrot.slane %v2174, 2
      %v2674 = vsel %vm2564, %v2671, %v2673
      %v2675 = vrot.slane %v2175, 2
      %v2676 = vsel %vm2564, %v2673, %v2675
      %v2677 = vrot.slane %v2176, 2
      %v2678 = vsel %vm2564, %v2675, %v2677
      %v2679 = vrot.slane %v2177, 2
      %v2680 = vsel %vm2564, %v2677, %v2679
      %v2681 = vrot.slane %v2178, 2
      %v2682 = vsel %vm2564, %v2679, %v2681
      %v2683 = vrot.slane %v2179, 2
      %v2684 = vsel %vm2564, %v2681, %v2683
      %v2685 = vrot.slane %v2180, 2
      %v2686 = vrot.slane %v2181, 2
      %v2687 = vsel %vm2564, %v2685, %v2686
      %v2688 = vrot.slane %v2182, 2
      %v2689 = vsel %vm2564, %v2686, %v2688
      %v2690 = vrot.slane %v2183, 2
      %v2691 = vsel %vm2564, %v2688, %v2690
      %v2692 = vrot.slane %v2184, 2
      %v2693 = vsel %vm2564, %v2690, %v2692
      %v2694 = vrot.slane %v2185, 2
      %v2695 = vsel %vm2564, %v2692, %v2694
      %v2696 = vrot.slane %v2186, 2
      %v2697 = vsel %vm2564, %v2694, %v2696
      %v2698 = vrot.slane %v2187, 2
      %v2699 = vsel %vm2564, %v2696, %v2698
      %v2700 = vrot.slane %v2188, 2
      %v2701 = vrot.slane %v2189, 2
      %v2702 = vsel %vm2564, %v2700, %v2701
      %v2703 = vrot.slane %v2190, 2
      %v2704 = vsel %vm2564, %v2701, %v2703
      %v2705 = vrot.slane %v2191, 2
      %v2706 = vsel %vm2564, %v2703, %v2705
      %v2707 = vrot.slane %v2192, 2
      %v2708 = vsel %vm2564, %v2705, %v2707
      %v2709 = vrot.slane %v2193, 2
      %v2710 = vsel %vm2564, %v2707, %v2709
      %v2711 = vrot.slane %v2194, 2
      %v2712 = vsel %vm2564, %v2709, %v2711
      %v2713 = vrot.slane %v2195, 2
      %v2714 = vsel %vm2564, %v2711, %v2713
      %v2715 = vrot.slane %v2196, 2
      %v2716 = vrot.slane %v2197, 2
      %v2717 = vsel %vm2564, %v2715, %v2716
      %v2718 = vrot.slane %v2198, 2
      %v2719 = vsel %vm2564, %v2716, %v2718
      %v2720 = vrot.slane %v2199, 2
      %v2721 = vsel %vm2564, %v2718, %v2720
      %v2722 = vrot.slane %v2200, 2
      %v2723 = vsel %vm2564, %v2720, %v2722
      %v2724 = vrot.slane %v2201, 2
      %v2725 = vsel %vm2564, %v2722, %v2724
      %v2726 = vrot.slane %v2202, 2
      %v2727 = vsel %vm2564, %v2724, %v2726
      %v2728 = vrot.slane %v2203, 2
      %v2729 = vsel %vm2564, %v2726, %v2728
      %v2730 = vrot.slane %v2204, 2
      %v2731 = vrot.slane %v2205, 2
      %v2732 = vsel %vm2564, %v2730, %v2731
      %v2733 = vrot.slane %v2206, 2
      %v2734 = vsel %vm2564, %v2731, %v2733
      %v2735 = vrot.slane %v2207, 2
      %v2736 = vsel %vm2564, %v2733, %v2735
      %v2737 = vrot.slane %v2208, 2
      %v2738 = vsel %vm2564, %v2735, %v2737
      %v2739 = vrot.slane %v2209, 2
      %v2740 = vsel %vm2564, %v2737, %v2739
      %v2741 = vrot.slane %v2210, 2
      %v2742 = vsel %vm2564, %v2739, %v2741
      %v2743 = vrot.slane %v2211, 2
      %v2744 = vsel %vm2564, %v2741, %v2743
      %v2745 = vrot.slane %v2212, 2
      %v2746 = vrot.slane %v2213, 2
      %v2747 = vsel %vm2564, %v2745, %v2746
      %v2748 = vrot.slane %v2214, 2
      %v2749 = vsel %vm2564, %v2746, %v2748
      %v2750 = vrot.slane %v2215, 2
      %v2751 = vsel %vm2564, %v2748, %v2750
      %v2752 = vrot.slane %v2216, 2
      %v2753 = vsel %vm2564, %v2750, %v2752
      %v2754 = vrot.slane %v2217, 2
      %v2755 = vsel %vm2564, %v2752, %v2754
      %v2756 = vrot.slane %v2218, 2
      %v2757 = vsel %vm2564, %v2754, %v2756
      %v2758 = vrot.slane %v2219, 2
      %v2759 = vsel %vm2564, %v2756, %v2758
      %v2760 = vrot.slane %v2220, 2
      %v2761 = vrot.slane %v2221, 2
      %v2762 = vsel %vm2564, %v2760, %v2761
      %v2763 = vrot.slane %v2222, 2
      %v2764 = vsel %vm2564, %v2761, %v2763
      %v2765 = vrot.slane %v2223, 2
      %v2766 = vsel %vm2564, %v2763, %v2765
      %v2767 = vrot.slane %v2224, 2
      %v2768 = vsel %vm2564, %v2765, %v2767
      %v2769 = vrot.slane %v2225, 2
      %v2770 = vsel %vm2564, %v2767, %v2769
      %v2771 = vrot.slane %v2226, 2
      %v2772 = vsel %vm2564, %v2769, %v2771
      %v2773 = vrot.slane %v2227, 2
      %v2774 = vsel %vm2564, %v2771, %v2773
      %v2775 = vrot.slane %v2228, 2
      %v2776 = vrot.slane %v2229, 2
      %v2777 = vsel %vm2564, %v2775, %v2776
      %v2778 = vrot.slane %v2230, 2
      %v2779 = vsel %vm2564, %v2776, %v2778
      %v2780 = vrot.slane %v2231, 2
      %v2781 = vsel %vm2564, %v2778, %v2780
      %v2782 = vrot.slane %v2232, 2
      %v2783 = vsel %vm2564, %v2780, %v2782
      %v2784 = vrot.slane %v2233, 2
      %v2785 = vsel %vm2564, %v2782, %v2784
      %v2786 = vrot.slane %v2234, 2
      %v2787 = vsel %vm2564, %v2784, %v2786
      %v2788 = vrot.slane %v2235, 2
      %v2789 = vsel %vm2564, %v2786, %v2788
      %v2790 = vrot.slane %v2236, 2
      %v2791 = vrot.slane %v2237, 2
      %v2792 = vsel %vm2564, %v2790, %v2791
      %v2793 = vrot.slane %v2238, 2
      %v2794 = vsel %vm2564, %v2791, %v2793
      %v2795 = vrot.slane %v2239, 2
      %v2796 = vsel %vm2564, %v2793, %v2795
      %v2797 = vrot.slane %v2240, 2
      %v2798 = vsel %vm2564, %v2795, %v2797
      %v2799 = vrot.slane %v2241, 2
      %v2800 = vsel %vm2564, %v2797, %v2799
      %v2801 = vrot.slane %v2242, 2
      %v2802 = vsel %vm2564, %v2799, %v2801
      %v2803 = vrot.slane %v2243, 2
      %v2804 = vsel %vm2564, %v2801, %v2803
      %v2805 = vrot.slane %v2244, 2
      %v2806 = vrot.slane %v2245, 2
      %v2807 = vsel %vm2564, %v2805, %v2806
      %v2808 = vrot.slane %v2246, 2
      %v2809 = vsel %vm2564, %v2806, %v2808
      %v2810 = vrot.slane %v2247, 2
      %v2811 = vsel %vm2564, %v2808, %v2810
      %v2812 = vrot.slane %v2248, 2
      %v2813 = vsel %vm2564, %v2810, %v2812
      %v2814 = vrot.slane %v2249, 2
      %v2815 = vsel %vm2564, %v2812, %v2814
      %v2816 = vrot.slane %v2250, 2
      %v2817 = vsel %vm2564, %v2814, %v2816
      %v2818 = vrot.slane %v2251, 2
      %v2819 = vsel %vm2564, %v2816, %v2818
      %v2820 = vrot.slane %v2252, 2
      %v2821 = vrot.slane %v2253, 2
      %v2822 = vsel %vm2564, %v2820, %v2821
      %v2823 = vrot.slane %v2254, 2
      %v2824 = vsel %vm2564, %v2821, %v2823
      %v2825 = vrot.slane %v2255, 2
      %v2826 = vsel %vm2564, %v2823, %v2825
      %v2827 = vrot.slane %v2256, 2
      %v2828 = vsel %vm2564, %v2825, %v2827
      %v2829 = vrot.slane %v2257, 2
      %v2830 = vsel %vm2564, %v2827, %v2829
      %v2831 = vrot.slane %v2258, 2
      %v2832 = vsel %vm2564, %v2829, %v2831
      %v2833 = vrot.slane %v2259, 2
      %v2834 = vsel %vm2564, %v2831, %v2833
      %v2835 = vrot.slane %v2260, 2
      %v2836 = vrot.slane %v2261, 2
      %v2837 = vsel %vm2564, %v2835, %v2836
      %v2838 = vrot.slane %v2262, 2
      %v2839 = vsel %vm2564, %v2836, %v2838
      %v2840 = vrot.slane %v2263, 2
      %v2841 = vsel %vm2564, %v2838, %v2840
      %v2842 = vrot.slane %v2264, 2
      %v2843 = vsel %vm2564, %v2840, %v2842
      %v2844 = vrot.slane %v2265, 2
      %v2845 = vsel %vm2564, %v2842, %v2844
      %v2846 = vrot.slane %v2266, 2
      %v2847 = vsel %vm2564, %v2844, %v2846
      %v2848 = vrot.slane %v2267, 2
      %v2849 = vsel %vm2564, %v2846, %v2848
      %v2850 = vrot.slane %v2268, 2
      %v2851 = vrot.slane %v2269, 2
      %v2852 = vsel %vm2564, %v2850, %v2851
      %v2853 = vrot.slane %v2270, 2
      %v2854 = vsel %vm2564, %v2851, %v2853
      %v2855 = vrot.slane %v2271, 2
      %v2856 = vsel %vm2564, %v2853, %v2855
      %v2857 = vrot.slane %v2272, 2
      %v2858 = vsel %vm2564, %v2855, %v2857
      %v2859 = vrot.slane %v2273, 2
      %v2860 = vsel %vm2564, %v2857, %v2859
      %v2861 = vrot.slane %v2274, 2
      %v2862 = vsel %vm2564, %v2859, %v2861
      %v2863 = vrot.slane %v2275, 2
      %v2864 = vsel %vm2564, %v2861, %v2863
      %v2865 = vrot.slane %v2276, 2
      %v2866 = vrot.slane %v2277, 2
      %v2867 = vsel %vm2564, %v2865, %v2866
      %v2868 = vrot.slane %v2278, 2
      %v2869 = vsel %vm2564, %v2866, %v2868
      %v2870 = vrot.slane %v2279, 2
      %v2871 = vsel %vm2564, %v2868, %v2870
      %v2872 = vrot.slane %v2280, 2
      %v2873 = vsel %vm2564, %v2870, %v2872
      %v2874 = vrot.slane %v2281, 2
      %v2875 = vsel %vm2564, %v2872, %v2874
      %v2876 = vrot.slane %v2282, 2
      %v2877 = vsel %vm2564, %v2874, %v2876
      %v2878 = vrot.slane %v2283, 2
      %v2879 = vsel %vm2564, %v2876, %v2878
      %v2880 = vrot.slane %v2284, 2
      %v2881 = vrot.slane %v2285, 2
      %v2882 = vsel %vm2564, %v2880, %v2881
      %v2883 = vrot.slane %v2286, 2
      %v2884 = vsel %vm2564, %v2881, %v2883
      %v2885 = vrot.slane %v2287, 2
      %v2886 = vsel %vm2564, %v2883, %v2885
      %v2887 = vrot.slane %v2288, 2
      %v2888 = vsel %vm2564, %v2885, %v2887
      %v2889 = vrot.slane %v2289, 2
      %v2890 = vsel %vm2564, %v2887, %v2889
      %v2891 = vrot.slane %v2290, 2
      %v2892 = vsel %vm2564, %v2889, %v2891
      %v2893 = vrot.slane %v2291, 2
      %v2894 = vsel %vm2564, %v2891, %v2893
      %v2895 = vrot.slane %v2292, 2
      %v2896 = vrot.slane %v2293, 2
      %v2897 = vsel %vm2564, %v2895, %v2896
      %v2898 = vrot.slane %v2294, 2
      %v2899 = vsel %vm2564, %v2896, %v2898
      %v2900 = vrot.slane %v2295, 2
      %v2901 = vsel %vm2564, %v2898, %v2900
      %v2902 = vrot.slane %v2296, 2
      %v2903 = vsel %vm2564, %v2900, %v2902
      %v2904 = vrot.slane %v2297, 2
      %v2905 = vsel %vm2564, %v2902, %v2904
      %v2906 = vrot.slane %v2298, 2
      %v2907 = vsel %vm2564, %v2904, %v2906
      %v2908 = vrot.slane %v2299, 2
      %v2909 = vsel %vm2564, %v2906, %v2908
      %v2910 = vrot.slane %v2300, 2
      %v2911 = vrot.slane %v2301, 2
      %v2912 = vsel %vm2564, %v2910, %v2911
      %v2913 = vrot.slane %v2302, 2
      %v2914 = vsel %vm2564, %v2911, %v2913
      %v2915 = vrot.slane %v2303, 2
      %v2916 = vsel %vm2564, %v2913, %v2915
      %v2917 = vrot.slane %v2304, 2
      %v2918 = vsel %vm2564, %v2915, %v2917
      %v2919 = vrot.slane %v2305, 2
      %v2920 = vsel %vm2564, %v2917, %v2919
      %v2921 = vrot.slane %v2306, 2
      %v2922 = vsel %vm2564, %v2919, %v2921
      %v2923 = vrot.slane %v2307, 2
      %v2924 = vsel %vm2564, %v2921, %v2923
      %v2925 = vrot.slane %v2308, 2
      %v2926 = vrot.slane %v2309, 2
      %v2927 = vsel %vm2564, %v2925, %v2926
      %v2928 = vrot.slane %v2310, 2
      %v2929 = vsel %vm2564, %v2926, %v2928
      %v2930 = vrot.slane %v2311, 2
      %v2931 = vsel %vm2564, %v2928, %v2930
      %v2932 = vrot.slane %v2312, 2
      %v2933 = vsel %vm2564, %v2930, %v2932
      %v2934 = vrot.slane %v2313, 2
      %v2935 = vsel %vm2564, %v2932, %v2934
      %v2936 = vrot.slane %v2314, 2
      %v2937 = vsel %vm2564, %v2934, %v2936
      %v2938 = vrot.slane %v2315, 2
      %v2939 = vsel %vm2564, %v2936, %v2938
      %v2940 = vrot.slane %v2316, 2
      %v2941 = vrot.slane %v2317, 2
      %v2942 = vsel %vm2564, %v2940, %v2941
      %v2943 = vrot.slane %v2318, 2
      %v2944 = vsel %vm2564, %v2941, %v2943
      %v2945 = vrot.slane %v2319, 2
      %v2946 = vsel %vm2564, %v2943, %v2945
      %v2947 = vrot.slane %v2320, 2
      %v2948 = vsel %vm2564, %v2945, %v2947
      %v2949 = vrot.slane %v2321, 2
      %v2950 = vsel %vm2564, %v2947, %v2949
      %v2951 = vrot.slane %v2322, 2
      %v2952 = vsel %vm2564, %v2949, %v2951
      %v2953 = vrot.slane %v2323, 2
      %v2954 = vsel %vm2564, %v2951, %v2953
      %v2955 = vrot.slane %v2324, 2
      %v2956 = vrot.slane %v2325, 2
      %v2957 = vsel %vm2564, %v2955, %v2956
      %v2958 = vrot.slane %v2326, 2
      %v2959 = vsel %vm2564, %v2956, %v2958
      %v2960 = vrot.slane %v2327, 2
      %v2961 = vsel %vm2564, %v2958, %v2960
      %v2962 = vrot.slane %v2328, 2
      %v2963 = vsel %vm2564, %v2960, %v2962
      %v2964 = vrot.slane %v2329, 2
      %v2965 = vsel %vm2564, %v2962, %v2964
      %v2966 = vrot.slane %v2330, 2
      %v2967 = vsel %vm2564, %v2964, %v2966
      %v2968 = vrot.slane %v2331, 2
      %v2969 = vsel %vm2564, %v2966, %v2968
      %v2970 = vrot.slane %v2332, 2
      %v2971 = vrot.slane %v2333, 2
      %v2972 = vsel %vm2564, %v2970, %v2971
      %v2973 = vrot.slane %v2334, 2
      %v2974 = vsel %vm2564, %v2971, %v2973
      %v2975 = vrot.slane %v2335, 2
      %v2976 = vsel %vm2564, %v2973, %v2975
      %v2977 = vrot.slane %v2336, 2
      %v2978 = vsel %vm2564, %v2975, %v2977
      %v2979 = vrot.slane %v2337, 2
      %v2980 = vsel %vm2564, %v2977, %v2979
      %v2981 = vrot.slane %v2338, 2
      %v2982 = vsel %vm2564, %v2979, %v2981
      %v2983 = vrot.slane %v2339, 2
      %v2984 = vsel %vm2564, %v2981, %v2983
      %v3181 = vadd.f32 %v1916, %v2567
      %v3182 = vadd.f32 %v1917, %v2569
      %v3183 = vadd.f32 %v1918, %v2571
      %v3184 = vadd.f32 %v1919, %v2573
      %v3185 = vadd.f32 %v1920, %v2575
      %v3186 = vadd.f32 %v1921, %v2577
      %v3187 = vadd.f32 %v1922, %v2579
      %v3188 = vadd.f32 %v1923, %v2582
      %v3189 = vadd.f32 %v1924, %v2584
      %v3190 = vadd.f32 %v1925, %v2586
      %v3191 = vadd.f32 %v1926, %v2588
      %v3192 = vadd.f32 %v1927, %v2590
      %v3193 = vadd.f32 %v1928, %v2592
      %v3194 = vadd.f32 %v1929, %v2594
      %v3195 = vadd.f32 %v1930, %v2597
      %v3196 = vadd.f32 %v1931, %v2599
      %v3197 = vadd.f32 %v1932, %v2601
      %v3198 = vadd.f32 %v1933, %v2603
      %v3199 = vadd.f32 %v1934, %v2605
      %v3200 = vadd.f32 %v1935, %v2607
      %v3201 = vadd.f32 %v1936, %v2609
      %v3202 = vadd.f32 %v1937, %v2612
      %v3203 = vadd.f32 %v1938, %v2614
      %v3204 = vadd.f32 %v1939, %v2616
      %v3205 = vadd.f32 %v1940, %v2618
      %v3206 = vadd.f32 %v1941, %v2620
      %v3207 = vadd.f32 %v1942, %v2622
      %v3208 = vadd.f32 %v1943, %v2624
      %v3209 = vadd.f32 %v1944, %v2627
      %v3210 = vadd.f32 %v1945, %v2629
      %v3211 = vadd.f32 %v1946, %v2631
      %v3212 = vadd.f32 %v1947, %v2633
      %v3213 = vadd.f32 %v1948, %v2635
      %v3214 = vadd.f32 %v1949, %v2637
      %v3215 = vadd.f32 %v1950, %v2639
      %v3216 = vadd.f32 %v1951, %v2642
      %v3217 = vadd.f32 %v1952, %v2644
      %v3218 = vadd.f32 %v1953, %v2646
      %v3219 = vadd.f32 %v1954, %v2648
      %v3220 = vadd.f32 %v1955, %v2650
      %v3221 = vadd.f32 %v1956, %v2652
      %v3222 = vadd.f32 %v1957, %v2654
      %v3223 = vadd.f32 %v1958, %v2657
      %v3224 = vadd.f32 %v1959, %v2659
      %v3225 = vadd.f32 %v1960, %v2661
      %v3226 = vadd.f32 %v1961, %v2663
      %v3227 = vadd.f32 %v1962, %v2665
      %v3228 = vadd.f32 %v1963, %v2667
      %v3229 = vadd.f32 %v1964, %v2669
      %v3230 = vadd.f32 %v1965, %v2672
      %v3231 = vadd.f32 %v1966, %v2674
      %v3232 = vadd.f32 %v1967, %v2676
      %v3233 = vadd.f32 %v1968, %v2678
      %v3234 = vadd.f32 %v1969, %v2680
      %v3235 = vadd.f32 %v1970, %v2682
      %v3236 = vadd.f32 %v1971, %v2684
      %v3237 = vadd.f32 %v1972, %v2687
      %v3238 = vadd.f32 %v1973, %v2689
      %v3239 = vadd.f32 %v1974, %v2691
      %v3240 = vadd.f32 %v1975, %v2693
      %v3241 = vadd.f32 %v1976, %v2695
      %v3242 = vadd.f32 %v1977, %v2697
      %v3243 = vadd.f32 %v1978, %v2699
      %v3244 = vadd.f32 %v1979, %v2702
      %v3245 = vadd.f32 %v1980, %v2704
      %v3246 = vadd.f32 %v1981, %v2706
      %v3247 = vadd.f32 %v1982, %v2708
      %v3248 = vadd.f32 %v1983, %v2710
      %v3249 = vadd.f32 %v1984, %v2712
      %v3250 = vadd.f32 %v1985, %v2714
      %v3251 = vadd.f32 %v1986, %v2717
      %v3252 = vadd.f32 %v1987, %v2719
      %v3253 = vadd.f32 %v1988, %v2721
      %v3254 = vadd.f32 %v1989, %v2723
      %v3255 = vadd.f32 %v1990, %v2725
      %v3256 = vadd.f32 %v1991, %v2727
      %v3257 = vadd.f32 %v1992, %v2729
      %v3258 = vadd.f32 %v1993, %v2732
      %v3259 = vadd.f32 %v1994, %v2734
      %v3260 = vadd.f32 %v1995, %v2736
      %v3261 = vadd.f32 %v1996, %v2738
      %v3262 = vadd.f32 %v1997, %v2740
      %v3263 = vadd.f32 %v1998, %v2742
      %v3264 = vadd.f32 %v1999, %v2744
      %v3265 = vadd.f32 %v2000, %v2747
      %v3266 = vadd.f32 %v2001, %v2749
      %v3267 = vadd.f32 %v2002, %v2751
      %v3268 = vadd.f32 %v2003, %v2753
      %v3269 = vadd.f32 %v2004, %v2755
      %v3270 = vadd.f32 %v2005, %v2757
      %v3271 = vadd.f32 %v2006, %v2759
      %v3272 = vadd.f32 %v2007, %v2762
      %v3273 = vadd.f32 %v2008, %v2764
      %v3274 = vadd.f32 %v2009, %v2766
      %v3275 = vadd.f32 %v2010, %v2768
      %v3276 = vadd.f32 %v2011, %v2770
      %v3277 = vadd.f32 %v2012, %v2772
      %v3278 = vadd.f32 %v2013, %v2774
      %v3279 = vadd.f32 %v2014, %v2777
      %v3280 = vadd.f32 %v2015, %v2779
      %v3281 = vadd.f32 %v2016, %v2781
      %v3282 = vadd.f32 %v2017, %v2783
      %v3283 = vadd.f32 %v2018, %v2785
      %v3284 = vadd.f32 %v2019, %v2787
      %v3285 = vadd.f32 %v2020, %v2789
      %v3286 = vadd.f32 %v2021, %v2792
      %v3287 = vadd.f32 %v2022, %v2794
      %v3288 = vadd.f32 %v2023, %v2796
      %v3289 = vadd.f32 %v2024, %v2798
      %v3290 = vadd.f32 %v2025, %v2800
      %v3291 = vadd.f32 %v2026, %v2802
      %v3292 = vadd.f32 %v2027, %v2804
      %v3293 = vadd.f32 %v2028, %v2807
      %v3294 = vadd.f32 %v2029, %v2809
      %v3295 = vadd.f32 %v2030, %v2811
      %v3296 = vadd.f32 %v2031, %v2813
      %v3297 = vadd.f32 %v2032, %v2815
      %v3298 = vadd.f32 %v2033, %v2817
      %v3299 = vadd.f32 %v2034, %v2819
      %v3300 = vadd.f32 %v2035, %v2822
      %v3301 = vadd.f32 %v2036, %v2824
      %v3302 = vadd.f32 %v2037, %v2826
      %v3303 = vadd.f32 %v2038, %v2828
      %v3304 = vadd.f32 %v2039, %v2830
      %v3305 = vadd.f32 %v2040, %v2832
      %v3306 = vadd.f32 %v2041, %v2834
      %v3307 = vadd.f32 %v2042, %v2837
      %v3308 = vadd.f32 %v2043, %v2839
      %v3309 = vadd.f32 %v2044, %v2841
      %v3310 = vadd.f32 %v2045, %v2843
      %v3311 = vadd.f32 %v2046, %v2845
      %v3312 = vadd.f32 %v2047, %v2847
      %v3313 = vadd.f32 %v2048, %v2849
      %v3314 = vadd.f32 %v2049, %v2852
      %v3315 = vadd.f32 %v2050, %v2854
      %v3316 = vadd.f32 %v2051, %v2856
      %v3317 = vadd.f32 %v2052, %v2858
      %v3318 = vadd.f32 %v2053, %v2860
      %v3319 = vadd.f32 %v2054, %v2862
      %v3320 = vadd.f32 %v2055, %v2864
      %v3321 = vadd.f32 %v2056, %v2867
      %v3322 = vadd.f32 %v2057, %v2869
      %v3323 = vadd.f32 %v2058, %v2871
      %v3324 = vadd.f32 %v2059, %v2873
      %v3325 = vadd.f32 %v2060, %v2875
      %v3326 = vadd.f32 %v2061, %v2877
      %v3327 = vadd.f32 %v2062, %v2879
      %v3328 = vadd.f32 %v2063, %v2882
      %v3329 = vadd.f32 %v2064, %v2884
      %v3330 = vadd.f32 %v2065, %v2886
      %v3331 = vadd.f32 %v2066, %v2888
      %v3332 = vadd.f32 %v2067, %v2890
      %v3333 = vadd.f32 %v2068, %v2892
      %v3334 = vadd.f32 %v2069, %v2894
      %v3335 = vadd.f32 %v2070, %v2897
      %v3336 = vadd.f32 %v2071, %v2899
      %v3337 = vadd.f32 %v2072, %v2901
      %v3338 = vadd.f32 %v2073, %v2903
      %v3339 = vadd.f32 %v2074, %v2905
      %v3340 = vadd.f32 %v2075, %v2907
      %v3341 = vadd.f32 %v2076, %v2909
      %v3342 = vadd.f32 %v2077, %v2912
      %v3343 = vadd.f32 %v2078, %v2914
      %v3344 = vadd.f32 %v2079, %v2916
      %v3345 = vadd.f32 %v2080, %v2918
      %v3346 = vadd.f32 %v2081, %v2920
      %v3347 = vadd.f32 %v2082, %v2922
      %v3348 = vadd.f32 %v2083, %v2924
      %v3349 = vadd.f32 %v2084, %v2927
      %v3350 = vadd.f32 %v2085, %v2929
      %v3351 = vadd.f32 %v2086, %v2931
      %v3352 = vadd.f32 %v2087, %v2933
      %v3353 = vadd.f32 %v2088, %v2935
      %v3354 = vadd.f32 %v2089, %v2937
      %v3355 = vadd.f32 %v2090, %v2939
      %v3356 = vadd.f32 %v2091, %v2942
      %v3357 = vadd.f32 %v2092, %v2944
      %v3358 = vadd.f32 %v2093, %v2946
      %v3359 = vadd.f32 %v2094, %v2948
      %v3360 = vadd.f32 %v2095, %v2950
      %v3361 = vadd.f32 %v2096, %v2952
      %v3362 = vadd.f32 %v2097, %v2954
      %v3363 = vadd.f32 %v2098, %v2957
      %v3364 = vadd.f32 %v2099, %v2959
      %v3365 = vadd.f32 %v2100, %v2961
      %v3366 = vadd.f32 %v2101, %v2963
      %v3367 = vadd.f32 %v2102, %v2965
      %v3368 = vadd.f32 %v2103, %v2967
      %v3369 = vadd.f32 %v2104, %v2969
      %v3370 = vadd.f32 %v2105, %v2972
      %v3371 = vadd.f32 %v2106, %v2974
      %v3372 = vadd.f32 %v2107, %v2976
      %v3373 = vadd.f32 %v2108, %v2978
      %v3374 = vadd.f32 %v2109, %v2980
      %v3375 = vadd.f32 %v2110, %v2982
      %v3376 = vadd.f32 %v2111, %v2984
      %v3377 = vlaneseq
      %v3378 = vshrl.u32 %v3377, 7
      %v3379 = vsub.s32 3, %v3378
      %v3380 = vrot.slane %v207, %v3379
      %v3381 = vmul.f32 %v219, %v3380
      %v3382 = vmul.f32 %v220, %v3380
      %v3383 = vmul.f32 %v221, %v3380
      %v3384 = vmul.f32 %v222, %v3380
      %v3385 = vmul.f32 %v223, %v3380
      %v3386 = vmul.f32 %v224, %v3380
      %v3387 = vmul.f32 %v225, %v3380
      %v3388 = vmul.f32 %v227, %v3380
      %v3389 = vmul.f32 %v228, %v3380
      %v3390 = vmul.f32 %v229, %v3380
      %v3391 = vmul.f32 %v230, %v3380
      %v3392 = vmul.f32 %v231, %v3380
      %v3393 = vmul.f32 %v232, %v3380
      %v3394 = vmul.f32 %v233, %v3380
      %v3395 = vmul.f32 %v235, %v3380
      %v3396 = vmul.f32 %v236, %v3380
      %v3397 = vmul.f32 %v237, %v3380
      %v3398 = vmul.f32 %v238, %v3380
      %v3399 = vmul.f32 %v239, %v3380
      %v3400 = vmul.f32 %v240, %v3380
      %v3401 = vmul.f32 %v241, %v3380
      %v3402 = vmul.f32 %v243, %v3380
      %v3403 = vmul.f32 %v244, %v3380
      %v3404 = vmul.f32 %v245, %v3380
      %v3405 = vmul.f32 %v246, %v3380
      %v3406 = vmul.f32 %v247, %v3380
      %v3407 = vmul.f32 %v248, %v3380
      %v3408 = vmul.f32 %v249, %v3380
      %v3409 = vmul.f32 %v251, %v3380
      %v3410 = vmul.f32 %v252, %v3380
      %v3411 = vmul.f32 %v253, %v3380
      %v3412 = vmul.f32 %v254, %v3380
      %v3413 = vmul.f32 %v255, %v3380
      %v3414 = vmul.f32 %v256, %v3380
      %v3415 = vmul.f32 %v257, %v3380
      %v3416 = vmul.f32 %v259, %v3380
      %v3417 = vmul.f32 %v260, %v3380
      %v3418 = vmul.f32 %v261, %v3380
      %v3419 = vmul.f32 %v262, %v3380
      %v3420 = vmul.f32 %v263, %v3380
      %v3421 = vmul.f32 %v264, %v3380
      %v3422 = vmul.f32 %v265, %v3380
      %v3423 = vmul.f32 %v267, %v3380
      %v3424 = vmul.f32 %v268, %v3380
      %v3425 = vmul.f32 %v269, %v3380
      %v3426 = vmul.f32 %v270, %v3380
      %v3427 = vmul.f32 %v271, %v3380
      %v3428 = vmul.f32 %v272, %v3380
      %v3429 = vmul.f32 %v273, %v3380
      %v3430 = vmul.f32 %v275, %v3380
      %v3431 = vmul.f32 %v276, %v3380
      %v3432 = vmul.f32 %v277, %v3380
      %v3433 = vmul.f32 %v278, %v3380
      %v3434 = vmul.f32 %v279, %v3380
      %v3435 = vmul.f32 %v280, %v3380
      %v3436 = vmul.f32 %v281, %v3380
      %v3437 = vmul.f32 %v283, %v3380
      %v3438 = vmul.f32 %v284, %v3380
      %v3439 = vmul.f32 %v285, %v3380
      %v3440 = vmul.f32 %v286, %v3380
      %v3441 = vmul.f32 %v287, %v3380
      %v3442 = vmul.f32 %v288, %v3380
      %v3443 = vmul.f32 %v289, %v3380
      %v3444 = vmul.f32 %v291, %v3380
      %v3445 = vmul.f32 %v292, %v3380
      %v3446 = vmul.f32 %v293, %v3380
      %v3447 = vmul.f32 %v294, %v3380
      %v3448 = vmul.f32 %v295, %v3380
      %v3449 = vmul.f32 %v296, %v3380
      %v3450 = vmul.f32 %v297, %v3380
      %v3451 = vmul.f32 %v299, %v3380
      %v3452 = vmul.f32 %v300, %v3380
      %v3453 = vmul.f32 %v301, %v3380
      %v3454 = vmul.f32 %v302, %v3380
      %v3455 = vmul.f32 %v303, %v3380
      %v3456 = vmul.f32 %v304, %v3380
      %v3457 = vmul.f32 %v305, %v3380
      %v3458 = vmul.f32 %v307, %v3380
      %v3459 = vmul.f32 %v308, %v3380
      %v3460 = vmul.f32 %v309, %v3380
      %v3461 = vmul.f32 %v310, %v3380
      %v3462 = vmul.f32 %v311, %v3380
      %v3463 = vmul.f32 %v312, %v3380
      %v3464 = vmul.f32 %v313, %v3380
      %v3465 = vmul.f32 %v315, %v3380
      %v3466 = vmul.f32 %v316, %v3380
      %v3467 = vmul.f32 %v317, %v3380
      %v3468 = vmul.f32 %v318, %v3380
      %v3469 = vmul.f32 %v319, %v3380
      %v3470 = vmul.f32 %v320, %v3380
      %v3471 = vmul.f32 %v321, %v3380
      %v3472 = vmul.f32 %v323, %v3380
      %v3473 = vmul.f32 %v324, %v3380
      %v3474 = vmul.f32 %v325, %v3380
      %v3475 = vmul.f32 %v326, %v3380
      %v3476 = vmul.f32 %v327, %v3380
      %v3477 = vmul.f32 %v328, %v3380
      %v3478 = vmul.f32 %v329, %v3380
      %v3479 = vmul.f32 %v331, %v3380
      %v3480 = vmul.f32 %v332, %v3380
      %v3481 = vmul.f32 %v333, %v3380
      %v3482 = vmul.f32 %v334, %v3380
      %v3483 = vmul.f32 %v335, %v3380
      %v3484 = vmul.f32 %v336, %v3380
      %v3485 = vmul.f32 %v337, %v3380
      %v3486 = vmul.f32 %v339, %v3380
      %v3487 = vmul.f32 %v340, %v3380
      %v3488 = vmul.f32 %v341, %v3380
      %v3489 = vmul.f32 %v342, %v3380
      %v3490 = vmul.f32 %v343, %v3380
      %v3491 = vmul.f32 %v344, %v3380
      %v3492 = vmul.f32 %v345, %v3380
      %v3493 = vmul.f32 %v347, %v3380
      %v3494 = vmul.f32 %v348, %v3380
      %v3495 = vmul.f32 %v349, %v3380
      %v3496 = vmul.f32 %v350, %v3380
      %v3497 = vmul.f32 %v351, %v3380
      %v3498 = vmul.f32 %v352, %v3380
      %v3499 = vmul.f32 %v353, %v3380
      %v3500 = vmul.f32 %v355, %v3380
      %v3501 = vmul.f32 %v356, %v3380
      %v3502 = vmul.f32 %v357, %v3380
      %v3503 = vmul.f32 %v358, %v3380
      %v3504 = vmul.f32 %v359, %v3380
      %v3505 = vmul.f32 %v360, %v3380
      %v3506 = vmul.f32 %v361, %v3380
      %v3507 = vmul.f32 %v363, %v3380
      %v3508 = vmul.f32 %v364, %v3380
      %v3509 = vmul.f32 %v365, %v3380
      %v3510 = vmul.f32 %v366, %v3380
      %v3511 = vmul.f32 %v367, %v3380
      %v3512 = vmul.f32 %v368, %v3380
      %v3513 = vmul.f32 %v369, %v3380
      %v3514 = vmul.f32 %v371, %v3380
      %v3515 = vmul.f32 %v372, %v3380
      %v3516 = vmul.f32 %v373, %v3380
      %v3517 = vmul.f32 %v374, %v3380
      %v3518 = vmul.f32 %v375, %v3380
      %v3519 = vmul.f32 %v376, %v3380
      %v3520 = vmul.f32 %v377, %v3380
      %v3521 = vmul.f32 %v379, %v3380
      %v3522 = vmul.f32 %v380, %v3380
      %v3523 = vmul.f32 %v381, %v3380
      %v3524 = vmul.f32 %v382, %v3380
      %v3525 = vmul.f32 %v383, %v3380
      %v3526 = vmul.f32 %v384, %v3380
      %v3527 = vmul.f32 %v385, %v3380
      %v3528 = vmul.f32 %v387, %v3380
      %v3529 = vmul.f32 %v388, %v3380
      %v3530 = vmul.f32 %v389, %v3380
      %v3531 = vmul.f32 %v390, %v3380
      %v3532 = vmul.f32 %v391, %v3380
      %v3533 = vmul.f32 %v392, %v3380
      %v3534 = vmul.f32 %v393, %v3380
      %v3535 = vmul.f32 %v395, %v3380
      %v3536 = vmul.f32 %v396, %v3380
      %v3537 = vmul.f32 %v397, %v3380
      %v3538 = vmul.f32 %v398, %v3380
      %v3539 = vmul.f32 %v399, %v3380
      %v3540 = vmul.f32 %v400, %v3380
      %v3541 = vmul.f32 %v401, %v3380
      %v3542 = vmul.f32 %v403, %v3380
      %v3543 = vmul.f32 %v404, %v3380
      %v3544 = vmul.f32 %v405, %v3380
      %v3545 = vmul.f32 %v406, %v3380
      %v3546 = vmul.f32 %v407, %v3380
      %v3547 = vmul.f32 %v408, %v3380
      %v3548 = vmul.f32 %v409, %v3380
      %v3549 = vmul.f32 %v411, %v3380
      %v3550 = vmul.f32 %v412, %v3380
      %v3551 = vmul.f32 %v413, %v3380
      %v3552 = vmul.f32 %v414, %v3380
      %v3553 = vmul.f32 %v415, %v3380
      %v3554 = vmul.f32 %v416, %v3380
      %v3555 = vmul.f32 %v417, %v3380
      %v3556 = vmul.f32 %v419, %v3380
      %v3557 = vmul.f32 %v420, %v3380
      %v3558 = vmul.f32 %v421, %v3380
      %v3559 = vmul.f32 %v422, %v3380
      %v3560 = vmul.f32 %v423, %v3380
      %v3561 = vmul.f32 %v424, %v3380
      %v3562 = vmul.f32 %v425, %v3380
      %v3563 = vmul.f32 %v427, %v3380
      %v3564 = vmul.f32 %v428, %v3380
      %v3565 = vmul.f32 %v429, %v3380
      %v3566 = vmul.f32 %v430, %v3380
      %v3567 = vmul.f32 %v431, %v3380
      %v3568 = vmul.f32 %v432, %v3380
      %v3569 = vmul.f32 %v433, %v3380
      %v3570 = vmul.f32 %v435, %v3380
      %v3571 = vmul.f32 %v436, %v3380
      %v3572 = vmul.f32 %v437, %v3380
      %v3573 = vmul.f32 %v438, %v3380
      %v3574 = vmul.f32 %v439, %v3380
      %v3575 = vmul.f32 %v440, %v3380
      %v3576 = vmul.f32 %v441, %v3380
      %v3577 = vadd.f32 %v3181, %v3381
      %v3578 = vadd.f32 %v3182, %v3382
      %v3579 = vadd.f32 %v3183, %v3383
      %v3580 = vadd.f32 %v3184, %v3384
      %v3581 = vadd.f32 %v3185, %v3385
      %v3582 = vadd.f32 %v3186, %v3386
      %v3583 = vadd.f32 %v3187, %v3387
      %v3584 = vadd.f32 %v3188, %v3388
      %v3585 = vadd.f32 %v3189, %v3389
      %v3586 = vadd.f32 %v3190, %v3390
      %v3587 = vadd.f32 %v3191, %v3391
      %v3588 = vadd.f32 %v3192, %v3392
      %v3589 = vadd.f32 %v3193, %v3393
      %v3590 = vadd.f32 %v3194, %v3394
      %v3591 = vadd.f32 %v3195, %v3395
      %v3592 = vadd.f32 %v3196, %v3396
      %v3593 = vadd.f32 %v3197, %v3397
      %v3594 = vadd.f32 %v3198, %v3398
      %v3595 = vadd.f32 %v3199, %v3399
      %v3596 = vadd.f32 %v3200, %v3400
      %v3597 = vadd.f32 %v3201, %v3401
      %v3598 = vadd.f32 %v3202, %v3402
      %v3599 = vadd.f32 %v3203, %v3403
      %v3600 = vadd.f32 %v3204, %v3404
      %v3601 = vadd.f32 %v3205, %v3405
      %v3602 = vadd.f32 %v3206, %v3406
      %v3603 = vadd.f32 %v3207, %v3407
      %v3604 = vadd.f32 %v3208, %v3408
      %v3605 = vadd.f32 %v3209, %v3409
      %v3606 = vadd.f32 %v3210, %v3410
      %v3607 = vadd.f32 %v3211, %v3411
      %v3608 = vadd.f32 %v3212, %v3412
      %v3609 = vadd.f32 %v3213, %v3413
      %v3610 = vadd.f32 %v3214, %v3414
      %v3611 = vadd.f32 %v3215, %v3415
      %v3612 = vadd.f32 %v3216, %v3416
      %v3613 = vadd.f32 %v3217, %v3417
      %v3614 = vadd.f32 %v3218, %v3418
      %v3615 = vadd.f32 %v3219, %v3419
      %v3616 = vadd.f32 %v3220, %v3420
      %v3617 = vadd.f32 %v3221, %v3421
      %v3618 = vadd.f32 %v3222, %v3422
      %v3619 = vadd.f32 %v3223, %v3423
      %v3620 = vadd.f32 %v3224, %v3424
      %v3621 = vadd.f32 %v3225, %v3425
      %v3622 = vadd.f32 %v3226, %v3426
      %v3623 = vadd.f32 %v3227, %v3427
      %v3624 = vadd.f32 %v3228, %v3428
      %v3625 = vadd.f32 %v3229, %v3429
      %v3626 = vadd.f32 %v3230, %v3430
      %v3627 = vadd.f32 %v3231, %v3431
      %v3628 = vadd.f32 %v3232, %v3432
      %v3629 = vadd.f32 %v3233, %v3433
      %v3630 = vadd.f32 %v3234, %v3434
      %v3631 = vadd.f32 %v3235, %v3435
      %v3632 = vadd.f32 %v3236, %v3436
      %v3633 = vadd.f32 %v3237, %v3437
      %v3634 = vadd.f32 %v3238, %v3438
      %v3635 = vadd.f32 %v3239, %v3439
      %v3636 = vadd.f32 %v3240, %v3440
      %v3637 = vadd.f32 %v3241, %v3441
      %v3638 = vadd.f32 %v3242, %v3442
      %v3639 = vadd.f32 %v3243, %v3443
      %v3640 = vadd.f32 %v3244, %v3444
      %v3641 = vadd.f32 %v3245, %v3445
      %v3642 = vadd.f32 %v3246, %v3446
      %v3643 = vadd.f32 %v3247, %v3447
      %v3644 = vadd.f32 %v3248, %v3448
      %v3645 = vadd.f32 %v3249, %v3449
      %v3646 = vadd.f32 %v3250, %v3450
      %v3647 = vadd.f32 %v3251, %v3451
      %v3648 = vadd.f32 %v3252, %v3452
      %v3649 = vadd.f32 %v3253, %v3453
      %v3650 = vadd.f32 %v3254, %v3454
      %v3651 = vadd.f32 %v3255, %v3455
      %v3652 = vadd.f32 %v3256, %v3456
      %v3653 = vadd.f32 %v3257, %v3457
      %v3654 = vadd.f32 %v3258, %v3458
      %v3655 = vadd.f32 %v3259, %v3459
      %v3656 = vadd.f32 %v3260, %v3460
      %v3657 = vadd.f32 %v3261, %v3461
      %v3658 = vadd.f32 %v3262, %v3462
      %v3659 = vadd.f32 %v3263, %v3463
      %v3660 = vadd.f32 %v3264, %v3464
      %v3661 = vadd.f32 %v3265, %v3465
      %v3662 = vadd.f32 %v3266, %v3466
      %v3663 = vadd.f32 %v3267, %v3467
      %v3664 = vadd.f32 %v3268, %v3468
      %v3665 = vadd.f32 %v3269, %v3469
      %v3666 = vadd.f32 %v3270, %v3470
      %v3667 = vadd.f32 %v3271, %v3471
      %v3668 = vadd.f32 %v3272, %v3472
      %v3669 = vadd.f32 %v3273, %v3473
      %v3670 = vadd.f32 %v3274, %v3474
      %v3671 = vadd.f32 %v3275, %v3475
      %v3672 = vadd.f32 %v3276, %v3476
      %v3673 = vadd.f32 %v3277, %v3477
      %v3674 = vadd.f32 %v3278, %v3478
      %v3675 = vadd.f32 %v3279, %v3479
      %v3676 = vadd.f32 %v3280, %v3480
      %v3677 = vadd.f32 %v3281, %v3481
      %v3678 = vadd.f32 %v3282, %v3482
      %v3679 = vadd.f32 %v3283, %v3483
      %v3680 = vadd.f32 %v3284, %v3484
      %v3681 = vadd.f32 %v3285, %v3485
      %v3682 = vadd.f32 %v3286, %v3486
      %v3683 = vadd.f32 %v3287, %v3487
      %v3684 = vadd.f32 %v3288, %v3488
      %v3685 = vadd.f32 %v3289, %v3489
      %v3686 = vadd.f32 %v3290, %v3490
      %v3687 = vadd.f32 %v3291, %v3491
      %v3688 = vadd.f32 %v3292, %v3492
      %v3689 = vadd.f32 %v3293, %v3493
      %v3690 = vadd.f32 %v3294, %v3494
      %v3691 = vadd.f32 %v3295, %v3495
      %v3692 = vadd.f32 %v3296, %v3496
      %v3693 = vadd.f32 %v3297, %v3497
      %v3694 = vadd.f32 %v3298, %v3498
      %v3695 = vadd.f32 %v3299, %v3499
      %v3696 = vadd.f32 %v3300, %v3500
      %v3697 = vadd.f32 %v3301, %v3501
      %v3698 = vadd.f32 %v3302, %v3502
      %v3699 = vadd.f32 %v3303, %v3503
      %v3700 = vadd.f32 %v3304, %v3504
      %v3701 = vadd.f32 %v3305, %v3505
      %v3702 = vadd.f32 %v3306, %v3506
      %v3703 = vadd.f32 %v3307, %v3507
      %v3704 = vadd.f32 %v3308, %v3508
      %v3705 = vadd.f32 %v3309, %v3509
      %v3706 = vadd.f32 %v3310, %v3510
      %v3707 = vadd.f32 %v3311, %v3511
      %v3708 = vadd.f32 %v3312, %v3512
      %v3709 = vadd.f32 %v3313, %v3513
      %v3710 = vadd.f32 %v3314, %v3514
      %v3711 = vadd.f32 %v3315, %v3515
      %v3712 = vadd.f32 %v3316, %v3516
      %v3713 = vadd.f32 %v3317, %v3517
      %v3714 = vadd.f32 %v3318, %v3518
      %v3715 = vadd.f32 %v3319, %v3519
      %v3716 = vadd.f32 %v3320, %v3520
      %v3717 = vadd.f32 %v3321, %v3521
      %v3718 = vadd.f32 %v3322, %v3522
      %v3719 = vadd.f32 %v3323, %v3523
      %v3720 = vadd.f32 %v3324, %v3524
      %v3721 = vadd.f32 %v3325, %v3525
      %v3722 = vadd.f32 %v3326, %v3526
      %v3723 = vadd.f32 %v3327, %v3527
      %v3724 = vadd.f32 %v3328, %v3528
      %v3725 = vadd.f32 %v3329, %v3529
      %v3726 = vadd.f32 %v3330, %v3530
      %v3727 = vadd.f32 %v3331, %v3531
      %v3728 = vadd.f32 %v3332, %v3532
      %v3729 = vadd.f32 %v3333, %v3533
      %v3730 = vadd.f32 %v3334, %v3534
      %v3731 = vadd.f32 %v3335, %v3535
      %v3732 = vadd.f32 %v3336, %v3536
      %v3733 = vadd.f32 %v3337, %v3537
      %v3734 = vadd.f32 %v3338, %v3538
      %v3735 = vadd.f32 %v3339, %v3539
      %v3736 = vadd.f32 %v3340, %v3540
      %v3737 = vadd.f32 %v3341, %v3541
      %v3738 = vadd.f32 %v3342, %v3542
      %v3739 = vadd.f32 %v3343, %v3543
      %v3740 = vadd.f32 %v3344, %v3544
      %v3741 = vadd.f32 %v3345, %v3545
      %v3742 = vadd.f32 %v3346, %v3546
      %v3743 = vadd.f32 %v3347, %v3547
      %v3744 = vadd.f32 %v3348, %v3548
      %v3745 = vadd.f32 %v3349, %v3549
      %v3746 = vadd.f32 %v3350, %v3550
      %v3747 = vadd.f32 %v3351, %v3551
      %v3748 = vadd.f32 %v3352, %v3552
      %v3749 = vadd.f32 %v3353, %v3553
      %v3750 = vadd.f32 %v3354, %v3554
      %v3751 = vadd.f32 %v3355, %v3555
      %v3752 = vadd.f32 %v3356, %v3556
      %v3753 = vadd.f32 %v3357, %v3557
      %v3754 = vadd.f32 %v3358, %v3558
      %v3755 = vadd.f32 %v3359, %v3559
      %v3756 = vadd.f32 %v3360, %v3560
      %v3757 = vadd.f32 %v3361, %v3561
      %v3758 = vadd.f32 %v3362, %v3562
      %v3759 = vadd.f32 %v3363, %v3563
      %v3760 = vadd.f32 %v3364, %v3564
      %v3761 = vadd.f32 %v3365, %v3565
      %v3762 = vadd.f32 %v3366, %v3566
      %v3763 = vadd.f32 %v3367, %v3567
      %v3764 = vadd.f32 %v3368, %v3568
      %v3765 = vadd.f32 %v3369, %v3569
      %v3766 = vadd.f32 %v3370, %v3570
      %v3767 = vadd.f32 %v3371, %v3571
      %v3768 = vadd.f32 %v3372, %v3572
      %v3769 = vadd.f32 %v3373, %v3573
      %v3770 = vadd.f32 %v3374, %v3574
      %v3771 = vadd.f32 %v3375, %v3575
      %v3772 = vadd.f32 %v3376, %v3576
      %v3773 = vlaneseq
      %v3774 = vshrl.u32 %v3773, 7
      %v3775 = vsub.s32 4, %v3774
      %v3776 = vrot.slane %v207, %v3775
      %v3777 = vmul.f32 %v219, %v3776
      %v3778 = vmul.f32 %v220, %v3776
      %v3779 = vmul.f32 %v221, %v3776
      %v3780 = vmul.f32 %v222, %v3776
      %v3781 = vmul.f32 %v223, %v3776
      %v3782 = vmul.f32 %v224, %v3776
      %v3783 = vmul.f32 %v225, %v3776
      %v3784 = vmul.f32 %v226, %v3776
      %v3785 = vmul.f32 %v227, %v3776
      %v3786 = vmul.f32 %v228, %v3776
      %v3787 = vmul.f32 %v229, %v3776
      %v3788 = vmul.f32 %v230, %v3776
      %v3789 = vmul.f32 %v231, %v3776
      %v3790 = vmul.f32 %v232, %v3776
      %v3791 = vmul.f32 %v233, %v3776
      %v3792 = vmul.f32 %v234, %v3776
      %v3793 = vmul.f32 %v235, %v3776
      %v3794 = vmul.f32 %v236, %v3776
      %v3795 = vmul.f32 %v237, %v3776
      %v3796 = vmul.f32 %v238, %v3776
      %v3797 = vmul.f32 %v239, %v3776
      %v3798 = vmul.f32 %v240, %v3776
      %v3799 = vmul.f32 %v241, %v3776
      %v3800 = vmul.f32 %v242, %v3776
      %v3801 = vmul.f32 %v243, %v3776
      %v3802 = vmul.f32 %v244, %v3776
      %v3803 = vmul.f32 %v245, %v3776
      %v3804 = vmul.f32 %v246, %v3776
      %v3805 = vmul.f32 %v247, %v3776
      %v3806 = vmul.f32 %v248, %v3776
      %v3807 = vmul.f32 %v249, %v3776
      %v3808 = vmul.f32 %v250, %v3776
      %v3809 = vmul.f32 %v251, %v3776
      %v3810 = vmul.f32 %v252, %v3776
      %v3811 = vmul.f32 %v253, %v3776
      %v3812 = vmul.f32 %v254, %v3776
      %v3813 = vmul.f32 %v255, %v3776
      %v3814 = vmul.f32 %v256, %v3776
      %v3815 = vmul.f32 %v257, %v3776
      %v3816 = vmul.f32 %v258, %v3776
      %v3817 = vmul.f32 %v259, %v3776
      %v3818 = vmul.f32 %v260, %v3776
      %v3819 = vmul.f32 %v261, %v3776
      %v3820 = vmul.f32 %v262, %v3776
      %v3821 = vmul.f32 %v263, %v3776
      %v3822 = vmul.f32 %v264, %v3776
      %v3823 = vmul.f32 %v265, %v3776
      %v3824 = vmul.f32 %v266, %v3776
      %v3825 = vmul.f32 %v267, %v3776
      %v3826 = vmul.f32 %v268, %v3776
      %v3827 = vmul.f32 %v269, %v3776
      %v3828 = vmul.f32 %v270, %v3776
      %v3829 = vmul.f32 %v271, %v3776
      %v3830 = vmul.f32 %v272, %v3776
      %v3831 = vmul.f32 %v273, %v3776
      %v3832 = vmul.f32 %v274, %v3776
      %v3833 = vmul.f32 %v275, %v3776
      %v3834 = vmul.f32 %v276, %v3776
      %v3835 = vmul.f32 %v277, %v3776
      %v3836 = vmul.f32 %v278, %v3776
      %v3837 = vmul.f32 %v279, %v3776
      %v3838 = vmul.f32 %v280, %v3776
      %v3839 = vmul.f32 %v281, %v3776
      %v3840 = vmul.f32 %v282, %v3776
      %v3841 = vmul.f32 %v283, %v3776
      %v3842 = vmul.f32 %v284, %v3776
      %v3843 = vmul.f32 %v285, %v3776
      %v3844 = vmul.f32 %v286, %v3776
      %v3845 = vmul.f32 %v287, %v3776
      %v3846 = vmul.f32 %v288, %v3776
      %v3847 = vmul.f32 %v289, %v3776
      %v3848 = vmul.f32 %v290, %v3776
      %v3849 = vmul.f32 %v291, %v3776
      %v3850 = vmul.f32 %v292, %v3776
      %v3851 = vmul.f32 %v293, %v3776
      %v3852 = vmul.f32 %v294, %v3776
      %v3853 = vmul.f32 %v295, %v3776
      %v3854 = vmul.f32 %v296, %v3776
      %v3855 = vmul.f32 %v297, %v3776
      %v3856 = vmul.f32 %v298, %v3776
      %v3857 = vmul.f32 %v299, %v3776
      %v3858 = vmul.f32 %v300, %v3776
      %v3859 = vmul.f32 %v301, %v3776
      %v3860 = vmul.f32 %v302, %v3776
      %v3861 = vmul.f32 %v303, %v3776
      %v3862 = vmul.f32 %v304, %v3776
      %v3863 = vmul.f32 %v305, %v3776
      %v3864 = vmul.f32 %v306, %v3776
      %v3865 = vmul.f32 %v307, %v3776
      %v3866 = vmul.f32 %v308, %v3776
      %v3867 = vmul.f32 %v309, %v3776
      %v3868 = vmul.f32 %v310, %v3776
      %v3869 = vmul.f32 %v311, %v3776
      %v3870 = vmul.f32 %v312, %v3776
      %v3871 = vmul.f32 %v313, %v3776
      %v3872 = vmul.f32 %v314, %v3776
      %v3873 = vmul.f32 %v315, %v3776
      %v3874 = vmul.f32 %v316, %v3776
      %v3875 = vmul.f32 %v317, %v3776
      %v3876 = vmul.f32 %v318, %v3776
      %v3877 = vmul.f32 %v319, %v3776
      %v3878 = vmul.f32 %v320, %v3776
      %v3879 = vmul.f32 %v321, %v3776
      %v3880 = vmul.f32 %v322, %v3776
      %v3881 = vmul.f32 %v323, %v3776
      %v3882 = vmul.f32 %v324, %v3776
      %v3883 = vmul.f32 %v325, %v3776
      %v3884 = vmul.f32 %v326, %v3776
      %v3885 = vmul.f32 %v327, %v3776
      %v3886 = vmul.f32 %v328, %v3776
      %v3887 = vmul.f32 %v329, %v3776
      %v3888 = vmul.f32 %v330, %v3776
      %v3889 = vmul.f32 %v331, %v3776
      %v3890 = vmul.f32 %v332, %v3776
      %v3891 = vmul.f32 %v333, %v3776
      %v3892 = vmul.f32 %v334, %v3776
      %v3893 = vmul.f32 %v335, %v3776
      %v3894 = vmul.f32 %v336, %v3776
      %v3895 = vmul.f32 %v337, %v3776
      %v3896 = vmul.f32 %v338, %v3776
      %v3897 = vmul.f32 %v339, %v3776
      %v3898 = vmul.f32 %v340, %v3776
      %v3899 = vmul.f32 %v341, %v3776
      %v3900 = vmul.f32 %v342, %v3776
      %v3901 = vmul.f32 %v343, %v3776
      %v3902 = vmul.f32 %v344, %v3776
      %v3903 = vmul.f32 %v345, %v3776
      %v3904 = vmul.f32 %v346, %v3776
      %v3905 = vmul.f32 %v347, %v3776
      %v3906 = vmul.f32 %v348, %v3776
      %v3907 = vmul.f32 %v349, %v3776
      %v3908 = vmul.f32 %v350, %v3776
      %v3909 = vmul.f32 %v351, %v3776
      %v3910 = vmul.f32 %v352, %v3776
      %v3911 = vmul.f32 %v353, %v3776
      %v3912 = vmul.f32 %v354, %v3776
      %v3913 = vmul.f32 %v355, %v3776
      %v3914 = vmul.f32 %v356, %v3776
      %v3915 = vmul.f32 %v357, %v3776
      %v3916 = vmul.f32 %v358, %v3776
      %v3917 = vmul.f32 %v359, %v3776
      %v3918 = vmul.f32 %v360, %v3776
      %v3919 = vmul.f32 %v361, %v3776
      %v3920 = vmul.f32 %v362, %v3776
      %v3921 = vmul.f32 %v363, %v3776
      %v3922 = vmul.f32 %v364, %v3776
      %v3923 = vmul.f32 %v365, %v3776
      %v3924 = vmul.f32 %v366, %v3776
      %v3925 = vmul.f32 %v367, %v3776
      %v3926 = vmul.f32 %v368, %v3776
      %v3927 = vmul.f32 %v369, %v3776
      %v3928 = vmul.f32 %v370, %v3776
      %v3929 = vmul.f32 %v371, %v3776
      %v3930 = vmul.f32 %v372, %v3776
      %v3931 = vmul.f32 %v373, %v3776
      %v3932 = vmul.f32 %v374, %v3776
      %v3933 = vmul.f32 %v375, %v3776
      %v3934 = vmul.f32 %v376, %v3776
      %v3935 = vmul.f32 %v377, %v3776
      %v3936 = vmul.f32 %v378, %v3776
      %v3937 = vmul.f32 %v379, %v3776
      %v3938 = vmul.f32 %v380, %v3776
      %v3939 = vmul.f32 %v381, %v3776
      %v3940 = vmul.f32 %v382, %v3776
      %v3941 = vmul.f32 %v383, %v3776
      %v3942 = vmul.f32 %v384, %v3776
      %v3943 = vmul.f32 %v385, %v3776
      %v3944 = vmul.f32 %v386, %v3776
      %v3945 = vmul.f32 %v387, %v3776
      %v3946 = vmul.f32 %v388, %v3776
      %v3947 = vmul.f32 %v389, %v3776
      %v3948 = vmul.f32 %v390, %v3776
      %v3949 = vmul.f32 %v391, %v3776
      %v3950 = vmul.f32 %v392, %v3776
      %v3951 = vmul.f32 %v393, %v3776
      %v3952 = vmul.f32 %v394, %v3776
      %v3953 = vmul.f32 %v395, %v3776
      %v3954 = vmul.f32 %v396, %v3776
      %v3955 = vmul.f32 %v397, %v3776
      %v3956 = vmul.f32 %v398, %v3776
      %v3957 = vmul.f32 %v399, %v3776
      %v3958 = vmul.f32 %v400, %v3776
      %v3959 = vmul.f32 %v401, %v3776
      %v3960 = vmul.f32 %v402, %v3776
      %v3961 = vmul.f32 %v403, %v3776
      %v3962 = vmul.f32 %v404, %v3776
      %v3963 = vmul.f32 %v405, %v3776
      %v3964 = vmul.f32 %v406, %v3776
      %v3965 = vmul.f32 %v407, %v3776
      %v3966 = vmul.f32 %v408, %v3776
      %v3967 = vmul.f32 %v409, %v3776
      %v3968 = vmul.f32 %v410, %v3776
      %v3969 = vmul.f32 %v411, %v3776
      %v3970 = vmul.f32 %v412, %v3776
      %v3971 = vmul.f32 %v413, %v3776
      %v3972 = vmul.f32 %v414, %v3776
      %v3973 = vmul.f32 %v415, %v3776
      %v3974 = vmul.f32 %v416, %v3776
      %v3975 = vmul.f32 %v417, %v3776
      %v3976 = vmul.f32 %v418, %v3776
      %v3977 = vmul.f32 %v419, %v3776
      %v3978 = vmul.f32 %v420, %v3776
      %v3979 = vmul.f32 %v421, %v3776
      %v3980 = vmul.f32 %v422, %v3776
      %v3981 = vmul.f32 %v423, %v3776
      %v3982 = vmul.f32 %v424, %v3776
      %v3983 = vmul.f32 %v425, %v3776
      %v3984 = vmul.f32 %v426, %v3776
      %v3985 = vmul.f32 %v427, %v3776
      %v3986 = vmul.f32 %v428, %v3776
      %v3987 = vmul.f32 %v429, %v3776
      %v3988 = vmul.f32 %v430, %v3776
      %v3989 = vmul.f32 %v431, %v3776
      %v3990 = vmul.f32 %v432, %v3776
      %v3991 = vmul.f32 %v433, %v3776
      %v3992 = vmul.f32 %v434, %v3776
      %v3993 = vmul.f32 %v435, %v3776
      %v3994 = vmul.f32 %v436, %v3776
      %v3995 = vmul.f32 %v437, %v3776
      %v3996 = vmul.f32 %v438, %v3776
      %v3997 = vmul.f32 %v439, %v3776
      %v3998 = vmul.f32 %v440, %v3776
      %v3999 = vmul.f32 %v441, %v3776
      %v4000 = vmul.f32 %v442, %v3776
      %v4225 = vrot.slane %v3777, 1
      %v4226 = vrot.slane %v3778, 1
      %v4227 = vsel %vm1299, %v4225, %v4226
      %v4228 = vrot.slane %v3779, 1
      %v4229 = vsel %vm1299, %v4226, %v4228
      %v4230 = vrot.slane %v3780, 1
      %v4231 = vsel %vm1299, %v4228, %v4230
      %v4232 = vrot.slane %v3781, 1
      %v4233 = vsel %vm1299, %v4230, %v4232
      %v4234 = vrot.slane %v3782, 1
      %v4235 = vsel %vm1299, %v4232, %v4234
      %v4236 = vrot.slane %v3783, 1
      %v4237 = vsel %vm1299, %v4234, %v4236
      %v4238 = vrot.slane %v3784, 1
      %v4239 = vsel %vm1299, %v4236, %v4238
      %v4240 = vrot.slane %v3785, 1
      %v4241 = vrot.slane %v3786, 1
      %v4242 = vsel %vm1299, %v4240, %v4241
      %v4243 = vrot.slane %v3787, 1
      %v4244 = vsel %vm1299, %v4241, %v4243
      %v4245 = vrot.slane %v3788, 1
      %v4246 = vsel %vm1299, %v4243, %v4245
      %v4247 = vrot.slane %v3789, 1
      %v4248 = vsel %vm1299, %v4245, %v4247
      %v4249 = vrot.slane %v3790, 1
      %v4250 = vsel %vm1299, %v4247, %v4249
      %v4251 = vrot.slane %v3791, 1
      %v4252 = vsel %vm1299, %v4249, %v4251
      %v4253 = vrot.slane %v3792, 1
      %v4254 = vsel %vm1299, %v4251, %v4253
      %v4255 = vrot.slane %v3793, 1
      %v4256 = vrot.slane %v3794, 1
      %v4257 = vsel %vm1299, %v4255, %v4256
      %v4258 = vrot.slane %v3795, 1
      %v4259 = vsel %vm1299, %v4256, %v4258
      %v4260 = vrot.slane %v3796, 1
      %v4261 = vsel %vm1299, %v4258, %v4260
      %v4262 = vrot.slane %v3797, 1
      %v4263 = vsel %vm1299, %v4260, %v4262
      %v4264 = vrot.slane %v3798, 1
      %v4265 = vsel %vm1299, %v4262, %v4264
      %v4266 = vrot.slane %v3799, 1
      %v4267 = vsel %vm1299, %v4264, %v4266
      %v4268 = vrot.slane %v3800, 1
      %v4269 = vsel %vm1299, %v4266, %v4268
      %v4270 = vrot.slane %v3801, 1
      %v4271 = vrot.slane %v3802, 1
      %v4272 = vsel %vm1299, %v4270, %v4271
      %v4273 = vrot.slane %v3803, 1
      %v4274 = vsel %vm1299, %v4271, %v4273
      %v4275 = vrot.slane %v3804, 1
      %v4276 = vsel %vm1299, %v4273, %v4275
      %v4277 = vrot.slane %v3805, 1
      %v4278 = vsel %vm1299, %v4275, %v4277
      %v4279 = vrot.slane %v3806, 1
      %v4280 = vsel %vm1299, %v4277, %v4279
      %v4281 = vrot.slane %v3807, 1
      %v4282 = vsel %vm1299, %v4279, %v4281
      %v4283 = vrot.slane %v3808, 1
      %v4284 = vsel %vm1299, %v4281, %v4283
      %v4285 = vrot.slane %v3809, 1
      %v4286 = vrot.slane %v3810, 1
      %v4287 = vsel %vm1299, %v4285, %v4286
      %v4288 = vrot.slane %v3811, 1
      %v4289 = vsel %vm1299, %v4286, %v4288
      %v4290 = vrot.slane %v3812, 1
      %v4291 = vsel %vm1299, %v4288, %v4290
      %v4292 = vrot.slane %v3813, 1
      %v4293 = vsel %vm1299, %v4290, %v4292
      %v4294 = vrot.slane %v3814, 1
      %v4295 = vsel %vm1299, %v4292, %v4294
      %v4296 = vrot.slane %v3815, 1
      %v4297 = vsel %vm1299, %v4294, %v4296
      %v4298 = vrot.slane %v3816, 1
      %v4299 = vsel %vm1299, %v4296, %v4298
      %v4300 = vrot.slane %v3817, 1
      %v4301 = vrot.slane %v3818, 1
      %v4302 = vsel %vm1299, %v4300, %v4301
      %v4303 = vrot.slane %v3819, 1
      %v4304 = vsel %vm1299, %v4301, %v4303
      %v4305 = vrot.slane %v3820, 1
      %v4306 = vsel %vm1299, %v4303, %v4305
      %v4307 = vrot.slane %v3821, 1
      %v4308 = vsel %vm1299, %v4305, %v4307
      %v4309 = vrot.slane %v3822, 1
      %v4310 = vsel %vm1299, %v4307, %v4309
      %v4311 = vrot.slane %v3823, 1
      %v4312 = vsel %vm1299, %v4309, %v4311
      %v4313 = vrot.slane %v3824, 1
      %v4314 = vsel %vm1299, %v4311, %v4313
      %v4315 = vrot.slane %v3825, 1
      %v4316 = vrot.slane %v3826, 1
      %v4317 = vsel %vm1299, %v4315, %v4316
      %v4318 = vrot.slane %v3827, 1
      %v4319 = vsel %vm1299, %v4316, %v4318
      %v4320 = vrot.slane %v3828, 1
      %v4321 = vsel %vm1299, %v4318, %v4320
      %v4322 = vrot.slane %v3829, 1
      %v4323 = vsel %vm1299, %v4320, %v4322
      %v4324 = vrot.slane %v3830, 1
      %v4325 = vsel %vm1299, %v4322, %v4324
      %v4326 = vrot.slane %v3831, 1
      %v4327 = vsel %vm1299, %v4324, %v4326
      %v4328 = vrot.slane %v3832, 1
      %v4329 = vsel %vm1299, %v4326, %v4328
      %v4330 = vrot.slane %v3833, 1
      %v4331 = vrot.slane %v3834, 1
      %v4332 = vsel %vm1299, %v4330, %v4331
      %v4333 = vrot.slane %v3835, 1
      %v4334 = vsel %vm1299, %v4331, %v4333
      %v4335 = vrot.slane %v3836, 1
      %v4336 = vsel %vm1299, %v4333, %v4335
      %v4337 = vrot.slane %v3837, 1
      %v4338 = vsel %vm1299, %v4335, %v4337
      %v4339 = vrot.slane %v3838, 1
      %v4340 = vsel %vm1299, %v4337, %v4339
      %v4341 = vrot.slane %v3839, 1
      %v4342 = vsel %vm1299, %v4339, %v4341
      %v4343 = vrot.slane %v3840, 1
      %v4344 = vsel %vm1299, %v4341, %v4343
      %v4345 = vrot.slane %v3841, 1
      %v4346 = vrot.slane %v3842, 1
      %v4347 = vsel %vm1299, %v4345, %v4346
      %v4348 = vrot.slane %v3843, 1
      %v4349 = vsel %vm1299, %v4346, %v4348
      %v4350 = vrot.slane %v3844, 1
      %v4351 = vsel %vm1299, %v4348, %v4350
      %v4352 = vrot.slane %v3845, 1
      %v4353 = vsel %vm1299, %v4350, %v4352
      %v4354 = vrot.slane %v3846, 1
      %v4355 = vsel %vm1299, %v4352, %v4354
      %v4356 = vrot.slane %v3847, 1
      %v4357 = vsel %vm1299, %v4354, %v4356
      %v4358 = vrot.slane %v3848, 1
      %v4359 = vsel %vm1299, %v4356, %v4358
      %v4360 = vrot.slane %v3849, 1
      %v4361 = vrot.slane %v3850, 1
      %v4362 = vsel %vm1299, %v4360, %v4361
      %v4363 = vrot.slane %v3851, 1
      %v4364 = vsel %vm1299, %v4361, %v4363
      %v4365 = vrot.slane %v3852, 1
      %v4366 = vsel %vm1299, %v4363, %v4365
      %v4367 = vrot.slane %v3853, 1
      %v4368 = vsel %vm1299, %v4365, %v4367
      %v4369 = vrot.slane %v3854, 1
      %v4370 = vsel %vm1299, %v4367, %v4369
      %v4371 = vrot.slane %v3855, 1
      %v4372 = vsel %vm1299, %v4369, %v4371
      %v4373 = vrot.slane %v3856, 1
      %v4374 = vsel %vm1299, %v4371, %v4373
      %v4375 = vrot.slane %v3857, 1
      %v4376 = vrot.slane %v3858, 1
      %v4377 = vsel %vm1299, %v4375, %v4376
      %v4378 = vrot.slane %v3859, 1
      %v4379 = vsel %vm1299, %v4376, %v4378
      %v4380 = vrot.slane %v3860, 1
      %v4381 = vsel %vm1299, %v4378, %v4380
      %v4382 = vrot.slane %v3861, 1
      %v4383 = vsel %vm1299, %v4380, %v4382
      %v4384 = vrot.slane %v3862, 1
      %v4385 = vsel %vm1299, %v4382, %v4384
      %v4386 = vrot.slane %v3863, 1
      %v4387 = vsel %vm1299, %v4384, %v4386
      %v4388 = vrot.slane %v3864, 1
      %v4389 = vsel %vm1299, %v4386, %v4388
      %v4390 = vrot.slane %v3865, 1
      %v4391 = vrot.slane %v3866, 1
      %v4392 = vsel %vm1299, %v4390, %v4391
      %v4393 = vrot.slane %v3867, 1
      %v4394 = vsel %vm1299, %v4391, %v4393
      %v4395 = vrot.slane %v3868, 1
      %v4396 = vsel %vm1299, %v4393, %v4395
      %v4397 = vrot.slane %v3869, 1
      %v4398 = vsel %vm1299, %v4395, %v4397
      %v4399 = vrot.slane %v3870, 1
      %v4400 = vsel %vm1299, %v4397, %v4399
      %v4401 = vrot.slane %v3871, 1
      %v4402 = vsel %vm1299, %v4399, %v4401
      %v4403 = vrot.slane %v3872, 1
      %v4404 = vsel %vm1299, %v4401, %v4403
      %v4405 = vrot.slane %v3873, 1
      %v4406 = vrot.slane %v3874, 1
      %v4407 = vsel %vm1299, %v4405, %v4406
      %v4408 = vrot.slane %v3875, 1
      %v4409 = vsel %vm1299, %v4406, %v4408
      %v4410 = vrot.slane %v3876, 1
      %v4411 = vsel %vm1299, %v4408, %v4410
      %v4412 = vrot.slane %v3877, 1
      %v4413 = vsel %vm1299, %v4410, %v4412
      %v4414 = vrot.slane %v3878, 1
      %v4415 = vsel %vm1299, %v4412, %v4414
      %v4416 = vrot.slane %v3879, 1
      %v4417 = vsel %vm1299, %v4414, %v4416
      %v4418 = vrot.slane %v3880, 1
      %v4419 = vsel %vm1299, %v4416, %v4418
      %v4420 = vrot.slane %v3881, 1
      %v4421 = vrot.slane %v3882, 1
      %v4422 = vsel %vm1299, %v4420, %v4421
      %v4423 = vrot.slane %v3883, 1
      %v4424 = vsel %vm1299, %v4421, %v4423
      %v4425 = vrot.slane %v3884, 1
      %v4426 = vsel %vm1299, %v4423, %v4425
      %v4427 = vrot.slane %v3885, 1
      %v4428 = vsel %vm1299, %v4425, %v4427
      %v4429 = vrot.slane %v3886, 1
      %v4430 = vsel %vm1299, %v4427, %v4429
      %v4431 = vrot.slane %v3887, 1
      %v4432 = vsel %vm1299, %v4429, %v4431
      %v4433 = vrot.slane %v3888, 1
      %v4434 = vsel %vm1299, %v4431, %v4433
      %v4435 = vrot.slane %v3889, 1
      %v4436 = vrot.slane %v3890, 1
      %v4437 = vsel %vm1299, %v4435, %v4436
      %v4438 = vrot.slane %v3891, 1
      %v4439 = vsel %vm1299, %v4436, %v4438
      %v4440 = vrot.slane %v3892, 1
      %v4441 = vsel %vm1299, %v4438, %v4440
      %v4442 = vrot.slane %v3893, 1
      %v4443 = vsel %vm1299, %v4440, %v4442
      %v4444 = vrot.slane %v3894, 1
      %v4445 = vsel %vm1299, %v4442, %v4444
      %v4446 = vrot.slane %v3895, 1
      %v4447 = vsel %vm1299, %v4444, %v4446
      %v4448 = vrot.slane %v3896, 1
      %v4449 = vsel %vm1299, %v4446, %v4448
      %v4450 = vrot.slane %v3897, 1
      %v4451 = vrot.slane %v3898, 1
      %v4452 = vsel %vm1299, %v4450, %v4451
      %v4453 = vrot.slane %v3899, 1
      %v4454 = vsel %vm1299, %v4451, %v4453
      %v4455 = vrot.slane %v3900, 1
      %v4456 = vsel %vm1299, %v4453, %v4455
      %v4457 = vrot.slane %v3901, 1
      %v4458 = vsel %vm1299, %v4455, %v4457
      %v4459 = vrot.slane %v3902, 1
      %v4460 = vsel %vm1299, %v4457, %v4459
      %v4461 = vrot.slane %v3903, 1
      %v4462 = vsel %vm1299, %v4459, %v4461
      %v4463 = vrot.slane %v3904, 1
      %v4464 = vsel %vm1299, %v4461, %v4463
      %v4465 = vrot.slane %v3905, 1
      %v4466 = vrot.slane %v3906, 1
      %v4467 = vsel %vm1299, %v4465, %v4466
      %v4468 = vrot.slane %v3907, 1
      %v4469 = vsel %vm1299, %v4466, %v4468
      %v4470 = vrot.slane %v3908, 1
      %v4471 = vsel %vm1299, %v4468, %v4470
      %v4472 = vrot.slane %v3909, 1
      %v4473 = vsel %vm1299, %v4470, %v4472
      %v4474 = vrot.slane %v3910, 1
      %v4475 = vsel %vm1299, %v4472, %v4474
      %v4476 = vrot.slane %v3911, 1
      %v4477 = vsel %vm1299, %v4474, %v4476
      %v4478 = vrot.slane %v3912, 1
      %v4479 = vsel %vm1299, %v4476, %v4478
      %v4480 = vrot.slane %v3913, 1
      %v4481 = vrot.slane %v3914, 1
      %v4482 = vsel %vm1299, %v4480, %v4481
      %v4483 = vrot.slane %v3915, 1
      %v4484 = vsel %vm1299, %v4481, %v4483
      %v4485 = vrot.slane %v3916, 1
      %v4486 = vsel %vm1299, %v4483, %v4485
      %v4487 = vrot.slane %v3917, 1
      %v4488 = vsel %vm1299, %v4485, %v4487
      %v4489 = vrot.slane %v3918, 1
      %v4490 = vsel %vm1299, %v4487, %v4489
      %v4491 = vrot.slane %v3919, 1
      %v4492 = vsel %vm1299, %v4489, %v4491
      %v4493 = vrot.slane %v3920, 1
      %v4494 = vsel %vm1299, %v4491, %v4493
      %v4495 = vrot.slane %v3921, 1
      %v4496 = vrot.slane %v3922, 1
      %v4497 = vsel %vm1299, %v4495, %v4496
      %v4498 = vrot.slane %v3923, 1
      %v4499 = vsel %vm1299, %v4496, %v4498
      %v4500 = vrot.slane %v3924, 1
      %v4501 = vsel %vm1299, %v4498, %v4500
      %v4502 = vrot.slane %v3925, 1
      %v4503 = vsel %vm1299, %v4500, %v4502
      %v4504 = vrot.slane %v3926, 1
      %v4505 = vsel %vm1299, %v4502, %v4504
      %v4506 = vrot.slane %v3927, 1
      %v4507 = vsel %vm1299, %v4504, %v4506
      %v4508 = vrot.slane %v3928, 1
      %v4509 = vsel %vm1299, %v4506, %v4508
      %v4510 = vrot.slane %v3929, 1
      %v4511 = vrot.slane %v3930, 1
      %v4512 = vsel %vm1299, %v4510, %v4511
      %v4513 = vrot.slane %v3931, 1
      %v4514 = vsel %vm1299, %v4511, %v4513
      %v4515 = vrot.slane %v3932, 1
      %v4516 = vsel %vm1299, %v4513, %v4515
      %v4517 = vrot.slane %v3933, 1
      %v4518 = vsel %vm1299, %v4515, %v4517
      %v4519 = vrot.slane %v3934, 1
      %v4520 = vsel %vm1299, %v4517, %v4519
      %v4521 = vrot.slane %v3935, 1
      %v4522 = vsel %vm1299, %v4519, %v4521
      %v4523 = vrot.slane %v3936, 1
      %v4524 = vsel %vm1299, %v4521, %v4523
      %v4525 = vrot.slane %v3937, 1
      %v4526 = vrot.slane %v3938, 1
      %v4527 = vsel %vm1299, %v4525, %v4526
      %v4528 = vrot.slane %v3939, 1
      %v4529 = vsel %vm1299, %v4526, %v4528
      %v4530 = vrot.slane %v3940, 1
      %v4531 = vsel %vm1299, %v4528, %v4530
      %v4532 = vrot.slane %v3941, 1
      %v4533 = vsel %vm1299, %v4530, %v4532
      %v4534 = vrot.slane %v3942, 1
      %v4535 = vsel %vm1299, %v4532, %v4534
      %v4536 = vrot.slane %v3943, 1
      %v4537 = vsel %vm1299, %v4534, %v4536
      %v4538 = vrot.slane %v3944, 1
      %v4539 = vsel %vm1299, %v4536, %v4538
      %v4540 = vrot.slane %v3945, 1
      %v4541 = vrot.slane %v3946, 1
      %v4542 = vsel %vm1299, %v4540, %v4541
      %v4543 = vrot.slane %v3947, 1
      %v4544 = vsel %vm1299, %v4541, %v4543
      %v4545 = vrot.slane %v3948, 1
      %v4546 = vsel %vm1299, %v4543, %v4545
      %v4547 = vrot.slane %v3949, 1
      %v4548 = vsel %vm1299, %v4545, %v4547
      %v4549 = vrot.slane %v3950, 1
      %v4550 = vsel %vm1299, %v4547, %v4549
      %v4551 = vrot.slane %v3951, 1
      %v4552 = vsel %vm1299, %v4549, %v4551
      %v4553 = vrot.slane %v3952, 1
      %v4554 = vsel %vm1299, %v4551, %v4553
      %v4555 = vrot.slane %v3953, 1
      %v4556 = vrot.slane %v3954, 1
      %v4557 = vsel %vm1299, %v4555, %v4556
      %v4558 = vrot.slane %v3955, 1
      %v4559 = vsel %vm1299, %v4556, %v4558
      %v4560 = vrot.slane %v3956, 1
      %v4561 = vsel %vm1299, %v4558, %v4560
      %v4562 = vrot.slane %v3957, 1
      %v4563 = vsel %vm1299, %v4560, %v4562
      %v4564 = vrot.slane %v3958, 1
      %v4565 = vsel %vm1299, %v4562, %v4564
      %v4566 = vrot.slane %v3959, 1
      %v4567 = vsel %vm1299, %v4564, %v4566
      %v4568 = vrot.slane %v3960, 1
      %v4569 = vsel %vm1299, %v4566, %v4568
      %v4570 = vrot.slane %v3961, 1
      %v4571 = vrot.slane %v3962, 1
      %v4572 = vsel %vm1299, %v4570, %v4571
      %v4573 = vrot.slane %v3963, 1
      %v4574 = vsel %vm1299, %v4571, %v4573
      %v4575 = vrot.slane %v3964, 1
      %v4576 = vsel %vm1299, %v4573, %v4575
      %v4577 = vrot.slane %v3965, 1
      %v4578 = vsel %vm1299, %v4575, %v4577
      %v4579 = vrot.slane %v3966, 1
      %v4580 = vsel %vm1299, %v4577, %v4579
      %v4581 = vrot.slane %v3967, 1
      %v4582 = vsel %vm1299, %v4579, %v4581
      %v4583 = vrot.slane %v3968, 1
      %v4584 = vsel %vm1299, %v4581, %v4583
      %v4585 = vrot.slane %v3969, 1
      %v4586 = vrot.slane %v3970, 1
      %v4587 = vsel %vm1299, %v4585, %v4586
      %v4588 = vrot.slane %v3971, 1
      %v4589 = vsel %vm1299, %v4586, %v4588
      %v4590 = vrot.slane %v3972, 1
      %v4591 = vsel %vm1299, %v4588, %v4590
      %v4592 = vrot.slane %v3973, 1
      %v4593 = vsel %vm1299, %v4590, %v4592
      %v4594 = vrot.slane %v3974, 1
      %v4595 = vsel %vm1299, %v4592, %v4594
      %v4596 = vrot.slane %v3975, 1
      %v4597 = vsel %vm1299, %v4594, %v4596
      %v4598 = vrot.slane %v3976, 1
      %v4599 = vsel %vm1299, %v4596, %v4598
      %v4600 = vrot.slane %v3977, 1
      %v4601 = vrot.slane %v3978, 1
      %v4602 = vsel %vm1299, %v4600, %v4601
      %v4603 = vrot.slane %v3979, 1
      %v4604 = vsel %vm1299, %v4601, %v4603
      %v4605 = vrot.slane %v3980, 1
      %v4606 = vsel %vm1299, %v4603, %v4605
      %v4607 = vrot.slane %v3981, 1
      %v4608 = vsel %vm1299, %v4605, %v4607
      %v4609 = vrot.slane %v3982, 1
      %v4610 = vsel %vm1299, %v4607, %v4609
      %v4611 = vrot.slane %v3983, 1
      %v4612 = vsel %vm1299, %v4609, %v4611
      %v4613 = vrot.slane %v3984, 1
      %v4614 = vsel %vm1299, %v4611, %v4613
      %v4615 = vrot.slane %v3985, 1
      %v4616 = vrot.slane %v3986, 1
      %v4617 = vsel %vm1299, %v4615, %v4616
      %v4618 = vrot.slane %v3987, 1
      %v4619 = vsel %vm1299, %v4616, %v4618
      %v4620 = vrot.slane %v3988, 1
      %v4621 = vsel %vm1299, %v4618, %v4620
      %v4622 = vrot.slane %v3989, 1
      %v4623 = vsel %vm1299, %v4620, %v4622
      %v4624 = vrot.slane %v3990, 1
      %v4625 = vsel %vm1299, %v4622, %v4624
      %v4626 = vrot.slane %v3991, 1
      %v4627 = vsel %vm1299, %v4624, %v4626
      %v4628 = vrot.slane %v3992, 1
      %v4629 = vsel %vm1299, %v4626, %v4628
      %v4630 = vrot.slane %v3993, 1
      %v4631 = vrot.slane %v3994, 1
      %v4632 = vsel %vm1299, %v4630, %v4631
      %v4633 = vrot.slane %v3995, 1
      %v4634 = vsel %vm1299, %v4631, %v4633
      %v4635 = vrot.slane %v3996, 1
      %v4636 = vsel %vm1299, %v4633, %v4635
      %v4637 = vrot.slane %v3997, 1
      %v4638 = vsel %vm1299, %v4635, %v4637
      %v4639 = vrot.slane %v3998, 1
      %v4640 = vsel %vm1299, %v4637, %v4639
      %v4641 = vrot.slane %v3999, 1
      %v4642 = vsel %vm1299, %v4639, %v4641
      %v4643 = vrot.slane %v4000, 1
      %v4644 = vsel %vm1299, %v4641, %v4643
      %v4841 = vadd.f32 %v3577, %v4227
      %v4842 = vadd.f32 %v3578, %v4229
      %v4843 = vadd.f32 %v3579, %v4231
      %v4844 = vadd.f32 %v3580, %v4233
      %v4845 = vadd.f32 %v3581, %v4235
      %v4846 = vadd.f32 %v3582, %v4237
      %v4847 = vadd.f32 %v3583, %v4239
      %v4848 = vadd.f32 %v3584, %v4242
      %v4849 = vadd.f32 %v3585, %v4244
      %v4850 = vadd.f32 %v3586, %v4246
      %v4851 = vadd.f32 %v3587, %v4248
      %v4852 = vadd.f32 %v3588, %v4250
      %v4853 = vadd.f32 %v3589, %v4252
      %v4854 = vadd.f32 %v3590, %v4254
      %v4855 = vadd.f32 %v3591, %v4257
      %v4856 = vadd.f32 %v3592, %v4259
      %v4857 = vadd.f32 %v3593, %v4261
      %v4858 = vadd.f32 %v3594, %v4263
      %v4859 = vadd.f32 %v3595, %v4265
      %v4860 = vadd.f32 %v3596, %v4267
      %v4861 = vadd.f32 %v3597, %v4269
      %v4862 = vadd.f32 %v3598, %v4272
      %v4863 = vadd.f32 %v3599, %v4274
      %v4864 = vadd.f32 %v3600, %v4276
      %v4865 = vadd.f32 %v3601, %v4278
      %v4866 = vadd.f32 %v3602, %v4280
      %v4867 = vadd.f32 %v3603, %v4282
      %v4868 = vadd.f32 %v3604, %v4284
      %v4869 = vadd.f32 %v3605, %v4287
      %v4870 = vadd.f32 %v3606, %v4289
      %v4871 = vadd.f32 %v3607, %v4291
      %v4872 = vadd.f32 %v3608, %v4293
      %v4873 = vadd.f32 %v3609, %v4295
      %v4874 = vadd.f32 %v3610, %v4297
      %v4875 = vadd.f32 %v3611, %v4299
      %v4876 = vadd.f32 %v3612, %v4302
      %v4877 = vadd.f32 %v3613, %v4304
      %v4878 = vadd.f32 %v3614, %v4306
      %v4879 = vadd.f32 %v3615, %v4308
      %v4880 = vadd.f32 %v3616, %v4310
      %v4881 = vadd.f32 %v3617, %v4312
      %v4882 = vadd.f32 %v3618, %v4314
      %v4883 = vadd.f32 %v3619, %v4317
      %v4884 = vadd.f32 %v3620, %v4319
      %v4885 = vadd.f32 %v3621, %v4321
      %v4886 = vadd.f32 %v3622, %v4323
      %v4887 = vadd.f32 %v3623, %v4325
      %v4888 = vadd.f32 %v3624, %v4327
      %v4889 = vadd.f32 %v3625, %v4329
      %v4890 = vadd.f32 %v3626, %v4332
      %v4891 = vadd.f32 %v3627, %v4334
      %v4892 = vadd.f32 %v3628, %v4336
      %v4893 = vadd.f32 %v3629, %v4338
      %v4894 = vadd.f32 %v3630, %v4340
      %v4895 = vadd.f32 %v3631, %v4342
      %v4896 = vadd.f32 %v3632, %v4344
      %v4897 = vadd.f32 %v3633, %v4347
      %v4898 = vadd.f32 %v3634, %v4349
      %v4899 = vadd.f32 %v3635, %v4351
      %v4900 = vadd.f32 %v3636, %v4353
      %v4901 = vadd.f32 %v3637, %v4355
      %v4902 = vadd.f32 %v3638, %v4357
      %v4903 = vadd.f32 %v3639, %v4359
      %v4904 = vadd.f32 %v3640, %v4362
      %v4905 = vadd.f32 %v3641, %v4364
      %v4906 = vadd.f32 %v3642, %v4366
      %v4907 = vadd.f32 %v3643, %v4368
      %v4908 = vadd.f32 %v3644, %v4370
      %v4909 = vadd.f32 %v3645, %v4372
      %v4910 = vadd.f32 %v3646, %v4374
      %v4911 = vadd.f32 %v3647, %v4377
      %v4912 = vadd.f32 %v3648, %v4379
      %v4913 = vadd.f32 %v3649, %v4381
      %v4914 = vadd.f32 %v3650, %v4383
      %v4915 = vadd.f32 %v3651, %v4385
      %v4916 = vadd.f32 %v3652, %v4387
      %v4917 = vadd.f32 %v3653, %v4389
      %v4918 = vadd.f32 %v3654, %v4392
      %v4919 = vadd.f32 %v3655, %v4394
      %v4920 = vadd.f32 %v3656, %v4396
      %v4921 = vadd.f32 %v3657, %v4398
      %v4922 = vadd.f32 %v3658, %v4400
      %v4923 = vadd.f32 %v3659, %v4402
      %v4924 = vadd.f32 %v3660, %v4404
      %v4925 = vadd.f32 %v3661, %v4407
      %v4926 = vadd.f32 %v3662, %v4409
      %v4927 = vadd.f32 %v3663, %v4411
      %v4928 = vadd.f32 %v3664, %v4413
      %v4929 = vadd.f32 %v3665, %v4415
      %v4930 = vadd.f32 %v3666, %v4417
      %v4931 = vadd.f32 %v3667, %v4419
      %v4932 = vadd.f32 %v3668, %v4422
      %v4933 = vadd.f32 %v3669, %v4424
      %v4934 = vadd.f32 %v3670, %v4426
      %v4935 = vadd.f32 %v3671, %v4428
      %v4936 = vadd.f32 %v3672, %v4430
      %v4937 = vadd.f32 %v3673, %v4432
      %v4938 = vadd.f32 %v3674, %v4434
      %v4939 = vadd.f32 %v3675, %v4437
      %v4940 = vadd.f32 %v3676, %v4439
      %v4941 = vadd.f32 %v3677, %v4441
      %v4942 = vadd.f32 %v3678, %v4443
      %v4943 = vadd.f32 %v3679, %v4445
      %v4944 = vadd.f32 %v3680, %v4447
      %v4945 = vadd.f32 %v3681, %v4449
      %v4946 = vadd.f32 %v3682, %v4452
      %v4947 = vadd.f32 %v3683, %v4454
      %v4948 = vadd.f32 %v3684, %v4456
      %v4949 = vadd.f32 %v3685, %v4458
      %v4950 = vadd.f32 %v3686, %v4460
      %v4951 = vadd.f32 %v3687, %v4462
      %v4952 = vadd.f32 %v3688, %v4464
      %v4953 = vadd.f32 %v3689, %v4467
      %v4954 = vadd.f32 %v3690, %v4469
      %v4955 = vadd.f32 %v3691, %v4471
      %v4956 = vadd.f32 %v3692, %v4473
      %v4957 = vadd.f32 %v3693, %v4475
      %v4958 = vadd.f32 %v3694, %v4477
      %v4959 = vadd.f32 %v3695, %v4479
      %v4960 = vadd.f32 %v3696, %v4482
      %v4961 = vadd.f32 %v3697, %v4484
      %v4962 = vadd.f32 %v3698, %v4486
      %v4963 = vadd.f32 %v3699, %v4488
      %v4964 = vadd.f32 %v3700, %v4490
      %v4965 = vadd.f32 %v3701, %v4492
      %v4966 = vadd.f32 %v3702, %v4494
      %v4967 = vadd.f32 %v3703, %v4497
      %v4968 = vadd.f32 %v3704, %v4499
      %v4969 = vadd.f32 %v3705, %v4501
      %v4970 = vadd.f32 %v3706, %v4503
      %v4971 = vadd.f32 %v3707, %v4505
      %v4972 = vadd.f32 %v3708, %v4507
      %v4973 = vadd.f32 %v3709, %v4509
      %v4974 = vadd.f32 %v3710, %v4512
      %v4975 = vadd.f32 %v3711, %v4514
      %v4976 = vadd.f32 %v3712, %v4516
      %v4977 = vadd.f32 %v3713, %v4518
      %v4978 = vadd.f32 %v3714, %v4520
      %v4979 = vadd.f32 %v3715, %v4522
      %v4980 = vadd.f32 %v3716, %v4524
      %v4981 = vadd.f32 %v3717, %v4527
      %v4982 = vadd.f32 %v3718, %v4529
      %v4983 = vadd.f32 %v3719, %v4531
      %v4984 = vadd.f32 %v3720, %v4533
      %v4985 = vadd.f32 %v3721, %v4535
      %v4986 = vadd.f32 %v3722, %v4537
      %v4987 = vadd.f32 %v3723, %v4539
      %v4988 = vadd.f32 %v3724, %v4542
      %v4989 = vadd.f32 %v3725, %v4544
      %v4990 = vadd.f32 %v3726, %v4546
      %v4991 = vadd.f32 %v3727, %v4548
      %v4992 = vadd.f32 %v3728, %v4550
      %v4993 = vadd.f32 %v3729, %v4552
      %v4994 = vadd.f32 %v3730, %v4554
      %v4995 = vadd.f32 %v3731, %v4557
      %v4996 = vadd.f32 %v3732, %v4559
      %v4997 = vadd.f32 %v3733, %v4561
      %v4998 = vadd.f32 %v3734, %v4563
      %v4999 = vadd.f32 %v3735, %v4565
      %v5000 = vadd.f32 %v3736, %v4567
      %v5001 = vadd.f32 %v3737, %v4569
      %v5002 = vadd.f32 %v3738, %v4572
      %v5003 = vadd.f32 %v3739, %v4574
      %v5004 = vadd.f32 %v3740, %v4576
      %v5005 = vadd.f32 %v3741, %v4578
      %v5006 = vadd.f32 %v3742, %v4580
      %v5007 = vadd.f32 %v3743, %v4582
      %v5008 = vadd.f32 %v3744, %v4584
      %v5009 = vadd.f32 %v3745, %v4587
      %v5010 = vadd.f32 %v3746, %v4589
      %v5011 = vadd.f32 %v3747, %v4591
      %v5012 = vadd.f32 %v3748, %v4593
      %v5013 = vadd.f32 %v3749, %v4595
      %v5014 = vadd.f32 %v3750, %v4597
      %v5015 = vadd.f32 %v3751, %v4599
      %v5016 = vadd.f32 %v3752, %v4602
      %v5017 = vadd.f32 %v3753, %v4604
      %v5018 = vadd.f32 %v3754, %v4606
      %v5019 = vadd.f32 %v3755, %v4608
      %v5020 = vadd.f32 %v3756, %v4610
      %v5021 = vadd.f32 %v3757, %v4612
      %v5022 = vadd.f32 %v3758, %v4614
      %v5023 = vadd.f32 %v3759, %v4617
      %v5024 = vadd.f32 %v3760, %v4619
      %v5025 = vadd.f32 %v3761, %v4621
      %v5026 = vadd.f32 %v3762, %v4623
      %v5027 = vadd.f32 %v3763, %v4625
      %v5028 = vadd.f32 %v3764, %v4627
      %v5029 = vadd.f32 %v3765, %v4629
      %v5030 = vadd.f32 %v3766, %v4632
      %v5031 = vadd.f32 %v3767, %v4634
      %v5032 = vadd.f32 %v3768, %v4636
      %v5033 = vadd.f32 %v3769, %v4638
      %v5034 = vadd.f32 %v3770, %v4640
      %v5035 = vadd.f32 %v3771, %v4642
      %v5036 = vadd.f32 %v3772, %v4644
      %v5037 = vlaneseq
      %v5038 = vshrl.u32 %v5037, 7
      %v5039 = vsub.s32 5, %v5038
      %v5040 = vrot.slane %v207, %v5039
      %v5041 = vmul.f32 %v219, %v5040
      %v5042 = vmul.f32 %v220, %v5040
      %v5043 = vmul.f32 %v221, %v5040
      %v5044 = vmul.f32 %v222, %v5040
      %v5045 = vmul.f32 %v223, %v5040
      %v5046 = vmul.f32 %v224, %v5040
      %v5047 = vmul.f32 %v225, %v5040
      %v5048 = vmul.f32 %v226, %v5040
      %v5049 = vmul.f32 %v227, %v5040
      %v5050 = vmul.f32 %v228, %v5040
      %v5051 = vmul.f32 %v229, %v5040
      %v5052 = vmul.f32 %v230, %v5040
      %v5053 = vmul.f32 %v231, %v5040
      %v5054 = vmul.f32 %v232, %v5040
      %v5055 = vmul.f32 %v233, %v5040
      %v5056 = vmul.f32 %v234, %v5040
      %v5057 = vmul.f32 %v235, %v5040
      %v5058 = vmul.f32 %v236, %v5040
      %v5059 = vmul.f32 %v237, %v5040
      %v5060 = vmul.f32 %v238, %v5040
      %v5061 = vmul.f32 %v239, %v5040
      %v5062 = vmul.f32 %v240, %v5040
      %v5063 = vmul.f32 %v241, %v5040
      %v5064 = vmul.f32 %v242, %v5040
      %v5065 = vmul.f32 %v243, %v5040
      %v5066 = vmul.f32 %v244, %v5040
      %v5067 = vmul.f32 %v245, %v5040
      %v5068 = vmul.f32 %v246, %v5040
      %v5069 = vmul.f32 %v247, %v5040
      %v5070 = vmul.f32 %v248, %v5040
      %v5071 = vmul.f32 %v249, %v5040
      %v5072 = vmul.f32 %v250, %v5040
      %v5073 = vmul.f32 %v251, %v5040
      %v5074 = vmul.f32 %v252, %v5040
      %v5075 = vmul.f32 %v253, %v5040
      %v5076 = vmul.f32 %v254, %v5040
      %v5077 = vmul.f32 %v255, %v5040
      %v5078 = vmul.f32 %v256, %v5040
      %v5079 = vmul.f32 %v257, %v5040
      %v5080 = vmul.f32 %v258, %v5040
      %v5081 = vmul.f32 %v259, %v5040
      %v5082 = vmul.f32 %v260, %v5040
      %v5083 = vmul.f32 %v261, %v5040
      %v5084 = vmul.f32 %v262, %v5040
      %v5085 = vmul.f32 %v263, %v5040
      %v5086 = vmul.f32 %v264, %v5040
      %v5087 = vmul.f32 %v265, %v5040
      %v5088 = vmul.f32 %v266, %v5040
      %v5089 = vmul.f32 %v267, %v5040
      %v5090 = vmul.f32 %v268, %v5040
      %v5091 = vmul.f32 %v269, %v5040
      %v5092 = vmul.f32 %v270, %v5040
      %v5093 = vmul.f32 %v271, %v5040
      %v5094 = vmul.f32 %v272, %v5040
      %v5095 = vmul.f32 %v273, %v5040
      %v5096 = vmul.f32 %v274, %v5040
      %v5097 = vmul.f32 %v275, %v5040
      %v5098 = vmul.f32 %v276, %v5040
      %v5099 = vmul.f32 %v277, %v5040
      %v5100 = vmul.f32 %v278, %v5040
      %v5101 = vmul.f32 %v279, %v5040
      %v5102 = vmul.f32 %v280, %v5040
      %v5103 = vmul.f32 %v281, %v5040
      %v5104 = vmul.f32 %v282, %v5040
      %v5105 = vmul.f32 %v283, %v5040
      %v5106 = vmul.f32 %v284, %v5040
      %v5107 = vmul.f32 %v285, %v5040
      %v5108 = vmul.f32 %v286, %v5040
      %v5109 = vmul.f32 %v287, %v5040
      %v5110 = vmul.f32 %v288, %v5040
      %v5111 = vmul.f32 %v289, %v5040
      %v5112 = vmul.f32 %v290, %v5040
      %v5113 = vmul.f32 %v291, %v5040
      %v5114 = vmul.f32 %v292, %v5040
      %v5115 = vmul.f32 %v293, %v5040
      %v5116 = vmul.f32 %v294, %v5040
      %v5117 = vmul.f32 %v295, %v5040
      %v5118 = vmul.f32 %v296, %v5040
      %v5119 = vmul.f32 %v297, %v5040
      %v5120 = vmul.f32 %v298, %v5040
      %v5121 = vmul.f32 %v299, %v5040
      %v5122 = vmul.f32 %v300, %v5040
      %v5123 = vmul.f32 %v301, %v5040
      %v5124 = vmul.f32 %v302, %v5040
      %v5125 = vmul.f32 %v303, %v5040
      %v5126 = vmul.f32 %v304, %v5040
      %v5127 = vmul.f32 %v305, %v5040
      %v5128 = vmul.f32 %v306, %v5040
      %v5129 = vmul.f32 %v307, %v5040
      %v5130 = vmul.f32 %v308, %v5040
      %v5131 = vmul.f32 %v309, %v5040
      %v5132 = vmul.f32 %v310, %v5040
      %v5133 = vmul.f32 %v311, %v5040
      %v5134 = vmul.f32 %v312, %v5040
      %v5135 = vmul.f32 %v313, %v5040
      %v5136 = vmul.f32 %v314, %v5040
      %v5137 = vmul.f32 %v315, %v5040
      %v5138 = vmul.f32 %v316, %v5040
      %v5139 = vmul.f32 %v317, %v5040
      %v5140 = vmul.f32 %v318, %v5040
      %v5141 = vmul.f32 %v319, %v5040
      %v5142 = vmul.f32 %v320, %v5040
      %v5143 = vmul.f32 %v321, %v5040
      %v5144 = vmul.f32 %v322, %v5040
      %v5145 = vmul.f32 %v323, %v5040
      %v5146 = vmul.f32 %v324, %v5040
      %v5147 = vmul.f32 %v325, %v5040
      %v5148 = vmul.f32 %v326, %v5040
      %v5149 = vmul.f32 %v327, %v5040
      %v5150 = vmul.f32 %v328, %v5040
      %v5151 = vmul.f32 %v329, %v5040
      %v5152 = vmul.f32 %v330, %v5040
      %v5153 = vmul.f32 %v331, %v5040
      %v5154 = vmul.f32 %v332, %v5040
      %v5155 = vmul.f32 %v333, %v5040
      %v5156 = vmul.f32 %v334, %v5040
      %v5157 = vmul.f32 %v335, %v5040
      %v5158 = vmul.f32 %v336, %v5040
      %v5159 = vmul.f32 %v337, %v5040
      %v5160 = vmul.f32 %v338, %v5040
      %v5161 = vmul.f32 %v339, %v5040
      %v5162 = vmul.f32 %v340, %v5040
      %v5163 = vmul.f32 %v341, %v5040
      %v5164 = vmul.f32 %v342, %v5040
      %v5165 = vmul.f32 %v343, %v5040
      %v5166 = vmul.f32 %v344, %v5040
      %v5167 = vmul.f32 %v345, %v5040
      %v5168 = vmul.f32 %v346, %v5040
      %v5169 = vmul.f32 %v347, %v5040
      %v5170 = vmul.f32 %v348, %v5040
      %v5171 = vmul.f32 %v349, %v5040
      %v5172 = vmul.f32 %v350, %v5040
      %v5173 = vmul.f32 %v351, %v5040
      %v5174 = vmul.f32 %v352, %v5040
      %v5175 = vmul.f32 %v353, %v5040
      %v5176 = vmul.f32 %v354, %v5040
      %v5177 = vmul.f32 %v355, %v5040
      %v5178 = vmul.f32 %v356, %v5040
      %v5179 = vmul.f32 %v357, %v5040
      %v5180 = vmul.f32 %v358, %v5040
      %v5181 = vmul.f32 %v359, %v5040
      %v5182 = vmul.f32 %v360, %v5040
      %v5183 = vmul.f32 %v361, %v5040
      %v5184 = vmul.f32 %v362, %v5040
      %v5185 = vmul.f32 %v363, %v5040
      %v5186 = vmul.f32 %v364, %v5040
      %v5187 = vmul.f32 %v365, %v5040
      %v5188 = vmul.f32 %v366, %v5040
      %v5189 = vmul.f32 %v367, %v5040
      %v5190 = vmul.f32 %v368, %v5040
      %v5191 = vmul.f32 %v369, %v5040
      %v5192 = vmul.f32 %v370, %v5040
      %v5193 = vmul.f32 %v371, %v5040
      %v5194 = vmul.f32 %v372, %v5040
      %v5195 = vmul.f32 %v373, %v5040
      %v5196 = vmul.f32 %v374, %v5040
      %v5197 = vmul.f32 %v375, %v5040
      %v5198 = vmul.f32 %v376, %v5040
      %v5199 = vmul.f32 %v377, %v5040
      %v5200 = vmul.f32 %v378, %v5040
      %v5201 = vmul.f32 %v379, %v5040
      %v5202 = vmul.f32 %v380, %v5040
      %v5203 = vmul.f32 %v381, %v5040
      %v5204 = vmul.f32 %v382, %v5040
      %v5205 = vmul.f32 %v383, %v5040
      %v5206 = vmul.f32 %v384, %v5040
      %v5207 = vmul.f32 %v385, %v5040
      %v5208 = vmul.f32 %v386, %v5040
      %v5209 = vmul.f32 %v387, %v5040
      %v5210 = vmul.f32 %v388, %v5040
      %v5211 = vmul.f32 %v389, %v5040
      %v5212 = vmul.f32 %v390, %v5040
      %v5213 = vmul.f32 %v391, %v5040
      %v5214 = vmul.f32 %v392, %v5040
      %v5215 = vmul.f32 %v393, %v5040
      %v5216 = vmul.f32 %v394, %v5040
      %v5217 = vmul.f32 %v395, %v5040
      %v5218 = vmul.f32 %v396, %v5040
      %v5219 = vmul.f32 %v397, %v5040
      %v5220 = vmul.f32 %v398, %v5040
      %v5221 = vmul.f32 %v399, %v5040
      %v5222 = vmul.f32 %v400, %v5040
      %v5223 = vmul.f32 %v401, %v5040
      %v5224 = vmul.f32 %v402, %v5040
      %v5225 = vmul.f32 %v403, %v5040
      %v5226 = vmul.f32 %v404, %v5040
      %v5227 = vmul.f32 %v405, %v5040
      %v5228 = vmul.f32 %v406, %v5040
      %v5229 = vmul.f32 %v407, %v5040
      %v5230 = vmul.f32 %v408, %v5040
      %v5231 = vmul.f32 %v409, %v5040
      %v5232 = vmul.f32 %v410, %v5040
      %v5233 = vmul.f32 %v411, %v5040
      %v5234 = vmul.f32 %v412, %v5040
      %v5235 = vmul.f32 %v413, %v5040
      %v5236 = vmul.f32 %v414, %v5040
      %v5237 = vmul.f32 %v415, %v5040
      %v5238 = vmul.f32 %v416, %v5040
      %v5239 = vmul.f32 %v417, %v5040
      %v5240 = vmul.f32 %v418, %v5040
      %v5241 = vmul.f32 %v419, %v5040
      %v5242 = vmul.f32 %v420, %v5040
      %v5243 = vmul.f32 %v421, %v5040
      %v5244 = vmul.f32 %v422, %v5040
      %v5245 = vmul.f32 %v423, %v5040
      %v5246 = vmul.f32 %v424, %v5040
      %v5247 = vmul.f32 %v425, %v5040
      %v5248 = vmul.f32 %v426, %v5040
      %v5249 = vmul.f32 %v427, %v5040
      %v5250 = vmul.f32 %v428, %v5040
      %v5251 = vmul.f32 %v429, %v5040
      %v5252 = vmul.f32 %v430, %v5040
      %v5253 = vmul.f32 %v431, %v5040
      %v5254 = vmul.f32 %v432, %v5040
      %v5255 = vmul.f32 %v433, %v5040
      %v5256 = vmul.f32 %v434, %v5040
      %v5257 = vmul.f32 %v435, %v5040
      %v5258 = vmul.f32 %v436, %v5040
      %v5259 = vmul.f32 %v437, %v5040
      %v5260 = vmul.f32 %v438, %v5040
      %v5261 = vmul.f32 %v439, %v5040
      %v5262 = vmul.f32 %v440, %v5040
      %v5263 = vmul.f32 %v441, %v5040
      %v5264 = vmul.f32 %v442, %v5040
      %v5489 = vrot.slane %v5041, 2
      %v5490 = vrot.slane %v5042, 2
      %v5491 = vsel %vm2564, %v5489, %v5490
      %v5492 = vrot.slane %v5043, 2
      %v5493 = vsel %vm2564, %v5490, %v5492
      %v5494 = vrot.slane %v5044, 2
      %v5495 = vsel %vm2564, %v5492, %v5494
      %v5496 = vrot.slane %v5045, 2
      %v5497 = vsel %vm2564, %v5494, %v5496
      %v5498 = vrot.slane %v5046, 2
      %v5499 = vsel %vm2564, %v5496, %v5498
      %v5500 = vrot.slane %v5047, 2
      %v5501 = vsel %vm2564, %v5498, %v5500
      %v5502 = vrot.slane %v5048, 2
      %v5503 = vsel %vm2564, %v5500, %v5502
      %v5504 = vrot.slane %v5049, 2
      %v5505 = vrot.slane %v5050, 2
      %v5506 = vsel %vm2564, %v5504, %v5505
      %v5507 = vrot.slane %v5051, 2
      %v5508 = vsel %vm2564, %v5505, %v5507
      %v5509 = vrot.slane %v5052, 2
      %v5510 = vsel %vm2564, %v5507, %v5509
      %v5511 = vrot.slane %v5053, 2
      %v5512 = vsel %vm2564, %v5509, %v5511
      %v5513 = vrot.slane %v5054, 2
      %v5514 = vsel %vm2564, %v5511, %v5513
      %v5515 = vrot.slane %v5055, 2
      %v5516 = vsel %vm2564, %v5513, %v5515
      %v5517 = vrot.slane %v5056, 2
      %v5518 = vsel %vm2564, %v5515, %v5517
      %v5519 = vrot.slane %v5057, 2
      %v5520 = vrot.slane %v5058, 2
      %v5521 = vsel %vm2564, %v5519, %v5520
      %v5522 = vrot.slane %v5059, 2
      %v5523 = vsel %vm2564, %v5520, %v5522
      %v5524 = vrot.slane %v5060, 2
      %v5525 = vsel %vm2564, %v5522, %v5524
      %v5526 = vrot.slane %v5061, 2
      %v5527 = vsel %vm2564, %v5524, %v5526
      %v5528 = vrot.slane %v5062, 2
      %v5529 = vsel %vm2564, %v5526, %v5528
      %v5530 = vrot.slane %v5063, 2
      %v5531 = vsel %vm2564, %v5528, %v5530
      %v5532 = vrot.slane %v5064, 2
      %v5533 = vsel %vm2564, %v5530, %v5532
      %v5534 = vrot.slane %v5065, 2
      %v5535 = vrot.slane %v5066, 2
      %v5536 = vsel %vm2564, %v5534, %v5535
      %v5537 = vrot.slane %v5067, 2
      %v5538 = vsel %vm2564, %v5535, %v5537
      %v5539 = vrot.slane %v5068, 2
      %v5540 = vsel %vm2564, %v5537, %v5539
      %v5541 = vrot.slane %v5069, 2
      %v5542 = vsel %vm2564, %v5539, %v5541
      %v5543 = vrot.slane %v5070, 2
      %v5544 = vsel %vm2564, %v5541, %v5543
      %v5545 = vrot.slane %v5071, 2
      %v5546 = vsel %vm2564, %v5543, %v5545
      %v5547 = vrot.slane %v5072, 2
      %v5548 = vsel %vm2564, %v5545, %v5547
      %v5549 = vrot.slane %v5073, 2
      %v5550 = vrot.slane %v5074, 2
      %v5551 = vsel %vm2564, %v5549, %v5550
      %v5552 = vrot.slane %v5075, 2
      %v5553 = vsel %vm2564, %v5550, %v5552
      %v5554 = vrot.slane %v5076, 2
      %v5555 = vsel %vm2564, %v5552, %v5554
      %v5556 = vrot.slane %v5077, 2
      %v5557 = vsel %vm2564, %v5554, %v5556
      %v5558 = vrot.slane %v5078, 2
      %v5559 = vsel %vm2564, %v5556, %v5558
      %v5560 = vrot.slane %v5079, 2
      %v5561 = vsel %vm2564, %v5558, %v5560
      %v5562 = vrot.slane %v5080, 2
      %v5563 = vsel %vm2564, %v5560, %v5562
      %v5564 = vrot.slane %v5081, 2
      %v5565 = vrot.slane %v5082, 2
      %v5566 = vsel %vm2564, %v5564, %v5565
      %v5567 = vrot.slane %v5083, 2
      %v5568 = vsel %vm2564, %v5565, %v5567
      %v5569 = vrot.slane %v5084, 2
      %v5570 = vsel %vm2564, %v5567, %v5569
      %v5571 = vrot.slane %v5085, 2
      %v5572 = vsel %vm2564, %v5569, %v5571
      %v5573 = vrot.slane %v5086, 2
      %v5574 = vsel %vm2564, %v5571, %v5573
      %v5575 = vrot.slane %v5087, 2
      %v5576 = vsel %vm2564, %v5573, %v5575
      %v5577 = vrot.slane %v5088, 2
      %v5578 = vsel %vm2564, %v5575, %v5577
      %v5579 = vrot.slane %v5089, 2
      %v5580 = vrot.slane %v5090, 2
      %v5581 = vsel %vm2564, %v5579, %v5580
      %v5582 = vrot.slane %v5091, 2
      %v5583 = vsel %vm2564, %v5580, %v5582
      %v5584 = vrot.slane %v5092, 2
      %v5585 = vsel %vm2564, %v5582, %v5584
      %v5586 = vrot.slane %v5093, 2
      %v5587 = vsel %vm2564, %v5584, %v5586
      %v5588 = vrot.slane %v5094, 2
      %v5589 = vsel %vm2564, %v5586, %v5588
      %v5590 = vrot.slane %v5095, 2
      %v5591 = vsel %vm2564, %v5588, %v5590
      %v5592 = vrot.slane %v5096, 2
      %v5593 = vsel %vm2564, %v5590, %v5592
      %v5594 = vrot.slane %v5097, 2
      %v5595 = vrot.slane %v5098, 2
      %v5596 = vsel %vm2564, %v5594, %v5595
      %v5597 = vrot.slane %v5099, 2
      %v5598 = vsel %vm2564, %v5595, %v5597
      %v5599 = vrot.slane %v5100, 2
      %v5600 = vsel %vm2564, %v5597, %v5599
      %v5601 = vrot.slane %v5101, 2
      %v5602 = vsel %vm2564, %v5599, %v5601
      %v5603 = vrot.slane %v5102, 2
      %v5604 = vsel %vm2564, %v5601, %v5603
      %v5605 = vrot.slane %v5103, 2
      %v5606 = vsel %vm2564, %v5603, %v5605
      %v5607 = vrot.slane %v5104, 2
      %v5608 = vsel %vm2564, %v5605, %v5607
      %v5609 = vrot.slane %v5105, 2
      %v5610 = vrot.slane %v5106, 2
      %v5611 = vsel %vm2564, %v5609, %v5610
      %v5612 = vrot.slane %v5107, 2
      %v5613 = vsel %vm2564, %v5610, %v5612
      %v5614 = vrot.slane %v5108, 2
      %v5615 = vsel %vm2564, %v5612, %v5614
      %v5616 = vrot.slane %v5109, 2
      %v5617 = vsel %vm2564, %v5614, %v5616
      %v5618 = vrot.slane %v5110, 2
      %v5619 = vsel %vm2564, %v5616, %v5618
      %v5620 = vrot.slane %v5111, 2
      %v5621 = vsel %vm2564, %v5618, %v5620
      %v5622 = vrot.slane %v5112, 2
      %v5623 = vsel %vm2564, %v5620, %v5622
      %v5624 = vrot.slane %v5113, 2
      %v5625 = vrot.slane %v5114, 2
      %v5626 = vsel %vm2564, %v5624, %v5625
      %v5627 = vrot.slane %v5115, 2
      %v5628 = vsel %vm2564, %v5625, %v5627
      %v5629 = vrot.slane %v5116, 2
      %v5630 = vsel %vm2564, %v5627, %v5629
      %v5631 = vrot.slane %v5117, 2
      %v5632 = vsel %vm2564, %v5629, %v5631
      %v5633 = vrot.slane %v5118, 2
      %v5634 = vsel %vm2564, %v5631, %v5633
      %v5635 = vrot.slane %v5119, 2
      %v5636 = vsel %vm2564, %v5633, %v5635
      %v5637 = vrot.slane %v5120, 2
      %v5638 = vsel %vm2564, %v5635, %v5637
      %v5639 = vrot.slane %v5121, 2
      %v5640 = vrot.slane %v5122, 2
      %v5641 = vsel %vm2564, %v5639, %v5640
      %v5642 = vrot.slane %v5123, 2
      %v5643 = vsel %vm2564, %v5640, %v5642
      %v5644 = vrot.slane %v5124, 2
      %v5645 = vsel %vm2564, %v5642, %v5644
      %v5646 = vrot.slane %v5125, 2
      %v5647 = vsel %vm2564, %v5644, %v5646
      %v5648 = vrot.slane %v5126, 2
      %v5649 = vsel %vm2564, %v5646, %v5648
      %v5650 = vrot.slane %v5127, 2
      %v5651 = vsel %vm2564, %v5648, %v5650
      %v5652 = vrot.slane %v5128, 2
      %v5653 = vsel %vm2564, %v5650, %v5652
      %v5654 = vrot.slane %v5129, 2
      %v5655 = vrot.slane %v5130, 2
      %v5656 = vsel %vm2564, %v5654, %v5655
      %v5657 = vrot.slane %v5131, 2
      %v5658 = vsel %vm2564, %v5655, %v5657
      %v5659 = vrot.slane %v5132, 2
      %v5660 = vsel %vm2564, %v5657, %v5659
      %v5661 = vrot.slane %v5133, 2
      %v5662 = vsel %vm2564, %v5659, %v5661
      %v5663 = vrot.slane %v5134, 2
      %v5664 = vsel %vm2564, %v5661, %v5663
      %v5665 = vrot.slane %v5135, 2
      %v5666 = vsel %vm2564, %v5663, %v5665
      %v5667 = vrot.slane %v5136, 2
      %v5668 = vsel %vm2564, %v5665, %v5667
      %v5669 = vrot.slane %v5137, 2
      %v5670 = vrot.slane %v5138, 2
      %v5671 = vsel %vm2564, %v5669, %v5670
      %v5672 = vrot.slane %v5139, 2
      %v5673 = vsel %vm2564, %v5670, %v5672
      %v5674 = vrot.slane %v5140, 2
      %v5675 = vsel %vm2564, %v5672, %v5674
      %v5676 = vrot.slane %v5141, 2
      %v5677 = vsel %vm2564, %v5674, %v5676
      %v5678 = vrot.slane %v5142, 2
      %v5679 = vsel %vm2564, %v5676, %v5678
      %v5680 = vrot.slane %v5143, 2
      %v5681 = vsel %vm2564, %v5678, %v5680
      %v5682 = vrot.slane %v5144, 2
      %v5683 = vsel %vm2564, %v5680, %v5682
      %v5684 = vrot.slane %v5145, 2
      %v5685 = vrot.slane %v5146, 2
      %v5686 = vsel %vm2564, %v5684, %v5685
      %v5687 = vrot.slane %v5147, 2
      %v5688 = vsel %vm2564, %v5685, %v5687
      %v5689 = vrot.slane %v5148, 2
      %v5690 = vsel %vm2564, %v5687, %v5689
      %v5691 = vrot.slane %v5149, 2
      %v5692 = vsel %vm2564, %v5689, %v5691
      %v5693 = vrot.slane %v5150, 2
      %v5694 = vsel %vm2564, %v5691, %v5693
      %v5695 = vrot.slane %v5151, 2
      %v5696 = vsel %vm2564, %v5693, %v5695
      %v5697 = vrot.slane %v5152, 2
      %v5698 = vsel %vm2564, %v5695, %v5697
      %v5699 = vrot.slane %v5153, 2
      %v5700 = vrot.slane %v5154, 2
      %v5701 = vsel %vm2564, %v5699, %v5700
      %v5702 = vrot.slane %v5155, 2
      %v5703 = vsel %vm2564, %v5700, %v5702
      %v5704 = vrot.slane %v5156, 2
      %v5705 = vsel %vm2564, %v5702, %v5704
      %v5706 = vrot.slane %v5157, 2
      %v5707 = vsel %vm2564, %v5704, %v5706
      %v5708 = vrot.slane %v5158, 2
      %v5709 = vsel %vm2564, %v5706, %v5708
      %v5710 = vrot.slane %v5159, 2
      %v5711 = vsel %vm2564, %v5708, %v5710
      %v5712 = vrot.slane %v5160, 2
      %v5713 = vsel %vm2564, %v5710, %v5712
      %v5714 = vrot.slane %v5161, 2
      %v5715 = vrot.slane %v5162, 2
      %v5716 = vsel %vm2564, %v5714, %v5715
      %v5717 = vrot.slane %v5163, 2
      %v5718 = vsel %vm2564, %v5715, %v5717
      %v5719 = vrot.slane %v5164, 2
      %v5720 = vsel %vm2564, %v5717, %v5719
      %v5721 = vrot.slane %v5165, 2
      %v5722 = vsel %vm2564, %v5719, %v5721
      %v5723 = vrot.slane %v5166, 2
      %v5724 = vsel %vm2564, %v5721, %v5723
      %v5725 = vrot.slane %v5167, 2
      %v5726 = vsel %vm2564, %v5723, %v5725
      %v5727 = vrot.slane %v5168, 2
      %v5728 = vsel %vm2564, %v5725, %v5727
      %v5729 = vrot.slane %v5169, 2
      %v5730 = vrot.slane %v5170, 2
      %v5731 = vsel %vm2564, %v5729, %v5730
      %v5732 = vrot.slane %v5171, 2
      %v5733 = vsel %vm2564, %v5730, %v5732
      %v5734 = vrot.slane %v5172, 2
      %v5735 = vsel %vm2564, %v5732, %v5734
      %v5736 = vrot.slane %v5173, 2
      %v5737 = vsel %vm2564, %v5734, %v5736
      %v5738 = vrot.slane %v5174, 2
      %v5739 = vsel %vm2564, %v5736, %v5738
      %v5740 = vrot.slane %v5175, 2
      %v5741 = vsel %vm2564, %v5738, %v5740
      %v5742 = vrot.slane %v5176, 2
      %v5743 = vsel %vm2564, %v5740, %v5742
      %v5744 = vrot.slane %v5177, 2
      %v5745 = vrot.slane %v5178, 2
      %v5746 = vsel %vm2564, %v5744, %v5745
      %v5747 = vrot.slane %v5179, 2
      %v5748 = vsel %vm2564, %v5745, %v5747
      %v5749 = vrot.slane %v5180, 2
      %v5750 = vsel %vm2564, %v5747, %v5749
      %v5751 = vrot.slane %v5181, 2
      %v5752 = vsel %vm2564, %v5749, %v5751
      %v5753 = vrot.slane %v5182, 2
      %v5754 = vsel %vm2564, %v5751, %v5753
      %v5755 = vrot.slane %v5183, 2
      %v5756 = vsel %vm2564, %v5753, %v5755
      %v5757 = vrot.slane %v5184, 2
      %v5758 = vsel %vm2564, %v5755, %v5757
      %v5759 = vrot.slane %v5185, 2
      %v5760 = vrot.slane %v5186, 2
      %v5761 = vsel %vm2564, %v5759, %v5760
      %v5762 = vrot.slane %v5187, 2
      %v5763 = vsel %vm2564, %v5760, %v5762
      %v5764 = vrot.slane %v5188, 2
      %v5765 = vsel %vm2564, %v5762, %v5764
      %v5766 = vrot.slane %v5189, 2
      %v5767 = vsel %vm2564, %v5764, %v5766
      %v5768 = vrot.slane %v5190, 2
      %v5769 = vsel %vm2564, %v5766, %v5768
      %v5770 = vrot.slane %v5191, 2
      %v5771 = vsel %vm2564, %v5768, %v5770
      %v5772 = vrot.slane %v5192, 2
      %v5773 = vsel %vm2564, %v5770, %v5772
      %v5774 = vrot.slane %v5193, 2
      %v5775 = vrot.slane %v5194, 2
      %v5776 = vsel %vm2564, %v5774, %v5775
      %v5777 = vrot.slane %v5195, 2
      %v5778 = vsel %vm2564, %v5775, %v5777
      %v5779 = vrot.slane %v5196, 2
      %v5780 = vsel %vm2564, %v5777, %v5779
      %v5781 = vrot.slane %v5197, 2
      %v5782 = vsel %vm2564, %v5779, %v5781
      %v5783 = vrot.slane %v5198, 2
      %v5784 = vsel %vm2564, %v5781, %v5783
      %v5785 = vrot.slane %v5199, 2
      %v5786 = vsel %vm2564, %v5783, %v5785
      %v5787 = vrot.slane %v5200, 2
      %v5788 = vsel %vm2564, %v5785, %v5787
      %v5789 = vrot.slane %v5201, 2
      %v5790 = vrot.slane %v5202, 2
      %v5791 = vsel %vm2564, %v5789, %v5790
      %v5792 = vrot.slane %v5203, 2
      %v5793 = vsel %vm2564, %v5790, %v5792
      %v5794 = vrot.slane %v5204, 2
      %v5795 = vsel %vm2564, %v5792, %v5794
      %v5796 = vrot.slane %v5205, 2
      %v5797 = vsel %vm2564, %v5794, %v5796
      %v5798 = vrot.slane %v5206, 2
      %v5799 = vsel %vm2564, %v5796, %v5798
      %v5800 = vrot.slane %v5207, 2
      %v5801 = vsel %vm2564, %v5798, %v5800
      %v5802 = vrot.slane %v5208, 2
      %v5803 = vsel %vm2564, %v5800, %v5802
      %v5804 = vrot.slane %v5209, 2
      %v5805 = vrot.slane %v5210, 2
      %v5806 = vsel %vm2564, %v5804, %v5805
      %v5807 = vrot.slane %v5211, 2
      %v5808 = vsel %vm2564, %v5805, %v5807
      %v5809 = vrot.slane %v5212, 2
      %v5810 = vsel %vm2564, %v5807, %v5809
      %v5811 = vrot.slane %v5213, 2
      %v5812 = vsel %vm2564, %v5809, %v5811
      %v5813 = vrot.slane %v5214, 2
      %v5814 = vsel %vm2564, %v5811, %v5813
      %v5815 = vrot.slane %v5215, 2
      %v5816 = vsel %vm2564, %v5813, %v5815
      %v5817 = vrot.slane %v5216, 2
      %v5818 = vsel %vm2564, %v5815, %v5817
      %v5819 = vrot.slane %v5217, 2
      %v5820 = vrot.slane %v5218, 2
      %v5821 = vsel %vm2564, %v5819, %v5820
      %v5822 = vrot.slane %v5219, 2
      %v5823 = vsel %vm2564, %v5820, %v5822
      %v5824 = vrot.slane %v5220, 2
      %v5825 = vsel %vm2564, %v5822, %v5824
      %v5826 = vrot.slane %v5221, 2
      %v5827 = vsel %vm2564, %v5824, %v5826
      %v5828 = vrot.slane %v5222, 2
      %v5829 = vsel %vm2564, %v5826, %v5828
      %v5830 = vrot.slane %v5223, 2
      %v5831 = vsel %vm2564, %v5828, %v5830
      %v5832 = vrot.slane %v5224, 2
      %v5833 = vsel %vm2564, %v5830, %v5832
      %v5834 = vrot.slane %v5225, 2
      %v5835 = vrot.slane %v5226, 2
      %v5836 = vsel %vm2564, %v5834, %v5835
      %v5837 = vrot.slane %v5227, 2
      %v5838 = vsel %vm2564, %v5835, %v5837
      %v5839 = vrot.slane %v5228, 2
      %v5840 = vsel %vm2564, %v5837, %v5839
      %v5841 = vrot.slane %v5229, 2
      %v5842 = vsel %vm2564, %v5839, %v5841
      %v5843 = vrot.slane %v5230, 2
      %v5844 = vsel %vm2564, %v5841, %v5843
      %v5845 = vrot.slane %v5231, 2
      %v5846 = vsel %vm2564, %v5843, %v5845
      %v5847 = vrot.slane %v5232, 2
      %v5848 = vsel %vm2564, %v5845, %v5847
      %v5849 = vrot.slane %v5233, 2
      %v5850 = vrot.slane %v5234, 2
      %v5851 = vsel %vm2564, %v5849, %v5850
      %v5852 = vrot.slane %v5235, 2
      %v5853 = vsel %vm2564, %v5850, %v5852
      %v5854 = vrot.slane %v5236, 2
      %v5855 = vsel %vm2564, %v5852, %v5854
      %v5856 = vrot.slane %v5237, 2
      %v5857 = vsel %vm2564, %v5854, %v5856
      %v5858 = vrot.slane %v5238, 2
      %v5859 = vsel %vm2564, %v5856, %v5858
      %v5860 = vrot.slane %v5239, 2
      %v5861 = vsel %vm2564, %v5858, %v5860
      %v5862 = vrot.slane %v5240, 2
      %v5863 = vsel %vm2564, %v5860, %v5862
      %v5864 = vrot.slane %v5241, 2
      %v5865 = vrot.slane %v5242, 2
      %v5866 = vsel %vm2564, %v5864, %v5865
      %v5867 = vrot.slane %v5243, 2
      %v5868 = vsel %vm2564, %v5865, %v5867
      %v5869 = vrot.slane %v5244, 2
      %v5870 = vsel %vm2564, %v5867, %v5869
      %v5871 = vrot.slane %v5245, 2
      %v5872 = vsel %vm2564, %v5869, %v5871
      %v5873 = vrot.slane %v5246, 2
      %v5874 = vsel %vm2564, %v5871, %v5873
      %v5875 = vrot.slane %v5247, 2
      %v5876 = vsel %vm2564, %v5873, %v5875
      %v5877 = vrot.slane %v5248, 2
      %v5878 = vsel %vm2564, %v5875, %v5877
      %v5879 = vrot.slane %v5249, 2
      %v5880 = vrot.slane %v5250, 2
      %v5881 = vsel %vm2564, %v5879, %v5880
      %v5882 = vrot.slane %v5251, 2
      %v5883 = vsel %vm2564, %v5880, %v5882
      %v5884 = vrot.slane %v5252, 2
      %v5885 = vsel %vm2564, %v5882, %v5884
      %v5886 = vrot.slane %v5253, 2
      %v5887 = vsel %vm2564, %v5884, %v5886
      %v5888 = vrot.slane %v5254, 2
      %v5889 = vsel %vm2564, %v5886, %v5888
      %v5890 = vrot.slane %v5255, 2
      %v5891 = vsel %vm2564, %v5888, %v5890
      %v5892 = vrot.slane %v5256, 2
      %v5893 = vsel %vm2564, %v5890, %v5892
      %v5894 = vrot.slane %v5257, 2
      %v5895 = vrot.slane %v5258, 2
      %v5896 = vsel %vm2564, %v5894, %v5895
      %v5897 = vrot.slane %v5259, 2
      %v5898 = vsel %vm2564, %v5895, %v5897
      %v5899 = vrot.slane %v5260, 2
      %v5900 = vsel %vm2564, %v5897, %v5899
      %v5901 = vrot.slane %v5261, 2
      %v5902 = vsel %vm2564, %v5899, %v5901
      %v5903 = vrot.slane %v5262, 2
      %v5904 = vsel %vm2564, %v5901, %v5903
      %v5905 = vrot.slane %v5263, 2
      %v5906 = vsel %vm2564, %v5903, %v5905
      %v5907 = vrot.slane %v5264, 2
      %v5908 = vsel %vm2564, %v5905, %v5907
      %v6105 = vadd.f32 %v4841, %v5491
      %v6106 = vadd.f32 %v4842, %v5493
      %v6107 = vadd.f32 %v4843, %v5495
      %v6108 = vadd.f32 %v4844, %v5497
      %v6109 = vadd.f32 %v4845, %v5499
      %v6110 = vadd.f32 %v4846, %v5501
      %v6111 = vadd.f32 %v4847, %v5503
      %v6112 = vadd.f32 %v4848, %v5506
      %v6113 = vadd.f32 %v4849, %v5508
      %v6114 = vadd.f32 %v4850, %v5510
      %v6115 = vadd.f32 %v4851, %v5512
      %v6116 = vadd.f32 %v4852, %v5514
      %v6117 = vadd.f32 %v4853, %v5516
      %v6118 = vadd.f32 %v4854, %v5518
      %v6119 = vadd.f32 %v4855, %v5521
      %v6120 = vadd.f32 %v4856, %v5523
      %v6121 = vadd.f32 %v4857, %v5525
      %v6122 = vadd.f32 %v4858, %v5527
      %v6123 = vadd.f32 %v4859, %v5529
      %v6124 = vadd.f32 %v4860, %v5531
      %v6125 = vadd.f32 %v4861, %v5533
      %v6126 = vadd.f32 %v4862, %v5536
      %v6127 = vadd.f32 %v4863, %v5538
      %v6128 = vadd.f32 %v4864, %v5540
      %v6129 = vadd.f32 %v4865, %v5542
      %v6130 = vadd.f32 %v4866, %v5544
      %v6131 = vadd.f32 %v4867, %v5546
      %v6132 = vadd.f32 %v4868, %v5548
      %v6133 = vadd.f32 %v4869, %v5551
      %v6134 = vadd.f32 %v4870, %v5553
      %v6135 = vadd.f32 %v4871, %v5555
      %v6136 = vadd.f32 %v4872, %v5557
      %v6137 = vadd.f32 %v4873, %v5559
      %v6138 = vadd.f32 %v4874, %v5561
      %v6139 = vadd.f32 %v4875, %v5563
      %v6140 = vadd.f32 %v4876, %v5566
      %v6141 = vadd.f32 %v4877, %v5568
      %v6142 = vadd.f32 %v4878, %v5570
      %v6143 = vadd.f32 %v4879, %v5572
      %v6144 = vadd.f32 %v4880, %v5574
      %v6145 = vadd.f32 %v4881, %v5576
      %v6146 = vadd.f32 %v4882, %v5578
      %v6147 = vadd.f32 %v4883, %v5581
      %v6148 = vadd.f32 %v4884, %v5583
      %v6149 = vadd.f32 %v4885, %v5585
      %v6150 = vadd.f32 %v4886, %v5587
      %v6151 = vadd.f32 %v4887, %v5589
      %v6152 = vadd.f32 %v4888, %v5591
      %v6153 = vadd.f32 %v4889, %v5593
      %v6154 = vadd.f32 %v4890, %v5596
      %v6155 = vadd.f32 %v4891, %v5598
      %v6156 = vadd.f32 %v4892, %v5600
      %v6157 = vadd.f32 %v4893, %v5602
      %v6158 = vadd.f32 %v4894, %v5604
      %v6159 = vadd.f32 %v4895, %v5606
      %v6160 = vadd.f32 %v4896, %v5608
      %v6161 = vadd.f32 %v4897, %v5611
      %v6162 = vadd.f32 %v4898, %v5613
      %v6163 = vadd.f32 %v4899, %v5615
      %v6164 = vadd.f32 %v4900, %v5617
      %v6165 = vadd.f32 %v4901, %v5619
      %v6166 = vadd.f32 %v4902, %v5621
      %v6167 = vadd.f32 %v4903, %v5623
      %v6168 = vadd.f32 %v4904, %v5626
      %v6169 = vadd.f32 %v4905, %v5628
      %v6170 = vadd.f32 %v4906, %v5630
      %v6171 = vadd.f32 %v4907, %v5632
      %v6172 = vadd.f32 %v4908, %v5634
      %v6173 = vadd.f32 %v4909, %v5636
      %v6174 = vadd.f32 %v4910, %v5638
      %v6175 = vadd.f32 %v4911, %v5641
      %v6176 = vadd.f32 %v4912, %v5643
      %v6177 = vadd.f32 %v4913, %v5645
      %v6178 = vadd.f32 %v4914, %v5647
      %v6179 = vadd.f32 %v4915, %v5649
      %v6180 = vadd.f32 %v4916, %v5651
      %v6181 = vadd.f32 %v4917, %v5653
      %v6182 = vadd.f32 %v4918, %v5656
      %v6183 = vadd.f32 %v4919, %v5658
      %v6184 = vadd.f32 %v4920, %v5660
      %v6185 = vadd.f32 %v4921, %v5662
      %v6186 = vadd.f32 %v4922, %v5664
      %v6187 = vadd.f32 %v4923, %v5666
      %v6188 = vadd.f32 %v4924, %v5668
      %v6189 = vadd.f32 %v4925, %v5671
      %v6190 = vadd.f32 %v4926, %v5673
      %v6191 = vadd.f32 %v4927, %v5675
      %v6192 = vadd.f32 %v4928, %v5677
      %v6193 = vadd.f32 %v4929, %v5679
      %v6194 = vadd.f32 %v4930, %v5681
      %v6195 = vadd.f32 %v4931, %v5683
      %v6196 = vadd.f32 %v4932, %v5686
      %v6197 = vadd.f32 %v4933, %v5688
      %v6198 = vadd.f32 %v4934, %v5690
      %v6199 = vadd.f32 %v4935, %v5692
      %v6200 = vadd.f32 %v4936, %v5694
      %v6201 = vadd.f32 %v4937, %v5696
      %v6202 = vadd.f32 %v4938, %v5698
      %v6203 = vadd.f32 %v4939, %v5701
      %v6204 = vadd.f32 %v4940, %v5703
      %v6205 = vadd.f32 %v4941, %v5705
      %v6206 = vadd.f32 %v4942, %v5707
      %v6207 = vadd.f32 %v4943, %v5709
      %v6208 = vadd.f32 %v4944, %v5711
      %v6209 = vadd.f32 %v4945, %v5713
      %v6210 = vadd.f32 %v4946, %v5716
      %v6211 = vadd.f32 %v4947, %v5718
      %v6212 = vadd.f32 %v4948, %v5720
      %v6213 = vadd.f32 %v4949, %v5722
      %v6214 = vadd.f32 %v4950, %v5724
      %v6215 = vadd.f32 %v4951, %v5726
      %v6216 = vadd.f32 %v4952, %v5728
      %v6217 = vadd.f32 %v4953, %v5731
      %v6218 = vadd.f32 %v4954, %v5733
      %v6219 = vadd.f32 %v4955, %v5735
      %v6220 = vadd.f32 %v4956, %v5737
      %v6221 = vadd.f32 %v4957, %v5739
      %v6222 = vadd.f32 %v4958, %v5741
      %v6223 = vadd.f32 %v4959, %v5743
      %v6224 = vadd.f32 %v4960, %v5746
      %v6225 = vadd.f32 %v4961, %v5748
      %v6226 = vadd.f32 %v4962, %v5750
      %v6227 = vadd.f32 %v4963, %v5752
      %v6228 = vadd.f32 %v4964, %v5754
      %v6229 = vadd.f32 %v4965, %v5756
      %v6230 = vadd.f32 %v4966, %v5758
      %v6231 = vadd.f32 %v4967, %v5761
      %v6232 = vadd.f32 %v4968, %v5763
      %v6233 = vadd.f32 %v4969, %v5765
      %v6234 = vadd.f32 %v4970, %v5767
      %v6235 = vadd.f32 %v4971, %v5769
      %v6236 = vadd.f32 %v4972, %v5771
      %v6237 = vadd.f32 %v4973, %v5773
      %v6238 = vadd.f32 %v4974, %v5776
      %v6239 = vadd.f32 %v4975, %v5778
      %v6240 = vadd.f32 %v4976, %v5780
      %v6241 = vadd.f32 %v4977, %v5782
      %v6242 = vadd.f32 %v4978, %v5784
      %v6243 = vadd.f32 %v4979, %v5786
      %v6244 = vadd.f32 %v4980, %v5788
      %v6245 = vadd.f32 %v4981, %v5791
      %v6246 = vadd.f32 %v4982, %v5793
      %v6247 = vadd.f32 %v4983, %v5795
      %v6248 = vadd.f32 %v4984, %v5797
      %v6249 = vadd.f32 %v4985, %v5799
      %v6250 = vadd.f32 %v4986, %v5801
      %v6251 = vadd.f32 %v4987, %v5803
      %v6252 = vadd.f32 %v4988, %v5806
      %v6253 = vadd.f32 %v4989, %v5808
      %v6254 = vadd.f32 %v4990, %v5810
      %v6255 = vadd.f32 %v4991, %v5812
      %v6256 = vadd.f32 %v4992, %v5814
      %v6257 = vadd.f32 %v4993, %v5816
      %v6258 = vadd.f32 %v4994, %v5818
      %v6259 = vadd.f32 %v4995, %v5821
      %v6260 = vadd.f32 %v4996, %v5823
      %v6261 = vadd.f32 %v4997, %v5825
      %v6262 = vadd.f32 %v4998, %v5827
      %v6263 = vadd.f32 %v4999, %v5829
      %v6264 = vadd.f32 %v5000, %v5831
      %v6265 = vadd.f32 %v5001, %v5833
      %v6266 = vadd.f32 %v5002, %v5836
      %v6267 = vadd.f32 %v5003, %v5838
      %v6268 = vadd.f32 %v5004, %v5840
      %v6269 = vadd.f32 %v5005, %v5842
      %v6270 = vadd.f32 %v5006, %v5844
      %v6271 = vadd.f32 %v5007, %v5846
      %v6272 = vadd.f32 %v5008, %v5848
      %v6273 = vadd.f32 %v5009, %v5851
      %v6274 = vadd.f32 %v5010, %v5853
      %v6275 = vadd.f32 %v5011, %v5855
      %v6276 = vadd.f32 %v5012, %v5857
      %v6277 = vadd.f32 %v5013, %v5859
      %v6278 = vadd.f32 %v5014, %v5861
      %v6279 = vadd.f32 %v5015, %v5863
      %v6280 = vadd.f32 %v5016, %v5866
      %v6281 = vadd.f32 %v5017, %v5868
      %v6282 = vadd.f32 %v5018, %v5870
      %v6283 = vadd.f32 %v5019, %v5872
      %v6284 = vadd.f32 %v5020, %v5874
      %v6285 = vadd.f32 %v5021, %v5876
      %v6286 = vadd.f32 %v5022, %v5878
      %v6287 = vadd.f32 %v5023, %v5881
      %v6288 = vadd.f32 %v5024, %v5883
      %v6289 = vadd.f32 %v5025, %v5885
      %v6290 = vadd.f32 %v5026, %v5887
      %v6291 = vadd.f32 %v5027, %v5889
      %v6292 = vadd.f32 %v5028, %v5891
      %v6293 = vadd.f32 %v5029, %v5893
      %v6294 = vadd.f32 %v5030, %v5896
      %v6295 = vadd.f32 %v5031, %v5898
      %v6296 = vadd.f32 %v5032, %v5900
      %v6297 = vadd.f32 %v5033, %v5902
      %v6298 = vadd.f32 %v5034, %v5904
      %v6299 = vadd.f32 %v5035, %v5906
      %v6300 = vadd.f32 %v5036, %v5908
      %v6301 = vlaneseq
      %v6302 = vshrl.u32 %v6301, 7
      %v6303 = vsub.s32 6, %v6302
      %v6304 = vrot.slane %v207, %v6303
      %v6305 = vmul.f32 %v227, %v6304
      %v6306 = vmul.f32 %v228, %v6304
      %v6307 = vmul.f32 %v229, %v6304
      %v6308 = vmul.f32 %v230, %v6304
      %v6309 = vmul.f32 %v231, %v6304
      %v6310 = vmul.f32 %v232, %v6304
      %v6311 = vmul.f32 %v233, %v6304
      %v6312 = vmul.f32 %v235, %v6304
      %v6313 = vmul.f32 %v236, %v6304
      %v6314 = vmul.f32 %v237, %v6304
      %v6315 = vmul.f32 %v238, %v6304
      %v6316 = vmul.f32 %v239, %v6304
      %v6317 = vmul.f32 %v240, %v6304
      %v6318 = vmul.f32 %v241, %v6304
      %v6319 = vmul.f32 %v243, %v6304
      %v6320 = vmul.f32 %v244, %v6304
      %v6321 = vmul.f32 %v245, %v6304
      %v6322 = vmul.f32 %v246, %v6304
      %v6323 = vmul.f32 %v247, %v6304
      %v6324 = vmul.f32 %v248, %v6304
      %v6325 = vmul.f32 %v249, %v6304
      %v6326 = vmul.f32 %v251, %v6304
      %v6327 = vmul.f32 %v252, %v6304
      %v6328 = vmul.f32 %v253, %v6304
      %v6329 = vmul.f32 %v254, %v6304
      %v6330 = vmul.f32 %v255, %v6304
      %v6331 = vmul.f32 %v256, %v6304
      %v6332 = vmul.f32 %v257, %v6304
      %v6333 = vmul.f32 %v259, %v6304
      %v6334 = vmul.f32 %v260, %v6304
      %v6335 = vmul.f32 %v261, %v6304
      %v6336 = vmul.f32 %v262, %v6304
      %v6337 = vmul.f32 %v263, %v6304
      %v6338 = vmul.f32 %v264, %v6304
      %v6339 = vmul.f32 %v265, %v6304
      %v6340 = vmul.f32 %v267, %v6304
      %v6341 = vmul.f32 %v268, %v6304
      %v6342 = vmul.f32 %v269, %v6304
      %v6343 = vmul.f32 %v270, %v6304
      %v6344 = vmul.f32 %v271, %v6304
      %v6345 = vmul.f32 %v272, %v6304
      %v6346 = vmul.f32 %v273, %v6304
      %v6347 = vmul.f32 %v275, %v6304
      %v6348 = vmul.f32 %v276, %v6304
      %v6349 = vmul.f32 %v277, %v6304
      %v6350 = vmul.f32 %v278, %v6304
      %v6351 = vmul.f32 %v279, %v6304
      %v6352 = vmul.f32 %v280, %v6304
      %v6353 = vmul.f32 %v281, %v6304
      %v6354 = vmul.f32 %v283, %v6304
      %v6355 = vmul.f32 %v284, %v6304
      %v6356 = vmul.f32 %v285, %v6304
      %v6357 = vmul.f32 %v286, %v6304
      %v6358 = vmul.f32 %v287, %v6304
      %v6359 = vmul.f32 %v288, %v6304
      %v6360 = vmul.f32 %v289, %v6304
      %v6361 = vmul.f32 %v291, %v6304
      %v6362 = vmul.f32 %v292, %v6304
      %v6363 = vmul.f32 %v293, %v6304
      %v6364 = vmul.f32 %v294, %v6304
      %v6365 = vmul.f32 %v295, %v6304
      %v6366 = vmul.f32 %v296, %v6304
      %v6367 = vmul.f32 %v297, %v6304
      %v6368 = vmul.f32 %v299, %v6304
      %v6369 = vmul.f32 %v300, %v6304
      %v6370 = vmul.f32 %v301, %v6304
      %v6371 = vmul.f32 %v302, %v6304
      %v6372 = vmul.f32 %v303, %v6304
      %v6373 = vmul.f32 %v304, %v6304
      %v6374 = vmul.f32 %v305, %v6304
      %v6375 = vmul.f32 %v307, %v6304
      %v6376 = vmul.f32 %v308, %v6304
      %v6377 = vmul.f32 %v309, %v6304
      %v6378 = vmul.f32 %v310, %v6304
      %v6379 = vmul.f32 %v311, %v6304
      %v6380 = vmul.f32 %v312, %v6304
      %v6381 = vmul.f32 %v313, %v6304
      %v6382 = vmul.f32 %v315, %v6304
      %v6383 = vmul.f32 %v316, %v6304
      %v6384 = vmul.f32 %v317, %v6304
      %v6385 = vmul.f32 %v318, %v6304
      %v6386 = vmul.f32 %v319, %v6304
      %v6387 = vmul.f32 %v320, %v6304
      %v6388 = vmul.f32 %v321, %v6304
      %v6389 = vmul.f32 %v323, %v6304
      %v6390 = vmul.f32 %v324, %v6304
      %v6391 = vmul.f32 %v325, %v6304
      %v6392 = vmul.f32 %v326, %v6304
      %v6393 = vmul.f32 %v327, %v6304
      %v6394 = vmul.f32 %v328, %v6304
      %v6395 = vmul.f32 %v329, %v6304
      %v6396 = vmul.f32 %v331, %v6304
      %v6397 = vmul.f32 %v332, %v6304
      %v6398 = vmul.f32 %v333, %v6304
      %v6399 = vmul.f32 %v334, %v6304
      %v6400 = vmul.f32 %v335, %v6304
      %v6401 = vmul.f32 %v336, %v6304
      %v6402 = vmul.f32 %v337, %v6304
      %v6403 = vmul.f32 %v339, %v6304
      %v6404 = vmul.f32 %v340, %v6304
      %v6405 = vmul.f32 %v341, %v6304
      %v6406 = vmul.f32 %v342, %v6304
      %v6407 = vmul.f32 %v343, %v6304
      %v6408 = vmul.f32 %v344, %v6304
      %v6409 = vmul.f32 %v345, %v6304
      %v6410 = vmul.f32 %v347, %v6304
      %v6411 = vmul.f32 %v348, %v6304
      %v6412 = vmul.f32 %v349, %v6304
      %v6413 = vmul.f32 %v350, %v6304
      %v6414 = vmul.f32 %v351, %v6304
      %v6415 = vmul.f32 %v352, %v6304
      %v6416 = vmul.f32 %v353, %v6304
      %v6417 = vmul.f32 %v355, %v6304
      %v6418 = vmul.f32 %v356, %v6304
      %v6419 = vmul.f32 %v357, %v6304
      %v6420 = vmul.f32 %v358, %v6304
      %v6421 = vmul.f32 %v359, %v6304
      %v6422 = vmul.f32 %v360, %v6304
      %v6423 = vmul.f32 %v361, %v6304
      %v6424 = vmul.f32 %v363, %v6304
      %v6425 = vmul.f32 %v364, %v6304
      %v6426 = vmul.f32 %v365, %v6304
      %v6427 = vmul.f32 %v366, %v6304
      %v6428 = vmul.f32 %v367, %v6304
      %v6429 = vmul.f32 %v368, %v6304
      %v6430 = vmul.f32 %v369, %v6304
      %v6431 = vmul.f32 %v371, %v6304
      %v6432 = vmul.f32 %v372, %v6304
      %v6433 = vmul.f32 %v373, %v6304
      %v6434 = vmul.f32 %v374, %v6304
      %v6435 = vmul.f32 %v375, %v6304
      %v6436 = vmul.f32 %v376, %v6304
      %v6437 = vmul.f32 %v377, %v6304
      %v6438 = vmul.f32 %v379, %v6304
      %v6439 = vmul.f32 %v380, %v6304
      %v6440 = vmul.f32 %v381, %v6304
      %v6441 = vmul.f32 %v382, %v6304
      %v6442 = vmul.f32 %v383, %v6304
      %v6443 = vmul.f32 %v384, %v6304
      %v6444 = vmul.f32 %v385, %v6304
      %v6445 = vmul.f32 %v387, %v6304
      %v6446 = vmul.f32 %v388, %v6304
      %v6447 = vmul.f32 %v389, %v6304
      %v6448 = vmul.f32 %v390, %v6304
      %v6449 = vmul.f32 %v391, %v6304
      %v6450 = vmul.f32 %v392, %v6304
      %v6451 = vmul.f32 %v393, %v6304
      %v6452 = vmul.f32 %v395, %v6304
      %v6453 = vmul.f32 %v396, %v6304
      %v6454 = vmul.f32 %v397, %v6304
      %v6455 = vmul.f32 %v398, %v6304
      %v6456 = vmul.f32 %v399, %v6304
      %v6457 = vmul.f32 %v400, %v6304
      %v6458 = vmul.f32 %v401, %v6304
      %v6459 = vmul.f32 %v403, %v6304
      %v6460 = vmul.f32 %v404, %v6304
      %v6461 = vmul.f32 %v405, %v6304
      %v6462 = vmul.f32 %v406, %v6304
      %v6463 = vmul.f32 %v407, %v6304
      %v6464 = vmul.f32 %v408, %v6304
      %v6465 = vmul.f32 %v409, %v6304
      %v6466 = vmul.f32 %v411, %v6304
      %v6467 = vmul.f32 %v412, %v6304
      %v6468 = vmul.f32 %v413, %v6304
      %v6469 = vmul.f32 %v414, %v6304
      %v6470 = vmul.f32 %v415, %v6304
      %v6471 = vmul.f32 %v416, %v6304
      %v6472 = vmul.f32 %v417, %v6304
      %v6473 = vmul.f32 %v419, %v6304
      %v6474 = vmul.f32 %v420, %v6304
      %v6475 = vmul.f32 %v421, %v6304
      %v6476 = vmul.f32 %v422, %v6304
      %v6477 = vmul.f32 %v423, %v6304
      %v6478 = vmul.f32 %v424, %v6304
      %v6479 = vmul.f32 %v425, %v6304
      %v6480 = vmul.f32 %v427, %v6304
      %v6481 = vmul.f32 %v428, %v6304
      %v6482 = vmul.f32 %v429, %v6304
      %v6483 = vmul.f32 %v430, %v6304
      %v6484 = vmul.f32 %v431, %v6304
      %v6485 = vmul.f32 %v432, %v6304
      %v6486 = vmul.f32 %v433, %v6304
      %v6487 = vmul.f32 %v435, %v6304
      %v6488 = vmul.f32 %v436, %v6304
      %v6489 = vmul.f32 %v437, %v6304
      %v6490 = vmul.f32 %v438, %v6304
      %v6491 = vmul.f32 %v439, %v6304
      %v6492 = vmul.f32 %v440, %v6304
      %v6493 = vmul.f32 %v441, %v6304
      %v6494 = vmul.f32 %v443, %v6304
      %v6495 = vmul.f32 %v444, %v6304
      %v6496 = vmul.f32 %v445, %v6304
      %v6497 = vmul.f32 %v446, %v6304
      %v6498 = vmul.f32 %v447, %v6304
      %v6499 = vmul.f32 %v448, %v6304
      %v6500 = vmul.f32 %v449, %v6304
      %v6501 = vadd.f32 %v6105, %v6305
      %v6502 = vadd.f32 %v6106, %v6306
      %v6503 = vadd.f32 %v6107, %v6307
      %v6504 = vadd.f32 %v6108, %v6308
      %v6505 = vadd.f32 %v6109, %v6309
      %v6506 = vadd.f32 %v6110, %v6310
      %v6507 = vadd.f32 %v6111, %v6311
      %v6508 = vadd.f32 %v6112, %v6312
      %v6509 = vadd.f32 %v6113, %v6313
      %v6510 = vadd.f32 %v6114, %v6314
      %v6511 = vadd.f32 %v6115, %v6315
      %v6512 = vadd.f32 %v6116, %v6316
      %v6513 = vadd.f32 %v6117, %v6317
      %v6514 = vadd.f32 %v6118, %v6318
      %v6515 = vadd.f32 %v6119, %v6319
      %v6516 = vadd.f32 %v6120, %v6320
      %v6517 = vadd.f32 %v6121, %v6321
      %v6518 = vadd.f32 %v6122, %v6322
      %v6519 = vadd.f32 %v6123, %v6323
      %v6520 = vadd.f32 %v6124, %v6324
      %v6521 = vadd.f32 %v6125, %v6325
      %v6522 = vadd.f32 %v6126, %v6326
      %v6523 = vadd.f32 %v6127, %v6327
      %v6524 = vadd.f32 %v6128, %v6328
      %v6525 = vadd.f32 %v6129, %v6329
      %v6526 = vadd.f32 %v6130, %v6330
      %v6527 = vadd.f32 %v6131, %v6331
      %v6528 = vadd.f32 %v6132, %v6332
      %v6529 = vadd.f32 %v6133, %v6333
      %v6530 = vadd.f32 %v6134, %v6334
      %v6531 = vadd.f32 %v6135, %v6335
      %v6532 = vadd.f32 %v6136, %v6336
      %v6533 = vadd.f32 %v6137, %v6337
      %v6534 = vadd.f32 %v6138, %v6338
      %v6535 = vadd.f32 %v6139, %v6339
      %v6536 = vadd.f32 %v6140, %v6340
      %v6537 = vadd.f32 %v6141, %v6341
      %v6538 = vadd.f32 %v6142, %v6342
      %v6539 = vadd.f32 %v6143, %v6343
      %v6540 = vadd.f32 %v6144, %v6344
      %v6541 = vadd.f32 %v6145, %v6345
      %v6542 = vadd.f32 %v6146, %v6346
      %v6543 = vadd.f32 %v6147, %v6347
      %v6544 = vadd.f32 %v6148, %v6348
      %v6545 = vadd.f32 %v6149, %v6349
      %v6546 = vadd.f32 %v6150, %v6350
      %v6547 = vadd.f32 %v6151, %v6351
      %v6548 = vadd.f32 %v6152, %v6352
      %v6549 = vadd.f32 %v6153, %v6353
      %v6550 = vadd.f32 %v6154, %v6354
      %v6551 = vadd.f32 %v6155, %v6355
      %v6552 = vadd.f32 %v6156, %v6356
      %v6553 = vadd.f32 %v6157, %v6357
      %v6554 = vadd.f32 %v6158, %v6358
      %v6555 = vadd.f32 %v6159, %v6359
      %v6556 = vadd.f32 %v6160, %v6360
      %v6557 = vadd.f32 %v6161, %v6361
      %v6558 = vadd.f32 %v6162, %v6362
      %v6559 = vadd.f32 %v6163, %v6363
      %v6560 = vadd.f32 %v6164, %v6364
      %v6561 = vadd.f32 %v6165, %v6365
      %v6562 = vadd.f32 %v6166, %v6366
      %v6563 = vadd.f32 %v6167, %v6367
      %v6564 = vadd.f32 %v6168, %v6368
      %v6565 = vadd.f32 %v6169, %v6369
      %v6566 = vadd.f32 %v6170, %v6370
      %v6567 = vadd.f32 %v6171, %v6371
      %v6568 = vadd.f32 %v6172, %v6372
      %v6569 = vadd.f32 %v6173, %v6373
      %v6570 = vadd.f32 %v6174, %v6374
      %v6571 = vadd.f32 %v6175, %v6375
      %v6572 = vadd.f32 %v6176, %v6376
      %v6573 = vadd.f32 %v6177, %v6377
      %v6574 = vadd.f32 %v6178, %v6378
      %v6575 = vadd.f32 %v6179, %v6379
      %v6576 = vadd.f32 %v6180, %v6380
      %v6577 = vadd.f32 %v6181, %v6381
      %v6578 = vadd.f32 %v6182, %v6382
      %v6579 = vadd.f32 %v6183, %v6383
      %v6580 = vadd.f32 %v6184, %v6384
      %v6581 = vadd.f32 %v6185, %v6385
      %v6582 = vadd.f32 %v6186, %v6386
      %v6583 = vadd.f32 %v6187, %v6387
      %v6584 = vadd.f32 %v6188, %v6388
      %v6585 = vadd.f32 %v6189, %v6389
      %v6586 = vadd.f32 %v6190, %v6390
      %v6587 = vadd.f32 %v6191, %v6391
      %v6588 = vadd.f32 %v6192, %v6392
      %v6589 = vadd.f32 %v6193, %v6393
      %v6590 = vadd.f32 %v6194, %v6394
      %v6591 = vadd.f32 %v6195, %v6395
      %v6592 = vadd.f32 %v6196, %v6396
      %v6593 = vadd.f32 %v6197, %v6397
      %v6594 = vadd.f32 %v6198, %v6398
      %v6595 = vadd.f32 %v6199, %v6399
      %v6596 = vadd.f32 %v6200, %v6400
      %v6597 = vadd.f32 %v6201, %v6401
      %v6598 = vadd.f32 %v6202, %v6402
      %v6599 = vadd.f32 %v6203, %v6403
      %v6600 = vadd.f32 %v6204, %v6404
      %v6601 = vadd.f32 %v6205, %v6405
      %v6602 = vadd.f32 %v6206, %v6406
      %v6603 = vadd.f32 %v6207, %v6407
      %v6604 = vadd.f32 %v6208, %v6408
      %v6605 = vadd.f32 %v6209, %v6409
      %v6606 = vadd.f32 %v6210, %v6410
      %v6607 = vadd.f32 %v6211, %v6411
      %v6608 = vadd.f32 %v6212, %v6412
      %v6609 = vadd.f32 %v6213, %v6413
      %v6610 = vadd.f32 %v6214, %v6414
      %v6611 = vadd.f32 %v6215, %v6415
      %v6612 = vadd.f32 %v6216, %v6416
      %v6613 = vadd.f32 %v6217, %v6417
      %v6614 = vadd.f32 %v6218, %v6418
      %v6615 = vadd.f32 %v6219, %v6419
      %v6616 = vadd.f32 %v6220, %v6420
      %v6617 = vadd.f32 %v6221, %v6421
      %v6618 = vadd.f32 %v6222, %v6422
      %v6619 = vadd.f32 %v6223, %v6423
      %v6620 = vadd.f32 %v6224, %v6424
      %v6621 = vadd.f32 %v6225, %v6425
      %v6622 = vadd.f32 %v6226, %v6426
      %v6623 = vadd.f32 %v6227, %v6427
      %v6624 = vadd.f32 %v6228, %v6428
      %v6625 = vadd.f32 %v6229, %v6429
      %v6626 = vadd.f32 %v6230, %v6430
      %v6627 = vadd.f32 %v6231, %v6431
      %v6628 = vadd.f32 %v6232, %v6432
      %v6629 = vadd.f32 %v6233, %v6433
      %v6630 = vadd.f32 %v6234, %v6434
      %v6631 = vadd.f32 %v6235, %v6435
      %v6632 = vadd.f32 %v6236, %v6436
      %v6633 = vadd.f32 %v6237, %v6437
      %v6634 = vadd.f32 %v6238, %v6438
      %v6635 = vadd.f32 %v6239, %v6439
      %v6636 = vadd.f32 %v6240, %v6440
      %v6637 = vadd.f32 %v6241, %v6441
      %v6638 = vadd.f32 %v6242, %v6442
      %v6639 = vadd.f32 %v6243, %v6443
      %v6640 = vadd.f32 %v6244, %v6444
      %v6641 = vadd.f32 %v6245, %v6445
      %v6642 = vadd.f32 %v6246, %v6446
      %v6643 = vadd.f32 %v6247, %v6447
      %v6644 = vadd.f32 %v6248, %v6448
      %v6645 = vadd.f32 %v6249, %v6449
      %v6646 = vadd.f32 %v6250, %v6450
      %v6647 = vadd.f32 %v6251, %v6451
      %v6648 = vadd.f32 %v6252, %v6452
      %v6649 = vadd.f32 %v6253, %v6453
      %v6650 = vadd.f32 %v6254, %v6454
      %v6651 = vadd.f32 %v6255, %v6455
      %v6652 = vadd.f32 %v6256, %v6456
      %v6653 = vadd.f32 %v6257, %v6457
      %v6654 = vadd.f32 %v6258, %v6458
      %v6655 = vadd.f32 %v6259, %v6459
      %v6656 = vadd.f32 %v6260, %v6460
      %v6657 = vadd.f32 %v6261, %v6461
      %v6658 = vadd.f32 %v6262, %v6462
      %v6659 = vadd.f32 %v6263, %v6463
      %v6660 = vadd.f32 %v6264, %v6464
      %v6661 = vadd.f32 %v6265, %v6465
      %v6662 = vadd.f32 %v6266, %v6466
      %v6663 = vadd.f32 %v6267, %v6467
      %v6664 = vadd.f32 %v6268, %v6468
      %v6665 = vadd.f32 %v6269, %v6469
      %v6666 = vadd.f32 %v6270, %v6470
      %v6667 = vadd.f32 %v6271, %v6471
      %v6668 = vadd.f32 %v6272, %v6472
      %v6669 = vadd.f32 %v6273, %v6473
      %v6670 = vadd.f32 %v6274, %v6474
      %v6671 = vadd.f32 %v6275, %v6475
      %v6672 = vadd.f32 %v6276, %v6476
      %v6673 = vadd.f32 %v6277, %v6477
      %v6674 = vadd.f32 %v6278, %v6478
      %v6675 = vadd.f32 %v6279, %v6479
      %v6676 = vadd.f32 %v6280, %v6480
      %v6677 = vadd.f32 %v6281, %v6481
      %v6678 = vadd.f32 %v6282, %v6482
      %v6679 = vadd.f32 %v6283, %v6483
      %v6680 = vadd.f32 %v6284, %v6484
      %v6681 = vadd.f32 %v6285, %v6485
      %v6682 = vadd.f32 %v6286, %v6486
      %v6683 = vadd.f32 %v6287, %v6487
      %v6684 = vadd.f32 %v6288, %v6488
      %v6685 = vadd.f32 %v6289, %v6489
      %v6686 = vadd.f32 %v6290, %v6490
      %v6687 = vadd.f32 %v6291, %v6491
      %v6688 = vadd.f32 %v6292, %v6492
      %v6689 = vadd.f32 %v6293, %v6493
      %v6690 = vadd.f32 %v6294, %v6494
      %v6691 = vadd.f32 %v6295, %v6495
      %v6692 = vadd.f32 %v6296, %v6496
      %v6693 = vadd.f32 %v6297, %v6497
      %v6694 = vadd.f32 %v6298, %v6498
      %v6695 = vadd.f32 %v6299, %v6499
      %v6696 = vadd.f32 %v6300, %v6500
      %v6697 = vlaneseq
      %v6698 = vshrl.u32 %v6697, 7
      %v6699 = vsub.s32 7, %v6698
      %v6700 = vrot.slane %v207, %v6699
      %v6701 = vmul.f32 %v227, %v6700
      %v6702 = vmul.f32 %v228, %v6700
      %v6703 = vmul.f32 %v229, %v6700
      %v6704 = vmul.f32 %v230, %v6700
      %v6705 = vmul.f32 %v231, %v6700
      %v6706 = vmul.f32 %v232, %v6700
      %v6707 = vmul.f32 %v233, %v6700
      %v6708 = vmul.f32 %v234, %v6700
      %v6709 = vmul.f32 %v235, %v6700
      %v6710 = vmul.f32 %v236, %v6700
      %v6711 = vmul.f32 %v237, %v6700
      %v6712 = vmul.f32 %v238, %v6700
      %v6713 = vmul.f32 %v239, %v6700
      %v6714 = vmul.f32 %v240, %v6700
      %v6715 = vmul.f32 %v241, %v6700
      %v6716 = vmul.f32 %v242, %v6700
      %v6717 = vmul.f32 %v243, %v6700
      %v6718 = vmul.f32 %v244, %v6700
      %v6719 = vmul.f32 %v245, %v6700
      %v6720 = vmul.f32 %v246, %v6700
      %v6721 = vmul.f32 %v247, %v6700
      %v6722 = vmul.f32 %v248, %v6700
      %v6723 = vmul.f32 %v249, %v6700
      %v6724 = vmul.f32 %v250, %v6700
      %v6725 = vmul.f32 %v251, %v6700
      %v6726 = vmul.f32 %v252, %v6700
      %v6727 = vmul.f32 %v253, %v6700
      %v6728 = vmul.f32 %v254, %v6700
      %v6729 = vmul.f32 %v255, %v6700
      %v6730 = vmul.f32 %v256, %v6700
      %v6731 = vmul.f32 %v257, %v6700
      %v6732 = vmul.f32 %v258, %v6700
      %v6733 = vmul.f32 %v259, %v6700
      %v6734 = vmul.f32 %v260, %v6700
      %v6735 = vmul.f32 %v261, %v6700
      %v6736 = vmul.f32 %v262, %v6700
      %v6737 = vmul.f32 %v263, %v6700
      %v6738 = vmul.f32 %v264, %v6700
      %v6739 = vmul.f32 %v265, %v6700
      %v6740 = vmul.f32 %v266, %v6700
      %v6741 = vmul.f32 %v267, %v6700
      %v6742 = vmul.f32 %v268, %v6700
      %v6743 = vmul.f32 %v269, %v6700
      %v6744 = vmul.f32 %v270, %v6700
      %v6745 = vmul.f32 %v271, %v6700
      %v6746 = vmul.f32 %v272, %v6700
      %v6747 = vmul.f32 %v273, %v6700
      %v6748 = vmul.f32 %v274, %v6700
      %v6749 = vmul.f32 %v275, %v6700
      %v6750 = vmul.f32 %v276, %v6700
      %v6751 = vmul.f32 %v277, %v6700
      %v6752 = vmul.f32 %v278, %v6700
      %v6753 = vmul.f32 %v279, %v6700
      %v6754 = vmul.f32 %v280, %v6700
      %v6755 = vmul.f32 %v281, %v6700
      %v6756 = vmul.f32 %v282, %v6700
      %v6757 = vmul.f32 %v283, %v6700
      %v6758 = vmul.f32 %v284, %v6700
      %v6759 = vmul.f32 %v285, %v6700
      %v6760 = vmul.f32 %v286, %v6700
      %v6761 = vmul.f32 %v287, %v6700
      %v6762 = vmul.f32 %v288, %v6700
      %v6763 = vmul.f32 %v289, %v6700
      %v6764 = vmul.f32 %v290, %v6700
      %v6765 = vmul.f32 %v291, %v6700
      %v6766 = vmul.f32 %v292, %v6700
      %v6767 = vmul.f32 %v293, %v6700
      %v6768 = vmul.f32 %v294, %v6700
      %v6769 = vmul.f32 %v295, %v6700
      %v6770 = vmul.f32 %v296, %v6700
      %v6771 = vmul.f32 %v297, %v6700
      %v6772 = vmul.f32 %v298, %v6700
      %v6773 = vmul.f32 %v299, %v6700
      %v6774 = vmul.f32 %v300, %v6700
      %v6775 = vmul.f32 %v301, %v6700
      %v6776 = vmul.f32 %v302, %v6700
      %v6777 = vmul.f32 %v303, %v6700
      %v6778 = vmul.f32 %v304, %v6700
      %v6779 = vmul.f32 %v305, %v6700
      %v6780 = vmul.f32 %v306, %v6700
      %v6781 = vmul.f32 %v307, %v6700
      %v6782 = vmul.f32 %v308, %v6700
      %v6783 = vmul.f32 %v309, %v6700
      %v6784 = vmul.f32 %v310, %v6700
      %v6785 = vmul.f32 %v311, %v6700
      %v6786 = vmul.f32 %v312, %v6700
      %v6787 = vmul.f32 %v313, %v6700
      %v6788 = vmul.f32 %v314, %v6700
      %v6789 = vmul.f32 %v315, %v6700
      %v6790 = vmul.f32 %v316, %v6700
      %v6791 = vmul.f32 %v317, %v6700
      %v6792 = vmul.f32 %v318, %v6700
      %v6793 = vmul.f32 %v319, %v6700
      %v6794 = vmul.f32 %v320, %v6700
      %v6795 = vmul.f32 %v321, %v6700
      %v6796 = vmul.f32 %v322, %v6700
      %v6797 = vmul.f32 %v323, %v6700
      %v6798 = vmul.f32 %v324, %v6700
      %v6799 = vmul.f32 %v325, %v6700
      %v6800 = vmul.f32 %v326, %v6700
      %v6801 = vmul.f32 %v327, %v6700
      %v6802 = vmul.f32 %v328, %v6700
      %v6803 = vmul.f32 %v329, %v6700
      %v6804 = vmul.f32 %v330, %v6700
      %v6805 = vmul.f32 %v331, %v6700
      %v6806 = vmul.f32 %v332, %v6700
      %v6807 = vmul.f32 %v333, %v6700
      %v6808 = vmul.f32 %v334, %v6700
      %v6809 = vmul.f32 %v335, %v6700
      %v6810 = vmul.f32 %v336, %v6700
      %v6811 = vmul.f32 %v337, %v6700
      %v6812 = vmul.f32 %v338, %v6700
      %v6813 = vmul.f32 %v339, %v6700
      %v6814 = vmul.f32 %v340, %v6700
      %v6815 = vmul.f32 %v341, %v6700
      %v6816 = vmul.f32 %v342, %v6700
      %v6817 = vmul.f32 %v343, %v6700
      %v6818 = vmul.f32 %v344, %v6700
      %v6819 = vmul.f32 %v345, %v6700
      %v6820 = vmul.f32 %v346, %v6700
      %v6821 = vmul.f32 %v347, %v6700
      %v6822 = vmul.f32 %v348, %v6700
      %v6823 = vmul.f32 %v349, %v6700
      %v6824 = vmul.f32 %v350, %v6700
      %v6825 = vmul.f32 %v351, %v6700
      %v6826 = vmul.f32 %v352, %v6700
      %v6827 = vmul.f32 %v353, %v6700
      %v6828 = vmul.f32 %v354, %v6700
      %v6829 = vmul.f32 %v355, %v6700
      %v6830 = vmul.f32 %v356, %v6700
      %v6831 = vmul.f32 %v357, %v6700
      %v6832 = vmul.f32 %v358, %v6700
      %v6833 = vmul.f32 %v359, %v6700
      %v6834 = vmul.f32 %v360, %v6700
      %v6835 = vmul.f32 %v361, %v6700
      %v6836 = vmul.f32 %v362, %v6700
      %v6837 = vmul.f32 %v363, %v6700
      %v6838 = vmul.f32 %v364, %v6700
      %v6839 = vmul.f32 %v365, %v6700
      %v6840 = vmul.f32 %v366, %v6700
      %v6841 = vmul.f32 %v367, %v6700
      %v6842 = vmul.f32 %v368, %v6700
      %v6843 = vmul.f32 %v369, %v6700
      %v6844 = vmul.f32 %v370, %v6700
      %v6845 = vmul.f32 %v371, %v6700
      %v6846 = vmul.f32 %v372, %v6700
      %v6847 = vmul.f32 %v373, %v6700
      %v6848 = vmul.f32 %v374, %v6700
      %v6849 = vmul.f32 %v375, %v6700
      %v6850 = vmul.f32 %v376, %v6700
      %v6851 = vmul.f32 %v377, %v6700
      %v6852 = vmul.f32 %v378, %v6700
      %v6853 = vmul.f32 %v379, %v6700
      %v6854 = vmul.f32 %v380, %v6700
      %v6855 = vmul.f32 %v381, %v6700
      %v6856 = vmul.f32 %v382, %v6700
      %v6857 = vmul.f32 %v383, %v6700
      %v6858 = vmul.f32 %v384, %v6700
      %v6859 = vmul.f32 %v385, %v6700
      %v6860 = vmul.f32 %v386, %v6700
      %v6861 = vmul.f32 %v387, %v6700
      %v6862 = vmul.f32 %v388, %v6700
      %v6863 = vmul.f32 %v389, %v6700
      %v6864 = vmul.f32 %v390, %v6700
      %v6865 = vmul.f32 %v391, %v6700
      %v6866 = vmul.f32 %v392, %v6700
      %v6867 = vmul.f32 %v393, %v6700
      %v6868 = vmul.f32 %v394, %v6700
      %v6869 = vmul.f32 %v395, %v6700
      %v6870 = vmul.f32 %v396, %v6700
      %v6871 = vmul.f32 %v397, %v6700
      %v6872 = vmul.f32 %v398, %v6700
      %v6873 = vmul.f32 %v399, %v6700
      %v6874 = vmul.f32 %v400, %v6700
      %v6875 = vmul.f32 %v401, %v6700
      %v6876 = vmul.f32 %v402, %v6700
      %v6877 = vmul.f32 %v403, %v6700
      %v6878 = vmul.f32 %v404, %v6700
      %v6879 = vmul.f32 %v405, %v6700
      %v6880 = vmul.f32 %v406, %v6700
      %v6881 = vmul.f32 %v407, %v6700
      %v6882 = vmul.f32 %v408, %v6700
      %v6883 = vmul.f32 %v409, %v6700
      %v6884 = vmul.f32 %v410, %v6700
      %v6885 = vmul.f32 %v411, %v6700
      %v6886 = vmul.f32 %v412, %v6700
      %v6887 = vmul.f32 %v413, %v6700
      %v6888 = vmul.f32 %v414, %v6700
      %v6889 = vmul.f32 %v415, %v6700
      %v6890 = vmul.f32 %v416, %v6700
      %v6891 = vmul.f32 %v417, %v6700
      %v6892 = vmul.f32 %v418, %v6700
      %v6893 = vmul.f32 %v419, %v6700
      %v6894 = vmul.f32 %v420, %v6700
      %v6895 = vmul.f32 %v421, %v6700
      %v6896 = vmul.f32 %v422, %v6700
      %v6897 = vmul.f32 %v423, %v6700
      %v6898 = vmul.f32 %v424, %v6700
      %v6899 = vmul.f32 %v425, %v6700
      %v6900 = vmul.f32 %v426, %v6700
      %v6901 = vmul.f32 %v427, %v6700
      %v6902 = vmul.f32 %v428, %v6700
      %v6903 = vmul.f32 %v429, %v6700
      %v6904 = vmul.f32 %v430, %v6700
      %v6905 = vmul.f32 %v431, %v6700
      %v6906 = vmul.f32 %v432, %v6700
      %v6907 = vmul.f32 %v433, %v6700
      %v6908 = vmul.f32 %v434, %v6700
      %v6909 = vmul.f32 %v435, %v6700
      %v6910 = vmul.f32 %v436, %v6700
      %v6911 = vmul.f32 %v437, %v6700
      %v6912 = vmul.f32 %v438, %v6700
      %v6913 = vmul.f32 %v439, %v6700
      %v6914 = vmul.f32 %v440, %v6700
      %v6915 = vmul.f32 %v441, %v6700
      %v6916 = vmul.f32 %v442, %v6700
      %v6917 = vmul.f32 %v443, %v6700
      %v6918 = vmul.f32 %v444, %v6700
      %v6919 = vmul.f32 %v445, %v6700
      %v6920 = vmul.f32 %v446, %v6700
      %v6921 = vmul.f32 %v447, %v6700
      %v6922 = vmul.f32 %v448, %v6700
      %v6923 = vmul.f32 %v449, %v6700
      %v6924 = vmul.f32 %v450, %v6700
      %v7149 = vrot.slane %v6701, 1
      %v7150 = vrot.slane %v6702, 1
      %v7151 = vsel %vm1299, %v7149, %v7150
      %v7152 = vrot.slane %v6703, 1
      %v7153 = vsel %vm1299, %v7150, %v7152
      %v7154 = vrot.slane %v6704, 1
      %v7155 = vsel %vm1299, %v7152, %v7154
      %v7156 = vrot.slane %v6705, 1
      %v7157 = vsel %vm1299, %v7154, %v7156
      %v7158 = vrot.slane %v6706, 1
      %v7159 = vsel %vm1299, %v7156, %v7158
      %v7160 = vrot.slane %v6707, 1
      %v7161 = vsel %vm1299, %v7158, %v7160
      %v7162 = vrot.slane %v6708, 1
      %v7163 = vsel %vm1299, %v7160, %v7162
      %v7164 = vrot.slane %v6709, 1
      %v7165 = vrot.slane %v6710, 1
      %v7166 = vsel %vm1299, %v7164, %v7165
      %v7167 = vrot.slane %v6711, 1
      %v7168 = vsel %vm1299, %v7165, %v7167
      %v7169 = vrot.slane %v6712, 1
      %v7170 = vsel %vm1299, %v7167, %v7169
      %v7171 = vrot.slane %v6713, 1
      %v7172 = vsel %vm1299, %v7169, %v7171
      %v7173 = vrot.slane %v6714, 1
      %v7174 = vsel %vm1299, %v7171, %v7173
      %v7175 = vrot.slane %v6715, 1
      %v7176 = vsel %vm1299, %v7173, %v7175
      %v7177 = vrot.slane %v6716, 1
      %v7178 = vsel %vm1299, %v7175, %v7177
      %v7179 = vrot.slane %v6717, 1
      %v7180 = vrot.slane %v6718, 1
      %v7181 = vsel %vm1299, %v7179, %v7180
      %v7182 = vrot.slane %v6719, 1
      %v7183 = vsel %vm1299, %v7180, %v7182
      %v7184 = vrot.slane %v6720, 1
      %v7185 = vsel %vm1299, %v7182, %v7184
      %v7186 = vrot.slane %v6721, 1
      %v7187 = vsel %vm1299, %v7184, %v7186
      %v7188 = vrot.slane %v6722, 1
      %v7189 = vsel %vm1299, %v7186, %v7188
      %v7190 = vrot.slane %v6723, 1
      %v7191 = vsel %vm1299, %v7188, %v7190
      %v7192 = vrot.slane %v6724, 1
      %v7193 = vsel %vm1299, %v7190, %v7192
      %v7194 = vrot.slane %v6725, 1
      %v7195 = vrot.slane %v6726, 1
      %v7196 = vsel %vm1299, %v7194, %v7195
      %v7197 = vrot.slane %v6727, 1
      %v7198 = vsel %vm1299, %v7195, %v7197
      %v7199 = vrot.slane %v6728, 1
      %v7200 = vsel %vm1299, %v7197, %v7199
      %v7201 = vrot.slane %v6729, 1
      %v7202 = vsel %vm1299, %v7199, %v7201
      %v7203 = vrot.slane %v6730, 1
      %v7204 = vsel %vm1299, %v7201, %v7203
      %v7205 = vrot.slane %v6731, 1
      %v7206 = vsel %vm1299, %v7203, %v7205
      %v7207 = vrot.slane %v6732, 1
      %v7208 = vsel %vm1299, %v7205, %v7207
      %v7209 = vrot.slane %v6733, 1
      %v7210 = vrot.slane %v6734, 1
      %v7211 = vsel %vm1299, %v7209, %v7210
      %v7212 = vrot.slane %v6735, 1
      %v7213 = vsel %vm1299, %v7210, %v7212
      %v7214 = vrot.slane %v6736, 1
      %v7215 = vsel %vm1299, %v7212, %v7214
      %v7216 = vrot.slane %v6737, 1
      %v7217 = vsel %vm1299, %v7214, %v7216
      %v7218 = vrot.slane %v6738, 1
      %v7219 = vsel %vm1299, %v7216, %v7218
      %v7220 = vrot.slane %v6739, 1
      %v7221 = vsel %vm1299, %v7218, %v7220
      %v7222 = vrot.slane %v6740, 1
      %v7223 = vsel %vm1299, %v7220, %v7222
      %v7224 = vrot.slane %v6741, 1
      %v7225 = vrot.slane %v6742, 1
      %v7226 = vsel %vm1299, %v7224, %v7225
      %v7227 = vrot.slane %v6743, 1
      %v7228 = vsel %vm1299, %v7225, %v7227
      %v7229 = vrot.slane %v6744, 1
      %v7230 = vsel %vm1299, %v7227, %v7229
      %v7231 = vrot.slane %v6745, 1
      %v7232 = vsel %vm1299, %v7229, %v7231
      %v7233 = vrot.slane %v6746, 1
      %v7234 = vsel %vm1299, %v7231, %v7233
      %v7235 = vrot.slane %v6747, 1
      %v7236 = vsel %vm1299, %v7233, %v7235
      %v7237 = vrot.slane %v6748, 1
      %v7238 = vsel %vm1299, %v7235, %v7237
      %v7239 = vrot.slane %v6749, 1
      %v7240 = vrot.slane %v6750, 1
      %v7241 = vsel %vm1299, %v7239, %v7240
      %v7242 = vrot.slane %v6751, 1
      %v7243 = vsel %vm1299, %v7240, %v7242
      %v7244 = vrot.slane %v6752, 1
      %v7245 = vsel %vm1299, %v7242, %v7244
      %v7246 = vrot.slane %v6753, 1
      %v7247 = vsel %vm1299, %v7244, %v7246
      %v7248 = vrot.slane %v6754, 1
      %v7249 = vsel %vm1299, %v7246, %v7248
      %v7250 = vrot.slane %v6755, 1
      %v7251 = vsel %vm1299, %v7248, %v7250
      %v7252 = vrot.slane %v6756, 1
      %v7253 = vsel %vm1299, %v7250, %v7252
      %v7254 = vrot.slane %v6757, 1
      %v7255 = vrot.slane %v6758, 1
      %v7256 = vsel %vm1299, %v7254, %v7255
      %v7257 = vrot.slane %v6759, 1
      %v7258 = vsel %vm1299, %v7255, %v7257
      %v7259 = vrot.slane %v6760, 1
      %v7260 = vsel %vm1299, %v7257, %v7259
      %v7261 = vrot.slane %v6761, 1
      %v7262 = vsel %vm1299, %v7259, %v7261
      %v7263 = vrot.slane %v6762, 1
      %v7264 = vsel %vm1299, %v7261, %v7263
      %v7265 = vrot.slane %v6763, 1
      %v7266 = vsel %vm1299, %v7263, %v7265
      %v7267 = vrot.slane %v6764, 1
      %v7268 = vsel %vm1299, %v7265, %v7267
      %v7269 = vrot.slane %v6765, 1
      %v7270 = vrot.slane %v6766, 1
      %v7271 = vsel %vm1299, %v7269, %v7270
      %v7272 = vrot.slane %v6767, 1
      %v7273 = vsel %vm1299, %v7270, %v7272
      %v7274 = vrot.slane %v6768, 1
      %v7275 = vsel %vm1299, %v7272, %v7274
      %v7276 = vrot.slane %v6769, 1
      %v7277 = vsel %vm1299, %v7274, %v7276
      %v7278 = vrot.slane %v6770, 1
      %v7279 = vsel %vm1299, %v7276, %v7278
      %v7280 = vrot.slane %v6771, 1
      %v7281 = vsel %vm1299, %v7278, %v7280
      %v7282 = vrot.slane %v6772, 1
      %v7283 = vsel %vm1299, %v7280, %v7282
      %v7284 = vrot.slane %v6773, 1
      %v7285 = vrot.slane %v6774, 1
      %v7286 = vsel %vm1299, %v7284, %v7285
      %v7287 = vrot.slane %v6775, 1
      %v7288 = vsel %vm1299, %v7285, %v7287
      %v7289 = vrot.slane %v6776, 1
      %v7290 = vsel %vm1299, %v7287, %v7289
      %v7291 = vrot.slane %v6777, 1
      %v7292 = vsel %vm1299, %v7289, %v7291
      %v7293 = vrot.slane %v6778, 1
      %v7294 = vsel %vm1299, %v7291, %v7293
      %v7295 = vrot.slane %v6779, 1
      %v7296 = vsel %vm1299, %v7293, %v7295
      %v7297 = vrot.slane %v6780, 1
      %v7298 = vsel %vm1299, %v7295, %v7297
      %v7299 = vrot.slane %v6781, 1
      %v7300 = vrot.slane %v6782, 1
      %v7301 = vsel %vm1299, %v7299, %v7300
      %v7302 = vrot.slane %v6783, 1
      %v7303 = vsel %vm1299, %v7300, %v7302
      %v7304 = vrot.slane %v6784, 1
      %v7305 = vsel %vm1299, %v7302, %v7304
      %v7306 = vrot.slane %v6785, 1
      %v7307 = vsel %vm1299, %v7304, %v7306
      %v7308 = vrot.slane %v6786, 1
      %v7309 = vsel %vm1299, %v7306, %v7308
      %v7310 = vrot.slane %v6787, 1
      %v7311 = vsel %vm1299, %v7308, %v7310
      %v7312 = vrot.slane %v6788, 1
      %v7313 = vsel %vm1299, %v7310, %v7312
      %v7314 = vrot.slane %v6789, 1
      %v7315 = vrot.slane %v6790, 1
      %v7316 = vsel %vm1299, %v7314, %v7315
      %v7317 = vrot.slane %v6791, 1
      %v7318 = vsel %vm1299, %v7315, %v7317
      %v7319 = vrot.slane %v6792, 1
      %v7320 = vsel %vm1299, %v7317, %v7319
      %v7321 = vrot.slane %v6793, 1
      %v7322 = vsel %vm1299, %v7319, %v7321
      %v7323 = vrot.slane %v6794, 1
      %v7324 = vsel %vm1299, %v7321, %v7323
      %v7325 = vrot.slane %v6795, 1
      %v7326 = vsel %vm1299, %v7323, %v7325
      %v7327 = vrot.slane %v6796, 1
      %v7328 = vsel %vm1299, %v7325, %v7327
      %v7329 = vrot.slane %v6797, 1
      %v7330 = vrot.slane %v6798, 1
      %v7331 = vsel %vm1299, %v7329, %v7330
      %v7332 = vrot.slane %v6799, 1
      %v7333 = vsel %vm1299, %v7330, %v7332
      %v7334 = vrot.slane %v6800, 1
      %v7335 = vsel %vm1299, %v7332, %v7334
      %v7336 = vrot.slane %v6801, 1
      %v7337 = vsel %vm1299, %v7334, %v7336
      %v7338 = vrot.slane %v6802, 1
      %v7339 = vsel %vm1299, %v7336, %v7338
      %v7340 = vrot.slane %v6803, 1
      %v7341 = vsel %vm1299, %v7338, %v7340
      %v7342 = vrot.slane %v6804, 1
      %v7343 = vsel %vm1299, %v7340, %v7342
      %v7344 = vrot.slane %v6805, 1
      %v7345 = vrot.slane %v6806, 1
      %v7346 = vsel %vm1299, %v7344, %v7345
      %v7347 = vrot.slane %v6807, 1
      %v7348 = vsel %vm1299, %v7345, %v7347
      %v7349 = vrot.slane %v6808, 1
      %v7350 = vsel %vm1299, %v7347, %v7349
      %v7351 = vrot.slane %v6809, 1
      %v7352 = vsel %vm1299, %v7349, %v7351
      %v7353 = vrot.slane %v6810, 1
      %v7354 = vsel %vm1299, %v7351, %v7353
      %v7355 = vrot.slane %v6811, 1
      %v7356 = vsel %vm1299, %v7353, %v7355
      %v7357 = vrot.slane %v6812, 1
      %v7358 = vsel %vm1299, %v7355, %v7357
      %v7359 = vrot.slane %v6813, 1
      %v7360 = vrot.slane %v6814, 1
      %v7361 = vsel %vm1299, %v7359, %v7360
      %v7362 = vrot.slane %v6815, 1
      %v7363 = vsel %vm1299, %v7360, %v7362
      %v7364 = vrot.slane %v6816, 1
      %v7365 = vsel %vm1299, %v7362, %v7364
      %v7366 = vrot.slane %v6817, 1
      %v7367 = vsel %vm1299, %v7364, %v7366
      %v7368 = vrot.slane %v6818, 1
      %v7369 = vsel %vm1299, %v7366, %v7368
      %v7370 = vrot.slane %v6819, 1
      %v7371 = vsel %vm1299, %v7368, %v7370
      %v7372 = vrot.slane %v6820, 1
      %v7373 = vsel %vm1299, %v7370, %v7372
      %v7374 = vrot.slane %v6821, 1
      %v7375 = vrot.slane %v6822, 1
      %v7376 = vsel %vm1299, %v7374, %v7375
      %v7377 = vrot.slane %v6823, 1
      %v7378 = vsel %vm1299, %v7375, %v7377
      %v7379 = vrot.slane %v6824, 1
      %v7380 = vsel %vm1299, %v7377, %v7379
      %v7381 = vrot.slane %v6825, 1
      %v7382 = vsel %vm1299, %v7379, %v7381
      %v7383 = vrot.slane %v6826, 1
      %v7384 = vsel %vm1299, %v7381, %v7383
      %v7385 = vrot.slane %v6827, 1
      %v7386 = vsel %vm1299, %v7383, %v7385
      %v7387 = vrot.slane %v6828, 1
      %v7388 = vsel %vm1299, %v7385, %v7387
      %v7389 = vrot.slane %v6829, 1
      %v7390 = vrot.slane %v6830, 1
      %v7391 = vsel %vm1299, %v7389, %v7390
      %v7392 = vrot.slane %v6831, 1
      %v7393 = vsel %vm1299, %v7390, %v7392
      %v7394 = vrot.slane %v6832, 1
      %v7395 = vsel %vm1299, %v7392, %v7394
      %v7396 = vrot.slane %v6833, 1
      %v7397 = vsel %vm1299, %v7394, %v7396
      %v7398 = vrot.slane %v6834, 1
      %v7399 = vsel %vm1299, %v7396, %v7398
      %v7400 = vrot.slane %v6835, 1
      %v7401 = vsel %vm1299, %v7398, %v7400
      %v7402 = vrot.slane %v6836, 1
      %v7403 = vsel %vm1299, %v7400, %v7402
      %v7404 = vrot.slane %v6837, 1
      %v7405 = vrot.slane %v6838, 1
      %v7406 = vsel %vm1299, %v7404, %v7405
      %v7407 = vrot.slane %v6839, 1
      %v7408 = vsel %vm1299, %v7405, %v7407
      %v7409 = vrot.slane %v6840, 1
      %v7410 = vsel %vm1299, %v7407, %v7409
      %v7411 = vrot.slane %v6841, 1
      %v7412 = vsel %vm1299, %v7409, %v7411
      %v7413 = vrot.slane %v6842, 1
      %v7414 = vsel %vm1299, %v7411, %v7413
      %v7415 = vrot.slane %v6843, 1
      %v7416 = vsel %vm1299, %v7413, %v7415
      %v7417 = vrot.slane %v6844, 1
      %v7418 = vsel %vm1299, %v7415, %v7417
      %v7419 = vrot.slane %v6845, 1
      %v7420 = vrot.slane %v6846, 1
      %v7421 = vsel %vm1299, %v7419, %v7420
      %v7422 = vrot.slane %v6847, 1
      %v7423 = vsel %vm1299, %v7420, %v7422
      %v7424 = vrot.slane %v6848, 1
      %v7425 = vsel %vm1299, %v7422, %v7424
      %v7426 = vrot.slane %v6849, 1
      %v7427 = vsel %vm1299, %v7424, %v7426
      %v7428 = vrot.slane %v6850, 1
      %v7429 = vsel %vm1299, %v7426, %v7428
      %v7430 = vrot.slane %v6851, 1
      %v7431 = vsel %vm1299, %v7428, %v7430
      %v7432 = vrot.slane %v6852, 1
      %v7433 = vsel %vm1299, %v7430, %v7432
      %v7434 = vrot.slane %v6853, 1
      %v7435 = vrot.slane %v6854, 1
      %v7436 = vsel %vm1299, %v7434, %v7435
      %v7437 = vrot.slane %v6855, 1
      %v7438 = vsel %vm1299, %v7435, %v7437
      %v7439 = vrot.slane %v6856, 1
      %v7440 = vsel %vm1299, %v7437, %v7439
      %v7441 = vrot.slane %v6857, 1
      %v7442 = vsel %vm1299, %v7439, %v7441
      %v7443 = vrot.slane %v6858, 1
      %v7444 = vsel %vm1299, %v7441, %v7443
      %v7445 = vrot.slane %v6859, 1
      %v7446 = vsel %vm1299, %v7443, %v7445
      %v7447 = vrot.slane %v6860, 1
      %v7448 = vsel %vm1299, %v7445, %v7447
      %v7449 = vrot.slane %v6861, 1
      %v7450 = vrot.slane %v6862, 1
      %v7451 = vsel %vm1299, %v7449, %v7450
      %v7452 = vrot.slane %v6863, 1
      %v7453 = vsel %vm1299, %v7450, %v7452
      %v7454 = vrot.slane %v6864, 1
      %v7455 = vsel %vm1299, %v7452, %v7454
      %v7456 = vrot.slane %v6865, 1
      %v7457 = vsel %vm1299, %v7454, %v7456
      %v7458 = vrot.slane %v6866, 1
      %v7459 = vsel %vm1299, %v7456, %v7458
      %v7460 = vrot.slane %v6867, 1
      %v7461 = vsel %vm1299, %v7458, %v7460
      %v7462 = vrot.slane %v6868, 1
      %v7463 = vsel %vm1299, %v7460, %v7462
      %v7464 = vrot.slane %v6869, 1
      %v7465 = vrot.slane %v6870, 1
      %v7466 = vsel %vm1299, %v7464, %v7465
      %v7467 = vrot.slane %v6871, 1
      %v7468 = vsel %vm1299, %v7465, %v7467
      %v7469 = vrot.slane %v6872, 1
      %v7470 = vsel %vm1299, %v7467, %v7469
      %v7471 = vrot.slane %v6873, 1
      %v7472 = vsel %vm1299, %v7469, %v7471
      %v7473 = vrot.slane %v6874, 1
      %v7474 = vsel %vm1299, %v7471, %v7473
      %v7475 = vrot.slane %v6875, 1
      %v7476 = vsel %vm1299, %v7473, %v7475
      %v7477 = vrot.slane %v6876, 1
      %v7478 = vsel %vm1299, %v7475, %v7477
      %v7479 = vrot.slane %v6877, 1
      %v7480 = vrot.slane %v6878, 1
      %v7481 = vsel %vm1299, %v7479, %v7480
      %v7482 = vrot.slane %v6879, 1
      %v7483 = vsel %vm1299, %v7480, %v7482
      %v7484 = vrot.slane %v6880, 1
      %v7485 = vsel %vm1299, %v7482, %v7484
      %v7486 = vrot.slane %v6881, 1
      %v7487 = vsel %vm1299, %v7484, %v7486
      %v7488 = vrot.slane %v6882, 1
      %v7489 = vsel %vm1299, %v7486, %v7488
      %v7490 = vrot.slane %v6883, 1
      %v7491 = vsel %vm1299, %v7488, %v7490
      %v7492 = vrot.slane %v6884, 1
      %v7493 = vsel %vm1299, %v7490, %v7492
      %v7494 = vrot.slane %v6885, 1
      %v7495 = vrot.slane %v6886, 1
      %v7496 = vsel %vm1299, %v7494, %v7495
      %v7497 = vrot.slane %v6887, 1
      %v7498 = vsel %vm1299, %v7495, %v7497
      %v7499 = vrot.slane %v6888, 1
      %v7500 = vsel %vm1299, %v7497, %v7499
      %v7501 = vrot.slane %v6889, 1
      %v7502 = vsel %vm1299, %v7499, %v7501
      %v7503 = vrot.slane %v6890, 1
      %v7504 = vsel %vm1299, %v7501, %v7503
      %v7505 = vrot.slane %v6891, 1
      %v7506 = vsel %vm1299, %v7503, %v7505
      %v7507 = vrot.slane %v6892, 1
      %v7508 = vsel %vm1299, %v7505, %v7507
      %v7509 = vrot.slane %v6893, 1
      %v7510 = vrot.slane %v6894, 1
      %v7511 = vsel %vm1299, %v7509, %v7510
      %v7512 = vrot.slane %v6895, 1
      %v7513 = vsel %vm1299, %v7510, %v7512
      %v7514 = vrot.slane %v6896, 1
      %v7515 = vsel %vm1299, %v7512, %v7514
      %v7516 = vrot.slane %v6897, 1
      %v7517 = vsel %vm1299, %v7514, %v7516
      %v7518 = vrot.slane %v6898, 1
      %v7519 = vsel %vm1299, %v7516, %v7518
      %v7520 = vrot.slane %v6899, 1
      %v7521 = vsel %vm1299, %v7518, %v7520
      %v7522 = vrot.slane %v6900, 1
      %v7523 = vsel %vm1299, %v7520, %v7522
      %v7524 = vrot.slane %v6901, 1
      %v7525 = vrot.slane %v6902, 1
      %v7526 = vsel %vm1299, %v7524, %v7525
      %v7527 = vrot.slane %v6903, 1
      %v7528 = vsel %vm1299, %v7525, %v7527
      %v7529 = vrot.slane %v6904, 1
      %v7530 = vsel %vm1299, %v7527, %v7529
      %v7531 = vrot.slane %v6905, 1
      %v7532 = vsel %vm1299, %v7529, %v7531
      %v7533 = vrot.slane %v6906, 1
      %v7534 = vsel %vm1299, %v7531, %v7533
      %v7535 = vrot.slane %v6907, 1
      %v7536 = vsel %vm1299, %v7533, %v7535
      %v7537 = vrot.slane %v6908, 1
      %v7538 = vsel %vm1299, %v7535, %v7537
      %v7539 = vrot.slane %v6909, 1
      %v7540 = vrot.slane %v6910, 1
      %v7541 = vsel %vm1299, %v7539, %v7540
      %v7542 = vrot.slane %v6911, 1
      %v7543 = vsel %vm1299, %v7540, %v7542
      %v7544 = vrot.slane %v6912, 1
      %v7545 = vsel %vm1299, %v7542, %v7544
      %v7546 = vrot.slane %v6913, 1
      %v7547 = vsel %vm1299, %v7544, %v7546
      %v7548 = vrot.slane %v6914, 1
      %v7549 = vsel %vm1299, %v7546, %v7548
      %v7550 = vrot.slane %v6915, 1
      %v7551 = vsel %vm1299, %v7548, %v7550
      %v7552 = vrot.slane %v6916, 1
      %v7553 = vsel %vm1299, %v7550, %v7552
      %v7554 = vrot.slane %v6917, 1
      %v7555 = vrot.slane %v6918, 1
      %v7556 = vsel %vm1299, %v7554, %v7555
      %v7557 = vrot.slane %v6919, 1
      %v7558 = vsel %vm1299, %v7555, %v7557
      %v7559 = vrot.slane %v6920, 1
      %v7560 = vsel %vm1299, %v7557, %v7559
      %v7561 = vrot.slane %v6921, 1
      %v7562 = vsel %vm1299, %v7559, %v7561
      %v7563 = vrot.slane %v6922, 1
      %v7564 = vsel %vm1299, %v7561, %v7563
      %v7565 = vrot.slane %v6923, 1
      %v7566 = vsel %vm1299, %v7563, %v7565
      %v7567 = vrot.slane %v6924, 1
      %v7568 = vsel %vm1299, %v7565, %v7567
      %v7765 = vadd.f32 %v6501, %v7151
      %v7766 = vadd.f32 %v6502, %v7153
      %v7767 = vadd.f32 %v6503, %v7155
      %v7768 = vadd.f32 %v6504, %v7157
      %v7769 = vadd.f32 %v6505, %v7159
      %v7770 = vadd.f32 %v6506, %v7161
      %v7771 = vadd.f32 %v6507, %v7163
      %v7772 = vadd.f32 %v6508, %v7166
      %v7773 = vadd.f32 %v6509, %v7168
      %v7774 = vadd.f32 %v6510, %v7170
      %v7775 = vadd.f32 %v6511, %v7172
      %v7776 = vadd.f32 %v6512, %v7174
      %v7777 = vadd.f32 %v6513, %v7176
      %v7778 = vadd.f32 %v6514, %v7178
      %v7779 = vadd.f32 %v6515, %v7181
      %v7780 = vadd.f32 %v6516, %v7183
      %v7781 = vadd.f32 %v6517, %v7185
      %v7782 = vadd.f32 %v6518, %v7187
      %v7783 = vadd.f32 %v6519, %v7189
      %v7784 = vadd.f32 %v6520, %v7191
      %v7785 = vadd.f32 %v6521, %v7193
      %v7786 = vadd.f32 %v6522, %v7196
      %v7787 = vadd.f32 %v6523, %v7198
      %v7788 = vadd.f32 %v6524, %v7200
      %v7789 = vadd.f32 %v6525, %v7202
      %v7790 = vadd.f32 %v6526, %v7204
      %v7791 = vadd.f32 %v6527, %v7206
      %v7792 = vadd.f32 %v6528, %v7208
      %v7793 = vadd.f32 %v6529, %v7211
      %v7794 = vadd.f32 %v6530, %v7213
      %v7795 = vadd.f32 %v6531, %v7215
      %v7796 = vadd.f32 %v6532, %v7217
      %v7797 = vadd.f32 %v6533, %v7219
      %v7798 = vadd.f32 %v6534, %v7221
      %v7799 = vadd.f32 %v6535, %v7223
      %v7800 = vadd.f32 %v6536, %v7226
      %v7801 = vadd.f32 %v6537, %v7228
      %v7802 = vadd.f32 %v6538, %v7230
      %v7803 = vadd.f32 %v6539, %v7232
      %v7804 = vadd.f32 %v6540, %v7234
      %v7805 = vadd.f32 %v6541, %v7236
      %v7806 = vadd.f32 %v6542, %v7238
      %v7807 = vadd.f32 %v6543, %v7241
      %v7808 = vadd.f32 %v6544, %v7243
      %v7809 = vadd.f32 %v6545, %v7245
      %v7810 = vadd.f32 %v6546, %v7247
      %v7811 = vadd.f32 %v6547, %v7249
      %v7812 = vadd.f32 %v6548, %v7251
      %v7813 = vadd.f32 %v6549, %v7253
      %v7814 = vadd.f32 %v6550, %v7256
      %v7815 = vadd.f32 %v6551, %v7258
      %v7816 = vadd.f32 %v6552, %v7260
      %v7817 = vadd.f32 %v6553, %v7262
      %v7818 = vadd.f32 %v6554, %v7264
      %v7819 = vadd.f32 %v6555, %v7266
      %v7820 = vadd.f32 %v6556, %v7268
      %v7821 = vadd.f32 %v6557, %v7271
      %v7822 = vadd.f32 %v6558, %v7273
      %v7823 = vadd.f32 %v6559, %v7275
      %v7824 = vadd.f32 %v6560, %v7277
      %v7825 = vadd.f32 %v6561, %v7279
      %v7826 = vadd.f32 %v6562, %v7281
      %v7827 = vadd.f32 %v6563, %v7283
      %v7828 = vadd.f32 %v6564, %v7286
      %v7829 = vadd.f32 %v6565, %v7288
      %v7830 = vadd.f32 %v6566, %v7290
      %v7831 = vadd.f32 %v6567, %v7292
      %v7832 = vadd.f32 %v6568, %v7294
      %v7833 = vadd.f32 %v6569, %v7296
      %v7834 = vadd.f32 %v6570, %v7298
      %v7835 = vadd.f32 %v6571, %v7301
      %v7836 = vadd.f32 %v6572, %v7303
      %v7837 = vadd.f32 %v6573, %v7305
      %v7838 = vadd.f32 %v6574, %v7307
      %v7839 = vadd.f32 %v6575, %v7309
      %v7840 = vadd.f32 %v6576, %v7311
      %v7841 = vadd.f32 %v6577, %v7313
      %v7842 = vadd.f32 %v6578, %v7316
      %v7843 = vadd.f32 %v6579, %v7318
      %v7844 = vadd.f32 %v6580, %v7320
      %v7845 = vadd.f32 %v6581, %v7322
      %v7846 = vadd.f32 %v6582, %v7324
      %v7847 = vadd.f32 %v6583, %v7326
      %v7848 = vadd.f32 %v6584, %v7328
      %v7849 = vadd.f32 %v6585, %v7331
      %v7850 = vadd.f32 %v6586, %v7333
      %v7851 = vadd.f32 %v6587, %v7335
      %v7852 = vadd.f32 %v6588, %v7337
      %v7853 = vadd.f32 %v6589, %v7339
      %v7854 = vadd.f32 %v6590, %v7341
      %v7855 = vadd.f32 %v6591, %v7343
      %v7856 = vadd.f32 %v6592, %v7346
      %v7857 = vadd.f32 %v6593, %v7348
      %v7858 = vadd.f32 %v6594, %v7350
      %v7859 = vadd.f32 %v6595, %v7352
      %v7860 = vadd.f32 %v6596, %v7354
      %v7861 = vadd.f32 %v6597, %v7356
      %v7862 = vadd.f32 %v6598, %v7358
      %v7863 = vadd.f32 %v6599, %v7361
      %v7864 = vadd.f32 %v6600, %v7363
      %v7865 = vadd.f32 %v6601, %v7365
      %v7866 = vadd.f32 %v6602, %v7367
      %v7867 = vadd.f32 %v6603, %v7369
      %v7868 = vadd.f32 %v6604, %v7371
      %v7869 = vadd.f32 %v6605, %v7373
      %v7870 = vadd.f32 %v6606, %v7376
      %v7871 = vadd.f32 %v6607, %v7378
      %v7872 = vadd.f32 %v6608, %v7380
      %v7873 = vadd.f32 %v6609, %v7382
      %v7874 = vadd.f32 %v6610, %v7384
      %v7875 = vadd.f32 %v6611, %v7386
      %v7876 = vadd.f32 %v6612, %v7388
      %v7877 = vadd.f32 %v6613, %v7391
      %v7878 = vadd.f32 %v6614, %v7393
      %v7879 = vadd.f32 %v6615, %v7395
      %v7880 = vadd.f32 %v6616, %v7397
      %v7881 = vadd.f32 %v6617, %v7399
      %v7882 = vadd.f32 %v6618, %v7401
      %v7883 = vadd.f32 %v6619, %v7403
      %v7884 = vadd.f32 %v6620, %v7406
      %v7885 = vadd.f32 %v6621, %v7408
      %v7886 = vadd.f32 %v6622, %v7410
      %v7887 = vadd.f32 %v6623, %v7412
      %v7888 = vadd.f32 %v6624, %v7414
      %v7889 = vadd.f32 %v6625, %v7416
      %v7890 = vadd.f32 %v6626, %v7418
      %v7891 = vadd.f32 %v6627, %v7421
      %v7892 = vadd.f32 %v6628, %v7423
      %v7893 = vadd.f32 %v6629, %v7425
      %v7894 = vadd.f32 %v6630, %v7427
      %v7895 = vadd.f32 %v6631, %v7429
      %v7896 = vadd.f32 %v6632, %v7431
      %v7897 = vadd.f32 %v6633, %v7433
      %v7898 = vadd.f32 %v6634, %v7436
      %v7899 = vadd.f32 %v6635, %v7438
      %v7900 = vadd.f32 %v6636, %v7440
      %v7901 = vadd.f32 %v6637, %v7442
      %v7902 = vadd.f32 %v6638, %v7444
      %v7903 = vadd.f32 %v6639, %v7446
      %v7904 = vadd.f32 %v6640, %v7448
      %v7905 = vadd.f32 %v6641, %v7451
      %v7906 = vadd.f32 %v6642, %v7453
      %v7907 = vadd.f32 %v6643, %v7455
      %v7908 = vadd.f32 %v6644, %v7457
      %v7909 = vadd.f32 %v6645, %v7459
      %v7910 = vadd.f32 %v6646, %v7461
      %v7911 = vadd.f32 %v6647, %v7463
      %v7912 = vadd.f32 %v6648, %v7466
      %v7913 = vadd.f32 %v6649, %v7468
      %v7914 = vadd.f32 %v6650, %v7470
      %v7915 = vadd.f32 %v6651, %v7472
      %v7916 = vadd.f32 %v6652, %v7474
      %v7917 = vadd.f32 %v6653, %v7476
      %v7918 = vadd.f32 %v6654, %v7478
      %v7919 = vadd.f32 %v6655, %v7481
      %v7920 = vadd.f32 %v6656, %v7483
      %v7921 = vadd.f32 %v6657, %v7485
      %v7922 = vadd.f32 %v6658, %v7487
      %v7923 = vadd.f32 %v6659, %v7489
      %v7924 = vadd.f32 %v6660, %v7491
      %v7925 = vadd.f32 %v6661, %v7493
      %v7926 = vadd.f32 %v6662, %v7496
      %v7927 = vadd.f32 %v6663, %v7498
      %v7928 = vadd.f32 %v6664, %v7500
      %v7929 = vadd.f32 %v6665, %v7502
      %v7930 = vadd.f32 %v6666, %v7504
      %v7931 = vadd.f32 %v6667, %v7506
      %v7932 = vadd.f32 %v6668, %v7508
      %v7933 = vadd.f32 %v6669, %v7511
      %v7934 = vadd.f32 %v6670, %v7513
      %v7935 = vadd.f32 %v6671, %v7515
      %v7936 = vadd.f32 %v6672, %v7517
      %v7937 = vadd.f32 %v6673, %v7519
      %v7938 = vadd.f32 %v6674, %v7521
      %v7939 = vadd.f32 %v6675, %v7523
      %v7940 = vadd.f32 %v6676, %v7526
      %v7941 = vadd.f32 %v6677, %v7528
      %v7942 = vadd.f32 %v6678, %v7530
      %v7943 = vadd.f32 %v6679, %v7532
      %v7944 = vadd.f32 %v6680, %v7534
      %v7945 = vadd.f32 %v6681, %v7536
      %v7946 = vadd.f32 %v6682, %v7538
      %v7947 = vadd.f32 %v6683, %v7541
      %v7948 = vadd.f32 %v6684, %v7543
      %v7949 = vadd.f32 %v6685, %v7545
      %v7950 = vadd.f32 %v6686, %v7547
      %v7951 = vadd.f32 %v6687, %v7549
      %v7952 = vadd.f32 %v6688, %v7551
      %v7953 = vadd.f32 %v6689, %v7553
      %v7954 = vadd.f32 %v6690, %v7556
      %v7955 = vadd.f32 %v6691, %v7558
      %v7956 = vadd.f32 %v6692, %v7560
      %v7957 = vadd.f32 %v6693, %v7562
      %v7958 = vadd.f32 %v6694, %v7564
      %v7959 = vadd.f32 %v6695, %v7566
      %v7960 = vadd.f32 %v6696, %v7568
      %v7961 = vlaneseq
      %v7962 = vshrl.u32 %v7961, 7
      %v7963 = vsub.s32 0, %v7962
      %v7964 = vrot.slane %v208, %v7963
      %v7965 = vmul.f32 %v227, %v7964
      %v7966 = vmul.f32 %v228, %v7964
      %v7967 = vmul.f32 %v229, %v7964
      %v7968 = vmul.f32 %v230, %v7964
      %v7969 = vmul.f32 %v231, %v7964
      %v7970 = vmul.f32 %v232, %v7964
      %v7971 = vmul.f32 %v233, %v7964
      %v7972 = vmul.f32 %v234, %v7964
      %v7973 = vmul.f32 %v235, %v7964
      %v7974 = vmul.f32 %v236, %v7964
      %v7975 = vmul.f32 %v237, %v7964
      %v7976 = vmul.f32 %v238, %v7964
      %v7977 = vmul.f32 %v239, %v7964
      %v7978 = vmul.f32 %v240, %v7964
      %v7979 = vmul.f32 %v241, %v7964
      %v7980 = vmul.f32 %v242, %v7964
      %v7981 = vmul.f32 %v243, %v7964
      %v7982 = vmul.f32 %v244, %v7964
      %v7983 = vmul.f32 %v245, %v7964
      %v7984 = vmul.f32 %v246, %v7964
      %v7985 = vmul.f32 %v247, %v7964
      %v7986 = vmul.f32 %v248, %v7964
      %v7987 = vmul.f32 %v249, %v7964
      %v7988 = vmul.f32 %v250, %v7964
      %v7989 = vmul.f32 %v251, %v7964
      %v7990 = vmul.f32 %v252, %v7964
      %v7991 = vmul.f32 %v253, %v7964
      %v7992 = vmul.f32 %v254, %v7964
      %v7993 = vmul.f32 %v255, %v7964
      %v7994 = vmul.f32 %v256, %v7964
      %v7995 = vmul.f32 %v257, %v7964
      %v7996 = vmul.f32 %v258, %v7964
      %v7997 = vmul.f32 %v259, %v7964
      %v7998 = vmul.f32 %v260, %v7964
      %v7999 = vmul.f32 %v261, %v7964
      %v8000 = vmul.f32 %v262, %v7964
      %v8001 = vmul.f32 %v263, %v7964
      %v8002 = vmul.f32 %v264, %v7964
      %v8003 = vmul.f32 %v265, %v7964
      %v8004 = vmul.f32 %v266, %v7964
      %v8005 = vmul.f32 %v267, %v7964
      %v8006 = vmul.f32 %v268, %v7964
      %v8007 = vmul.f32 %v269, %v7964
      %v8008 = vmul.f32 %v270, %v7964
      %v8009 = vmul.f32 %v271, %v7964
      %v8010 = vmul.f32 %v272, %v7964
      %v8011 = vmul.f32 %v273, %v7964
      %v8012 = vmul.f32 %v274, %v7964
      %v8013 = vmul.f32 %v275, %v7964
      %v8014 = vmul.f32 %v276, %v7964
      %v8015 = vmul.f32 %v277, %v7964
      %v8016 = vmul.f32 %v278, %v7964
      %v8017 = vmul.f32 %v279, %v7964
      %v8018 = vmul.f32 %v280, %v7964
      %v8019 = vmul.f32 %v281, %v7964
      %v8020 = vmul.f32 %v282, %v7964
      %v8021 = vmul.f32 %v283, %v7964
      %v8022 = vmul.f32 %v284, %v7964
      %v8023 = vmul.f32 %v285, %v7964
      %v8024 = vmul.f32 %v286, %v7964
      %v8025 = vmul.f32 %v287, %v7964
      %v8026 = vmul.f32 %v288, %v7964
      %v8027 = vmul.f32 %v289, %v7964
      %v8028 = vmul.f32 %v290, %v7964
      %v8029 = vmul.f32 %v291, %v7964
      %v8030 = vmul.f32 %v292, %v7964
      %v8031 = vmul.f32 %v293, %v7964
      %v8032 = vmul.f32 %v294, %v7964
      %v8033 = vmul.f32 %v295, %v7964
      %v8034 = vmul.f32 %v296, %v7964
      %v8035 = vmul.f32 %v297, %v7964
      %v8036 = vmul.f32 %v298, %v7964
      %v8037 = vmul.f32 %v299, %v7964
      %v8038 = vmul.f32 %v300, %v7964
      %v8039 = vmul.f32 %v301, %v7964
      %v8040 = vmul.f32 %v302, %v7964
      %v8041 = vmul.f32 %v303, %v7964
      %v8042 = vmul.f32 %v304, %v7964
      %v8043 = vmul.f32 %v305, %v7964
      %v8044 = vmul.f32 %v306, %v7964
      %v8045 = vmul.f32 %v307, %v7964
      %v8046 = vmul.f32 %v308, %v7964
      %v8047 = vmul.f32 %v309, %v7964
      %v8048 = vmul.f32 %v310, %v7964
      %v8049 = vmul.f32 %v311, %v7964
      %v8050 = vmul.f32 %v312, %v7964
      %v8051 = vmul.f32 %v313, %v7964
      %v8052 = vmul.f32 %v314, %v7964
      %v8053 = vmul.f32 %v315, %v7964
      %v8054 = vmul.f32 %v316, %v7964
      %v8055 = vmul.f32 %v317, %v7964
      %v8056 = vmul.f32 %v318, %v7964
      %v8057 = vmul.f32 %v319, %v7964
      %v8058 = vmul.f32 %v320, %v7964
      %v8059 = vmul.f32 %v321, %v7964
      %v8060 = vmul.f32 %v322, %v7964
      %v8061 = vmul.f32 %v323, %v7964
      %v8062 = vmul.f32 %v324, %v7964
      %v8063 = vmul.f32 %v325, %v7964
      %v8064 = vmul.f32 %v326, %v7964
      %v8065 = vmul.f32 %v327, %v7964
      %v8066 = vmul.f32 %v328, %v7964
      %v8067 = vmul.f32 %v329, %v7964
      %v8068 = vmul.f32 %v330, %v7964
      %v8069 = vmul.f32 %v331, %v7964
      %v8070 = vmul.f32 %v332, %v7964
      %v8071 = vmul.f32 %v333, %v7964
      %v8072 = vmul.f32 %v334, %v7964
      %v8073 = vmul.f32 %v335, %v7964
      %v8074 = vmul.f32 %v336, %v7964
      %v8075 = vmul.f32 %v337, %v7964
      %v8076 = vmul.f32 %v338, %v7964
      %v8077 = vmul.f32 %v339, %v7964
      %v8078 = vmul.f32 %v340, %v7964
      %v8079 = vmul.f32 %v341, %v7964
      %v8080 = vmul.f32 %v342, %v7964
      %v8081 = vmul.f32 %v343, %v7964
      %v8082 = vmul.f32 %v344, %v7964
      %v8083 = vmul.f32 %v345, %v7964
      %v8084 = vmul.f32 %v346, %v7964
      %v8085 = vmul.f32 %v347, %v7964
      %v8086 = vmul.f32 %v348, %v7964
      %v8087 = vmul.f32 %v349, %v7964
      %v8088 = vmul.f32 %v350, %v7964
      %v8089 = vmul.f32 %v351, %v7964
      %v8090 = vmul.f32 %v352, %v7964
      %v8091 = vmul.f32 %v353, %v7964
      %v8092 = vmul.f32 %v354, %v7964
      %v8093 = vmul.f32 %v355, %v7964
      %v8094 = vmul.f32 %v356, %v7964
      %v8095 = vmul.f32 %v357, %v7964
      %v8096 = vmul.f32 %v358, %v7964
      %v8097 = vmul.f32 %v359, %v7964
      %v8098 = vmul.f32 %v360, %v7964
      %v8099 = vmul.f32 %v361, %v7964
      %v8100 = vmul.f32 %v362, %v7964
      %v8101 = vmul.f32 %v363, %v7964
      %v8102 = vmul.f32 %v364, %v7964
      %v8103 = vmul.f32 %v365, %v7964
      %v8104 = vmul.f32 %v366, %v7964
      %v8105 = vmul.f32 %v367, %v7964
      %v8106 = vmul.f32 %v368, %v7964
      %v8107 = vmul.f32 %v369, %v7964
      %v8108 = vmul.f32 %v370, %v7964
      %v8109 = vmul.f32 %v371, %v7964
      %v8110 = vmul.f32 %v372, %v7964
      %v8111 = vmul.f32 %v373, %v7964
      %v8112 = vmul.f32 %v374, %v7964
      %v8113 = vmul.f32 %v375, %v7964
      %v8114 = vmul.f32 %v376, %v7964
      %v8115 = vmul.f32 %v377, %v7964
      %v8116 = vmul.f32 %v378, %v7964
      %v8117 = vmul.f32 %v379, %v7964
      %v8118 = vmul.f32 %v380, %v7964
      %v8119 = vmul.f32 %v381, %v7964
      %v8120 = vmul.f32 %v382, %v7964
      %v8121 = vmul.f32 %v383, %v7964
      %v8122 = vmul.f32 %v384, %v7964
      %v8123 = vmul.f32 %v385, %v7964
      %v8124 = vmul.f32 %v386, %v7964
      %v8125 = vmul.f32 %v387, %v7964
      %v8126 = vmul.f32 %v388, %v7964
      %v8127 = vmul.f32 %v389, %v7964
      %v8128 = vmul.f32 %v390, %v7964
      %v8129 = vmul.f32 %v391, %v7964
      %v8130 = vmul.f32 %v392, %v7964
      %v8131 = vmul.f32 %v393, %v7964
      %v8132 = vmul.f32 %v394, %v7964
      %v8133 = vmul.f32 %v395, %v7964
      %v8134 = vmul.f32 %v396, %v7964
      %v8135 = vmul.f32 %v397, %v7964
      %v8136 = vmul.f32 %v398, %v7964
      %v8137 = vmul.f32 %v399, %v7964
      %v8138 = vmul.f32 %v400, %v7964
      %v8139 = vmul.f32 %v401, %v7964
      %v8140 = vmul.f32 %v402, %v7964
      %v8141 = vmul.f32 %v403, %v7964
      %v8142 = vmul.f32 %v404, %v7964
      %v8143 = vmul.f32 %v405, %v7964
      %v8144 = vmul.f32 %v406, %v7964
      %v8145 = vmul.f32 %v407, %v7964
      %v8146 = vmul.f32 %v408, %v7964
      %v8147 = vmul.f32 %v409, %v7964
      %v8148 = vmul.f32 %v410, %v7964
      %v8149 = vmul.f32 %v411, %v7964
      %v8150 = vmul.f32 %v412, %v7964
      %v8151 = vmul.f32 %v413, %v7964
      %v8152 = vmul.f32 %v414, %v7964
      %v8153 = vmul.f32 %v415, %v7964
      %v8154 = vmul.f32 %v416, %v7964
      %v8155 = vmul.f32 %v417, %v7964
      %v8156 = vmul.f32 %v418, %v7964
      %v8157 = vmul.f32 %v419, %v7964
      %v8158 = vmul.f32 %v420, %v7964
      %v8159 = vmul.f32 %v421, %v7964
      %v8160 = vmul.f32 %v422, %v7964
      %v8161 = vmul.f32 %v423, %v7964
      %v8162 = vmul.f32 %v424, %v7964
      %v8163 = vmul.f32 %v425, %v7964
      %v8164 = vmul.f32 %v426, %v7964
      %v8165 = vmul.f32 %v427, %v7964
      %v8166 = vmul.f32 %v428, %v7964
      %v8167 = vmul.f32 %v429, %v7964
      %v8168 = vmul.f32 %v430, %v7964
      %v8169 = vmul.f32 %v431, %v7964
      %v8170 = vmul.f32 %v432, %v7964
      %v8171 = vmul.f32 %v433, %v7964
      %v8172 = vmul.f32 %v434, %v7964
      %v8173 = vmul.f32 %v435, %v7964
      %v8174 = vmul.f32 %v436, %v7964
      %v8175 = vmul.f32 %v437, %v7964
      %v8176 = vmul.f32 %v438, %v7964
      %v8177 = vmul.f32 %v439, %v7964
      %v8178 = vmul.f32 %v440, %v7964
      %v8179 = vmul.f32 %v441, %v7964
      %v8180 = vmul.f32 %v442, %v7964
      %v8181 = vmul.f32 %v443, %v7964
      %v8182 = vmul.f32 %v444, %v7964
      %v8183 = vmul.f32 %v445, %v7964
      %v8184 = vmul.f32 %v446, %v7964
      %v8185 = vmul.f32 %v447, %v7964
      %v8186 = vmul.f32 %v448, %v7964
      %v8187 = vmul.f32 %v449, %v7964
      %v8188 = vmul.f32 %v450, %v7964
      %v8413 = vrot.slane %v7965, 2
      %v8414 = vrot.slane %v7966, 2
      %v8415 = vsel %vm2564, %v8413, %v8414
      %v8416 = vrot.slane %v7967, 2
      %v8417 = vsel %vm2564, %v8414, %v8416
      %v8418 = vrot.slane %v7968, 2
      %v8419 = vsel %vm2564, %v8416, %v8418
      %v8420 = vrot.slane %v7969, 2
      %v8421 = vsel %vm2564, %v8418, %v8420
      %v8422 = vrot.slane %v7970, 2
      %v8423 = vsel %vm2564, %v8420, %v8422
      %v8424 = vrot.slane %v7971, 2
      %v8425 = vsel %vm2564, %v8422, %v8424
      %v8426 = vrot.slane %v7972, 2
      %v8427 = vsel %vm2564, %v8424, %v8426
      %v8428 = vrot.slane %v7973, 2
      %v8429 = vrot.slane %v7974, 2
      %v8430 = vsel %vm2564, %v8428, %v8429
      %v8431 = vrot.slane %v7975, 2
      %v8432 = vsel %vm2564, %v8429, %v8431
      %v8433 = vrot.slane %v7976, 2
      %v8434 = vsel %vm2564, %v8431, %v8433
      %v8435 = vrot.slane %v7977, 2
      %v8436 = vsel %vm2564, %v8433, %v8435
      %v8437 = vrot.slane %v7978, 2
      %v8438 = vsel %vm2564, %v8435, %v8437
      %v8439 = vrot.slane %v7979, 2
      %v8440 = vsel %vm2564, %v8437, %v8439
      %v8441 = vrot.slane %v7980, 2
      %v8442 = vsel %vm2564, %v8439, %v8441
      %v8443 = vrot.slane %v7981, 2
      %v8444 = vrot.slane %v7982, 2
      %v8445 = vsel %vm2564, %v8443, %v8444
      %v8446 = vrot.slane %v7983, 2
      %v8447 = vsel %vm2564, %v8444, %v8446
      %v8448 = vrot.slane %v7984, 2
      %v8449 = vsel %vm2564, %v8446, %v8448
      %v8450 = vrot.slane %v7985, 2
      %v8451 = vsel %vm2564, %v8448, %v8450
      %v8452 = vrot.slane %v7986, 2
      %v8453 = vsel %vm2564, %v8450, %v8452
      %v8454 = vrot.slane %v7987, 2
      %v8455 = vsel %vm2564, %v8452, %v8454
      %v8456 = vrot.slane %v7988, 2
      %v8457 = vsel %vm2564, %v8454, %v8456
      %v8458 = vrot.slane %v7989, 2
      %v8459 = vrot.slane %v7990, 2
      %v8460 = vsel %vm2564, %v8458, %v8459
      %v8461 = vrot.slane %v7991, 2
      %v8462 = vsel %vm2564, %v8459, %v8461
      %v8463 = vrot.slane %v7992, 2
      %v8464 = vsel %vm2564, %v8461, %v8463
      %v8465 = vrot.slane %v7993, 2
      %v8466 = vsel %vm2564, %v8463, %v8465
      %v8467 = vrot.slane %v7994, 2
      %v8468 = vsel %vm2564, %v8465, %v8467
      %v8469 = vrot.slane %v7995, 2
      %v8470 = vsel %vm2564, %v8467, %v8469
      %v8471 = vrot.slane %v7996, 2
      %v8472 = vsel %vm2564, %v8469, %v8471
      %v8473 = vrot.slane %v7997, 2
      %v8474 = vrot.slane %v7998, 2
      %v8475 = vsel %vm2564, %v8473, %v8474
      %v8476 = vrot.slane %v7999, 2
      %v8477 = vsel %vm2564, %v8474, %v8476
      %v8478 = vrot.slane %v8000, 2
      %v8479 = vsel %vm2564, %v8476, %v8478
      %v8480 = vrot.slane %v8001, 2
      %v8481 = vsel %vm2564, %v8478, %v8480
      %v8482 = vrot.slane %v8002, 2
      %v8483 = vsel %vm2564, %v8480, %v8482
      %v8484 = vrot.slane %v8003, 2
      %v8485 = vsel %vm2564, %v8482, %v8484
      %v8486 = vrot.slane %v8004, 2
      %v8487 = vsel %vm2564, %v8484, %v8486
      %v8488 = vrot.slane %v8005, 2
      %v8489 = vrot.slane %v8006, 2
      %v8490 = vsel %vm2564, %v8488, %v8489
      %v8491 = vrot.slane %v8007, 2
      %v8492 = vsel %vm2564, %v8489, %v8491
      %v8493 = vrot.slane %v8008, 2
      %v8494 = vsel %vm2564, %v8491, %v8493
      %v8495 = vrot.slane %v8009, 2
      %v8496 = vsel %vm2564, %v8493, %v8495
      %v8497 = vrot.slane %v8010, 2
      %v8498 = vsel %vm2564, %v8495, %v8497
      %v8499 = vrot.slane %v8011, 2
      %v8500 = vsel %vm2564, %v8497, %v8499
      %v8501 = vrot.slane %v8012, 2
      %v8502 = vsel %vm2564, %v8499, %v8501
      %v8503 = vrot.slane %v8013, 2
      %v8504 = vrot.slane %v8014, 2
      %v8505 = vsel %vm2564, %v8503, %v8504
      %v8506 = vrot.slane %v8015, 2
      %v8507 = vsel %vm2564, %v8504, %v8506
      %v8508 = vrot.slane %v8016, 2
      %v8509 = vsel %vm2564, %v8506, %v8508
      %v8510 = vrot.slane %v8017, 2
      %v8511 = vsel %vm2564, %v8508, %v8510
      %v8512 = vrot.slane %v8018, 2
      %v8513 = vsel %vm2564, %v8510, %v8512
      %v8514 = vrot.slane %v8019, 2
      %v8515 = vsel %vm2564, %v8512, %v8514
      %v8516 = vrot.slane %v8020, 2
      %v8517 = vsel %vm2564, %v8514, %v8516
      %v8518 = vrot.slane %v8021, 2
      %v8519 = vrot.slane %v8022, 2
      %v8520 = vsel %vm2564, %v8518, %v8519
      %v8521 = vrot.slane %v8023, 2
      %v8522 = vsel %vm2564, %v8519, %v8521
      %v8523 = vrot.slane %v8024, 2
      %v8524 = vsel %vm2564, %v8521, %v8523
      %v8525 = vrot.slane %v8025, 2
      %v8526 = vsel %vm2564, %v8523, %v8525
      %v8527 = vrot.slane %v8026, 2
      %v8528 = vsel %vm2564, %v8525, %v8527
      %v8529 = vrot.slane %v8027, 2
      %v8530 = vsel %vm2564, %v8527, %v8529
      %v8531 = vrot.slane %v8028, 2
      %v8532 = vsel %vm2564, %v8529, %v8531
      %v8533 = vrot.slane %v8029, 2
      %v8534 = vrot.slane %v8030, 2
      %v8535 = vsel %vm2564, %v8533, %v8534
      %v8536 = vrot.slane %v8031, 2
      %v8537 = vsel %vm2564, %v8534, %v8536
      %v8538 = vrot.slane %v8032, 2
      %v8539 = vsel %vm2564, %v8536, %v8538
      %v8540 = vrot.slane %v8033, 2
      %v8541 = vsel %vm2564, %v8538, %v8540
      %v8542 = vrot.slane %v8034, 2
      %v8543 = vsel %vm2564, %v8540, %v8542
      %v8544 = vrot.slane %v8035, 2
      %v8545 = vsel %vm2564, %v8542, %v8544
      %v8546 = vrot.slane %v8036, 2
      %v8547 = vsel %vm2564, %v8544, %v8546
      %v8548 = vrot.slane %v8037, 2
      %v8549 = vrot.slane %v8038, 2
      %v8550 = vsel %vm2564, %v8548, %v8549
      %v8551 = vrot.slane %v8039, 2
      %v8552 = vsel %vm2564, %v8549, %v8551
      %v8553 = vrot.slane %v8040, 2
      %v8554 = vsel %vm2564, %v8551, %v8553
      %v8555 = vrot.slane %v8041, 2
      %v8556 = vsel %vm2564, %v8553, %v8555
      %v8557 = vrot.slane %v8042, 2
      %v8558 = vsel %vm2564, %v8555, %v8557
      %v8559 = vrot.slane %v8043, 2
      %v8560 = vsel %vm2564, %v8557, %v8559
      %v8561 = vrot.slane %v8044, 2
      %v8562 = vsel %vm2564, %v8559, %v8561
      %v8563 = vrot.slane %v8045, 2
      %v8564 = vrot.slane %v8046, 2
      %v8565 = vsel %vm2564, %v8563, %v8564
      %v8566 = vrot.slane %v8047, 2
      %v8567 = vsel %vm2564, %v8564, %v8566
      %v8568 = vrot.slane %v8048, 2
      %v8569 = vsel %vm2564, %v8566, %v8568
      %v8570 = vrot.slane %v8049, 2
      %v8571 = vsel %vm2564, %v8568, %v8570
      %v8572 = vrot.slane %v8050, 2
      %v8573 = vsel %vm2564, %v8570, %v8572
      %v8574 = vrot.slane %v8051, 2
      %v8575 = vsel %vm2564, %v8572, %v8574
      %v8576 = vrot.slane %v8052, 2
      %v8577 = vsel %vm2564, %v8574, %v8576
      %v8578 = vrot.slane %v8053, 2
      %v8579 = vrot.slane %v8054, 2
      %v8580 = vsel %vm2564, %v8578, %v8579
      %v8581 = vrot.slane %v8055, 2
      %v8582 = vsel %vm2564, %v8579, %v8581
      %v8583 = vrot.slane %v8056, 2
      %v8584 = vsel %vm2564, %v8581, %v8583
      %v8585 = vrot.slane %v8057, 2
      %v8586 = vsel %vm2564, %v8583, %v8585
      %v8587 = vrot.slane %v8058, 2
      %v8588 = vsel %vm2564, %v8585, %v8587
      %v8589 = vrot.slane %v8059, 2
      %v8590 = vsel %vm2564, %v8587, %v8589
      %v8591 = vrot.slane %v8060, 2
      %v8592 = vsel %vm2564, %v8589, %v8591
      %v8593 = vrot.slane %v8061, 2
      %v8594 = vrot.slane %v8062, 2
      %v8595 = vsel %vm2564, %v8593, %v8594
      %v8596 = vrot.slane %v8063, 2
      %v8597 = vsel %vm2564, %v8594, %v8596
      %v8598 = vrot.slane %v8064, 2
      %v8599 = vsel %vm2564, %v8596, %v8598
      %v8600 = vrot.slane %v8065, 2
      %v8601 = vsel %vm2564, %v8598, %v8600
      %v8602 = vrot.slane %v8066, 2
      %v8603 = vsel %vm2564, %v8600, %v8602
      %v8604 = vrot.slane %v8067, 2
      %v8605 = vsel %vm2564, %v8602, %v8604
      %v8606 = vrot.slane %v8068, 2
      %v8607 = vsel %vm2564, %v8604, %v8606
      %v8608 = vrot.slane %v8069, 2
      %v8609 = vrot.slane %v8070, 2
      %v8610 = vsel %vm2564, %v8608, %v8609
      %v8611 = vrot.slane %v8071, 2
      %v8612 = vsel %vm2564, %v8609, %v8611
      %v8613 = vrot.slane %v8072, 2
      %v8614 = vsel %vm2564, %v8611, %v8613
      %v8615 = vrot.slane %v8073, 2
      %v8616 = vsel %vm2564, %v8613, %v8615
      %v8617 = vrot.slane %v8074, 2
      %v8618 = vsel %vm2564, %v8615, %v8617
      %v8619 = vrot.slane %v8075, 2
      %v8620 = vsel %vm2564, %v8617, %v8619
      %v8621 = vrot.slane %v8076, 2
      %v8622 = vsel %vm2564, %v8619, %v8621
      %v8623 = vrot.slane %v8077, 2
      %v8624 = vrot.slane %v8078, 2
      %v8625 = vsel %vm2564, %v8623, %v8624
      %v8626 = vrot.slane %v8079, 2
      %v8627 = vsel %vm2564, %v8624, %v8626
      %v8628 = vrot.slane %v8080, 2
      %v8629 = vsel %vm2564, %v8626, %v8628
      %v8630 = vrot.slane %v8081, 2
      %v8631 = vsel %vm2564, %v8628, %v8630
      %v8632 = vrot.slane %v8082, 2
      %v8633 = vsel %vm2564, %v8630, %v8632
      %v8634 = vrot.slane %v8083, 2
      %v8635 = vsel %vm2564, %v8632, %v8634
      %v8636 = vrot.slane %v8084, 2
      %v8637 = vsel %vm2564, %v8634, %v8636
      %v8638 = vrot.slane %v8085, 2
      %v8639 = vrot.slane %v8086, 2
      %v8640 = vsel %vm2564, %v8638, %v8639
      %v8641 = vrot.slane %v8087, 2
      %v8642 = vsel %vm2564, %v8639, %v8641
      %v8643 = vrot.slane %v8088, 2
      %v8644 = vsel %vm2564, %v8641, %v8643
      %v8645 = vrot.slane %v8089, 2
      %v8646 = vsel %vm2564, %v8643, %v8645
      %v8647 = vrot.slane %v8090, 2
      %v8648 = vsel %vm2564, %v8645, %v8647
      %v8649 = vrot.slane %v8091, 2
      %v8650 = vsel %vm2564, %v8647, %v8649
      %v8651 = vrot.slane %v8092, 2
      %v8652 = vsel %vm2564, %v8649, %v8651
      %v8653 = vrot.slane %v8093, 2
      %v8654 = vrot.slane %v8094, 2
      %v8655 = vsel %vm2564, %v8653, %v8654
      %v8656 = vrot.slane %v8095, 2
      %v8657 = vsel %vm2564, %v8654, %v8656
      %v8658 = vrot.slane %v8096, 2
      %v8659 = vsel %vm2564, %v8656, %v8658
      %v8660 = vrot.slane %v8097, 2
      %v8661 = vsel %vm2564, %v8658, %v8660
      %v8662 = vrot.slane %v8098, 2
      %v8663 = vsel %vm2564, %v8660, %v8662
      %v8664 = vrot.slane %v8099, 2
      %v8665 = vsel %vm2564, %v8662, %v8664
      %v8666 = vrot.slane %v8100, 2
      %v8667 = vsel %vm2564, %v8664, %v8666
      %v8668 = vrot.slane %v8101, 2
      %v8669 = vrot.slane %v8102, 2
      %v8670 = vsel %vm2564, %v8668, %v8669
      %v8671 = vrot.slane %v8103, 2
      %v8672 = vsel %vm2564, %v8669, %v8671
      %v8673 = vrot.slane %v8104, 2
      %v8674 = vsel %vm2564, %v8671, %v8673
      %v8675 = vrot.slane %v8105, 2
      %v8676 = vsel %vm2564, %v8673, %v8675
      %v8677 = vrot.slane %v8106, 2
      %v8678 = vsel %vm2564, %v8675, %v8677
      %v8679 = vrot.slane %v8107, 2
      %v8680 = vsel %vm2564, %v8677, %v8679
      %v8681 = vrot.slane %v8108, 2
      %v8682 = vsel %vm2564, %v8679, %v8681
      %v8683 = vrot.slane %v8109, 2
      %v8684 = vrot.slane %v8110, 2
      %v8685 = vsel %vm2564, %v8683, %v8684
      %v8686 = vrot.slane %v8111, 2
      %v8687 = vsel %vm2564, %v8684, %v8686
      %v8688 = vrot.slane %v8112, 2
      %v8689 = vsel %vm2564, %v8686, %v8688
      %v8690 = vrot.slane %v8113, 2
      %v8691 = vsel %vm2564, %v8688, %v8690
      %v8692 = vrot.slane %v8114, 2
      %v8693 = vsel %vm2564, %v8690, %v8692
      %v8694 = vrot.slane %v8115, 2
      %v8695 = vsel %vm2564, %v8692, %v8694
      %v8696 = vrot.slane %v8116, 2
      %v8697 = vsel %vm2564, %v8694, %v8696
      %v8698 = vrot.slane %v8117, 2
      %v8699 = vrot.slane %v8118, 2
      %v8700 = vsel %vm2564, %v8698, %v8699
      %v8701 = vrot.slane %v8119, 2
      %v8702 = vsel %vm2564, %v8699, %v8701
      %v8703 = vrot.slane %v8120, 2
      %v8704 = vsel %vm2564, %v8701, %v8703
      %v8705 = vrot.slane %v8121, 2
      %v8706 = vsel %vm2564, %v8703, %v8705
      %v8707 = vrot.slane %v8122, 2
      %v8708 = vsel %vm2564, %v8705, %v8707
      %v8709 = vrot.slane %v8123, 2
      %v8710 = vsel %vm2564, %v8707, %v8709
      %v8711 = vrot.slane %v8124, 2
      %v8712 = vsel %vm2564, %v8709, %v8711
      %v8713 = vrot.slane %v8125, 2
      %v8714 = vrot.slane %v8126, 2
      %v8715 = vsel %vm2564, %v8713, %v8714
      %v8716 = vrot.slane %v8127, 2
      %v8717 = vsel %vm2564, %v8714, %v8716
      %v8718 = vrot.slane %v8128, 2
      %v8719 = vsel %vm2564, %v8716, %v8718
      %v8720 = vrot.slane %v8129, 2
      %v8721 = vsel %vm2564, %v8718, %v8720
      %v8722 = vrot.slane %v8130, 2
      %v8723 = vsel %vm2564, %v8720, %v8722
      %v8724 = vrot.slane %v8131, 2
      %v8725 = vsel %vm2564, %v8722, %v8724
      %v8726 = vrot.slane %v8132, 2
      %v8727 = vsel %vm2564, %v8724, %v8726
      %v8728 = vrot.slane %v8133, 2
      %v8729 = vrot.slane %v8134, 2
      %v8730 = vsel %vm2564, %v8728, %v8729
      %v8731 = vrot.slane %v8135, 2
      %v8732 = vsel %vm2564, %v8729, %v8731
      %v8733 = vrot.slane %v8136, 2
      %v8734 = vsel %vm2564, %v8731, %v8733
      %v8735 = vrot.slane %v8137, 2
      %v8736 = vsel %vm2564, %v8733, %v8735
      %v8737 = vrot.slane %v8138, 2
      %v8738 = vsel %vm2564, %v8735, %v8737
      %v8739 = vrot.slane %v8139, 2
      %v8740 = vsel %vm2564, %v8737, %v8739
      %v8741 = vrot.slane %v8140, 2
      %v8742 = vsel %vm2564, %v8739, %v8741
      %v8743 = vrot.slane %v8141, 2
      %v8744 = vrot.slane %v8142, 2
      %v8745 = vsel %vm2564, %v8743, %v8744
      %v8746 = vrot.slane %v8143, 2
      %v8747 = vsel %vm2564, %v8744, %v8746
      %v8748 = vrot.slane %v8144, 2
      %v8749 = vsel %vm2564, %v8746, %v8748
      %v8750 = vrot.slane %v8145, 2
      %v8751 = vsel %vm2564, %v8748, %v8750
      %v8752 = vrot.slane %v8146, 2
      %v8753 = vsel %vm2564, %v8750, %v8752
      %v8754 = vrot.slane %v8147, 2
      %v8755 = vsel %vm2564, %v8752, %v8754
      %v8756 = vrot.slane %v8148, 2
      %v8757 = vsel %vm2564, %v8754, %v8756
      %v8758 = vrot.slane %v8149, 2
      %v8759 = vrot.slane %v8150, 2
      %v8760 = vsel %vm2564, %v8758, %v8759
      %v8761 = vrot.slane %v8151, 2
      %v8762 = vsel %vm2564, %v8759, %v8761
      %v8763 = vrot.slane %v8152, 2
      %v8764 = vsel %vm2564, %v8761, %v8763
      %v8765 = vrot.slane %v8153, 2
      %v8766 = vsel %vm2564, %v8763, %v8765
      %v8767 = vrot.slane %v8154, 2
      %v8768 = vsel %vm2564, %v8765, %v8767
      %v8769 = vrot.slane %v8155, 2
      %v8770 = vsel %vm2564, %v8767, %v8769
      %v8771 = vrot.slane %v8156, 2
      %v8772 = vsel %vm2564, %v8769, %v8771
      %v8773 = vrot.slane %v8157, 2
      %v8774 = vrot.slane %v8158, 2
      %v8775 = vsel %vm2564, %v8773, %v8774
      %v8776 = vrot.slane %v8159, 2
      %v8777 = vsel %vm2564, %v8774, %v8776
      %v8778 = vrot.slane %v8160, 2
      %v8779 = vsel %vm2564, %v8776, %v8778
      %v8780 = vrot.slane %v8161, 2
      %v8781 = vsel %vm2564, %v8778, %v8780
      %v8782 = vrot.slane %v8162, 2
      %v8783 = vsel %vm2564, %v8780, %v8782
      %v8784 = vrot.slane %v8163, 2
      %v8785 = vsel %vm2564, %v8782, %v8784
      %v8786 = vrot.slane %v8164, 2
      %v8787 = vsel %vm2564, %v8784, %v8786
      %v8788 = vrot.slane %v8165, 2
      %v8789 = vrot.slane %v8166, 2
      %v8790 = vsel %vm2564, %v8788, %v8789
      %v8791 = vrot.slane %v8167, 2
      %v8792 = vsel %vm2564, %v8789, %v8791
      %v8793 = vrot.slane %v8168, 2
      %v8794 = vsel %vm2564, %v8791, %v8793
      %v8795 = vrot.slane %v8169, 2
      %v8796 = vsel %vm2564, %v8793, %v8795
      %v8797 = vrot.slane %v8170, 2
      %v8798 = vsel %vm2564, %v8795, %v8797
      %v8799 = vrot.slane %v8171, 2
      %v8800 = vsel %vm2564, %v8797, %v8799
      %v8801 = vrot.slane %v8172, 2
      %v8802 = vsel %vm2564, %v8799, %v8801
      %v8803 = vrot.slane %v8173, 2
      %v8804 = vrot.slane %v8174, 2
      %v8805 = vsel %vm2564, %v8803, %v8804
      %v8806 = vrot.slane %v8175, 2
      %v8807 = vsel %vm2564, %v8804, %v8806
      %v8808 = vrot.slane %v8176, 2
      %v8809 = vsel %vm2564, %v8806, %v8808
      %v8810 = vrot.slane %v8177, 2
      %v8811 = vsel %vm2564, %v8808, %v8810
      %v8812 = vrot.slane %v8178, 2
      %v8813 = vsel %vm2564, %v8810, %v8812
      %v8814 = vrot.slane %v8179, 2
      %v8815 = vsel %vm2564, %v8812, %v8814
      %v8816 = vrot.slane %v8180, 2
      %v8817 = vsel %vm2564, %v8814, %v8816
      %v8818 = vrot.slane %v8181, 2
      %v8819 = vrot.slane %v8182, 2
      %v8820 = vsel %vm2564, %v8818, %v8819
      %v8821 = vrot.slane %v8183, 2
      %v8822 = vsel %vm2564, %v8819, %v8821
      %v8823 = vrot.slane %v8184, 2
      %v8824 = vsel %vm2564, %v8821, %v8823
      %v8825 = vrot.slane %v8185, 2
      %v8826 = vsel %vm2564, %v8823, %v8825
      %v8827 = vrot.slane %v8186, 2
      %v8828 = vsel %vm2564, %v8825, %v8827
      %v8829 = vrot.slane %v8187, 2
      %v8830 = vsel %vm2564, %v8827, %v8829
      %v8831 = vrot.slane %v8188, 2
      %v8832 = vsel %vm2564, %v8829, %v8831
      %v9029 = vadd.f32 %v7765, %v8415
      %v9030 = vadd.f32 %v7766, %v8417
      %v9031 = vadd.f32 %v7767, %v8419
      %v9032 = vadd.f32 %v7768, %v8421
      %v9033 = vadd.f32 %v7769, %v8423
      %v9034 = vadd.f32 %v7770, %v8425
      %v9035 = vadd.f32 %v7771, %v8427
      %v9036 = vadd.f32 %v7772, %v8430
      %v9037 = vadd.f32 %v7773, %v8432
      %v9038 = vadd.f32 %v7774, %v8434
      %v9039 = vadd.f32 %v7775, %v8436
      %v9040 = vadd.f32 %v7776, %v8438
      %v9041 = vadd.f32 %v7777, %v8440
      %v9042 = vadd.f32 %v7778, %v8442
      %v9043 = vadd.f32 %v7779, %v8445
      %v9044 = vadd.f32 %v7780, %v8447
      %v9045 = vadd.f32 %v7781, %v8449
      %v9046 = vadd.f32 %v7782, %v8451
      %v9047 = vadd.f32 %v7783, %v8453
      %v9048 = vadd.f32 %v7784, %v8455
      %v9049 = vadd.f32 %v7785, %v8457
      %v9050 = vadd.f32 %v7786, %v8460
      %v9051 = vadd.f32 %v7787, %v8462
      %v9052 = vadd.f32 %v7788, %v8464
      %v9053 = vadd.f32 %v7789, %v8466
      %v9054 = vadd.f32 %v7790, %v8468
      %v9055 = vadd.f32 %v7791, %v8470
      %v9056 = vadd.f32 %v7792, %v8472
      %v9057 = vadd.f32 %v7793, %v8475
      %v9058 = vadd.f32 %v7794, %v8477
      %v9059 = vadd.f32 %v7795, %v8479
      %v9060 = vadd.f32 %v7796, %v8481
      %v9061 = vadd.f32 %v7797, %v8483
      %v9062 = vadd.f32 %v7798, %v8485
      %v9063 = vadd.f32 %v7799, %v8487
      %v9064 = vadd.f32 %v7800, %v8490
      %v9065 = vadd.f32 %v7801, %v8492
      %v9066 = vadd.f32 %v7802, %v8494
      %v9067 = vadd.f32 %v7803, %v8496
      %v9068 = vadd.f32 %v7804, %v8498
      %v9069 = vadd.f32 %v7805, %v8500
      %v9070 = vadd.f32 %v7806, %v8502
      %v9071 = vadd.f32 %v7807, %v8505
      %v9072 = vadd.f32 %v7808, %v8507
      %v9073 = vadd.f32 %v7809, %v8509
      %v9074 = vadd.f32 %v7810, %v8511
      %v9075 = vadd.f32 %v7811, %v8513
      %v9076 = vadd.f32 %v7812, %v8515
      %v9077 = vadd.f32 %v7813, %v8517
      %v9078 = vadd.f32 %v7814, %v8520
      %v9079 = vadd.f32 %v7815, %v8522
      %v9080 = vadd.f32 %v7816, %v8524
      %v9081 = vadd.f32 %v7817, %v8526
      %v9082 = vadd.f32 %v7818, %v8528
      %v9083 = vadd.f32 %v7819, %v8530
      %v9084 = vadd.f32 %v7820, %v8532
      %v9085 = vadd.f32 %v7821, %v8535
      %v9086 = vadd.f32 %v7822, %v8537
      %v9087 = vadd.f32 %v7823, %v8539
      %v9088 = vadd.f32 %v7824, %v8541
      %v9089 = vadd.f32 %v7825, %v8543
      %v9090 = vadd.f32 %v7826, %v8545
      %v9091 = vadd.f32 %v7827, %v8547
      %v9092 = vadd.f32 %v7828, %v8550
      %v9093 = vadd.f32 %v7829, %v8552
      %v9094 = vadd.f32 %v7830, %v8554
      %v9095 = vadd.f32 %v7831, %v8556
      %v9096 = vadd.f32 %v7832, %v8558
      %v9097 = vadd.f32 %v7833, %v8560
      %v9098 = vadd.f32 %v7834, %v8562
      %v9099 = vadd.f32 %v7835, %v8565
      %v9100 = vadd.f32 %v7836, %v8567
      %v9101 = vadd.f32 %v7837, %v8569
      %v9102 = vadd.f32 %v7838, %v8571
      %v9103 = vadd.f32 %v7839, %v8573
      %v9104 = vadd.f32 %v7840, %v8575
      %v9105 = vadd.f32 %v7841, %v8577
      %v9106 = vadd.f32 %v7842, %v8580
      %v9107 = vadd.f32 %v7843, %v8582
      %v9108 = vadd.f32 %v7844, %v8584
      %v9109 = vadd.f32 %v7845, %v8586
      %v9110 = vadd.f32 %v7846, %v8588
      %v9111 = vadd.f32 %v7847, %v8590
      %v9112 = vadd.f32 %v7848, %v8592
      %v9113 = vadd.f32 %v7849, %v8595
      %v9114 = vadd.f32 %v7850, %v8597
      %v9115 = vadd.f32 %v7851, %v8599
      %v9116 = vadd.f32 %v7852, %v8601
      %v9117 = vadd.f32 %v7853, %v8603
      %v9118 = vadd.f32 %v7854, %v8605
      %v9119 = vadd.f32 %v7855, %v8607
      %v9120 = vadd.f32 %v7856, %v8610
      %v9121 = vadd.f32 %v7857, %v8612
      %v9122 = vadd.f32 %v7858, %v8614
      %v9123 = vadd.f32 %v7859, %v8616
      %v9124 = vadd.f32 %v7860, %v8618
      %v9125 = vadd.f32 %v7861, %v8620
      %v9126 = vadd.f32 %v7862, %v8622
      %v9127 = vadd.f32 %v7863, %v8625
      %v9128 = vadd.f32 %v7864, %v8627
      %v9129 = vadd.f32 %v7865, %v8629
      %v9130 = vadd.f32 %v7866, %v8631
      %v9131 = vadd.f32 %v7867, %v8633
      %v9132 = vadd.f32 %v7868, %v8635
      %v9133 = vadd.f32 %v7869, %v8637
      %v9134 = vadd.f32 %v7870, %v8640
      %v9135 = vadd.f32 %v7871, %v8642
      %v9136 = vadd.f32 %v7872, %v8644
      %v9137 = vadd.f32 %v7873, %v8646
      %v9138 = vadd.f32 %v7874, %v8648
      %v9139 = vadd.f32 %v7875, %v8650
      %v9140 = vadd.f32 %v7876, %v8652
      %v9141 = vadd.f32 %v7877, %v8655
      %v9142 = vadd.f32 %v7878, %v8657
      %v9143 = vadd.f32 %v7879, %v8659
      %v9144 = vadd.f32 %v7880, %v8661
      %v9145 = vadd.f32 %v7881, %v8663
      %v9146 = vadd.f32 %v7882, %v8665
      %v9147 = vadd.f32 %v7883, %v8667
      %v9148 = vadd.f32 %v7884, %v8670
      %v9149 = vadd.f32 %v7885, %v8672
      %v9150 = vadd.f32 %v7886, %v8674
      %v9151 = vadd.f32 %v7887, %v8676
      %v9152 = vadd.f32 %v7888, %v8678
      %v9153 = vadd.f32 %v7889, %v8680
      %v9154 = vadd.f32 %v7890, %v8682
      %v9155 = vadd.f32 %v7891, %v8685
      %v9156 = vadd.f32 %v7892, %v8687
      %v9157 = vadd.f32 %v7893, %v8689
      %v9158 = vadd.f32 %v7894, %v8691
      %v9159 = vadd.f32 %v7895, %v8693
      %v9160 = vadd.f32 %v7896, %v8695
      %v9161 = vadd.f32 %v7897, %v8697
      %v9162 = vadd.f32 %v7898, %v8700
      %v9163 = vadd.f32 %v7899, %v8702
      %v9164 = vadd.f32 %v7900, %v8704
      %v9165 = vadd.f32 %v7901, %v8706
      %v9166 = vadd.f32 %v7902, %v8708
      %v9167 = vadd.f32 %v7903, %v8710
      %v9168 = vadd.f32 %v7904, %v8712
      %v9169 = vadd.f32 %v7905, %v8715
      %v9170 = vadd.f32 %v7906, %v8717
      %v9171 = vadd.f32 %v7907, %v8719
      %v9172 = vadd.f32 %v7908, %v8721
      %v9173 = vadd.f32 %v7909, %v8723
      %v9174 = vadd.f32 %v7910, %v8725
      %v9175 = vadd.f32 %v7911, %v8727
      %v9176 = vadd.f32 %v7912, %v8730
      %v9177 = vadd.f32 %v7913, %v8732
      %v9178 = vadd.f32 %v7914, %v8734
      %v9179 = vadd.f32 %v7915, %v8736
      %v9180 = vadd.f32 %v7916, %v8738
      %v9181 = vadd.f32 %v7917, %v8740
      %v9182 = vadd.f32 %v7918, %v8742
      %v9183 = vadd.f32 %v7919, %v8745
      %v9184 = vadd.f32 %v7920, %v8747
      %v9185 = vadd.f32 %v7921, %v8749
      %v9186 = vadd.f32 %v7922, %v8751
      %v9187 = vadd.f32 %v7923, %v8753
      %v9188 = vadd.f32 %v7924, %v8755
      %v9189 = vadd.f32 %v7925, %v8757
      %v9190 = vadd.f32 %v7926, %v8760
      %v9191 = vadd.f32 %v7927, %v8762
      %v9192 = vadd.f32 %v7928, %v8764
      %v9193 = vadd.f32 %v7929, %v8766
      %v9194 = vadd.f32 %v7930, %v8768
      %v9195 = vadd.f32 %v7931, %v8770
      %v9196 = vadd.f32 %v7932, %v8772
      %v9197 = vadd.f32 %v7933, %v8775
      %v9198 = vadd.f32 %v7934, %v8777
      %v9199 = vadd.f32 %v7935, %v8779
      %v9200 = vadd.f32 %v7936, %v8781
      %v9201 = vadd.f32 %v7937, %v8783
      %v9202 = vadd.f32 %v7938, %v8785
      %v9203 = vadd.f32 %v7939, %v8787
      %v9204 = vadd.f32 %v7940, %v8790
      %v9205 = vadd.f32 %v7941, %v8792
      %v9206 = vadd.f32 %v7942, %v8794
      %v9207 = vadd.f32 %v7943, %v8796
      %v9208 = vadd.f32 %v7944, %v8798
      %v9209 = vadd.f32 %v7945, %v8800
      %v9210 = vadd.f32 %v7946, %v8802
      %v9211 = vadd.f32 %v7947, %v8805
      %v9212 = vadd.f32 %v7948, %v8807
      %v9213 = vadd.f32 %v7949, %v8809
      %v9214 = vadd.f32 %v7950, %v8811
      %v9215 = vadd.f32 %v7951, %v8813
      %v9216 = vadd.f32 %v7952, %v8815
      %v9217 = vadd.f32 %v7953, %v8817
      %v9218 = vadd.f32 %v7954, %v8820
      %v9219 = vadd.f32 %v7955, %v8822
      %v9220 = vadd.f32 %v7956, %v8824
      %v9221 = vadd.f32 %v7957, %v8826
      %v9222 = vadd.f32 %v7958, %v8828
      %v9223 = vadd.f32 %v7959, %v8830
      %v9224 = vadd.f32 %v7960, %v8832
      // Predicated region
      $region41: #{dwconv_bn.1} parent=35 // pred_check
        %p9225 = pneg %p199
      $region42: #{dwconv_bn.1} parent=35 // pred_check_branch
        %9227 = sbr.rel (%p9225) target = $region44
      $region43: #{dwconv_bn.1} parent=35 // pred_region
        %v9228 = vld [vmem:[#allocation2] sm:$0x1]
        %v9229 = vadd.f32 %v9029, %v9030
        %v9230 = vadd.f32 %v9229, %v9031
        %v9231 = vadd.f32 %v9230, %v9032
        %v9232 = vadd.f32 %v9231, %v9033
        %v9233 = vadd.f32 %v9232, %v9034
        %v9234 = vadd.f32 %v9233, %v9035
        %v9235 = vadd.f32 %v9234, %v9036
        %v9236 = vadd.f32 %v9235, %v9037
        %v9237 = vadd.f32 %v9236, %v9038
        %v9238 = vadd.f32 %v9237, %v9039
        %v9239 = vadd.f32 %v9238, %v9040
        %v9240 = vadd.f32 %v9239, %v9041
        %v9241 = vadd.f32 %v9240, %v9042
        %v9242 = vadd.f32 %v9241, %v9043
        %v9243 = vadd.f32 %v9242, %v9044
        %v9244 = vadd.f32 %v9243, %v9045
        %v9245 = vadd.f32 %v9244, %v9046
        %v9246 = vadd.f32 %v9245, %v9047
        %v9247 = vadd.f32 %v9246, %v9048
        %v9248 = vadd.f32 %v9247, %v9049
        %v9249 = vadd.f32 %v9248, %v9050
        %v9250 = vadd.f32 %v9249, %v9051
        %v9251 = vadd.f32 %v9250, %v9052
        %v9252 = vadd.f32 %v9251, %v9053
        %v9253 = vadd.f32 %v9252, %v9054
        %v9254 = vadd.f32 %v9253, %v9055
        %v9255 = vadd.f32 %v9254, %v9056
        %v9256 = vadd.f32 %v9255, %v9057
        %v9257 = vadd.f32 %v9256, %v9058
        %v9258 = vadd.f32 %v9257, %v9059
        %v9259 = vadd.f32 %v9258, %v9060
        %v9260 = vadd.f32 %v9259, %v9061
        %v9261 = vadd.f32 %v9260, %v9062
        %v9262 = vadd.f32 %v9261, %v9063
        %v9263 = vadd.f32 %v9262, %v9064
        %v9264 = vadd.f32 %v9263, %v9065
        %v9265 = vadd.f32 %v9264, %v9066
        %v9266 = vadd.f32 %v9265, %v9067
        %v9267 = vadd.f32 %v9266, %v9068
        %v9268 = vadd.f32 %v9267, %v9069
        %v9269 = vadd.f32 %v9268, %v9070
        %v9270 = vadd.f32 %v9269, %v9071
        %v9271 = vadd.f32 %v9270, %v9072
        %v9272 = vadd.f32 %v9271, %v9073
        %v9273 = vadd.f32 %v9272, %v9074
        %v9274 = vadd.f32 %v9273, %v9075
        %v9275 = vadd.f32 %v9274, %v9076
        %v9276 = vadd.f32 %v9275, %v9077
        %v9277 = vadd.f32 %v9276, %v9078
        %v9278 = vadd.f32 %v9277, %v9079
        %v9279 = vadd.f32 %v9278, %v9080
        %v9280 = vadd.f32 %v9279, %v9081
        %v9281 = vadd.f32 %v9280, %v9082
        %v9282 = vadd.f32 %v9281, %v9083
        %v9283 = vadd.f32 %v9282, %v9084
        %v9284 = vadd.f32 %v9283, %v9085
        %v9285 = vadd.f32 %v9284, %v9086
        %v9286 = vadd.f32 %v9285, %v9087
        %v9287 = vadd.f32 %v9286, %v9088
        %v9288 = vadd.f32 %v9287, %v9089
        %v9289 = vadd.f32 %v9288, %v9090
        %v9290 = vadd.f32 %v9289, %v9091
        %v9291 = vadd.f32 %v9290, %v9092
        %v9292 = vadd.f32 %v9291, %v9093
        %v9293 = vadd.f32 %v9292, %v9094
        %v9294 = vadd.f32 %v9293, %v9095
        %v9295 = vadd.f32 %v9294, %v9096
        %v9296 = vadd.f32 %v9295, %v9097
        %v9297 = vadd.f32 %v9296, %v9098
        %v9298 = vadd.f32 %v9297, %v9099
        %v9299 = vadd.f32 %v9298, %v9100
        %v9300 = vadd.f32 %v9299, %v9101
        %v9301 = vadd.f32 %v9300, %v9102
        %v9302 = vadd.f32 %v9301, %v9103
        %v9303 = vadd.f32 %v9302, %v9104
        %v9304 = vadd.f32 %v9303, %v9105
        %v9305 = vadd.f32 %v9304, %v9106
        %v9306 = vadd.f32 %v9305, %v9107
        %v9307 = vadd.f32 %v9306, %v9108
        %v9308 = vadd.f32 %v9307, %v9109
        %v9309 = vadd.f32 %v9308, %v9110
        %v9310 = vadd.f32 %v9309, %v9111
        %v9311 = vadd.f32 %v9310, %v9112
        %v9312 = vadd.f32 %v9311, %v9113
        %v9313 = vadd.f32 %v9312, %v9114
        %v9314 = vadd.f32 %v9313, %v9115
        %v9315 = vadd.f32 %v9314, %v9116
        %v9316 = vadd.f32 %v9315, %v9117
        %v9317 = vadd.f32 %v9316, %v9118
        %v9318 = vadd.f32 %v9317, %v9119
        %v9319 = vadd.f32 %v9318, %v9120
        %v9320 = vadd.f32 %v9319, %v9121
        %v9321 = vadd.f32 %v9320, %v9122
        %v9322 = vadd.f32 %v9321, %v9123
        %v9323 = vadd.f32 %v9322, %v9124
        %v9324 = vadd.f32 %v9323, %v9125
        %v9325 = vadd.f32 %v9324, %v9126
        %v9326 = vadd.f32 %v9325, %v9127
        %v9327 = vadd.f32 %v9326, %v9128
        %v9328 = vadd.f32 %v9327, %v9129
        %v9329 = vadd.f32 %v9328, %v9130
        %v9330 = vadd.f32 %v9329, %v9131
        %v9331 = vadd.f32 %v9330, %v9132
        %v9332 = vadd.f32 %v9331, %v9133
        %v9333 = vadd.f32 %v9332, %v9134
        %v9334 = vadd.f32 %v9333, %v9135
        %v9335 = vadd.f32 %v9334, %v9136
        %v9336 = vadd.f32 %v9335, %v9137
        %v9337 = vadd.f32 %v9336, %v9138
        %v9338 = vadd.f32 %v9337, %v9139
        %v9339 = vadd.f32 %v9338, %v9140
        %v9340 = vadd.f32 %v9339, %v9141
        %v9341 = vadd.f32 %v9340, %v9142
        %v9342 = vadd.f32 %v9341, %v9143
        %v9343 = vadd.f32 %v9342, %v9144
        %v9344 = vadd.f32 %v9343, %v9145
        %v9345 = vadd.f32 %v9344, %v9146
        %v9346 = vadd.f32 %v9345, %v9147
        %v9347 = vadd.f32 %v9346, %v9148
        %v9348 = vadd.f32 %v9347, %v9149
        %v9349 = vadd.f32 %v9348, %v9150
        %v9350 = vadd.f32 %v9349, %v9151
        %v9351 = vadd.f32 %v9350, %v9152
        %v9352 = vadd.f32 %v9351, %v9153
        %v9353 = vadd.f32 %v9352, %v9154
        %v9354 = vadd.f32 %v9353, %v9155
        %v9355 = vadd.f32 %v9354, %v9156
        %v9356 = vadd.f32 %v9355, %v9157
        %v9357 = vadd.f32 %v9356, %v9158
        %v9358 = vadd.f32 %v9357, %v9159
        %v9359 = vadd.f32 %v9358, %v9160
        %v9360 = vadd.f32 %v9359, %v9161
        %v9361 = vadd.f32 %v9360, %v9162
        %v9362 = vadd.f32 %v9361, %v9163
        %v9363 = vadd.f32 %v9362, %v9164
        %v9364 = vadd.f32 %v9363, %v9165
        %v9365 = vadd.f32 %v9364, %v9166
        %v9366 = vadd.f32 %v9365, %v9167
        %v9367 = vadd.f32 %v9366, %v9168
        %v9368 = vadd.f32 %v9367, %v9169
        %v9369 = vadd.f32 %v9368, %v9170
        %v9370 = vadd.f32 %v9369, %v9171
        %v9371 = vadd.f32 %v9370, %v9172
        %v9372 = vadd.f32 %v9371, %v9173
        %v9373 = vadd.f32 %v9372, %v9174
        %v9374 = vadd.f32 %v9373, %v9175
        %v9375 = vadd.f32 %v9374, %v9176
        %v9376 = vadd.f32 %v9375, %v9177
        %v9377 = vadd.f32 %v9376, %v9178
        %v9378 = vadd.f32 %v9377, %v9179
        %v9379 = vadd.f32 %v9378, %v9180
        %v9380 = vadd.f32 %v9379, %v9181
        %v9381 = vadd.f32 %v9380, %v9182
        %v9382 = vadd.f32 %v9381, %v9183
        %v9383 = vadd.f32 %v9382, %v9184
        %v9384 = vadd.f32 %v9383, %v9185
        %v9385 = vadd.f32 %v9384, %v9186
        %v9386 = vadd.f32 %v9385, %v9187
        %v9387 = vadd.f32 %v9386, %v9188
        %v9388 = vadd.f32 %v9387, %v9189
        %v9389 = vadd.f32 %v9388, %v9190
        %v9390 = vadd.f32 %v9389, %v9191
        %v9391 = vadd.f32 %v9390, %v9192
        %v9392 = vadd.f32 %v9391, %v9193
        %v9393 = vadd.f32 %v9392, %v9194
        %v9394 = vadd.f32 %v9393, %v9195
        %v9395 = vadd.f32 %v9394, %v9196
        %v9396 = vadd.f32 %v9395, %v9197
        %v9397 = vadd.f32 %v9396, %v9198
        %v9398 = vadd.f32 %v9397, %v9199
        %v9399 = vadd.f32 %v9398, %v9200
        %v9400 = vadd.f32 %v9399, %v9201
        %v9401 = vadd.f32 %v9400, %v9202
        %v9402 = vadd.f32 %v9401, %v9203
        %v9403 = vadd.f32 %v9402, %v9204
        %v9404 = vadd.f32 %v9403, %v9205
        %v9405 = vadd.f32 %v9404, %v9206
        %v9406 = vadd.f32 %v9405, %v9207
        %v9407 = vadd.f32 %v9406, %v9208
        %v9408 = vadd.f32 %v9407, %v9209
        %v9409 = vadd.f32 %v9408, %v9210
        %v9410 = vadd.f32 %v9409, %v9211
        %v9411 = vadd.f32 %v9410, %v9212
        %v9412 = vadd.f32 %v9411, %v9213
        %v9413 = vadd.f32 %v9412, %v9214
        %v9414 = vadd.f32 %v9413, %v9215
        %v9415 = vadd.f32 %v9414, %v9216
        %v9416 = vadd.f32 %v9415, %v9217
        %v9417 = vadd.f32 %v9416, %v9218
        %v9418 = vadd.f32 %v9417, %v9219
        %v9419 = vadd.f32 %v9418, %v9220
        %v9420 = vadd.f32 %v9419, %v9221
        %v9421 = vadd.f32 %v9420, %v9222
        %v9422 = vadd.f32 %v9421, %v9223
        %v9423 = vadd.f32 %v9422, %v9224
        %v9424 = vrot.slane %v9423, 4
        %v9425 = vadd.f32 %v9423, %v9424
        %v9426 = vrot.slane %v9425, 2
        %v9427 = vadd.f32 %v9425, %v9426
        %v9428 = vrot.slane %v9427, 1
        %v9429 = vadd.f32 %v9427, %v9428
        %v9430 = vadd.f32 %v9228, %v9429
        %9431 = vst [vmem:[#allocation2] sm:$0x1] %v9430
        %v9432 = vld [vmem:[#allocation3] sm:$0x1]
        %v9433 = vmul.f32 %v9029, %v9029
        %v9434 = vmul.f32 %v9030, %v9030
        %v9435 = vmul.f32 %v9031, %v9031
        %v9436 = vmul.f32 %v9032, %v9032
        %v9437 = vmul.f32 %v9033, %v9033
        %v9438 = vmul.f32 %v9034, %v9034
        %v9439 = vmul.f32 %v9035, %v9035
        %v9440 = vmul.f32 %v9036, %v9036
        %v9441 = vmul.f32 %v9037, %v9037
        %v9442 = vmul.f32 %v9038, %v9038
        %v9443 = vmul.f32 %v9039, %v9039
        %v9444 = vmul.f32 %v9040, %v9040
        %v9445 = vmul.f32 %v9041, %v9041
        %v9446 = vmul.f32 %v9042, %v9042
        %v9447 = vmul.f32 %v9043, %v9043
        %v9448 = vmul.f32 %v9044, %v9044
        %v9449 = vmul.f32 %v9045, %v9045
        %v9450 = vmul.f32 %v9046, %v9046
        %v9451 = vmul.f32 %v9047, %v9047
        %v9452 = vmul.f32 %v9048, %v9048
        %v9453 = vmul.f32 %v9049, %v9049
        %v9454 = vmul.f32 %v9050, %v9050
        %v9455 = vmul.f32 %v9051, %v9051
        %v9456 = vmul.f32 %v9052, %v9052
        %v9457 = vmul.f32 %v9053, %v9053
        %v9458 = vmul.f32 %v9054, %v9054
        %v9459 = vmul.f32 %v9055, %v9055
        %v9460 = vmul.f32 %v9056, %v9056
        %v9461 = vmul.f32 %v9057, %v9057
        %v9462 = vmul.f32 %v9058, %v9058
        %v9463 = vmul.f32 %v9059, %v9059
        %v9464 = vmul.f32 %v9060, %v9060
        %v9465 = vmul.f32 %v9061, %v9061
        %v9466 = vmul.f32 %v9062, %v9062
        %v9467 = vmul.f32 %v9063, %v9063
        %v9468 = vmul.f32 %v9064, %v9064
        %v9469 = vmul.f32 %v9065, %v9065
        %v9470 = vmul.f32 %v9066, %v9066
        %v9471 = vmul.f32 %v9067, %v9067
        %v9472 = vmul.f32 %v9068, %v9068
        %v9473 = vmul.f32 %v9069, %v9069
        %v9474 = vmul.f32 %v9070, %v9070
        %v9475 = vmul.f32 %v9071, %v9071
        %v9476 = vmul.f32 %v9072, %v9072
        %v9477 = vmul.f32 %v9073, %v9073
        %v9478 = vmul.f32 %v9074, %v9074
        %v9479 = vmul.f32 %v9075, %v9075
        %v9480 = vmul.f32 %v9076, %v9076
        %v9481 = vmul.f32 %v9077, %v9077
        %v9482 = vmul.f32 %v9078, %v9078
        %v9483 = vmul.f32 %v9079, %v9079
        %v9484 = vmul.f32 %v9080, %v9080
        %v9485 = vmul.f32 %v9081, %v9081
        %v9486 = vmul.f32 %v9082, %v9082
        %v9487 = vmul.f32 %v9083, %v9083
        %v9488 = vmul.f32 %v9084, %v9084
        %v9489 = vmul.f32 %v9085, %v9085
        %v9490 = vmul.f32 %v9086, %v9086
        %v9491 = vmul.f32 %v9087, %v9087
        %v9492 = vmul.f32 %v9088, %v9088
        %v9493 = vmul.f32 %v9089, %v9089
        %v9494 = vmul.f32 %v9090, %v9090
        %v9495 = vmul.f32 %v9091, %v9091
        %v9496 = vmul.f32 %v9092, %v9092
        %v9497 = vmul.f32 %v9093, %v9093
        %v9498 = vmul.f32 %v9094, %v9094
        %v9499 = vmul.f32 %v9095, %v9095
        %v9500 = vmul.f32 %v9096, %v9096
        %v9501 = vmul.f32 %v9097, %v9097
        %v9502 = vmul.f32 %v9098, %v9098
        %v9503 = vmul.f32 %v9099, %v9099
        %v9504 = vmul.f32 %v9100, %v9100
        %v9505 = vmul.f32 %v9101, %v9101
        %v9506 = vmul.f32 %v9102, %v9102
        %v9507 = vmul.f32 %v9103, %v9103
        %v9508 = vmul.f32 %v9104, %v9104
        %v9509 = vmul.f32 %v9105, %v9105
        %v9510 = vmul.f32 %v9106, %v9106
        %v9511 = vmul.f32 %v9107, %v9107
        %v9512 = vmul.f32 %v9108, %v9108
        %v9513 = vmul.f32 %v9109, %v9109
        %v9514 = vmul.f32 %v9110, %v9110
        %v9515 = vmul.f32 %v9111, %v9111
        %v9516 = vmul.f32 %v9112, %v9112
        %v9517 = vmul.f32 %v9113, %v9113
        %v9518 = vmul.f32 %v9114, %v9114
        %v9519 = vmul.f32 %v9115, %v9115
        %v9520 = vmul.f32 %v9116, %v9116
        %v9521 = vmul.f32 %v9117, %v9117
        %v9522 = vmul.f32 %v9118, %v9118
        %v9523 = vmul.f32 %v9119, %v9119
        %v9524 = vmul.f32 %v9120, %v9120
        %v9525 = vmul.f32 %v9121, %v9121
        %v9526 = vmul.f32 %v9122, %v9122
        %v9527 = vmul.f32 %v9123, %v9123
        %v9528 = vmul.f32 %v9124, %v9124
        %v9529 = vmul.f32 %v9125, %v9125
        %v9530 = vmul.f32 %v9126, %v9126
        %v9531 = vmul.f32 %v9127, %v9127
        %v9532 = vmul.f32 %v9128, %v9128
        %v9533 = vmul.f32 %v9129, %v9129
        %v9534 = vmul.f32 %v9130, %v9130
        %v9535 = vmul.f32 %v9131, %v9131
        %v9536 = vmul.f32 %v9132, %v9132
        %v9537 = vmul.f32 %v9133, %v9133
        %v9538 = vmul.f32 %v9134, %v9134
        %v9539 = vmul.f32 %v9135, %v9135
        %v9540 = vmul.f32 %v9136, %v9136
        %v9541 = vmul.f32 %v9137, %v9137
        %v9542 = vmul.f32 %v9138, %v9138
        %v9543 = vmul.f32 %v9139, %v9139
        %v9544 = vmul.f32 %v9140, %v9140
        %v9545 = vmul.f32 %v9141, %v9141
        %v9546 = vmul.f32 %v9142, %v9142
        %v9547 = vmul.f32 %v9143, %v9143
        %v9548 = vmul.f32 %v9144, %v9144
        %v9549 = vmul.f32 %v9145, %v9145
        %v9550 = vmul.f32 %v9146, %v9146
        %v9551 = vmul.f32 %v9147, %v9147
        %v9552 = vmul.f32 %v9148, %v9148
        %v9553 = vmul.f32 %v9149, %v9149
        %v9554 = vmul.f32 %v9150, %v9150
        %v9555 = vmul.f32 %v9151, %v9151
        %v9556 = vmul.f32 %v9152, %v9152
        %v9557 = vmul.f32 %v9153, %v9153
        %v9558 = vmul.f32 %v9154, %v9154
        %v9559 = vmul.f32 %v9155, %v9155
        %v9560 = vmul.f32 %v9156, %v9156
        %v9561 = vmul.f32 %v9157, %v9157
        %v9562 = vmul.f32 %v9158, %v9158
        %v9563 = vmul.f32 %v9159, %v9159
        %v9564 = vmul.f32 %v9160, %v9160
        %v9565 = vmul.f32 %v9161, %v9161
        %v9566 = vmul.f32 %v9162, %v9162
        %v9567 = vmul.f32 %v9163, %v9163
        %v9568 = vmul.f32 %v9164, %v9164
        %v9569 = vmul.f32 %v9165, %v9165
        %v9570 = vmul.f32 %v9166, %v9166
        %v9571 = vmul.f32 %v9167, %v9167
        %v9572 = vmul.f32 %v9168, %v9168
        %v9573 = vmul.f32 %v9169, %v9169
        %v9574 = vmul.f32 %v9170, %v9170
        %v9575 = vmul.f32 %v9171, %v9171
        %v9576 = vmul.f32 %v9172, %v9172
        %v9577 = vmul.f32 %v9173, %v9173
        %v9578 = vmul.f32 %v9174, %v9174
        %v9579 = vmul.f32 %v9175, %v9175
        %v9580 = vmul.f32 %v9176, %v9176
        %v9581 = vmul.f32 %v9177, %v9177
        %v9582 = vmul.f32 %v9178, %v9178
        %v9583 = vmul.f32 %v9179, %v9179
        %v9584 = vmul.f32 %v9180, %v9180
        %v9585 = vmul.f32 %v9181, %v9181
        %v9586 = vmul.f32 %v9182, %v9182
        %v9587 = vmul.f32 %v9183, %v9183
        %v9588 = vmul.f32 %v9184, %v9184
        %v9589 = vmul.f32 %v9185, %v9185
        %v9590 = vmul.f32 %v9186, %v9186
        %v9591 = vmul.f32 %v9187, %v9187
        %v9592 = vmul.f32 %v9188, %v9188
        %v9593 = vmul.f32 %v9189, %v9189
        %v9594 = vmul.f32 %v9190, %v9190
        %v9595 = vmul.f32 %v9191, %v9191
        %v9596 = vmul.f32 %v9192, %v9192
        %v9597 = vmul.f32 %v9193, %v9193
        %v9598 = vmul.f32 %v9194, %v9194
        %v9599 = vmul.f32 %v9195, %v9195
        %v9600 = vmul.f32 %v9196, %v9196
        %v9601 = vmul.f32 %v9197, %v9197
        %v9602 = vmul.f32 %v9198, %v9198
        %v9603 = vmul.f32 %v9199, %v9199
        %v9604 = vmul.f32 %v9200, %v9200
        %v9605 = vmul.f32 %v9201, %v9201
        %v9606 = vmul.f32 %v9202, %v9202
        %v9607 = vmul.f32 %v9203, %v9203
        %v9608 = vmul.f32 %v9204, %v9204
        %v9609 = vmul.f32 %v9205, %v9205
        %v9610 = vmul.f32 %v9206, %v9206
        %v9611 = vmul.f32 %v9207, %v9207
        %v9612 = vmul.f32 %v9208, %v9208
        %v9613 = vmul.f32 %v9209, %v9209
        %v9614 = vmul.f32 %v9210, %v9210
        %v9615 = vmul.f32 %v9211, %v9211
        %v9616 = vmul.f32 %v9212, %v9212
        %v9617 = vmul.f32 %v9213, %v9213
        %v9618 = vmul.f32 %v9214, %v9214
        %v9619 = vmul.f32 %v9215, %v9215
        %v9620 = vmul.f32 %v9216, %v9216
        %v9621 = vmul.f32 %v9217, %v9217
        %v9622 = vmul.f32 %v9218, %v9218
        %v9623 = vmul.f32 %v9219, %v9219
        %v9624 = vmul.f32 %v9220, %v9220
        %v9625 = vmul.f32 %v9221, %v9221
        %v9626 = vmul.f32 %v9222, %v9222
        %v9627 = vmul.f32 %v9223, %v9223
        %v9628 = vmul.f32 %v9224, %v9224
        %v9629 = vadd.f32 %v9433, %v9434
        %v9630 = vadd.f32 %v9629, %v9435
        %v9631 = vadd.f32 %v9630, %v9436
        %v9632 = vadd.f32 %v9631, %v9437
        %v9633 = vadd.f32 %v9632, %v9438
        %v9634 = vadd.f32 %v9633, %v9439
        %v9635 = vadd.f32 %v9634, %v9440
        %v9636 = vadd.f32 %v9635, %v9441
        %v9637 = vadd.f32 %v9636, %v9442
        %v9638 = vadd.f32 %v9637, %v9443
        %v9639 = vadd.f32 %v9638, %v9444
        %v9640 = vadd.f32 %v9639, %v9445
        %v9641 = vadd.f32 %v9640, %v9446
        %v9642 = vadd.f32 %v9641, %v9447
        %v9643 = vadd.f32 %v9642, %v9448
        %v9644 = vadd.f32 %v9643, %v9449
        %v9645 = vadd.f32 %v9644, %v9450
        %v9646 = vadd.f32 %v9645, %v9451
        %v9647 = vadd.f32 %v9646, %v9452
        %v9648 = vadd.f32 %v9647, %v9453
        %v9649 = vadd.f32 %v9648, %v9454
        %v9650 = vadd.f32 %v9649, %v9455
        %v9651 = vadd.f32 %v9650, %v9456
        %v9652 = vadd.f32 %v9651, %v9457
        %v9653 = vadd.f32 %v9652, %v9458
        %v9654 = vadd.f32 %v9653, %v9459
        %v9655 = vadd.f32 %v9654, %v9460
        %v9656 = vadd.f32 %v9655, %v9461
        %v9657 = vadd.f32 %v9656, %v9462
        %v9658 = vadd.f32 %v9657, %v9463
        %v9659 = vadd.f32 %v9658, %v9464
        %v9660 = vadd.f32 %v9659, %v9465
        %v9661 = vadd.f32 %v9660, %v9466
        %v9662 = vadd.f32 %v9661, %v9467
        %v9663 = vadd.f32 %v9662, %v9468
        %v9664 = vadd.f32 %v9663, %v9469
        %v9665 = vadd.f32 %v9664, %v9470
        %v9666 = vadd.f32 %v9665, %v9471
        %v9667 = vadd.f32 %v9666, %v9472
        %v9668 = vadd.f32 %v9667, %v9473
        %v9669 = vadd.f32 %v9668, %v9474
        %v9670 = vadd.f32 %v9669, %v9475
        %v9671 = vadd.f32 %v9670, %v9476
        %v9672 = vadd.f32 %v9671, %v9477
        %v9673 = vadd.f32 %v9672, %v9478
        %v9674 = vadd.f32 %v9673, %v9479
        %v9675 = vadd.f32 %v9674, %v9480
        %v9676 = vadd.f32 %v9675, %v9481
        %v9677 = vadd.f32 %v9676, %v9482
        %v9678 = vadd.f32 %v9677, %v9483
        %v9679 = vadd.f32 %v9678, %v9484
        %v9680 = vadd.f32 %v9679, %v9485
        %v9681 = vadd.f32 %v9680, %v9486
        %v9682 = vadd.f32 %v9681, %v9487
        %v9683 = vadd.f32 %v9682, %v9488
        %v9684 = vadd.f32 %v9683, %v9489
        %v9685 = vadd.f32 %v9684, %v9490
        %v9686 = vadd.f32 %v9685, %v9491
        %v9687 = vadd.f32 %v9686, %v9492
        %v9688 = vadd.f32 %v9687, %v9493
        %v9689 = vadd.f32 %v9688, %v9494
        %v9690 = vadd.f32 %v9689, %v9495
        %v9691 = vadd.f32 %v9690, %v9496
        %v9692 = vadd.f32 %v9691, %v9497
        %v9693 = vadd.f32 %v9692, %v9498
        %v9694 = vadd.f32 %v9693, %v9499
        %v9695 = vadd.f32 %v9694, %v9500
        %v9696 = vadd.f32 %v9695, %v9501
        %v9697 = vadd.f32 %v9696, %v9502
        %v9698 = vadd.f32 %v9697, %v9503
        %v9699 = vadd.f32 %v9698, %v9504
        %v9700 = vadd.f32 %v9699, %v9505
        %v9701 = vadd.f32 %v9700, %v9506
        %v9702 = vadd.f32 %v9701, %v9507
        %v9703 = vadd.f32 %v9702, %v9508
        %v9704 = vadd.f32 %v9703, %v9509
        %v9705 = vadd.f32 %v9704, %v9510
        %v9706 = vadd.f32 %v9705, %v9511
        %v9707 = vadd.f32 %v9706, %v9512
        %v9708 = vadd.f32 %v9707, %v9513
        %v9709 = vadd.f32 %v9708, %v9514
        %v9710 = vadd.f32 %v9709, %v9515
        %v9711 = vadd.f32 %v9710, %v9516
        %v9712 = vadd.f32 %v9711, %v9517
        %v9713 = vadd.f32 %v9712, %v9518
        %v9714 = vadd.f32 %v9713, %v9519
        %v9715 = vadd.f32 %v9714, %v9520
        %v9716 = vadd.f32 %v9715, %v9521
        %v9717 = vadd.f32 %v9716, %v9522
        %v9718 = vadd.f32 %v9717, %v9523
        %v9719 = vadd.f32 %v9718, %v9524
        %v9720 = vadd.f32 %v9719, %v9525
        %v9721 = vadd.f32 %v9720, %v9526
        %v9722 = vadd.f32 %v9721, %v9527
        %v9723 = vadd.f32 %v9722, %v9528
        %v9724 = vadd.f32 %v9723, %v9529
        %v9725 = vadd.f32 %v9724, %v9530
        %v9726 = vadd.f32 %v9725, %v9531
        %v9727 = vadd.f32 %v9726, %v9532
        %v9728 = vadd.f32 %v9727, %v9533
        %v9729 = vadd.f32 %v9728, %v9534
        %v9730 = vadd.f32 %v9729, %v9535
        %v9731 = vadd.f32 %v9730, %v9536
        %v9732 = vadd.f32 %v9731, %v9537
        %v9733 = vadd.f32 %v9732, %v9538
        %v9734 = vadd.f32 %v9733, %v9539
        %v9735 = vadd.f32 %v9734, %v9540
        %v9736 = vadd.f32 %v9735, %v9541
        %v9737 = vadd.f32 %v9736, %v9542
        %v9738 = vadd.f32 %v9737, %v9543
        %v9739 = vadd.f32 %v9738, %v9544
        %v9740 = vadd.f32 %v9739, %v9545
        %v9741 = vadd.f32 %v9740, %v9546
        %v9742 = vadd.f32 %v9741, %v9547
        %v9743 = vadd.f32 %v9742, %v9548
        %v9744 = vadd.f32 %v9743, %v9549
        %v9745 = vadd.f32 %v9744, %v9550
        %v9746 = vadd.f32 %v9745, %v9551
        %v9747 = vadd.f32 %v9746, %v9552
        %v9748 = vadd.f32 %v9747, %v9553
        %v9749 = vadd.f32 %v9748, %v9554
        %v9750 = vadd.f32 %v9749, %v9555
        %v9751 = vadd.f32 %v9750, %v9556
        %v9752 = vadd.f32 %v9751, %v9557
        %v9753 = vadd.f32 %v9752, %v9558
        %v9754 = vadd.f32 %v9753, %v9559
        %v9755 = vadd.f32 %v9754, %v9560
        %v9756 = vadd.f32 %v9755, %v9561
        %v9757 = vadd.f32 %v9756, %v9562
        %v9758 = vadd.f32 %v9757, %v9563
        %v9759 = vadd.f32 %v9758, %v9564
        %v9760 = vadd.f32 %v9759, %v9565
        %v9761 = vadd.f32 %v9760, %v9566
        %v9762 = vadd.f32 %v9761, %v9567
        %v9763 = vadd.f32 %v9762, %v9568
        %v9764 = vadd.f32 %v9763, %v9569
        %v9765 = vadd.f32 %v9764, %v9570
        %v9766 = vadd.f32 %v9765, %v9571
        %v9767 = vadd.f32 %v9766, %v9572
        %v9768 = vadd.f32 %v9767, %v9573
        %v9769 = vadd.f32 %v9768, %v9574
        %v9770 = vadd.f32 %v9769, %v9575
        %v9771 = vadd.f32 %v9770, %v9576
        %v9772 = vadd.f32 %v9771, %v9577
        %v9773 = vadd.f32 %v9772, %v9578
        %v9774 = vadd.f32 %v9773, %v9579
        %v9775 = vadd.f32 %v9774, %v9580
        %v9776 = vadd.f32 %v9775, %v9581
        %v9777 = vadd.f32 %v9776, %v9582
        %v9778 = vadd.f32 %v9777, %v9583
        %v9779 = vadd.f32 %v9778, %v9584
        %v9780 = vadd.f32 %v9779, %v9585
        %v9781 = vadd.f32 %v9780, %v9586
        %v9782 = vadd.f32 %v9781, %v9587
        %v9783 = vadd.f32 %v9782, %v9588
        %v9784 = vadd.f32 %v9783, %v9589
        %v9785 = vadd.f32 %v9784, %v9590
        %v9786 = vadd.f32 %v9785, %v9591
        %v9787 = vadd.f32 %v9786, %v9592
        %v9788 = vadd.f32 %v9787, %v9593
        %v9789 = vadd.f32 %v9788, %v9594
        %v9790 = vadd.f32 %v9789, %v9595
        %v9791 = vadd.f32 %v9790, %v9596
        %v9792 = vadd.f32 %v9791, %v9597
        %v9793 = vadd.f32 %v9792, %v9598
        %v9794 = vadd.f32 %v9793, %v9599
        %v9795 = vadd.f32 %v9794, %v9600
        %v9796 = vadd.f32 %v9795, %v9601
        %v9797 = vadd.f32 %v9796, %v9602
        %v9798 = vadd.f32 %v9797, %v9603
        %v9799 = vadd.f32 %v9798, %v9604
        %v9800 = vadd.f32 %v9799, %v9605
        %v9801 = vadd.f32 %v9800, %v9606
        %v9802 = vadd.f32 %v9801, %v9607
        %v9803 = vadd.f32 %v9802, %v9608
        %v9804 = vadd.f32 %v9803, %v9609
        %v9805 = vadd.f32 %v9804, %v9610
        %v9806 = vadd.f32 %v9805, %v9611
        %v9807 = vadd.f32 %v9806, %v9612
        %v9808 = vadd.f32 %v9807, %v9613
        %v9809 = vadd.f32 %v9808, %v9614
        %v9810 = vadd.f32 %v9809, %v9615
        %v9811 = vadd.f32 %v9810, %v9616
        %v9812 = vadd.f32 %v9811, %v9617
        %v9813 = vadd.f32 %v9812, %v9618
        %v9814 = vadd.f32 %v9813, %v9619
        %v9815 = vadd.f32 %v9814, %v9620
        %v9816 = vadd.f32 %v9815, %v9621
        %v9817 = vadd.f32 %v9816, %v9622
        %v9818 = vadd.f32 %v9817, %v9623
        %v9819 = vadd.f32 %v9818, %v9624
        %v9820 = vadd.f32 %v9819, %v9625
        %v9821 = vadd.f32 %v9820, %v9626
        %v9822 = vadd.f32 %v9821, %v9627
        %v9823 = vadd.f32 %v9822, %v9628
        %v9824 = vrot.slane %v9823, 4
        %v9825 = vadd.f32 %v9823, %v9824
        %v9826 = vrot.slane %v9825, 2
        %v9827 = vadd.f32 %v9825, %v9826
        %v9828 = vrot.slane %v9827, 1
        %v9829 = vadd.f32 %v9827, %v9828
        %v9830 = vadd.f32 %v9432, %v9829
        %9831 = vst [vmem:[#allocation3] sm:$0x1] %v9830
      $region44: #{dwconv_bn.1} parent=35 // pred_fallthru
        _
      %p9832 = scmp.eq.s32.totalorder %s19, 1
      %p9833 = pnand %p9832, %p200
      %p9834 = pneg %p9833
      // Predicated region
      $region45: #{dwconv_bn.1} parent=35 // pred_check
        _
      $region46: #{dwconv_bn.1} parent=35 // pred_check_branch
        %9836 = sbr.rel (%p9833) target = $region48
      $region47: #{dwconv_bn.1} parent=35 // pred_region
        %v9837 = vld [vmem:[#allocation2] sm:$0x1]
        %v9838 = vmul.f32 %v9837, 0.00031887754
        %v9839 = vld [vmem:[#allocation3] sm:$0x1]
        %v9840 = vmul.f32 %v9839, 0.00031887754
        %v9841 = vmul.f32 %v9838, %v9838
        %v9842 = vsub.f32 %v9840, %v9841
        %v9843 = vmax.f32 %v9842, 0.0
        %v9844 = vld [vmem:[%s2] sm:$0x1]
        %v9845 = vadd.f32 %v9843, 1e-05
        %v9846 = vrsqrt.pop %v9845
        %v9847 = vmul.f32 %v9844, %v9846
        %9848 = vst [vmem:[#allocation4] sm:$0x1] %v9847
        %v9849 = vld [vmem:[%s3] sm:$0x1]
        %v9850 = vmul.f32 %v9838, %v9847
        %v9851 = vsub.f32 %v9849, %v9850
        %9852 = vst [vmem:[#allocation5] sm:$0x1] %v9851
      $region48: #{dwconv_bn.1} parent=35 // pred_fallthru
        _
      // Predicated region
      $region49: #{dwconv_bn.1} parent=35 // pred_check
        %p9853 = pneg %p9832
      $region50: #{dwconv_bn.1} parent=35 // pred_check_branch
        %9855 = sbr.rel (%p9853) target = $region52
      $region51: #{dwconv_bn.1} parent=35 // pred_region
        %v9856 = vld [vmem:[#allocation4] sm:$0x1]
        %v9857 = vld [vmem:[#allocation5] sm:$0x1]
        %v9859 = vlaneseq
        %v9860 = vshrl.u32 %v9859, 7
        %v9861 = vsub.s32 0, %v9860
        %v9862 = vrot.slane %v9856, %v9861
        %v9864 = vmul.f32 %v9029, %v9862
        %v9865 = vmul.f32 %v9030, %v9862
        %v9866 = vmul.f32 %v9031, %v9862
        %v9867 = vmul.f32 %v9032, %v9862
        %v9868 = vmul.f32 %v9033, %v9862
        %v9869 = vmul.f32 %v9034, %v9862
        %v9870 = vmul.f32 %v9035, %v9862
        %v9871 = vmul.f32 %v9036, %v9862
        %v9872 = vmul.f32 %v9037, %v9862
        %v9873 = vmul.f32 %v9038, %v9862
        %v9874 = vmul.f32 %v9039, %v9862
        %v9875 = vmul.f32 %v9040, %v9862
        %v9876 = vmul.f32 %v9041, %v9862
        %v9877 = vmul.f32 %v9042, %v9862
        %v9878 = vmul.f32 %v9043, %v9862
        %v9879 = vmul.f32 %v9044, %v9862
        %v9880 = vmul.f32 %v9045, %v9862
        %v9881 = vmul.f32 %v9046, %v9862
        %v9882 = vmul.f32 %v9047, %v9862
        %v9883 = vmul.f32 %v9048, %v9862
        %v9884 = vmul.f32 %v9049, %v9862
        %v9885 = vmul.f32 %v9050, %v9862
        %v9886 = vmul.f32 %v9051, %v9862
        %v9887 = vmul.f32 %v9052, %v9862
        %v9888 = vmul.f32 %v9053, %v9862
        %v9889 = vmul.f32 %v9054, %v9862
        %v9890 = vmul.f32 %v9055, %v9862
        %v9891 = vmul.f32 %v9056, %v9862
        %v9892 = vmul.f32 %v9057, %v9862
        %v9893 = vmul.f32 %v9058, %v9862
        %v9894 = vmul.f32 %v9059, %v9862
        %v9895 = vmul.f32 %v9060, %v9862
        %v9896 = vmul.f32 %v9061, %v9862
        %v9897 = vmul.f32 %v9062, %v9862
        %v9898 = vmul.f32 %v9063, %v9862
        %v9899 = vmul.f32 %v9064, %v9862
        %v9900 = vmul.f32 %v9065, %v9862
        %v9901 = vmul.f32 %v9066, %v9862
        %v9902 = vmul.f32 %v9067, %v9862
        %v9903 = vmul.f32 %v9068, %v9862
        %v9904 = vmul.f32 %v9069, %v9862
        %v9905 = vmul.f32 %v9070, %v9862
        %v9906 = vmul.f32 %v9071, %v9862
        %v9907 = vmul.f32 %v9072, %v9862
        %v9908 = vmul.f32 %v9073, %v9862
        %v9909 = vmul.f32 %v9074, %v9862
        %v9910 = vmul.f32 %v9075, %v9862
        %v9911 = vmul.f32 %v9076, %v9862
        %v9912 = vmul.f32 %v9077, %v9862
        %v9913 = vmul.f32 %v9078, %v9862
        %v9914 = vmul.f32 %v9079, %v9862
        %v9915 = vmul.f32 %v9080, %v9862
        %v9916 = vmul.f32 %v9081, %v9862
        %v9917 = vmul.f32 %v9082, %v9862
        %v9918 = vmul.f32 %v9083, %v9862
        %v9919 = vmul.f32 %v9084, %v9862
        %v9920 = vmul.f32 %v9085, %v9862
        %v9921 = vmul.f32 %v9086, %v9862
        %v9922 = vmul.f32 %v9087, %v9862
        %v9923 = vmul.f32 %v9088, %v9862
        %v9924 = vmul.f32 %v9089, %v9862
        %v9925 = vmul.f32 %v9090, %v9862
        %v9926 = vmul.f32 %v9091, %v9862
        %v9927 = vmul.f32 %v9092, %v9862
        %v9928 = vmul.f32 %v9093, %v9862
        %v9929 = vmul.f32 %v9094, %v9862
        %v9930 = vmul.f32 %v9095, %v9862
        %v9931 = vmul.f32 %v9096, %v9862
        %v9932 = vmul.f32 %v9097, %v9862
        %v9933 = vmul.f32 %v9098, %v9862
        %v9934 = vmul.f32 %v9099, %v9862
        %v9935 = vmul.f32 %v9100, %v9862
        %v9936 = vmul.f32 %v9101, %v9862
        %v9937 = vmul.f32 %v9102, %v9862
        %v9938 = vmul.f32 %v9103, %v9862
        %v9939 = vmul.f32 %v9104, %v9862
        %v9940 = vmul.f32 %v9105, %v9862
        %v9941 = vmul.f32 %v9106, %v9862
        %v9942 = vmul.f32 %v9107, %v9862
        %v9943 = vmul.f32 %v9108, %v9862
        %v9944 = vmul.f32 %v9109, %v9862
        %v9945 = vmul.f32 %v9110, %v9862
        %v9946 = vmul.f32 %v9111, %v9862
        %v9947 = vmul.f32 %v9112, %v9862
        %v9948 = vmul.f32 %v9113, %v9862
        %v9949 = vmul.f32 %v9114, %v9862
        %v9950 = vmul.f32 %v9115, %v9862
        %v9951 = vmul.f32 %v9116, %v9862
        %v9952 = vmul.f32 %v9117, %v9862
        %v9953 = vmul.f32 %v9118, %v9862
        %v9954 = vmul.f32 %v9119, %v9862
        %v9955 = vmul.f32 %v9120, %v9862
        %v9956 = vmul.f32 %v9121, %v9862
        %v9957 = vmul.f32 %v9122, %v9862
        %v9958 = vmul.f32 %v9123, %v9862
        %v9959 = vmul.f32 %v9124, %v9862
        %v9960 = vmul.f32 %v9125, %v9862
        %v9961 = vmul.f32 %v9126, %v9862
        %v9962 = vmul.f32 %v9127, %v9862
        %v9963 = vmul.f32 %v9128, %v9862
        %v9964 = vmul.f32 %v9129, %v9862
        %v9965 = vmul.f32 %v9130, %v9862
        %v9966 = vmul.f32 %v9131, %v9862
        %v9967 = vmul.f32 %v9132, %v9862
        %v9968 = vmul.f32 %v9133, %v9862
        %v9969 = vmul.f32 %v9134, %v9862
        %v9970 = vmul.f32 %v9135, %v9862
        %v9971 = vmul.f32 %v9136, %v9862
        %v9972 = vmul.f32 %v9137, %v9862
        %v9973 = vmul.f32 %v9138, %v9862
        %v9974 = vmul.f32 %v9139, %v9862
        %v9975 = vmul.f32 %v9140, %v9862
        %v9976 = vmul.f32 %v9141, %v9862
        %v9977 = vmul.f32 %v9142, %v9862
        %v9978 = vmul.f32 %v9143, %v9862
        %v9979 = vmul.f32 %v9144, %v9862
        %v9980 = vmul.f32 %v9145, %v9862
        %v9981 = vmul.f32 %v9146, %v9862
        %v9982 = vmul.f32 %v9147, %v9862
        %v9983 = vmul.f32 %v9148, %v9862
        %v9984 = vmul.f32 %v9149, %v9862
        %v9985 = vmul.f32 %v9150, %v9862
        %v9986 = vmul.f32 %v9151, %v9862
        %v9987 = vmul.f32 %v9152, %v9862
        %v9988 = vmul.f32 %v9153, %v9862
        %v9989 = vmul.f32 %v9154, %v9862
        %v9990 = vmul.f32 %v9155, %v9862
        %v9991 = vmul.f32 %v9156, %v9862
        %v9992 = vmul.f32 %v9157, %v9862
        %v9993 = vmul.f32 %v9158, %v9862
        %v9994 = vmul.f32 %v9159, %v9862
        %v9995 = vmul.f32 %v9160, %v9862
        %v9996 = vmul.f32 %v9161, %v9862
        %v9997 = vmul.f32 %v9162, %v9862
        %v9998 = vmul.f32 %v9163, %v9862
        %v9999 = vmul.f32 %v9164, %v9862
        %v10000 = vmul.f32 %v9165, %v9862
        %v10001 = vmul.f32 %v9166, %v9862
        %v10002 = vmul.f32 %v9167, %v9862
        %v10003 = vmul.f32 %v9168, %v9862
        %v10004 = vmul.f32 %v9169, %v9862
        %v10005 = vmul.f32 %v9170, %v9862
        %v10006 = vmul.f32 %v9171, %v9862
        %v10007 = vmul.f32 %v9172, %v9862
        %v10008 = vmul.f32 %v9173, %v9862
        %v10009 = vmul.f32 %v9174, %v9862
        %v10010 = vmul.f32 %v9175, %v9862
        %v10011 = vmul.f32 %v9176, %v9862
        %v10012 = vmul.f32 %v9177, %v9862
        %v10013 = vmul.f32 %v9178, %v9862
        %v10014 = vmul.f32 %v9179, %v9862
        %v10015 = vmul.f32 %v9180, %v9862
        %v10016 = vmul.f32 %v9181, %v9862
        %v10017 = vmul.f32 %v9182, %v9862
        %v10018 = vmul.f32 %v9183, %v9862
        %v10019 = vmul.f32 %v9184, %v9862
        %v10020 = vmul.f32 %v9185, %v9862
        %v10021 = vmul.f32 %v9186, %v9862
        %v10022 = vmul.f32 %v9187, %v9862
        %v10023 = vmul.f32 %v9188, %v9862
        %v10024 = vmul.f32 %v9189, %v9862
        %v10025 = vmul.f32 %v9190, %v9862
        %v10026 = vmul.f32 %v9191, %v9862
        %v10027 = vmul.f32 %v9192, %v9862
        %v10028 = vmul.f32 %v9193, %v9862
        %v10029 = vmul.f32 %v9194, %v9862
        %v10030 = vmul.f32 %v9195, %v9862
        %v10031 = vmul.f32 %v9196, %v9862
        %v10032 = vmul.f32 %v9197, %v9862
        %v10033 = vmul.f32 %v9198, %v9862
        %v10034 = vmul.f32 %v9199, %v9862
        %v10035 = vmul.f32 %v9200, %v9862
        %v10036 = vmul.f32 %v9201, %v9862
        %v10037 = vmul.f32 %v9202, %v9862
        %v10038 = vmul.f32 %v9203, %v9862
        %v10039 = vmul.f32 %v9204, %v9862
        %v10040 = vmul.f32 %v9205, %v9862
        %v10041 = vmul.f32 %v9206, %v9862
        %v10042 = vmul.f32 %v9207, %v9862
        %v10043 = vmul.f32 %v9208, %v9862
        %v10044 = vmul.f32 %v9209, %v9862
        %v10045 = vmul.f32 %v9210, %v9862
        %v10046 = vmul.f32 %v9211, %v9862
        %v10047 = vmul.f32 %v9212, %v9862
        %v10048 = vmul.f32 %v9213, %v9862
        %v10049 = vmul.f32 %v9214, %v9862
        %v10050 = vmul.f32 %v9215, %v9862
        %v10051 = vmul.f32 %v9216, %v9862
        %v10052 = vmul.f32 %v9217, %v9862
        %v10053 = vmul.f32 %v9218, %v9862
        %v10054 = vmul.f32 %v9219, %v9862
        %v10055 = vmul.f32 %v9220, %v9862
        %v10056 = vmul.f32 %v9221, %v9862
        %v10057 = vmul.f32 %v9222, %v9862
        %v10058 = vmul.f32 %v9223, %v9862
        %v10059 = vmul.f32 %v9224, %v9862
        %v10061 = vlaneseq
        %v10062 = vshrl.u32 %v10061, 7
        %v10063 = vsub.s32 0, %v10062
        %v10064 = vrot.slane %v9857, %v10063
        %v10066 = vadd.f32 %v9864, %v10064
        %v10067 = vadd.f32 %v9865, %v10064
        %v10068 = vadd.f32 %v9866, %v10064
        %v10069 = vadd.f32 %v9867, %v10064
        %v10070 = vadd.f32 %v9868, %v10064
        %v10071 = vadd.f32 %v9869, %v10064
        %v10072 = vadd.f32 %v9870, %v10064
        %v10073 = vadd.f32 %v9871, %v10064
        %v10074 = vadd.f32 %v9872, %v10064
        %v10075 = vadd.f32 %v9873, %v10064
        %v10076 = vadd.f32 %v9874, %v10064
        %v10077 = vadd.f32 %v9875, %v10064
        %v10078 = vadd.f32 %v9876, %v10064
        %v10079 = vadd.f32 %v9877, %v10064
        %v10080 = vadd.f32 %v9878, %v10064
        %v10081 = vadd.f32 %v9879, %v10064
        %v10082 = vadd.f32 %v9880, %v10064
        %v10083 = vadd.f32 %v9881, %v10064
        %v10084 = vadd.f32 %v9882, %v10064
        %v10085 = vadd.f32 %v9883, %v10064
        %v10086 = vadd.f32 %v9884, %v10064
        %v10087 = vadd.f32 %v9885, %v10064
        %v10088 = vadd.f32 %v9886, %v10064
        %v10089 = vadd.f32 %v9887, %v10064
        %v10090 = vadd.f32 %v9888, %v10064
        %v10091 = vadd.f32 %v9889, %v10064
        %v10092 = vadd.f32 %v9890, %v10064
        %v10093 = vadd.f32 %v9891, %v10064
        %v10094 = vadd.f32 %v9892, %v10064
        %v10095 = vadd.f32 %v9893, %v10064
        %v10096 = vadd.f32 %v9894, %v10064
        %v10097 = vadd.f32 %v9895, %v10064
        %v10098 = vadd.f32 %v9896, %v10064
        %v10099 = vadd.f32 %v9897, %v10064
        %v10100 = vadd.f32 %v9898, %v10064
        %v10101 = vadd.f32 %v9899, %v10064
        %v10102 = vadd.f32 %v9900, %v10064
        %v10103 = vadd.f32 %v9901, %v10064
        %v10104 = vadd.f32 %v9902, %v10064
        %v10105 = vadd.f32 %v9903, %v10064
        %v10106 = vadd.f32 %v9904, %v10064
        %v10107 = vadd.f32 %v9905, %v10064
        %v10108 = vadd.f32 %v9906, %v10064
        %v10109 = vadd.f32 %v9907, %v10064
        %v10110 = vadd.f32 %v9908, %v10064
        %v10111 = vadd.f32 %v9909, %v10064
        %v10112 = vadd.f32 %v9910, %v10064
        %v10113 = vadd.f32 %v9911, %v10064
        %v10114 = vadd.f32 %v9912, %v10064
        %v10115 = vadd.f32 %v9913, %v10064
        %v10116 = vadd.f32 %v9914, %v10064
        %v10117 = vadd.f32 %v9915, %v10064
        %v10118 = vadd.f32 %v9916, %v10064
        %v10119 = vadd.f32 %v9917, %v10064
        %v10120 = vadd.f32 %v9918, %v10064
        %v10121 = vadd.f32 %v9919, %v10064
        %v10122 = vadd.f32 %v9920, %v10064
        %v10123 = vadd.f32 %v9921, %v10064
        %v10124 = vadd.f32 %v9922, %v10064
        %v10125 = vadd.f32 %v9923, %v10064
        %v10126 = vadd.f32 %v9924, %v10064
        %v10127 = vadd.f32 %v9925, %v10064
        %v10128 = vadd.f32 %v9926, %v10064
        %v10129 = vadd.f32 %v9927, %v10064
        %v10130 = vadd.f32 %v9928, %v10064
        %v10131 = vadd.f32 %v9929, %v10064
        %v10132 = vadd.f32 %v9930, %v10064
        %v10133 = vadd.f32 %v9931, %v10064
        %v10134 = vadd.f32 %v9932, %v10064
        %v10135 = vadd.f32 %v9933, %v10064
        %v10136 = vadd.f32 %v9934, %v10064
        %v10137 = vadd.f32 %v9935, %v10064
        %v10138 = vadd.f32 %v9936, %v10064
        %v10139 = vadd.f32 %v9937, %v10064
        %v10140 = vadd.f32 %v9938, %v10064
        %v10141 = vadd.f32 %v9939, %v10064
        %v10142 = vadd.f32 %v9940, %v10064
        %v10143 = vadd.f32 %v9941, %v10064
        %v10144 = vadd.f32 %v9942, %v10064
        %v10145 = vadd.f32 %v9943, %v10064
        %v10146 = vadd.f32 %v9944, %v10064
        %v10147 = vadd.f32 %v9945, %v10064
        %v10148 = vadd.f32 %v9946, %v10064
        %v10149 = vadd.f32 %v9947, %v10064
        %v10150 = vadd.f32 %v9948, %v10064
        %v10151 = vadd.f32 %v9949, %v10064
        %v10152 = vadd.f32 %v9950, %v10064
        %v10153 = vadd.f32 %v9951, %v10064
        %v10154 = vadd.f32 %v9952, %v10064
        %v10155 = vadd.f32 %v9953, %v10064
        %v10156 = vadd.f32 %v9954, %v10064
        %v10157 = vadd.f32 %v9955, %v10064
        %v10158 = vadd.f32 %v9956, %v10064
        %v10159 = vadd.f32 %v9957, %v10064
        %v10160 = vadd.f32 %v9958, %v10064
        %v10161 = vadd.f32 %v9959, %v10064
        %v10162 = vadd.f32 %v9960, %v10064
        %v10163 = vadd.f32 %v9961, %v10064
        %v10164 = vadd.f32 %v9962, %v10064
        %v10165 = vadd.f32 %v9963, %v10064
        %v10166 = vadd.f32 %v9964, %v10064
        %v10167 = vadd.f32 %v9965, %v10064
        %v10168 = vadd.f32 %v9966, %v10064
        %v10169 = vadd.f32 %v9967, %v10064
        %v10170 = vadd.f32 %v9968, %v10064
        %v10171 = vadd.f32 %v9969, %v10064
        %v10172 = vadd.f32 %v9970, %v10064
        %v10173 = vadd.f32 %v9971, %v10064
        %v10174 = vadd.f32 %v9972, %v10064
        %v10175 = vadd.f32 %v9973, %v10064
        %v10176 = vadd.f32 %v9974, %v10064
        %v10177 = vadd.f32 %v9975, %v10064
        %v10178 = vadd.f32 %v9976, %v10064
        %v10179 = vadd.f32 %v9977, %v10064
        %v10180 = vadd.f32 %v9978, %v10064
        %v10181 = vadd.f32 %v9979, %v10064
        %v10182 = vadd.f32 %v9980, %v10064
        %v10183 = vadd.f32 %v9981, %v10064
        %v10184 = vadd.f32 %v9982, %v10064
        %v10185 = vadd.f32 %v9983, %v10064
        %v10186 = vadd.f32 %v9984, %v10064
        %v10187 = vadd.f32 %v9985, %v10064
        %v10188 = vadd.f32 %v9986, %v10064
        %v10189 = vadd.f32 %v9987, %v10064
        %v10190 = vadd.f32 %v9988, %v10064
        %v10191 = vadd.f32 %v9989, %v10064
        %v10192 = vadd.f32 %v9990, %v10064
        %v10193 = vadd.f32 %v9991, %v10064
        %v10194 = vadd.f32 %v9992, %v10064
        %v10195 = vadd.f32 %v9993, %v10064
        %v10196 = vadd.f32 %v9994, %v10064
        %v10197 = vadd.f32 %v9995, %v10064
        %v10198 = vadd.f32 %v9996, %v10064
        %v10199 = vadd.f32 %v9997, %v10064
        %v10200 = vadd.f32 %v9998, %v10064
        %v10201 = vadd.f32 %v9999, %v10064
        %v10202 = vadd.f32 %v10000, %v10064
        %v10203 = vadd.f32 %v10001, %v10064
        %v10204 = vadd.f32 %v10002, %v10064
        %v10205 = vadd.f32 %v10003, %v10064
        %v10206 = vadd.f32 %v10004, %v10064
        %v10207 = vadd.f32 %v10005, %v10064
        %v10208 = vadd.f32 %v10006, %v10064
        %v10209 = vadd.f32 %v10007, %v10064
        %v10210 = vadd.f32 %v10008, %v10064
        %v10211 = vadd.f32 %v10009, %v10064
        %v10212 = vadd.f32 %v10010, %v10064
        %v10213 = vadd.f32 %v10011, %v10064
        %v10214 = vadd.f32 %v10012, %v10064
        %v10215 = vadd.f32 %v10013, %v10064
        %v10216 = vadd.f32 %v10014, %v10064
        %v10217 = vadd.f32 %v10015, %v10064
        %v10218 = vadd.f32 %v10016, %v10064
        %v10219 = vadd.f32 %v10017, %v10064
        %v10220 = vadd.f32 %v10018, %v10064
        %v10221 = vadd.f32 %v10019, %v10064
        %v10222 = vadd.f32 %v10020, %v10064
        %v10223 = vadd.f32 %v10021, %v10064
        %v10224 = vadd.f32 %v10022, %v10064
        %v10225 = vadd.f32 %v10023, %v10064
        %v10226 = vadd.f32 %v10024, %v10064
        %v10227 = vadd.f32 %v10025, %v10064
        %v10228 = vadd.f32 %v10026, %v10064
        %v10229 = vadd.f32 %v10027, %v10064
        %v10230 = vadd.f32 %v10028, %v10064
        %v10231 = vadd.f32 %v10029, %v10064
        %v10232 = vadd.f32 %v10030, %v10064
        %v10233 = vadd.f32 %v10031, %v10064
        %v10234 = vadd.f32 %v10032, %v10064
        %v10235 = vadd.f32 %v10033, %v10064
        %v10236 = vadd.f32 %v10034, %v10064
        %v10237 = vadd.f32 %v10035, %v10064
        %v10238 = vadd.f32 %v10036, %v10064
        %v10239 = vadd.f32 %v10037, %v10064
        %v10240 = vadd.f32 %v10038, %v10064
        %v10241 = vadd.f32 %v10039, %v10064
        %v10242 = vadd.f32 %v10040, %v10064
        %v10243 = vadd.f32 %v10041, %v10064
        %v10244 = vadd.f32 %v10042, %v10064
        %v10245 = vadd.f32 %v10043, %v10064
        %v10246 = vadd.f32 %v10044, %v10064
        %v10247 = vadd.f32 %v10045, %v10064
        %v10248 = vadd.f32 %v10046, %v10064
        %v10249 = vadd.f32 %v10047, %v10064
        %v10250 = vadd.f32 %v10048, %v10064
        %v10251 = vadd.f32 %v10049, %v10064
        %v10252 = vadd.f32 %v10050, %v10064
        %v10253 = vadd.f32 %v10051, %v10064
        %v10254 = vadd.f32 %v10052, %v10064
        %v10255 = vadd.f32 %v10053, %v10064
        %v10256 = vadd.f32 %v10054, %v10064
        %v10257 = vadd.f32 %v10055, %v10064
        %v10258 = vadd.f32 %v10056, %v10064
        %v10259 = vadd.f32 %v10057, %v10064
        %v10260 = vadd.f32 %v10058, %v10064
        %v10261 = vadd.f32 %v10059, %v10064
        %10262 = vst [vmem:[%s195] sm:$0xff] %v10066
        %10263 = vst [vmem:[%s195 + $0x8] sm:$0xff] %v10067
        %10264 = vst [vmem:[%s195 + $0x10] sm:$0xff] %v10068
        %10265 = vst [vmem:[%s195 + $0x18] sm:$0xff] %v10069
        %10266 = vst [vmem:[%s195 + $0x20] sm:$0xff] %v10070
        %10267 = vst [vmem:[%s195 + $0x28] sm:$0xff] %v10071
        %10268 = vst [vmem:[%s195 + $0x30] sm:$0xff] %v10072
        %10269 = vst [vmem:[%s195 + $0x38] sm:$0xff] %v10073
        %10270 = vst [vmem:[%s195 + $0x40] sm:$0xff] %v10074
        %10271 = vst [vmem:[%s195 + $0x48] sm:$0xff] %v10075
        %10272 = vst [vmem:[%s195 + $0x50] sm:$0xff] %v10076
        %10273 = vst [vmem:[%s195 + $0x58] sm:$0xff] %v10077
        %10274 = vst [vmem:[%s195 + $0x60] sm:$0xff] %v10078
        %10275 = vst [vmem:[%s195 + $0x68] sm:$0xff] %v10079
        %10276 = vst [vmem:[%s195 + $0x70] sm:$0xff] %v10080
        %10277 = vst [vmem:[%s195 + $0x78] sm:$0xff] %v10081
        %10278 = vst [vmem:[%s195 + $0x80] sm:$0xff] %v10082
        %10279 = vst [vmem:[%s195 + $0x88] sm:$0xff] %v10083
        %10280 = vst [vmem:[%s195 + $0x90] sm:$0xff] %v10084
        %10281 = vst [vmem:[%s195 + $0x98] sm:$0xff] %v10085
        %10282 = vst [vmem:[%s195 + $0xa0] sm:$0xff] %v10086
        %10283 = vst [vmem:[%s195 + $0xa8] sm:$0xff] %v10087
        %10284 = vst [vmem:[%s195 + $0xb0] sm:$0xff] %v10088
        %10285 = vst [vmem:[%s195 + $0xb8] sm:$0xff] %v10089
        %10286 = vst [vmem:[%s195 + $0xc0] sm:$0xff] %v10090
        %10287 = vst [vmem:[%s195 + $0xc8] sm:$0xff] %v10091
        %10288 = vst [vmem:[%s195 + $0xd0] sm:$0xff] %v10092
        %10289 = vst [vmem:[%s195 + $0xd8] sm:$0xff] %v10093
        %10290 = vst [vmem:[%s195 + $0xe0] sm:$0xff] %v10094
        %10291 = vst [vmem:[%s195 + $0xe8] sm:$0xff] %v10095
        %10292 = vst [vmem:[%s195 + $0xf0] sm:$0xff] %v10096
        %10293 = vst [vmem:[%s195 + $0xf8] sm:$0xff] %v10097
        %10294 = vst [vmem:[%s195 + $0x100] sm:$0xff] %v10098
        %10295 = vst [vmem:[%s195 + $0x108] sm:$0xff] %v10099
        %10296 = vst [vmem:[%s195 + $0x110] sm:$0xff] %v10100
        %10297 = vst [vmem:[%s195 + $0x118] sm:$0xff] %v10101
        %10298 = vst [vmem:[%s195 + $0x120] sm:$0xff] %v10102
        %10299 = vst [vmem:[%s195 + $0x128] sm:$0xff] %v10103
        %10300 = vst [vmem:[%s195 + $0x130] sm:$0xff] %v10104
        %10301 = vst [vmem:[%s195 + $0x138] sm:$0xff] %v10105
        %10302 = vst [vmem:[%s195 + $0x140] sm:$0xff] %v10106
        %10303 = vst [vmem:[%s195 + $0x148] sm:$0xff] %v10107
        %10304 = vst [vmem:[%s195 + $0x150] sm:$0xff] %v10108
        %10305 = vst [vmem:[%s195 + $0x158] sm:$0xff] %v10109
        %10306 = vst [vmem:[%s195 + $0x160] sm:$0xff] %v10110
        %10307 = vst [vmem:[%s195 + $0x168] sm:$0xff] %v10111
        %10308 = vst [vmem:[%s195 + $0x170] sm:$0xff] %v10112
        %10309 = vst [vmem:[%s195 + $0x178] sm:$0xff] %v10113
        %10310 = vst [vmem:[%s195 + $0x180] sm:$0xff] %v10114
        %10311 = vst [vmem:[%s195 + $0x188] sm:$0xff] %v10115
        %10312 = vst [vmem:[%s195 + $0x190] sm:$0xff] %v10116
        %10313 = vst [vmem:[%s195 + $0x198] sm:$0xff] %v10117
        %10314 = vst [vmem:[%s195 + $0x1a0] sm:$0xff] %v10118
        %10315 = vst [vmem:[%s195 + $0x1a8] sm:$0xff] %v10119
        %10316 = vst [vmem:[%s195 + $0x1b0] sm:$0xff] %v10120
        %10317 = vst [vmem:[%s195 + $0x1b8] sm:$0xff] %v10121
        %10318 = vst [vmem:[%s195 + $0x1c0] sm:$0xff] %v10122
        %10319 = vst [vmem:[%s195 + $0x1c8] sm:$0xff] %v10123
        %10320 = vst [vmem:[%s195 + $0x1d0] sm:$0xff] %v10124
        %10321 = vst [vmem:[%s195 + $0x1d8] sm:$0xff] %v10125
        %10322 = vst [vmem:[%s195 + $0x1e0] sm:$0xff] %v10126
        %10323 = vst [vmem:[%s195 + $0x1e8] sm:$0xff] %v10127
        %10324 = vst [vmem:[%s195 + $0x1f0] sm:$0xff] %v10128
        %10325 = vst [vmem:[%s195 + $0x1f8] sm:$0xff] %v10129
        %10326 = vst [vmem:[%s195 + $0x200] sm:$0xff] %v10130
        %10327 = vst [vmem:[%s195 + $0x208] sm:$0xff] %v10131
        %10328 = vst [vmem:[%s195 + $0x210] sm:$0xff] %v10132
        %10329 = vst [vmem:[%s195 + $0x218] sm:$0xff] %v10133
        %10330 = vst [vmem:[%s195 + $0x220] sm:$0xff] %v10134
        %10331 = vst [vmem:[%s195 + $0x228] sm:$0xff] %v10135
        %10332 = vst [vmem:[%s195 + $0x230] sm:$0xff] %v10136
        %10333 = vst [vmem:[%s195 + $0x238] sm:$0xff] %v10137
        %10334 = vst [vmem:[%s195 + $0x240] sm:$0xff] %v10138
        %10335 = vst [vmem:[%s195 + $0x248] sm:$0xff] %v10139
        %10336 = vst [vmem:[%s195 + $0x250] sm:$0xff] %v10140
        %10337 = vst [vmem:[%s195 + $0x258] sm:$0xff] %v10141
        %10338 = vst [vmem:[%s195 + $0x260] sm:$0xff] %v10142
        %10339 = vst [vmem:[%s195 + $0x268] sm:$0xff] %v10143
        %10340 = vst [vmem:[%s195 + $0x270] sm:$0xff] %v10144
        %10341 = vst [vmem:[%s195 + $0x278] sm:$0xff] %v10145
        %10342 = vst [vmem:[%s195 + $0x280] sm:$0xff] %v10146
        %10343 = vst [vmem:[%s195 + $0x288] sm:$0xff] %v10147
        %10344 = vst [vmem:[%s195 + $0x290] sm:$0xff] %v10148
        %10345 = vst [vmem:[%s195 + $0x298] sm:$0xff] %v10149
        %10346 = vst [vmem:[%s195 + $0x2a0] sm:$0xff] %v10150
        %10347 = vst [vmem:[%s195 + $0x2a8] sm:$0xff] %v10151
        %10348 = vst [vmem:[%s195 + $0x2b0] sm:$0xff] %v10152
        %10349 = vst [vmem:[%s195 + $0x2b8] sm:$0xff] %v10153
        %10350 = vst [vmem:[%s195 + $0x2c0] sm:$0xff] %v10154
        %10351 = vst [vmem:[%s195 + $0x2c8] sm:$0xff] %v10155
        %10352 = vst [vmem:[%s195 + $0x2d0] sm:$0xff] %v10156
        %10353 = vst [vmem:[%s195 + $0x2d8] sm:$0xff] %v10157
        %10354 = vst [vmem:[%s195 + $0x2e0] sm:$0xff] %v10158
        %10355 = vst [vmem:[%s195 + $0x2e8] sm:$0xff] %v10159
        %10356 = vst [vmem:[%s195 + $0x2f0] sm:$0xff] %v10160
        %10357 = vst [vmem:[%s195 + $0x2f8] sm:$0xff] %v10161
        %10358 = vst [vmem:[%s195 + $0x300] sm:$0xff] %v10162
        %10359 = vst [vmem:[%s195 + $0x308] sm:$0xff] %v10163
        %10360 = vst [vmem:[%s195 + $0x310] sm:$0xff] %v10164
        %10361 = vst [vmem:[%s195 + $0x318] sm:$0xff] %v10165
        %10362 = vst [vmem:[%s195 + $0x320] sm:$0xff] %v10166
        %10363 = vst [vmem:[%s195 + $0x328] sm:$0xff] %v10167
        %10364 = vst [vmem:[%s195 + $0x330] sm:$0xff] %v10168
        %10365 = vst [vmem:[%s195 + $0x338] sm:$0xff] %v10169
        %10366 = vst [vmem:[%s195 + $0x340] sm:$0xff] %v10170
        %10367 = vst [vmem:[%s195 + $0x348] sm:$0xff] %v10171
        %10368 = vst [vmem:[%s195 + $0x350] sm:$0xff] %v10172
        %10369 = vst [vmem:[%s195 + $0x358] sm:$0xff] %v10173
        %10370 = vst [vmem:[%s195 + $0x360] sm:$0xff] %v10174
        %10371 = vst [vmem:[%s195 + $0x368] sm:$0xff] %v10175
        %10372 = vst [vmem:[%s195 + $0x370] sm:$0xff] %v10176
        %10373 = vst [vmem:[%s195 + $0x378] sm:$0xff] %v10177
        %10374 = vst [vmem:[%s195 + $0x380] sm:$0xff] %v10178
        %10375 = vst [vmem:[%s195 + $0x388] sm:$0xff] %v10179
        %10376 = vst [vmem:[%s195 + $0x390] sm:$0xff] %v10180
        %10377 = vst [vmem:[%s195 + $0x398] sm:$0xff] %v10181
        %10378 = vst [vmem:[%s195 + $0x3a0] sm:$0xff] %v10182
        %10379 = vst [vmem:[%s195 + $0x3a8] sm:$0xff] %v10183
        %10380 = vst [vmem:[%s195 + $0x3b0] sm:$0xff] %v10184
        %10381 = vst [vmem:[%s195 + $0x3b8] sm:$0xff] %v10185
        %10382 = vst [vmem:[%s195 + $0x3c0] sm:$0xff] %v10186
        %10383 = vst [vmem:[%s195 + $0x3c8] sm:$0xff] %v10187
        %10384 = vst [vmem:[%s195 + $0x3d0] sm:$0xff] %v10188
        %10385 = vst [vmem:[%s195 + $0x3d8] sm:$0xff] %v10189
        %10386 = vst [vmem:[%s195 + $0x3e0] sm:$0xff] %v10190
        %10387 = vst [vmem:[%s195 + $0x3e8] sm:$0xff] %v10191
        %10388 = vst [vmem:[%s195 + $0x3f0] sm:$0xff] %v10192
        %10389 = vst [vmem:[%s195 + $0x3f8] sm:$0xff] %v10193
        %10390 = vst [vmem:[%s195 + $0x400] sm:$0xff] %v10194
        %10391 = vst [vmem:[%s195 + $0x408] sm:$0xff] %v10195
        %10392 = vst [vmem:[%s195 + $0x410] sm:$0xff] %v10196
        %10393 = vst [vmem:[%s195 + $0x418] sm:$0xff] %v10197
        %10394 = vst [vmem:[%s195 + $0x420] sm:$0xff] %v10198
        %10395 = vst [vmem:[%s195 + $0x428] sm:$0xff] %v10199
        %10396 = vst [vmem:[%s195 + $0x430] sm:$0xff] %v10200
        %10397 = vst [vmem:[%s195 + $0x438] sm:$0xff] %v10201
        %10398 = vst [vmem:[%s195 + $0x440] sm:$0xff] %v10202
        %10399 = vst [vmem:[%s195 + $0x448] sm:$0xff] %v10203
        %10400 = vst [vmem:[%s195 + $0x450] sm:$0xff] %v10204
        %10401 = vst [vmem:[%s195 + $0x458] sm:$0xff] %v10205
        %10402 = vst [vmem:[%s195 + $0x460] sm:$0xff] %v10206
        %10403 = vst [vmem:[%s195 + $0x468] sm:$0xff] %v10207
        %10404 = vst [vmem:[%s195 + $0x470] sm:$0xff] %v10208
        %10405 = vst [vmem:[%s195 + $0x478] sm:$0xff] %v10209
        %10406 = vst [vmem:[%s195 + $0x480] sm:$0xff] %v10210
        %10407 = vst [vmem:[%s195 + $0x488] sm:$0xff] %v10211
        %10408 = vst [vmem:[%s195 + $0x490] sm:$0xff] %v10212
        %10409 = vst [vmem:[%s195 + $0x498] sm:$0xff] %v10213
        %10410 = vst [vmem:[%s195 + $0x4a0] sm:$0xff] %v10214
        %10411 = vst [vmem:[%s195 + $0x4a8] sm:$0xff] %v10215
        %10412 = vst [vmem:[%s195 + $0x4b0] sm:$0xff] %v10216
        %10413 = vst [vmem:[%s195 + $0x4b8] sm:$0xff] %v10217
        %10414 = vst [vmem:[%s195 + $0x4c0] sm:$0xff] %v10218
        %10415 = vst [vmem:[%s195 + $0x4c8] sm:$0xff] %v10219
        %10416 = vst [vmem:[%s195 + $0x4d0] sm:$0xff] %v10220
        %10417 = vst [vmem:[%s195 + $0x4d8] sm:$0xff] %v10221
        %10418 = vst [vmem:[%s195 + $0x4e0] sm:$0xff] %v10222
        %10419 = vst [vmem:[%s195 + $0x4e8] sm:$0xff] %v10223
        %10420 = vst [vmem:[%s195 + $0x4f0] sm:$0xff] %v10224
        %10421 = vst [vmem:[%s195 + $0x4f8] sm:$0xff] %v10225
        %10422 = vst [vmem:[%s195 + $0x500] sm:$0xff] %v10226
        %10423 = vst [vmem:[%s195 + $0x508] sm:$0xff] %v10227
        %10424 = vst [vmem:[%s195 + $0x510] sm:$0xff] %v10228
        %10425 = vst [vmem:[%s195 + $0x518] sm:$0xff] %v10229
        %10426 = vst [vmem:[%s195 + $0x520] sm:$0xff] %v10230
        %10427 = vst [vmem:[%s195 + $0x528] sm:$0xff] %v10231
        %10428 = vst [vmem:[%s195 + $0x530] sm:$0xff] %v10232
        %10429 = vst [vmem:[%s195 + $0x538] sm:$0xff] %v10233
        %10430 = vst [vmem:[%s195 + $0x540] sm:$0xff] %v10234
        %10431 = vst [vmem:[%s195 + $0x548] sm:$0xff] %v10235
        %10432 = vst [vmem:[%s195 + $0x550] sm:$0xff] %v10236
        %10433 = vst [vmem:[%s195 + $0x558] sm:$0xff] %v10237
        %10434 = vst [vmem:[%s195 + $0x560] sm:$0xff] %v10238
        %10435 = vst [vmem:[%s195 + $0x568] sm:$0xff] %v10239
        %10436 = vst [vmem:[%s195 + $0x570] sm:$0xff] %v10240
        %10437 = vst [vmem:[%s195 + $0x578] sm:$0xff] %v10241
        %10438 = vst [vmem:[%s195 + $0x580] sm:$0xff] %v10242
        %10439 = vst [vmem:[%s195 + $0x588] sm:$0xff] %v10243
        %10440 = vst [vmem:[%s195 + $0x590] sm:$0xff] %v10244
        %10441 = vst [vmem:[%s195 + $0x598] sm:$0xff] %v10245
        %10442 = vst [vmem:[%s195 + $0x5a0] sm:$0xff] %v10246
        %10443 = vst [vmem:[%s195 + $0x5a8] sm:$0xff] %v10247
        %10444 = vst [vmem:[%s195 + $0x5b0] sm:$0xff] %v10248
        %10445 = vst [vmem:[%s195 + $0x5b8] sm:$0xff] %v10249
        %10446 = vst [vmem:[%s195 + $0x5c0] sm:$0xff] %v10250
        %10447 = vst [vmem:[%s195 + $0x5c8] sm:$0xff] %v10251
        %10448 = vst [vmem:[%s195 + $0x5d0] sm:$0xff] %v10252
        %10449 = vst [vmem:[%s195 + $0x5d8] sm:$0xff] %v10253
        %10450 = vst [vmem:[%s195 + $0x5e0] sm:$0xff] %v10254
        %10451 = vst [vmem:[%s195 + $0x5e8] sm:$0xff] %v10255
        %10452 = vst [vmem:[%s195 + $0x5f0] sm:$0xff] %v10256
        %10453 = vst [vmem:[%s195 + $0x5f8] sm:$0xff] %v10257
        %10454 = vst [vmem:[%s195 + $0x600] sm:$0xff] %v10258
        %10455 = vst [vmem:[%s195 + $0x608] sm:$0xff] %v10259
        %10456 = vst [vmem:[%s195 + $0x610] sm:$0xff] %v10260
        %10457 = vst [vmem:[%s195 + $0x618] sm:$0xff] %v10261
      $region52: #{dwconv_bn.1} parent=35 // pred_fallthru
        _
      %s10458 = smul.u32 %s19, %s20
      %s10459 = smul.u32 28, %s10458
      %p10460 = scmp.lt.s32.totalorder %s10459, 55
      %s10461 = scalar_select %p10460, %s10459, 55
      %s10462 = smul.addr %s10461, 7
      %s10463 = smul.addr %s10462, 8
      %s10464 = scalar_lea.vmem %s4, %s10463
      // Predicated region
      $region53: #{dwconv_bn.1} parent=35 // pred_check
        %p10465 = pneg %p131
      $region54: #{dwconv_bn.1} parent=35 // pred_check_branch
        %10467 = sbr.rel (%p10465) target = $region56
      $region55: #{dwconv_bn.1} parent=35 // pred_region
        %s10468 = smul.u32 %s19, %s20
        %s10469 = smul.u32 28, %s10468
      $region56: #{dwconv_bn.1} parent=35 // pred_fallthru
        _
    $region36: #{dwconv_bn.1} parent=5 // pred_fallthru
      _
    %p10470 = scmp.le.s32.totalorder 2, %s10
    // Predicated region
    $region57: #{dwconv_bn.1} parent=5 // pred_check
      %p10471 = pneg %p10470
    $region58: #{dwconv_bn.1} parent=5 // pred_check_branch
      %10473 = sbr.rel (%p10471) target = $region60
    $region59: #{dwconv_bn.1} parent=5 // pred_region
      %s10474 = ssub.s32 %s10, 2
      // Predicated region
      $region61: #{dwconv_bn.1} parent=59 // pred_check
        %p10475 = pneg %p137
      $region62: #{dwconv_bn.1} parent=59 // pred_check_branch
        %10477 = sbr.rel (%p10475) target = $region64
      $region63: #{dwconv_bn.1} parent=59 // pred_region
        %s10478 = smul.u32 %s21, %s22
        %s10479 = smul.u32 28, %s10478
        %p10480 = scmp.lt.s32.totalorder %s10479, 55
        %s10481 = scalar_select %p10480, %s10479, 55
        %s10482 = smul.addr %s10481, 7
        %s10483 = smul.addr %s10482, 8
        %s10484 = scalar_lea.vmem %s4, %s10483
      $region64: #{dwconv_bn.1} parent=59 // pred_fallthru
        _
    $region60: #{dwconv_bn.1} parent=5 // pred_fallthru
      _
  $region6: #{dwconv_bn.1} parent=0 // loop_footer
    %s14 = sadd.s32 1, %s10
  $region7: #{dwconv_bn.1} parent=0 // loop_footer_branch
    %9 = sbr.rel target = $region3
  $region8: #{dwconv_bn.1} parent=0 // loop_exit
    _

</llo_original>
